<compile_context>
chip_gen: v6e
topology: v6e:2x2x1
jax: 0.10.0
libtpu: 0.0.40
codegen_flags: <defaults>
</compile_context>

<pallas_src>
import jax
import jax.numpy as jnp
from jax import lax
from jax.experimental import pallas as pl
from jax.experimental.pallas import tpu as pltpu

CIN, COUT, KH, KW = 3, 16, 3, 3
H, W = 224, 224
HP, WP = 112, 112                  # pooled spatial dims
SPATIAL = HP * WP                  # 12544 = 98 * 128  (lane dense)
FEAT = COUT * SPATIAL              # 200704
HID = 128                          # fc1 output features
NOUT = 4                           # fc2 output features
NPATCH = CIN * 16                  # 48 channels of the 4x4 patch tensor

TS = 1792                          # conv spatial tile (12544 / 7, multiple of 128)
TK = 12544                         # fc1 K tile        (200704 / 16)
NK = FEAT // TK                    # 16 K blocks total
NSPLIT = 2                         # K-loop split across TensorCores (v7x)
NK2 = NK // NSPLIT                 # 8 K blocks per split


# ---------------------------------------------------------------------------
# Kernel 1: fused conv3x3(pad=1) + bias + ReLU + maxpool 2x2 (one MXU matmul)
# ---------------------------------------------------------------------------
def conv_relu_pool_kernel(x_ref, w_ref, b_ref, o_ref):
    # x_ref: (1, 48, TS) f32 patches   w_ref: (64, 48) f32   b_ref: (16, 1) f32
    # o_ref: (1, 16, TS) bf16
    x = x_ref[0]                                            # (48, TS)
    acc = jnp.dot(w_ref[...], x, preferred_element_type=jnp.float32)   # (64, TS)
    # max over the 2x2 pool window: the 4 pool offsets live in 16-row slices
    m = jnp.maximum(jnp.maximum(acc[0:16], acc[16:32]),
                    jnp.maximum(acc[32:48], acc[48:64]))
    # bias + ReLU after the max is valid by monotonicity; emit bf16 features
    o_ref[0] = jnp.maximum(m + b_ref[...], 0.0).astype(o_ref.dtype)


def conv_relu_pool(patches, w64, conv_b):
    n = patches.shape[0]
    nt = SPATIAL // TS
    return pl.pallas_call(
        conv_relu_pool_kernel,
        out_shape=jax.ShapeDtypeStruct((n, COUT, SPATIAL), jnp.bfloat16),
        grid_spec=pltpu.PrefetchScalarGridSpec(
            num_scalar_prefetch=0,
            grid=(n, nt),
            in_specs=[
                pl.BlockSpec((1, NPATCH, TS), lambda i, t: (i, 0, t)),
                pl.BlockSpec((4 * COUT, NPATCH), lambda i, t: (0, 0)),
                pl.BlockSpec((COUT, 1), lambda i, t: (0, 0)),
            ],
            out_specs=pl.BlockSpec((1, COUT, TS), lambda i, t: (i, 0, t)),
        ),
        compiler_params=pltpu.CompilerParams(
            dimension_semantics=("parallel", "parallel"),
            vmem_limit_bytes=32 * 1024 * 1024),
    )(patches, w64, conv_b)


# ---------------------------------------------------------------------------
# Kernel 2: fc1 partial sums — K-tiled bf16 MXU matmul, K loop split 2-way
# ---------------------------------------------------------------------------
def fc1_kernel(feat_ref, w1_ref, o_ref, acc_ref):
    k = pl.program_id(1)

    @pl.when(k == 0)
    def _():
        acc_ref[...] = jnp.zeros_like(acc_ref)

    # (N, TK) bf16 @ (TK, 128) bf16 -> f32 VMEM accumulator
    acc_ref[...] += jnp.dot(feat_ref[...], w1_ref[...],
                            preferred_element_type=jnp.float32)

    @pl.when(k == pl.num_programs(1) - 1)
    def _():
        o_ref[0] = acc_ref[...]


def fc1_partial(feat, w1t):
    n = feat.shape[0]
    return pl.pallas_call(
        fc1_kernel,
        out_shape=jax.ShapeDtypeStruct((NSPLIT, n, HID), jnp.float32),
        grid_spec=pltpu.PrefetchScalarGridSpec(
            num_scalar_prefetch=0,
            grid=(NSPLIT, NK2),
            in_specs=[
                pl.BlockSpec((n, TK), lambda c, k: (0, c * NK2 + k)),
                pl.BlockSpec((TK, HID), lambda c, k: (c * NK2 + k, 0)),
            ],
            out_specs=pl.BlockSpec((1, n, HID), lambda c, k: (c, 0, 0)),
            scratch_shapes=[pltpu.VMEM((n, HID), jnp.float32)],
        ),
        compiler_params=pltpu.CompilerParams(
            # c axis "parallel" -> both v7x TensorCores stream half the weight;
            # K axis stays "arbitrary" (resident-accumulator pattern).
            dimension_semantics=("parallel", "arbitrary"),
            vmem_limit_bytes=32 * 1024 * 1024),
    )(feat, w1t)


# ---------------------------------------------------------------------------
# Kernel 3: tiny epilogue — sum partials + bias + ReLU + fc2
# ---------------------------------------------------------------------------
def head_kernel(part_ref, b1_ref, w2_ref, b2_ref, o_ref):
    h = jnp.sum(part_ref[...], axis=0) + b1_ref[...]        # (N, HID) f32
    h = jnp.maximum(h, 0.0)
    o_ref[...] = jnp.dot(h, w2_ref[...],
                         preferred_element_type=jnp.float32) + b2_ref[...]


def fc_head_epilogue(partials, b1, w2t_pad, b2_pad):
    n = partials.shape[1]
    out = pl.pallas_call(
        head_kernel,
        out_shape=jax.ShapeDtypeStruct((n, HID), jnp.float32),
        grid_spec=pltpu.PrefetchScalarGridSpec(
            num_scalar_prefetch=0,
            grid=(1,),
            in_specs=[
                pl.BlockSpec((NSPLIT, n, HID), lambda i: (0, 0, 0)),
                pl.BlockSpec((1, HID), lambda i: (0, 0)),
                pl.BlockSpec((HID, HID), lambda i: (0, 0)),
                pl.BlockSpec((1, HID), lambda i: (0, 0)),
            ],
            out_specs=pl.BlockSpec((n, HID), lambda i: (0, 0)),
        ),
    )(partials, b1, w2t_pad, b2_pad)
    return out[:, :NOUT]


# ---------------------------------------------------------------------------
# One-time weight layout prep (load time, outside the jitted forward)
# ---------------------------------------------------------------------------
def prepare_params(params):
    w = params["conv_w"]                                    # (16, 3, 3, 3)
    w_list = []
    for p in range(2):
        for q in range(2):
            # Place the 3x3 taps inside the 4x4 patch window at offset (p, q);
            # extracting "patches" of this padded kernel reproduces exactly the
            # channel ordering conv_general_dilated_patches uses for the input,
            # so the in-kernel matmul contraction matches by construction.
            wpad = jnp.pad(w, ((0, 0), (0, 0), (p, 1 - p), (q, 1 - q)))
            wcol = lax.conv_general_dilated_patches(
                wpad, filter_shape=(4, 4), window_strides=(1, 1),
                padding="VALID")                            # (16, 48, 1, 1)
            w_list.append(wcol.reshape(COUT, NPATCH))
    w2t_pad = jnp.zeros((HID, HID), jnp.float32).at[:, :NOUT].set(params["fc2_w"].T)
    b2_pad = jnp.zeros((1, HID), jnp.float32).at[0, :NOUT].set(params["fc2_b"])
    return {
        "conv_w64": jnp.concatenate(w_list, axis=0),        # (64, 48) f32
        "conv_b": params["conv_b"].reshape(COUT, 1),        # (16, 1)
        # fc1 weight: transposed ONCE to lane-dense (FEAT, 128) and cast bf16
        "fc1_wt": jnp.transpose(params["fc1_w"]).astype(jnp.bfloat16),
        "fc1_b": params["fc1_b"].reshape(1, HID),           # f32
        "fc2_wt": w2t_pad,                                  # (128, 128) f32
        "fc2_b": b2_pad,                                    # (1, 128) f32
    }


# ---------------------------------------------------------------------------
# Full forward (layout glue in plain JAX, compute in Pallas)
# ---------------------------------------------------------------------------
def simple_cnn_forward(x, kp):
    n = x.shape[0]
    # Space-to-depth patch extraction in one fused op (data rearrangement glue):
    # patches[n, c, i, j] = x_pad[n, ci, 2i+a, 2j+b] for patch channel c<->(ci,a,b)
    patches = lax.conv_general_dilated_patches(
        x, filter_shape=(4, 4), window_strides=(2, 2),
        padding=((1, 1), (1, 1)))                           # (N, 48, 112, 112)
    patches = patches.reshape(n, NPATCH, SPATIAL)           # lane-dense (N,48,12544)

    pooled = conv_relu_pool(patches, kp["conv_w64"], kp["conv_b"])  # (N,16,12544) bf16
    feat = pooled.reshape(n, FEAT)                          # same order as torch .view
    partials = fc1_partial(feat, kp["fc1_wt"])              # (2, N, 128) f32
    return fc_head_epilogue(partials, kp["fc1_b"], kp["fc2_wt"], kp["fc2_b"])


# ---------------------------------------------------------------------------
# Pure-JAX reference for correctness
# ---------------------------------------------------------------------------
def reference_forward(x, params):
    conv = lax.conv_general_dilated(
        x, params["conv_w"], window_strides=(1, 1), padding=((1, 1), (1, 1)),
        dimension_numbers=("NCHW", "OIHW", "NCHW"))
    conv = jnp.maximum(conv + params["conv_b"][None, :, None, None], 0.0)
    pooled = lax.reduce_window(conv, -jnp.inf, lax.max,
                               (1, 1, 2, 2), (1, 1, 2, 2), "VALID")
    feat = pooled.reshape(x.shape[0], -1)
    h = jnp.maximum(feat @ params["fc1_w"].T + params["fc1_b"], 0.0)
    return h @ params["fc2_w"].T + params["fc2_b"]


if __name__ == "__main__":
    key = jax.random.PRNGKey(0)
    k1, k2, k3, k4, k5, k6, k7 = jax.random.split(key, 7)

    params = {
        "conv_w": jax.random.normal(k1, (COUT, CIN, KH, KW), jnp.float32) * 0.1,
        "conv_b": jax.random.normal(k2, (COUT,), jnp.float32) * 0.1,
        "fc1_w": jax.random.normal(k3, (HID, FEAT), jnp.float32)
                 * (1.0 / jnp.sqrt(FEAT)),
        "fc1_b": jax.random.normal(k4, (HID,), jnp.float32) * 0.1,
        "fc2_w": jax.random.normal(k5, (NOUT, HID), jnp.float32)
                 * (1.0 / jnp.sqrt(HID)),
        "fc2_b": jax.random.normal(k6, (NOUT,), jnp.float32) * 0.1,
    }

    # fc1 expects 16*112*112 features -> spatial input must be 224x224
    x = jax.random.normal(k7, (2, CIN, H, W), jnp.float32)

    kparams = prepare_params(params)                 # one-time weight layout prep
    out = jax.jit(simple_cnn_forward)(x, kparams)
    out = jax.block_until_ready(out)

    ref = jax.block_until_ready(jax.jit(reference_forward)(x, params))
    assert out.shape == (2, NOUT), out.shape
    assert jnp.allclose(out, ref, rtol=1e-2, atol=1e-2), (out, ref)

    print("KERNEL_OK")
</pallas_src>

<mosaic_0001>
module attributes {stable_mosaic.version = 11 : i64} {
  func.func @conv_relu_pool_kernel(%arg0: i32, %arg1: i32, %arg2: memref<1x48x1792xf32, #tpu.memory_space<vmem>>, %arg3: memref<64x48xf32, #tpu.memory_space<vmem>>, %arg4: memref<16x1xf32, #tpu.memory_space<vmem>>, %arg5: memref<1x16x1792xbf16, #tpu.memory_space<vmem>>) attributes {dimension_semantics = [#tpu.dimension_semantics<parallel>, #tpu.dimension_semantics<parallel>], iteration_bounds = array<i64: 2, 7>, scalar_prefetch = 0 : i64, scratch_operands = 0 : i64, tpu.core_type = #tpu.core_type<tc>, window_params = [{transform_indices = @transform_0, window_bounds = array<i64: 1, 48, 1792>}, {pipeline_mode = #tpu.pipeline_mode<synchronous>, transform_indices = @transform_1, window_bounds = array<i64: 64, 48>}, {pipeline_mode = #tpu.pipeline_mode<synchronous>, transform_indices = @transform_2, window_bounds = array<i64: 16, 1>}, {transform_indices = @transform_3, window_bounds = array<i64: 1, 16, 1792>}]} {
    %c0 = arith.constant 0 : index
    %c0_0 = arith.constant 0 : index
    %c0_1 = arith.constant 0 : index
    %0 = vector.load %arg2[%c0, %c0_0, %c0_1] : memref<1x48x1792xf32, #tpu.memory_space<vmem>>, vector<1x48x1792xf32>
    %1 = vector.shape_cast %0 : vector<1x48x1792xf32> to vector<48x1792xf32>
    %c0_2 = arith.constant 0 : index
    %c0_3 = arith.constant 0 : index
    %2 = vector.load %arg3[%c0_2, %c0_3] : memref<64x48xf32, #tpu.memory_space<vmem>>, vector<64x48xf32>
    %cst = arith.constant dense<0.000000e+00> : vector<64x1792xf32>
    %3 = tpu.matmul %2, %1, %cst {dimension_numbers = #tpu.dot_dimension_numbers<[1], [0], [0], [1], [0, 0, 1, 1], [], []>} : vector<64x48xf32>, vector<48x1792xf32>, vector<64x1792xf32> -> vector<64x1792xf32>
    %4 = vector.extract_strided_slice %3 {offsets = [0, 0], sizes = [16, 1792], strides = [1, 1]} : vector<64x1792xf32> to vector<16x1792xf32>
    %5 = vector.extract_strided_slice %3 {offsets = [16, 0], sizes = [16, 1792], strides = [1, 1]} : vector<64x1792xf32> to vector<16x1792xf32>
    %6 = arith.maximumf %4, %5 : vector<16x1792xf32>
    %7 = vector.extract_strided_slice %3 {offsets = [32, 0], sizes = [16, 1792], strides = [1, 1]} : vector<64x1792xf32> to vector<16x1792xf32>
    %8 = vector.extract_strided_slice %3 {offsets = [48, 0], sizes = [16, 1792], strides = [1, 1]} : vector<64x1792xf32> to vector<16x1792xf32>
    %9 = arith.maximumf %7, %8 : vector<16x1792xf32>
    %10 = arith.maximumf %6, %9 : vector<16x1792xf32>
    %c0_4 = arith.constant 0 : index
    %c0_5 = arith.constant 0 : index
    %11 = vector.load %arg4[%c0_4, %c0_5] : memref<16x1xf32, #tpu.memory_space<vmem>>, vector<16x1xf32>
    %12 = vector.broadcast %11 : vector<16x1xf32> to vector<16x1792xf32>
    %13 = arith.addf %10, %12 : vector<16x1792xf32>
    %cst_6 = arith.constant 0.000000e+00 : f32
    %14 = vector.broadcast %cst_6 : f32 to vector<16x1792xf32>
    %15 = arith.maximumf %13, %14 : vector<16x1792xf32>
    %16 = arith.truncf %15 : vector<16x1792xf32> to vector<16x1792xbf16>
    %c0_7 = arith.constant 0 : index
    %c0_8 = arith.constant 0 : index
    %c0_9 = arith.constant 0 : index
    %17 = vector.load %arg5[%c0_7, %c0_8, %c0_9] : memref<1x16x1792xbf16, #tpu.memory_space<vmem>>, vector<1x16x1792xbf16>
    %18 = vector.shape_cast %17 : vector<1x16x1792xbf16> to vector<16x1792xbf16>
    %19 = vector.shape_cast %16 : vector<16x1792xbf16> to vector<1x16x1792xbf16>
    tpu.vector_store %arg5[%c0_7, %c0_8, %c0_9], %19 {strides = array<i32>} : memref<1x16x1792xbf16, #tpu.memory_space<vmem>>, vector<1x16x1792xbf16>,
    return
  }
  func.func @transform_0(%arg0: i32, %arg1: i32) -> (i32, i32, i32) {
    %c0_i32 = arith.constant 0 : i32
    %c0_i32_0 = arith.constant 0 : i32
    return %arg0, %c0_i32, %arg1 : i32, i32, i32
  }
  func.func @transform_1(%arg0: i32, %arg1: i32) -> (i32, i32) {
    %c0_i32 = arith.constant 0 : i32
    %c0_i32_0 = arith.constant 0 : i32
    %c0_i32_1 = arith.constant 0 : i32
    return %c0_i32, %c0_i32_0 : i32, i32
  }
  func.func @transform_2(%arg0: i32, %arg1: i32) -> (i32, i32) {
    %c0_i32 = arith.constant 0 : i32
    %c0_i32_0 = arith.constant 0 : i32
    %c0_i32_1 = arith.constant 0 : i32
    return %c0_i32, %c0_i32_0 : i32, i32
  }
  func.func @transform_3(%arg0: i32, %arg1: i32) -> (i32, i32, i32) {
    %c0_i32 = arith.constant 0 : i32
    %c0_i32_0 = arith.constant 0 : i32
    return %arg0, %c0_i32, %arg1 : i32, i32, i32
  }
}

module attributes {stable_mosaic.version = 11 : i64} {
  func.func @head_kernel(%arg0: i32, %arg1: memref<2x2x128xf32, #tpu.memory_space<vmem>>, %arg2: memref<1x128xf32, #tpu.memory_space<vmem>>, %arg3: memref<128x128xf32, #tpu.memory_space<vmem>>, %arg4: memref<1x128xf32, #tpu.memory_space<vmem>>, %arg5: memref<2x128xf32, #tpu.memory_space<vmem>>) attributes {dimension_semantics = [#tpu.dimension_semantics<arbitrary>], iteration_bounds = array<i64: 1>, scalar_prefetch = 0 : i64, scratch_operands = 0 : i64, tpu.core_type = #tpu.core_type<tc>, window_params = [{pipeline_mode = #tpu.pipeline_mode<synchronous>, transform_indices = @transform_0, window_bounds = array<i64: 2, 2, 128>}, {pipeline_mode = #tpu.pipeline_mode<synchronous>, transform_indices = @transform_1, window_bounds = array<i64: 1, 128>}, {pipeline_mode = #tpu.pipeline_mode<synchronous>, transform_indices = @transform_2, window_bounds = array<i64: 128, 128>}, {pipeline_mode = #tpu.pipeline_mode<synchronous>, transform_indices = @transform_3, window_bounds = array<i64: 1, 128>}, {pipeline_mode = #tpu.pipeline_mode<synchronous>, transform_indices = @transform_4, window_bounds = array<i64: 2, 128>}]} {
    %c0 = arith.constant 0 : index
    %c0_0 = arith.constant 0 : index
    %c0_1 = arith.constant 0 : index
    %0 = vector.load %arg1[%c0, %c0_0, %c0_1] : memref<2x2x128xf32, #tpu.memory_space<vmem>>, vector<2x2x128xf32>
    %cst = arith.constant dense<0.000000e+00> : vector<2x128xf32>
    %1 = vector.multi_reduction <add>, %0, %cst [0] : vector<2x2x128xf32> to vector<2x128xf32>
    %c0_2 = arith.constant 0 : index
    %c0_3 = arith.constant 0 : index
    %2 = vector.load %arg2[%c0_2, %c0_3] : memref<1x128xf32, #tpu.memory_space<vmem>>, vector<1x128xf32>
    %3 = vector.broadcast %2 : vector<1x128xf32> to vector<2x128xf32>
    %4 = arith.addf %1, %3 : vector<2x128xf32>
    %cst_4 = arith.constant 0.000000e+00 : f32
    %5 = vector.broadcast %cst_4 : f32 to vector<2x128xf32>
    %6 = arith.maximumf %4, %5 : vector<2x128xf32>
    %c0_5 = arith.constant 0 : index
    %c0_6 = arith.constant 0 : index
    %7 = vector.load %arg3[%c0_5, %c0_6] : memref<128x128xf32, #tpu.memory_space<vmem>>, vector<128x128xf32>
    %cst_7 = arith.constant dense<0.000000e+00> : vector<2x128xf32>
    %8 = tpu.matmul %6, %7, %cst_7 {dimension_numbers = #tpu.dot_dimension_numbers<[1], [0], [0], [1], [0, 0, 1, 1], [], []>} : vector<2x128xf32>, vector<128x128xf32>, vector<2x128xf32> -> vector<2x128xf32>
    %c0_8 = arith.constant 0 : index
    %c0_9 = arith.constant 0 : index
    %9 = vector.load %arg4[%c0_8, %c0_9] : memref<1x128xf32, #tpu.memory_space<vmem>>, vector<1x128xf32>
    %10 = vector.broadcast %9 : vector<1x128xf32> to vector<2x128xf32>
    %11 = arith.addf %8, %10 : vector<2x128xf32>
    %c0_10 = arith.constant 0 : index
    %c0_11 = arith.constant 0 : index
    %12 = vector.load %arg5[%c0_10, %c0_11] : memref<2x128xf32, #tpu.memory_space<vmem>>, vector<2x128xf32>
    tpu.vector_store %arg5[%c0_10, %c0_11], %11 {strides = array<i32>} : memref<2x128xf32, #tpu.memory_space<vmem>>, vector<2x128xf32>,
    return
  }
  func.func @transform_0(%arg0: i32) -> (i32, i32, i32) {
    %c0_i32 = arith.constant 0 : i32
    %c0_i32_0 = arith.constant 0 : i32
    %c0_i32_1 = arith.constant 0 : i32
    %c0_i32_2 = arith.constant 0 : i32
    return %c0_i32, %c0_i32_0, %c0_i32_1 : i32, i32, i32
  }
  func.func @transform_1(%arg0: i32) -> (i32, i32) {
    %c0_i32 = arith.constant 0 : i32
    %c0_i32_0 = arith.constant 0 : i32
    %c0_i32_1 = arith.constant 0 : i32
    return %c0_i32, %c0_i32_0 : i32, i32
  }
  func.func @transform_2(%arg0: i32) -> (i32, i32) {
    %c0_i32 = arith.constant 0 : i32
    %c0_i32_0 = arith.constant 0 : i32
    %c0_i32_1 = arith.constant 0 : i32
    return %c0_i32, %c0_i32_0 : i32, i32
  }
  func.func @transform_3(%arg0: i32) -> (i32, i32) {
    %c0_i32 = arith.constant 0 : i32
    %c0_i32_0 = arith.constant 0 : i32
    %c0_i32_1 = arith.constant 0 : i32
    return %c0_i32, %c0_i32_0 : i32, i32
  }
  func.func @transform_4(%arg0: i32) -> (i32, i32) {
    %c0_i32 = arith.constant 0 : i32
    %c0_i32_0 = arith.constant 0 : i32
    %c0_i32_1 = arith.constant 0 : i32
    return %c0_i32, %c0_i32_0 : i32, i32
  }
}

module attributes {stable_mosaic.version = 11 : i64} {
  func.func @fc1_kernel(%arg0: i32, %arg1: i32, %arg2: memref<2x12544xbf16, #tpu.memory_space<vmem>>, %arg3: memref<12544x128xbf16, #tpu.memory_space<vmem>>, %arg4: memref<1x2x128xf32, #tpu.memory_space<vmem>>, %arg5: memref<2x128xf32, #tpu.memory_space<vmem>>) attributes {dimension_semantics = [#tpu.dimension_semantics<parallel>, #tpu.dimension_semantics<arbitrary>], iteration_bounds = array<i64: 2, 8>, scalar_prefetch = 0 : i64, scratch_operands = 1 : i64, tpu.core_type = #tpu.core_type<tc>, window_params = [{transform_indices = @transform_0, window_bounds = array<i64: 2, 12544>}, {transform_indices = @transform_1, window_bounds = array<i64: 12544, 128>}, {transform_indices = @transform_2, window_bounds = array<i64: 1, 2, 128>}]} {
    %c0_i32 = arith.constant 0 : i32
    %0 = arith.cmpi eq, %arg1, %c0_i32 : i32
    %1 = arith.extui %0 : i1 to i32
    %c0_i32_0 = arith.constant 0 : i32
    %2 = arith.cmpi ne, %1, %c0_i32_0 : i32
    scf.if %2 {
      %cst_9 = arith.constant 0.000000e+00 : f32
      %12 = vector.broadcast %cst_9 : f32 to vector<2x128xf32>
      %c0_10 = arith.constant 0 : index
      %c0_11 = arith.constant 0 : index
      %13 = vector.load %arg5[%c0_10, %c0_11] : memref<2x128xf32, #tpu.memory_space<vmem>>, vector<2x128xf32>
      tpu.vector_store %arg5[%c0_10, %c0_11], %12 {strides = array<i32>} : memref<2x128xf32, #tpu.memory_space<vmem>>, vector<2x128xf32>,
    } else {
    }
    %c0 = arith.constant 0 : index
    %c0_1 = arith.constant 0 : index
    %3 = vector.load %arg5[%c0, %c0_1] : memref<2x128xf32, #tpu.memory_space<vmem>>, vector<2x128xf32>
    %c0_2 = arith.constant 0 : index
    %c0_3 = arith.constant 0 : index
    %4 = vector.load %arg2[%c0_2, %c0_3] : memref<2x12544xbf16, #tpu.memory_space<vmem>>, vector<2x12544xbf16>
    %c0_4 = arith.constant 0 : index
    %c0_5 = arith.constant 0 : index
    %5 = vector.load %arg3[%c0_4, %c0_5] : memref<12544x128xbf16, #tpu.memory_space<vmem>>, vector<12544x128xbf16>
    %cst = arith.constant dense<0.000000e+00> : vector<2x128xf32>
    %6 = tpu.matmul %4, %5, %cst {dimension_numbers = #tpu.dot_dimension_numbers<[1], [0], [0], [1], [0, 0, 1, 1], [], []>} : vector<2x12544xbf16>, vector<12544x128xbf16>, vector<2x128xf32> -> vector<2x128xf32>
    %7 = arith.addf %3, %6 : vector<2x128xf32>
    %c0_6 = arith.constant 0 : index
    %c0_7 = arith.constant 0 : index
    %8 = vector.load %arg5[%c0_6, %c0_7] : memref<2x128xf32, #tpu.memory_space<vmem>>, vector<2x128xf32>
    tpu.vector_store %arg5[%c0_6, %c0_7], %7 {strides = array<i32>} : memref<2x128xf32, #tpu.memory_space<vmem>>, vector<2x128xf32>,
    %c7_i32 = arith.constant 7 : i32
    %9 = arith.cmpi eq, %arg1, %c7_i32 : i32
    %10 = arith.extui %9 : i1 to i32
    %c0_i32_8 = arith.constant 0 : i32
    %11 = arith.cmpi ne, %10, %c0_i32_8 : i32
    scf.if %11 {
      %c0_9 = arith.constant 0 : index
      %c0_10 = arith.constant 0 : index
      %12 = vector.load %arg5[%c0_9, %c0_10] : memref<2x128xf32, #tpu.memory_space<vmem>>, vector<2x128xf32>
      %c0_11 = arith.constant 0 : index
      %c0_12 = arith.constant 0 : index
      %c0_13 = arith.constant 0 : index
      %13 = vector.load %arg4[%c0_11, %c0_12, %c0_13] : memref<1x2x128xf32, #tpu.memory_space<vmem>>, vector<1x2x128xf32>
      %14 = vector.shape_cast %13 : vector<1x2x128xf32> to vector<2x128xf32>
      %15 = vector.shape_cast %12 : vector<2x128xf32> to vector<1x2x128xf32>
      tpu.vector_store %arg4[%c0_11, %c0_12, %c0_13], %15 {strides = array<i32>} : memref<1x2x128xf32, #tpu.memory_space<vmem>>, vector<1x2x128xf32>,
    } else {
    }
    return
  }
  func.func @transform_0(%arg0: i32, %arg1: i32) -> (i32, i32) {
    %c8_i32 = arith.constant 8 : i32
    %0 = arith.muli %arg0, %c8_i32 : i32
    %1 = arith.addi %0, %arg1 : i32
    %c0_i32 = arith.constant 0 : i32
    %c0_i32_0 = arith.constant 0 : i32
    return %c0_i32, %1 : i32, i32
  }
  func.func @transform_1(%arg0: i32, %arg1: i32) -> (i32, i32) {
    %c8_i32 = arith.constant 8 : i32
    %0 = arith.muli %arg0, %c8_i32 : i32
    %1 = arith.addi %0, %arg1 : i32
    %c0_i32 = arith.constant 0 : i32
    %c0_i32_0 = arith.constant 0 : i32
    return %1, %c0_i32 : i32, i32
  }
  func.func @transform_2(%arg0: i32, %arg1: i32) -> (i32, i32, i32) {
    %c0_i32 = arith.constant 0 : i32
    %c0_i32_0 = arith.constant 0 : i32
    %c0_i32_1 = arith.constant 0 : i32
    return %arg0, %c0_i32, %c0_i32_0 : i32, i32, i32
  }
}

</mosaic_0001>

<llo_original>
// kernel: simple_cnn_forward.3
$region0: #{simple_cnn_forward.3}
  #allocation0 [shape = 'u32[]', space=smem, size = 0x4, offset = 0x4, fixed_abs, tag = 'smem constant byte address 0x4 - core index']
  #allocation1 [shape = 'u32[144,128]{1,0:T(1,128)}', space=vmem, size = 0x12000, scoped, tag = 'internal scratch']
  %s0 = inlined_call_operand.vmem [shape: f32[2,48,12544], index: 0, kind: input, shape index: {}]
  %s1 = inlined_call_operand.vmem [shape: f32[64,48], index: 1, kind: input, shape index: {}]
  %s2 = inlined_call_operand.vmem [shape: f32[16,1], index: 2, kind: input, shape index: {}]
  %s3 = inlined_call_operand.vmem [shape: bf16[2,16,12544], index: 3, kind: output, shape index: {}]
  %s4 = sld [smem:[#allocation0]]
  $region87: #{simple_cnn_forward.3} parent=0
    _
  %s6 = ssub.s32 1, %s4
  %s7 = scalar_select 0, %s6, %s4
  $region1: #{simple_cnn_forward.3} parent=0
    #allocation2 [shape = 'u8[688128]{0}', space=vmem, size = 0xa8000, scoped, tag = 'input window, operand 0']
    #allocation3 [shape = 'u8[114688]{0}', space=vmem, size = 0x1c000, scoped, tag = 'output window, operand 0']
    loop: start=0, step=1, limit=16
    $region2: #{simple_cnn_forward.3} parent=1 // loop_pre_header
      _
    $region3: #{simple_cnn_forward.3} parent=1 // loop_header
      %s9 = sphi 0, %s13
      %p10 = scmp.ge.s32.totalorder %s9, 16
      %s16 = sphi 0, %s28
      %s17 = sphi 0, %s24
      %s18 = sphi 0, %s16
      %s19 = sphi 0, %s17
      %s20 = sphi 0, %s18
      %s21 = sphi 0, %s19
      %s33 = sphi 0, %s35
      %s36 = sphi 0, %s33
      %s37 = sphi 0, %s36
      %s53 = sphi 0, %s37
      %s57 = sphi 0, %s57
      %s59 = sphi 0, %s57
      %s60 = sphi 0, %s59
      %s74 = sphi 0, %s60
      %s78 = sphi 0, %s78
      %s80 = sphi 0, %s78
      %s81 = sphi 0, %s80
      %s95 = sphi 0, %s81
      %s103 = sphi 0, %s105
      %s106 = sphi 0, %s103
      %s107 = sphi 0, %s106
      %s123 = sphi 0, %s107
    $region4: #{simple_cnn_forward.3} parent=1 // loop_header_branch
      %12 = sbr.rel (%p10) target = $region8
    $region5: #{simple_cnn_forward.3} parent=1 // loop_body
      %s14 = ssub.s32 %s9, 1
      %s15 = ssub.s32 %s9, 2
      %s22 = sadd.s32 1, %s17
      %p23 = scmp.ge.s32.totalorder %s22, 7
      %s24 = scalar_select %p23, 0, %s22
      %s25 = sadd.s32 1, %s16
      %s26 = scalar_select %p23, %s25, %s16
      %p27 = scmp.ge.s32.totalorder %s26, 2
      %s28 = scalar_select %p27, 0, %s26
      %s29 = ssub.s32 %s16, %s28
      %s30 = ssub.s32 %s17, %s24
      %s31 = sor.u32 %s29, %s30
      %p32 = scmp.eq.s32.totalorder %s31, 0
      %s34 = sadd.s32 %s33, 1
      %s35 = scalar_select %p32, %s33, %s34
      %p38 = pneg %p32
      %p39 = scmp.eq.s32.totalorder %s9, 13
      %p40 = por %p38, %p39
      %p41 = scmp.ne.s32.totalorder %s33, %s36
      %p42 = scmp.eq.s32.totalorder %s9, 0
      %p43 = por %p41, %p42
      %p44 = scmp.ne.s32.totalorder %s33, %s36
      %p45 = scmp.eq.s32.totalorder %s14, 13
      %p46 = por %p44, %p45
      %p47 = scmp.ne.s32.totalorder %s36, %s37
      %p48 = scmp.eq.s32.totalorder %s14, 0
      %p49 = por %p47, %p48
      %p50 = scmp.ne.s32.totalorder %s36, %s37
      %p51 = scmp.eq.s32.totalorder %s15, 13
      %p52 = por %p50, %p51
      %p54 = scmp.ne.s32.totalorder %s37, %s53
      %p55 = scmp.eq.s32.totalorder %s15, 0
      %p56 = por %p54, %p55
      %s58 = sadd.s32 %s57, 1
      %p61 = scmp.eq.s32.totalorder %s9, 13
      %p62 = scmp.ne.s32.totalorder %s57, %s59
      %p63 = scmp.eq.s32.totalorder %s9, 0
      %p64 = por %p62, %p63
      %p65 = scmp.ne.s32.totalorder %s57, %s59
      %p66 = scmp.eq.s32.totalorder %s14, 13
      %p67 = por %p65, %p66
      %p68 = scmp.ne.s32.totalorder %s59, %s60
      %p69 = scmp.eq.s32.totalorder %s14, 0
      %p70 = por %p68, %p69
      %p71 = scmp.ne.s32.totalorder %s59, %s60
      %p72 = scmp.eq.s32.totalorder %s15, 13
      %p73 = por %p71, %p72
      %p75 = scmp.ne.s32.totalorder %s60, %s74
      %p76 = scmp.eq.s32.totalorder %s15, 0
      %p77 = por %p75, %p76
      %s79 = sadd.s32 %s78, 1
      %p82 = scmp.eq.s32.totalorder %s9, 13
      %p83 = scmp.ne.s32.totalorder %s78, %s80
      %p84 = scmp.eq.s32.totalorder %s9, 0
      %p85 = por %p83, %p84
      %p86 = scmp.ne.s32.totalorder %s78, %s80
      %p87 = scmp.eq.s32.totalorder %s14, 13
      %p88 = por %p86, %p87
      %p89 = scmp.ne.s32.totalorder %s80, %s81
      %p90 = scmp.eq.s32.totalorder %s14, 0
      %p91 = por %p89, %p90
      %p92 = scmp.ne.s32.totalorder %s80, %s81
      %p93 = scmp.eq.s32.totalorder %s15, 13
      %p94 = por %p92, %p93
      %p96 = scmp.ne.s32.totalorder %s81, %s95
      %p97 = scmp.eq.s32.totalorder %s15, 0
      %p98 = por %p96, %p97
      %s99 = ssub.s32 %s16, %s28
      %s100 = ssub.s32 %s17, %s24
      %s101 = sor.u32 %s99, %s100
      %p102 = scmp.eq.s32.totalorder %s101, 0
      %s104 = sadd.s32 %s103, 1
      %s105 = scalar_select %p102, %s103, %s104
      %p108 = pneg %p102
      %p109 = scmp.eq.s32.totalorder %s9, 13
      %p110 = por %p108, %p109
      %p111 = scmp.ne.s32.totalorder %s103, %s106
      %p112 = scmp.eq.s32.totalorder %s9, 0
      %p113 = por %p111, %p112
      %p114 = scmp.ne.s32.totalorder %s103, %s106
      %p115 = scmp.eq.s32.totalorder %s14, 13
      %p116 = por %p114, %p115
      %p117 = scmp.ne.s32.totalorder %s106, %s107
      %p118 = scmp.eq.s32.totalorder %s14, 0
      %p119 = por %p117, %p118
      %p120 = scmp.ne.s32.totalorder %s106, %s107
      %p121 = scmp.eq.s32.totalorder %s15, 13
      %p122 = por %p120, %p121
      %p124 = scmp.ne.s32.totalorder %s107, %s123
      %p125 = scmp.eq.s32.totalorder %s15, 0
      %p126 = por %p124, %p125
      %p127 = scmp.le.s32.totalorder 1, %s9
      %p128 = scmp.lt.s32.totalorder %s9, 15
      %p129 = pnand %p127, %p128
      %p130 = pneg %p129
      // Predicated region
      $region9: #{simple_cnn_forward.3} parent=5 // pred_check
        _
      $region10: #{simple_cnn_forward.3} parent=5 // pred_check_branch
        %132 = sbr.rel (%p129) target = $region12
      $region11: #{simple_cnn_forward.3} parent=5 // pred_region
        %s133 = ssub.s32 %s9, 1
        // Predicated region
        $region13: #{simple_cnn_forward.3} parent=11 // pred_check
          %p134 = pneg %p70
        $region14: #{simple_cnn_forward.3} parent=11 // pred_check_branch
          %136 = sbr.rel (%p134) target = $region16
        $region15: #{simple_cnn_forward.3} parent=11 // pred_region
          _
        $region16: #{simple_cnn_forward.3} parent=11 // pred_fallthru
          _
        // Predicated region
        $region17: #{simple_cnn_forward.3} parent=11 // pred_check
          %p137 = pneg %p91
        $region18: #{simple_cnn_forward.3} parent=11 // pred_check_branch
          %139 = sbr.rel (%p137) target = $region20
        $region19: #{simple_cnn_forward.3} parent=11 // pred_region
          _
        $region20: #{simple_cnn_forward.3} parent=11 // pred_fallthru
          _
      $region12: #{simple_cnn_forward.3} parent=5 // pred_fallthru
        _
      %p140 = scmp.lt.s32.totalorder %s9, 14
      // Predicated region
      $region21: #{simple_cnn_forward.3} parent=5 // pred_check
        %p141 = pneg %p140
      $region22: #{simple_cnn_forward.3} parent=5 // pred_check_branch
        %143 = sbr.rel (%p141) target = $region24
      $region23: #{simple_cnn_forward.3} parent=5 // pred_region
        // Predicated region
        $region25: #{simple_cnn_forward.3} parent=23 // pred_check
          %p144 = pneg %p43
        $region26: #{simple_cnn_forward.3} parent=23 // pred_check_branch
          %146 = sbr.rel (%p144) target = $region28
        $region27: #{simple_cnn_forward.3} parent=23 // pred_region
          %s147 = sand.u32 %s33, 1
          %s148 = sand.u32 %s33, 1
          %s149 = smul.addr %s148, 672
          %s150 = scalar_lea.vmem [#allocation2], %s149
          %s151 = smul.u32 14, %s17
          %s152 = smul.addr %s16, 588
          %s153 = sadd.s32 %s151, %s152
          %s154 = smul.addr %s153, 8
          %s155 = scalar_lea.vmem %s0, %s154
          // Predicated region
          $region29: #{simple_cnn_forward.3} parent=27 // pred_check
            _
          $region30: #{simple_cnn_forward.3} parent=27 // pred_check_branch
            %157 = sbr.rel (0) target = $region32
          $region31: #{simple_cnn_forward.3} parent=27 // pred_region
            // Predicated region
            $region33: #{simple_cnn_forward.3} parent=31 // pred_check
              _
            $region34: #{simple_cnn_forward.3} parent=31 // pred_check_branch
              %159 = sbr.rel (0) target = $region36
            $region35: #{simple_cnn_forward.3} parent=31 // pred_region
              loop: start=0, step=1, limit=1
              $region37: #{simple_cnn_forward.3} parent=35 // loop_pre_header
                _
              $region38: #{simple_cnn_forward.3} parent=35 // loop_header
                %s161 = sphi 0, %s165
                %p162 = scmp.ge.s32.totalorder %s161, 1
                %s166 = sphi %s155, %s155
                %s167 = sphi %s150, %s150
              $region39: #{simple_cnn_forward.3} parent=35 // loop_header_branch
                %164 = sbr.rel (%p162) target = $region43
              $region40: #{simple_cnn_forward.3} parent=35 // loop_body
                %v168 = vld [vmem:[%s166] sm:$0xff]
                %169 = vst [vmem:[%s167] sm:$0xff] %v168
                %v170 = vld [vmem:[%s166 + $0x8] sm:$0xff]
                %171 = vst [vmem:[%s167 + $0x8] sm:$0xff] %v170
                %v172 = vld [vmem:[%s166 + $0x10] sm:$0xff]
                %173 = vst [vmem:[%s167 + $0x10] sm:$0xff] %v172
                %v174 = vld [vmem:[%s166 + $0x18] sm:$0xff]
                %175 = vst [vmem:[%s167 + $0x18] sm:$0xff] %v174
                %v176 = vld [vmem:[%s166 + $0x20] sm:$0xff]
                %177 = vst [vmem:[%s167 + $0x20] sm:$0xff] %v176
                %v178 = vld [vmem:[%s166 + $0x28] sm:$0xff]
                %179 = vst [vmem:[%s167 + $0x28] sm:$0xff] %v178
                %v180 = vld [vmem:[%s166 + $0x30] sm:$0xff]
                %181 = vst [vmem:[%s167 + $0x30] sm:$0xff] %v180
                %v182 = vld [vmem:[%s166 + $0x38] sm:$0xff]
                %183 = vst [vmem:[%s167 + $0x38] sm:$0xff] %v182
                %v184 = vld [vmem:[%s166 + $0x40] sm:$0xff]
                %185 = vst [vmem:[%s167 + $0x40] sm:$0xff] %v184
                %v186 = vld [vmem:[%s166 + $0x48] sm:$0xff]
                %187 = vst [vmem:[%s167 + $0x48] sm:$0xff] %v186
                %v188 = vld [vmem:[%s166 + $0x50] sm:$0xff]
                %189 = vst [vmem:[%s167 + $0x50] sm:$0xff] %v188
                %v190 = vld [vmem:[%s166 + $0x58] sm:$0xff]
                %191 = vst [vmem:[%s167 + $0x58] sm:$0xff] %v190
                %v192 = vld [vmem:[%s166 + $0x60] sm:$0xff]
                %193 = vst [vmem:[%s167 + $0x60] sm:$0xff] %v192
                %v194 = vld [vmem:[%s166 + $0x68] sm:$0xff]
                %195 = vst [vmem:[%s167 + $0x68] sm:$0xff] %v194
                %v196 = vld [vmem:[%s166 + $0x310] sm:$0xff]
                %197 = vst [vmem:[%s167 + $0x70] sm:$0xff] %v196
                %v198 = vld [vmem:[%s166 + $0x318] sm:$0xff]
                %199 = vst [vmem:[%s167 + $0x78] sm:$0xff] %v198
                %v200 = vld [vmem:[%s166 + $0x320] sm:$0xff]
                %201 = vst [vmem:[%s167 + $0x80] sm:$0xff] %v200
                %v202 = vld [vmem:[%s166 + $0x328] sm:$0xff]
                %203 = vst [vmem:[%s167 + $0x88] sm:$0xff] %v202
                %v204 = vld [vmem:[%s166 + $0x330] sm:$0xff]
                %205 = vst [vmem:[%s167 + $0x90] sm:$0xff] %v204
                %v206 = vld [vmem:[%s166 + $0x338] sm:$0xff]
                %207 = vst [vmem:[%s167 + $0x98] sm:$0xff] %v206
                %v208 = vld [vmem:[%s166 + $0x340] sm:$0xff]
                %209 = vst [vmem:[%s167 + $0xa0] sm:$0xff] %v208
                %v210 = vld [vmem:[%s166 + $0x348] sm:$0xff]
                %211 = vst [vmem:[%s167 + $0xa8] sm:$0xff] %v210
                %v212 = vld [vmem:[%s166 + $0x350] sm:$0xff]
                %213 = vst [vmem:[%s167 + $0xb0] sm:$0xff] %v212
                %v214 = vld [vmem:[%s166 + $0x358] sm:$0xff]
                %215 = vst [vmem:[%s167 + $0xb8] sm:$0xff] %v214
                %v216 = vld [vmem:[%s166 + $0x360] sm:$0xff]
                %217 = vst [vmem:[%s167 + $0xc0] sm:$0xff] %v216
                %v218 = vld [vmem:[%s166 + $0x368] sm:$0xff]
                %219 = vst [vmem:[%s167 + $0xc8] sm:$0xff] %v218
                %v220 = vld [vmem:[%s166 + $0x370] sm:$0xff]
                %221 = vst [vmem:[%s167 + $0xd0] sm:$0xff] %v220
                %v222 = vld [vmem:[%s166 + $0x378] sm:$0xff]
                %223 = vst [vmem:[%s167 + $0xd8] sm:$0xff] %v222
                %v224 = vld [vmem:[%s166 + $0x620] sm:$0xff]
                %225 = vst [vmem:[%s167 + $0xe0] sm:$0xff] %v224
                %v226 = vld [vmem:[%s166 + $0x628] sm:$0xff]
                %227 = vst [vmem:[%s167 + $0xe8] sm:$0xff] %v226
                %v228 = vld [vmem:[%s166 + $0x630] sm:$0xff]
                %229 = vst [vmem:[%s167 + $0xf0] sm:$0xff] %v228
                %v230 = vld [vmem:[%s166 + $0x638] sm:$0xff]
                %231 = vst [vmem:[%s167 + $0xf8] sm:$0xff] %v230
                %v232 = vld [vmem:[%s166 + $0x640] sm:$0xff]
                %233 = vst [vmem:[%s167 + $0x100] sm:$0xff] %v232
                %v234 = vld [vmem:[%s166 + $0x648] sm:$0xff]
                %235 = vst [vmem:[%s167 + $0x108] sm:$0xff] %v234
                %v236 = vld [vmem:[%s166 + $0x650] sm:$0xff]
                %237 = vst [vmem:[%s167 + $0x110] sm:$0xff] %v236
                %v238 = vld [vmem:[%s166 + $0x658] sm:$0xff]
                %239 = vst [vmem:[%s167 + $0x118] sm:$0xff] %v238
                %v240 = vld [vmem:[%s166 + $0x660] sm:$0xff]
                %241 = vst [vmem:[%s167 + $0x120] sm:$0xff] %v240
                %v242 = vld [vmem:[%s166 + $0x668] sm:$0xff]
                %243 = vst [vmem:[%s167 + $0x128] sm:$0xff] %v242
                %v244 = vld [vmem:[%s166 + $0x670] sm:$0xff]
                %245 = vst [vmem:[%s167 + $0x130] sm:$0xff] %v244
                %v246 = vld [vmem:[%s166 + $0x678] sm:$0xff]
                %247 = vst [vmem:[%s167 + $0x138] sm:$0xff] %v246
                %v248 = vld [vmem:[%s166 + $0x680] sm:$0xff]
                %249 = vst [vmem:[%s167 + $0x140] sm:$0xff] %v248
                %v250 = vld [vmem:[%s166 + $0x688] sm:$0xff]
                %251 = vst [vmem:[%s167 + $0x148] sm:$0xff] %v250
                %v252 = vld [vmem:[%s166 + $0x930] sm:$0xff]
                %253 = vst [vmem:[%s167 + $0x150] sm:$0xff] %v252
                %v254 = vld [vmem:[%s166 + $0x938] sm:$0xff]
                %255 = vst [vmem:[%s167 + $0x158] sm:$0xff] %v254
                %v256 = vld [vmem:[%s166 + $0x940] sm:$0xff]
                %257 = vst [vmem:[%s167 + $0x160] sm:$0xff] %v256
                %v258 = vld [vmem:[%s166 + $0x948] sm:$0xff]
                %259 = vst [vmem:[%s167 + $0x168] sm:$0xff] %v258
                %v260 = vld [vmem:[%s166 + $0x950] sm:$0xff]
                %261 = vst [vmem:[%s167 + $0x170] sm:$0xff] %v260
                %v262 = vld [vmem:[%s166 + $0x958] sm:$0xff]
                %263 = vst [vmem:[%s167 + $0x178] sm:$0xff] %v262
                %v264 = vld [vmem:[%s166 + $0x960] sm:$0xff]
                %265 = vst [vmem:[%s167 + $0x180] sm:$0xff] %v264
                %v266 = vld [vmem:[%s166 + $0x968] sm:$0xff]
                %267 = vst [vmem:[%s167 + $0x188] sm:$0xff] %v266
                %v268 = vld [vmem:[%s166 + $0x970] sm:$0xff]
                %269 = vst [vmem:[%s167 + $0x190] sm:$0xff] %v268
                %v270 = vld [vmem:[%s166 + $0x978] sm:$0xff]
                %271 = vst [vmem:[%s167 + $0x198] sm:$0xff] %v270
                %v272 = vld [vmem:[%s166 + $0x980] sm:$0xff]
                %273 = vst [vmem:[%s167 + $0x1a0] sm:$0xff] %v272
                %v274 = vld [vmem:[%s166 + $0x988] sm:$0xff]
                %275 = vst [vmem:[%s167 + $0x1a8] sm:$0xff] %v274
                %v276 = vld [vmem:[%s166 + $0x990] sm:$0xff]
                %277 = vst [vmem:[%s167 + $0x1b0] sm:$0xff] %v276
                %v278 = vld [vmem:[%s166 + $0x998] sm:$0xff]
                %279 = vst [vmem:[%s167 + $0x1b8] sm:$0xff] %v278
                %v280 = vld [vmem:[%s166 + $0xc40] sm:$0xff]
                %281 = vst [vmem:[%s167 + $0x1c0] sm:$0xff] %v280
                %v282 = vld [vmem:[%s166 + $0xc48] sm:$0xff]
                %283 = vst [vmem:[%s167 + $0x1c8] sm:$0xff] %v282
                %v284 = vld [vmem:[%s166 + $0xc50] sm:$0xff]
                %285 = vst [vmem:[%s167 + $0x1d0] sm:$0xff] %v284
                %v286 = vld [vmem:[%s166 + $0xc58] sm:$0xff]
                %287 = vst [vmem:[%s167 + $0x1d8] sm:$0xff] %v286
                %v288 = vld [vmem:[%s166 + $0xc60] sm:$0xff]
                %289 = vst [vmem:[%s167 + $0x1e0] sm:$0xff] %v288
                %v290 = vld [vmem:[%s166 + $0xc68] sm:$0xff]
                %291 = vst [vmem:[%s167 + $0x1e8] sm:$0xff] %v290
                %v292 = vld [vmem:[%s166 + $0xc70] sm:$0xff]
                %293 = vst [vmem:[%s167 + $0x1f0] sm:$0xff] %v292
                %v294 = vld [vmem:[%s166 + $0xc78] sm:$0xff]
                %295 = vst [vmem:[%s167 + $0x1f8] sm:$0xff] %v294
                %v296 = vld [vmem:[%s166 + $0xc80] sm:$0xff]
                %297 = vst [vmem:[%s167 + $0x200] sm:$0xff] %v296
                %v298 = vld [vmem:[%s166 + $0xc88] sm:$0xff]
                %299 = vst [vmem:[%s167 + $0x208] sm:$0xff] %v298
                %v300 = vld [vmem:[%s166 + $0xc90] sm:$0xff]
                %301 = vst [vmem:[%s167 + $0x210] sm:$0xff] %v300
                %v302 = vld [vmem:[%s166 + $0xc98] sm:$0xff]
                %303 = vst [vmem:[%s167 + $0x218] sm:$0xff] %v302
                %v304 = vld [vmem:[%s166 + $0xca0] sm:$0xff]
                %305 = vst [vmem:[%s167 + $0x220] sm:$0xff] %v304
                %v306 = vld [vmem:[%s166 + $0xca8] sm:$0xff]
                %307 = vst [vmem:[%s167 + $0x228] sm:$0xff] %v306
                %v308 = vld [vmem:[%s166 + $0xf50] sm:$0xff]
                %309 = vst [vmem:[%s167 + $0x230] sm:$0xff] %v308
                %v310 = vld [vmem:[%s166 + $0xf58] sm:$0xff]
                %311 = vst [vmem:[%s167 + $0x238] sm:$0xff] %v310
                %v312 = vld [vmem:[%s166 + $0xf60] sm:$0xff]
                %313 = vst [vmem:[%s167 + $0x240] sm:$0xff] %v312
                %v314 = vld [vmem:[%s166 + $0xf68] sm:$0xff]
                %315 = vst [vmem:[%s167 + $0x248] sm:$0xff] %v314
                %v316 = vld [vmem:[%s166 + $0xf70] sm:$0xff]
                %317 = vst [vmem:[%s167 + $0x250] sm:$0xff] %v316
                %v318 = vld [vmem:[%s166 + $0xf78] sm:$0xff]
                %319 = vst [vmem:[%s167 + $0x258] sm:$0xff] %v318
                %v320 = vld [vmem:[%s166 + $0xf80] sm:$0xff]
                %321 = vst [vmem:[%s167 + $0x260] sm:$0xff] %v320
                %v322 = vld [vmem:[%s166 + $0xf88] sm:$0xff]
                %323 = vst [vmem:[%s167 + $0x268] sm:$0xff] %v322
                %v324 = vld [vmem:[%s166 + $0xf90] sm:$0xff]
                %325 = vst [vmem:[%s167 + $0x270] sm:$0xff] %v324
                %v326 = vld [vmem:[%s166 + $0xf98] sm:$0xff]
                %327 = vst [vmem:[%s167 + $0x278] sm:$0xff] %v326
                %v328 = vld [vmem:[%s166 + $0xfa0] sm:$0xff]
                %329 = vst [vmem:[%s167 + $0x280] sm:$0xff] %v328
                %v330 = vld [vmem:[%s166 + $0xfa8] sm:$0xff]
                %331 = vst [vmem:[%s167 + $0x288] sm:$0xff] %v330
                %v332 = vld [vmem:[%s166 + $0xfb0] sm:$0xff]
                %333 = vst [vmem:[%s167 + $0x290] sm:$0xff] %v332
                %v334 = vld [vmem:[%s166 + $0xfb8] sm:$0xff]
                %335 = vst [vmem:[%s167 + $0x298] sm:$0xff] %v334
              $region41: #{simple_cnn_forward.3} parent=35 // loop_footer
                %s165 = sadd.s32 1, %s161
              $region42: #{simple_cnn_forward.3} parent=35 // loop_footer_branch
                %160 = sbr.rel target = $region38
              $region43: #{simple_cnn_forward.3} parent=35 // loop_exit
                _
            $region36: #{simple_cnn_forward.3} parent=31 // pred_fallthru
              _
            // Predicated region
            $region44: #{simple_cnn_forward.3} parent=31 // pred_check
              _
            $region45: #{simple_cnn_forward.3} parent=31 // pred_check_branch
              %337 = sbr.rel target = $region47
            $region46: #{simple_cnn_forward.3} parent=31 // pred_region
              _
            $region47: #{simple_cnn_forward.3} parent=31 // pred_fallthru
              _
          $region32: #{simple_cnn_forward.3} parent=27 // pred_fallthru
            _
          %338 = vnop
        $region28: #{simple_cnn_forward.3} parent=23 // pred_fallthru
          _
      $region24: #{simple_cnn_forward.3} parent=5 // pred_fallthru
        _
      %p339 = scmp.le.s32.totalorder 1, %s9
      %p340 = scmp.lt.s32.totalorder %s9, 15
      %p341 = pnand %p339, %p340
      %p342 = pneg %p341
      // Predicated region
      $region48: #{simple_cnn_forward.3} parent=5 // pred_check
        _
      $region49: #{simple_cnn_forward.3} parent=5 // pred_check_branch
        %344 = sbr.rel (%p341) target = $region51
      $region50: #{simple_cnn_forward.3} parent=5 // pred_region
        %s345 = ssub.s32 %s9, 1
        %s346 = sand.u32 %s36, 1
        %s347 = sand.u32 %s36, 1
        %s348 = smul.addr %s347, 672
        %s349 = scalar_lea.vmem [#allocation2], %s348
        // Predicated region
        $region52: #{simple_cnn_forward.3} parent=50 // pred_check
          %p350 = pneg %p49
        $region53: #{simple_cnn_forward.3} parent=50 // pred_check_branch
          %352 = sbr.rel (%p350) target = $region55
        $region54: #{simple_cnn_forward.3} parent=50 // pred_region
          _
        $region55: #{simple_cnn_forward.3} parent=50 // pred_fallthru
          _
        %s353 = sand.u32 %s36, 1
        %s354 = sand.u32 %s36, 1
        %s355 = smul.addr %s354, 672
        %s356 = scalar_lea.vmem [#allocation2], %s355
        %p357 = pneg %p49
        %p358 = pneg %p46
        %p359 = pneg %p70
        %p360 = pneg %p67
        %p361 = pneg %p91
        %p362 = pneg %p88
        %p363 = pneg %p119
        %p364 = pneg %p116
        %s365 = sand.u32 %s106, 1
        %s366 = sand.u32 %s106, 1
        %s367 = smul.addr %s366, 112
        %s368 = scalar_lea.vmem [#allocation3], %s367
        %s369 = smul.u32 14, %s19
        %s370 = smul.u32 14, %s19
        %v371 = vld [vmem:[%s349] sm:$0xff]
        %v372 = vld [vmem:[%s349 + $0x8] sm:$0xff]
        %v373 = vld [vmem:[%s349 + $0x10] sm:$0xff]
        %v374 = vld [vmem:[%s349 + $0x18] sm:$0xff]
        %v375 = vld [vmem:[%s349 + $0x20] sm:$0xff]
        %v376 = vld [vmem:[%s349 + $0x28] sm:$0xff]
        %v377 = vld [vmem:[%s349 + $0x30] sm:$0xff]
        %v378 = vld [vmem:[%s349 + $0x38] sm:$0xff]
        %v379 = vld [vmem:[%s349 + $0x40] sm:$0xff]
        %v380 = vld [vmem:[%s349 + $0x48] sm:$0xff]
        %v381 = vld [vmem:[%s349 + $0x50] sm:$0xff]
        %v382 = vld [vmem:[%s349 + $0x58] sm:$0xff]
        %v383 = vld [vmem:[%s349 + $0x60] sm:$0xff]
        %v384 = vld [vmem:[%s349 + $0x68] sm:$0xff]
        %v385 = vld [vmem:[%s349 + $0x70] sm:$0xff]
        %v386 = vld [vmem:[%s349 + $0x78] sm:$0xff]
        %v387 = vld [vmem:[%s349 + $0x80] sm:$0xff]
        %v388 = vld [vmem:[%s349 + $0x88] sm:$0xff]
        %v389 = vld [vmem:[%s349 + $0x90] sm:$0xff]
        %v390 = vld [vmem:[%s349 + $0x98] sm:$0xff]
        %v391 = vld [vmem:[%s349 + $0xa0] sm:$0xff]
        %v392 = vld [vmem:[%s349 + $0xa8] sm:$0xff]
        %v393 = vld [vmem:[%s349 + $0xb0] sm:$0xff]
        %v394 = vld [vmem:[%s349 + $0xb8] sm:$0xff]
        %v395 = vld [vmem:[%s349 + $0xc0] sm:$0xff]
        %v396 = vld [vmem:[%s349 + $0xc8] sm:$0xff]
        %v397 = vld [vmem:[%s349 + $0xd0] sm:$0xff]
        %v398 = vld [vmem:[%s349 + $0xd8] sm:$0xff]
        %v399 = vld [vmem:[%s349 + $0xe0] sm:$0xff]
        %v400 = vld [vmem:[%s349 + $0xe8] sm:$0xff]
        %v401 = vld [vmem:[%s349 + $0xf0] sm:$0xff]
        %v402 = vld [vmem:[%s349 + $0xf8] sm:$0xff]
        %v403 = vld [vmem:[%s349 + $0x100] sm:$0xff]
        %v404 = vld [vmem:[%s349 + $0x108] sm:$0xff]
        %v405 = vld [vmem:[%s349 + $0x110] sm:$0xff]
        %v406 = vld [vmem:[%s349 + $0x118] sm:$0xff]
        %v407 = vld [vmem:[%s349 + $0x120] sm:$0xff]
        %v408 = vld [vmem:[%s349 + $0x128] sm:$0xff]
        %v409 = vld [vmem:[%s349 + $0x130] sm:$0xff]
        %v410 = vld [vmem:[%s349 + $0x138] sm:$0xff]
        %v411 = vld [vmem:[%s349 + $0x140] sm:$0xff]
        %v412 = vld [vmem:[%s349 + $0x148] sm:$0xff]
        %v413 = vld [vmem:[%s349 + $0x150] sm:$0xff]
        %v414 = vld [vmem:[%s349 + $0x158] sm:$0xff]
        %v415 = vld [vmem:[%s349 + $0x160] sm:$0xff]
        %v416 = vld [vmem:[%s349 + $0x168] sm:$0xff]
        %v417 = vld [vmem:[%s349 + $0x170] sm:$0xff]
        %v418 = vld [vmem:[%s349 + $0x178] sm:$0xff]
        %v419 = vld [vmem:[%s349 + $0x180] sm:$0xff]
        %v420 = vld [vmem:[%s349 + $0x188] sm:$0xff]
        %v421 = vld [vmem:[%s349 + $0x190] sm:$0xff]
        %v422 = vld [vmem:[%s349 + $0x198] sm:$0xff]
        %v423 = vld [vmem:[%s349 + $0x1a0] sm:$0xff]
        %v424 = vld [vmem:[%s349 + $0x1a8] sm:$0xff]
        %v425 = vld [vmem:[%s349 + $0x1b0] sm:$0xff]
        %v426 = vld [vmem:[%s349 + $0x1b8] sm:$0xff]
        %v427 = vld [vmem:[%s349 + $0x1c0] sm:$0xff]
        %v428 = vld [vmem:[%s349 + $0x1c8] sm:$0xff]
        %v429 = vld [vmem:[%s349 + $0x1d0] sm:$0xff]
        %v430 = vld [vmem:[%s349 + $0x1d8] sm:$0xff]
        %v431 = vld [vmem:[%s349 + $0x1e0] sm:$0xff]
        %v432 = vld [vmem:[%s349 + $0x1e8] sm:$0xff]
        %v433 = vld [vmem:[%s349 + $0x1f0] sm:$0xff]
        %v434 = vld [vmem:[%s349 + $0x1f8] sm:$0xff]
        %v435 = vld [vmem:[%s349 + $0x200] sm:$0xff]
        %v436 = vld [vmem:[%s349 + $0x208] sm:$0xff]
        %v437 = vld [vmem:[%s349 + $0x210] sm:$0xff]
        %v438 = vld [vmem:[%s349 + $0x218] sm:$0xff]
        %v439 = vld [vmem:[%s349 + $0x220] sm:$0xff]
        %v440 = vld [vmem:[%s349 + $0x228] sm:$0xff]
        %v441 = vld [vmem:[%s349 + $0x230] sm:$0xff]
        %v442 = vld [vmem:[%s349 + $0x238] sm:$0xff]
        %v443 = vld [vmem:[%s349 + $0x240] sm:$0xff]
        %v444 = vld [vmem:[%s349 + $0x248] sm:$0xff]
        %v445 = vld [vmem:[%s349 + $0x250] sm:$0xff]
        %v446 = vld [vmem:[%s349 + $0x258] sm:$0xff]
        %v447 = vld [vmem:[%s349 + $0x260] sm:$0xff]
        %v448 = vld [vmem:[%s349 + $0x268] sm:$0xff]
        %v449 = vld [vmem:[%s349 + $0x270] sm:$0xff]
        %v450 = vld [vmem:[%s349 + $0x278] sm:$0xff]
        %v451 = vld [vmem:[%s349 + $0x280] sm:$0xff]
        %v452 = vld [vmem:[%s349 + $0x288] sm:$0xff]
        %v453 = vld [vmem:[%s349 + $0x290] sm:$0xff]
        %v454 = vld [vmem:[%s349 + $0x298] sm:$0xff]
        %v455 = vld [vmem:[%s1] sm:$0xff]
        %v456 = vld [vmem:[%s1 + $0x8] sm:$0xff]
        %v457 = vld [vmem:[%s1 + $0x10] sm:$0xff]
        %v458 = vld [vmem:[%s1 + $0x18] sm:$0xff]
        %v459 = vld [vmem:[%s1 + $0x20] sm:$0xff]
        %v460 = vld [vmem:[%s1 + $0x28] sm:$0xff]
        %v461 = vld [vmem:[%s1 + $0x30] sm:$0xff]
        %v462 = vld [vmem:[%s1 + $0x38] sm:$0xff]
        %vm463 = vcmask 392192
        %v465 = vsel %vm463, %v455, 0
        %v468 = vsel %vm463, %v456, 0
        %v471 = vsel %vm463, %v457, 0
        %v474 = vsel %vm463, %v458, 0
        %v477 = vsel %vm463, %v459, 0
        %v480 = vsel %vm463, %v460, 0
        %v483 = vsel %vm463, %v461, 0
        %v486 = vsel %vm463, %v462, 0
        %488 = vmatprep.subr.mxu0 0.0
        %489 = vmatpush1.msra.mxu0 0.0
        %490 = vmatprep.subr.mxu0 0.0
        %491 = vmatpush1.msra.mxu0 0.0
        %492 = vmatprep.subr.mxu0 0.0
        %493 = vmatpush1.msra.mxu0 0.0
        %494 = vmatprep.subr.mxu0 0.0
        %495 = vmatpush1.msra.mxu0 0.0
        %496 = vmatprep.subr.mxu0 0.0
        %497 = vmatpush1.msra.mxu0 0.0
        %498 = vmatprep.subr.mxu0 0.0
        %499 = vmatpush1.msra.mxu0 0.0
        %500 = vmatprep.subr.mxu0 0.0
        %501 = vmatpush1.msra.mxu0 0.0
        %502 = vmatprep.subr.mxu0 0.0
        %503 = vmatpush1.msra.mxu0 0.0
        %504 = vmatprep.subr.mxu0 0.0
        %505 = vmatpush1.msra.mxu0 0.0
        %506 = vmatprep.subr.mxu0 0.0
        %507 = vmatpush1.msra.mxu0 0.0
        %508 = vmatprep.subr.mxu0 %v442
        %509 = vmatpush1.msra.mxu0 %v441
        %510 = vmatprep.subr.mxu0 %v428
        %511 = vmatpush1.msra.mxu0 %v427
        %512 = vmatprep.subr.mxu0 %v414
        %513 = vmatpush1.msra.mxu0 %v413
        %514 = vmatprep.subr.mxu0 %v400
        %515 = vmatpush1.msra.mxu0 %v399
        %516 = vmatprep.subr.mxu0 %v386
        %517 = vmatpush1.msra.mxu0 %v385
        %518 = vmatprep.subr.mxu0 %v372
        %519 = vmatpush1.msra.mxu0 %v371
        %520 = vmatprep.subr.mxu0 0.0
        %521 = vmatpush2.msra.mxu0 0.0
        %522 = vmatprep.subr.mxu0 0.0
        %523 = vmatpush2.msra.mxu0 0.0
        %524 = vmatprep.subr.mxu0 0.0
        %525 = vmatpush2.msra.mxu0 0.0
        %526 = vmatprep.subr.mxu0 0.0
        %527 = vmatpush2.msra.mxu0 0.0
        %528 = vmatprep.subr.mxu0 0.0
        %529 = vmatpush2.msra.mxu0 0.0
        %530 = vmatprep.subr.mxu0 0.0
        %531 = vmatpush2.msra.mxu0 0.0
        %532 = vmatprep.subr.mxu0 0.0
        %533 = vmatpush2.msra.mxu0 0.0
        %534 = vmatprep.subr.mxu0 0.0
        %535 = vmatpush2.msra.mxu0 0.0
        %536 = vmatprep.subr.mxu0 0.0
        %537 = vmatpush2.msra.mxu0 0.0
        %538 = vmatprep.subr.mxu0 0.0
        %539 = vmatpush2.msra.mxu0 0.0
        %540 = vmatprep.subr.mxu0 0.0
        %541 = vmatpush2.msra.mxu0 0.0
        %542 = vmatprep.subr.mxu0 0.0
        %543 = vmatpush2.msra.mxu0 0.0
        %544 = vmatprep.subr.mxu0 0.0
        %545 = vmatpush2.msra.mxu0 0.0
        %546 = vmatprep.subr.mxu0 0.0
        %547 = vmatpush2.msra.mxu0 0.0
        %548 = vmatprep.subr.mxu0 0.0
        %549 = vmatpush2.msra.mxu0 0.0
        %550 = vmatprep.subr.mxu0 0.0
        %551 = vmatpush2.msra.mxu0 0.0
        %552 = vmatprep.mubr.f32.mxu0 0.0
        %553 = vmatmul.mubr.f32.gmra.mxu0 %v465
        %v554 = vpop.f32.mrf.mxu0
        %v555 = vadd.f32 0.0, %v554
        %v556 = vpop.f32.mrf.mxu0
        %v557 = vadd.f32 0.0, %v556
        %558 = vmatprep.mubr.f32.mxu0 0.0
        %559 = vmatmul.mubr.f32.gmra.mxu0 %v468
        %v560 = vpop.f32.mrf.mxu0
        %v561 = vadd.f32 0.0, %v560
        %v562 = vpop.f32.mrf.mxu0
        %v563 = vadd.f32 0.0, %v562
        %564 = vmatprep.mubr.f32.mxu0 0.0
        %565 = vmatmul.mubr.f32.gmra.mxu0 %v471
        %v566 = vpop.f32.mrf.mxu0
        %v567 = vadd.f32 0.0, %v566
        %v568 = vpop.f32.mrf.mxu0
        %v569 = vadd.f32 0.0, %v568
        %570 = vmatprep.mubr.f32.mxu0 0.0
        %571 = vmatmul.mubr.f32.gmra.mxu0 %v474
        %v572 = vpop.f32.mrf.mxu0
        %v573 = vadd.f32 0.0, %v572
        %v574 = vpop.f32.mrf.mxu0
        %v575 = vadd.f32 0.0, %v574
        %576 = vmatprep.mubr.f32.mxu0 0.0
        %577 = vmatmul.mubr.f32.gmra.mxu0 %v477
        %v578 = vpop.f32.mrf.mxu0
        %v579 = vadd.f32 0.0, %v578
        %v580 = vpop.f32.mrf.mxu0
        %v581 = vadd.f32 0.0, %v580
        %582 = vmatprep.mubr.f32.mxu0 0.0
        %583 = vmatmul.mubr.f32.gmra.mxu0 %v480
        %v584 = vpop.f32.mrf.mxu0
        %v585 = vadd.f32 0.0, %v584
        %v586 = vpop.f32.mrf.mxu0
        %v587 = vadd.f32 0.0, %v586
        %588 = vmatprep.mubr.f32.mxu0 0.0
        %589 = vmatmul.mubr.f32.gmra.mxu0 %v483
        %v590 = vpop.f32.mrf.mxu0
        %v591 = vadd.f32 0.0, %v590
        %v592 = vpop.f32.mrf.mxu0
        %v593 = vadd.f32 0.0, %v592
        %594 = vmatprep.mubr.f32.mxu0 0.0
        %595 = vmatmul.mubr.f32.gmra.mxu0 %v486
        %v596 = vpop.f32.mrf.mxu0
        %v597 = vadd.f32 0.0, %v596
        %v598 = vpop.f32.mrf.mxu0
        %v599 = vadd.f32 0.0, %v598
        %600 = vdwg.mxu0
        %601 = vmatprep.subr.mxu0 0.0
        %602 = vmatpush1.msra.mxu0 0.0
        %603 = vmatprep.subr.mxu0 0.0
        %604 = vmatpush1.msra.mxu0 0.0
        %605 = vmatprep.subr.mxu0 0.0
        %606 = vmatpush1.msra.mxu0 0.0
        %607 = vmatprep.subr.mxu0 0.0
        %608 = vmatpush1.msra.mxu0 0.0
        %609 = vmatprep.subr.mxu0 0.0
        %610 = vmatpush1.msra.mxu0 0.0
        %611 = vmatprep.subr.mxu0 0.0
        %612 = vmatpush1.msra.mxu0 0.0
        %613 = vmatprep.subr.mxu0 0.0
        %614 = vmatpush1.msra.mxu0 0.0
        %615 = vmatprep.subr.mxu0 0.0
        %616 = vmatpush1.msra.mxu0 0.0
        %617 = vmatprep.subr.mxu0 0.0
        %618 = vmatpush1.msra.mxu0 0.0
        %619 = vmatprep.subr.mxu0 0.0
        %620 = vmatpush1.msra.mxu0 0.0
        %621 = vmatprep.subr.mxu0 %v444
        %622 = vmatpush1.msra.mxu0 %v443
        %623 = vmatprep.subr.mxu0 %v430
        %624 = vmatpush1.msra.mxu0 %v429
        %625 = vmatprep.subr.mxu0 %v416
        %626 = vmatpush1.msra.mxu0 %v415
        %627 = vmatprep.subr.mxu0 %v402
        %628 = vmatpush1.msra.mxu0 %v401
        %629 = vmatprep.subr.mxu0 %v388
        %630 = vmatpush1.msra.mxu0 %v387
        %631 = vmatprep.subr.mxu0 %v374
        %632 = vmatpush1.msra.mxu0 %v373
        %633 = vmatprep.subr.mxu0 0.0
        %634 = vmatpush2.msra.mxu0 0.0
        %635 = vmatprep.subr.mxu0 0.0
        %636 = vmatpush2.msra.mxu0 0.0
        %637 = vmatprep.subr.mxu0 0.0
        %638 = vmatpush2.msra.mxu0 0.0
        %639 = vmatprep.subr.mxu0 0.0
        %640 = vmatpush2.msra.mxu0 0.0
        %641 = vmatprep.subr.mxu0 0.0
        %642 = vmatpush2.msra.mxu0 0.0
        %643 = vmatprep.subr.mxu0 0.0
        %644 = vmatpush2.msra.mxu0 0.0
        %645 = vmatprep.subr.mxu0 0.0
        %646 = vmatpush2.msra.mxu0 0.0
        %647 = vmatprep.subr.mxu0 0.0
        %648 = vmatpush2.msra.mxu0 0.0
        %649 = vmatprep.subr.mxu0 0.0
        %650 = vmatpush2.msra.mxu0 0.0
        %651 = vmatprep.subr.mxu0 0.0
        %652 = vmatpush2.msra.mxu0 0.0
        %653 = vmatprep.subr.mxu0 0.0
        %654 = vmatpush2.msra.mxu0 0.0
        %655 = vmatprep.subr.mxu0 0.0
        %656 = vmatpush2.msra.mxu0 0.0
        %657 = vmatprep.subr.mxu0 0.0
        %658 = vmatpush2.msra.mxu0 0.0
        %659 = vmatprep.subr.mxu0 0.0
        %660 = vmatpush2.msra.mxu0 0.0
        %661 = vmatprep.subr.mxu0 0.0
        %662 = vmatpush2.msra.mxu0 0.0
        %663 = vmatprep.subr.mxu0 0.0
        %664 = vmatpush2.msra.mxu0 0.0
        %665 = vmatprep.mubr.f32.mxu0 0.0
        %666 = vmatmul.mubr.f32.gmra.mxu0 %v465
        %v667 = vpop.f32.mrf.mxu0
        %v668 = vadd.f32 0.0, %v667
        %v669 = vpop.f32.mrf.mxu0
        %v670 = vadd.f32 0.0, %v669
        %671 = vmatprep.mubr.f32.mxu0 0.0
        %672 = vmatmul.mubr.f32.gmra.mxu0 %v468
        %v673 = vpop.f32.mrf.mxu0
        %v674 = vadd.f32 0.0, %v673
        %v675 = vpop.f32.mrf.mxu0
        %v676 = vadd.f32 0.0, %v675
        %677 = vmatprep.mubr.f32.mxu0 0.0
        %678 = vmatmul.mubr.f32.gmra.mxu0 %v471
        %v679 = vpop.f32.mrf.mxu0
        %v680 = vadd.f32 0.0, %v679
        %v681 = vpop.f32.mrf.mxu0
        %v682 = vadd.f32 0.0, %v681
        %683 = vmatprep.mubr.f32.mxu0 0.0
        %684 = vmatmul.mubr.f32.gmra.mxu0 %v474
        %v685 = vpop.f32.mrf.mxu0
        %v686 = vadd.f32 0.0, %v685
        %v687 = vpop.f32.mrf.mxu0
        %v688 = vadd.f32 0.0, %v687
        %689 = vmatprep.mubr.f32.mxu0 0.0
        %690 = vmatmul.mubr.f32.gmra.mxu0 %v477
        %v691 = vpop.f32.mrf.mxu0
        %v692 = vadd.f32 0.0, %v691
        %v693 = vpop.f32.mrf.mxu0
        %v694 = vadd.f32 0.0, %v693
        %695 = vmatprep.mubr.f32.mxu0 0.0
        %696 = vmatmul.mubr.f32.gmra.mxu0 %v480
        %v697 = vpop.f32.mrf.mxu0
        %v698 = vadd.f32 0.0, %v697
        %v699 = vpop.f32.mrf.mxu0
        %v700 = vadd.f32 0.0, %v699
        %701 = vmatprep.mubr.f32.mxu0 0.0
        %702 = vmatmul.mubr.f32.gmra.mxu0 %v483
        %v703 = vpop.f32.mrf.mxu0
        %v704 = vadd.f32 0.0, %v703
        %v705 = vpop.f32.mrf.mxu0
        %v706 = vadd.f32 0.0, %v705
        %707 = vmatprep.mubr.f32.mxu0 0.0
        %708 = vmatmul.mubr.f32.gmra.mxu0 %v486
        %v709 = vpop.f32.mrf.mxu0
        %v710 = vadd.f32 0.0, %v709
        %v711 = vpop.f32.mrf.mxu0
        %v712 = vadd.f32 0.0, %v711
        %713 = vdwg.mxu0
        %714 = vmatprep.subr.mxu0 0.0
        %715 = vmatpush1.msra.mxu0 0.0
        %716 = vmatprep.subr.mxu0 0.0
        %717 = vmatpush1.msra.mxu0 0.0
        %718 = vmatprep.subr.mxu0 0.0
        %719 = vmatpush1.msra.mxu0 0.0
        %720 = vmatprep.subr.mxu0 0.0
        %721 = vmatpush1.msra.mxu0 0.0
        %722 = vmatprep.subr.mxu0 0.0
        %723 = vmatpush1.msra.mxu0 0.0
        %724 = vmatprep.subr.mxu0 0.0
        %725 = vmatpush1.msra.mxu0 0.0
        %726 = vmatprep.subr.mxu0 0.0
        %727 = vmatpush1.msra.mxu0 0.0
        %728 = vmatprep.subr.mxu0 0.0
        %729 = vmatpush1.msra.mxu0 0.0
        %730 = vmatprep.subr.mxu0 0.0
        %731 = vmatpush1.msra.mxu0 0.0
        %732 = vmatprep.subr.mxu0 0.0
        %733 = vmatpush1.msra.mxu0 0.0
        %734 = vmatprep.subr.mxu0 %v446
        %735 = vmatpush1.msra.mxu0 %v445
        %736 = vmatprep.subr.mxu0 %v432
        %737 = vmatpush1.msra.mxu0 %v431
        %738 = vmatprep.subr.mxu0 %v418
        %739 = vmatpush1.msra.mxu0 %v417
        %740 = vmatprep.subr.mxu0 %v404
        %741 = vmatpush1.msra.mxu0 %v403
        %742 = vmatprep.subr.mxu0 %v390
        %743 = vmatpush1.msra.mxu0 %v389
        %744 = vmatprep.subr.mxu0 %v376
        %745 = vmatpush1.msra.mxu0 %v375
        %746 = vmatprep.subr.mxu0 0.0
        %747 = vmatpush2.msra.mxu0 0.0
        %748 = vmatprep.subr.mxu0 0.0
        %749 = vmatpush2.msra.mxu0 0.0
        %750 = vmatprep.subr.mxu0 0.0
        %751 = vmatpush2.msra.mxu0 0.0
        %752 = vmatprep.subr.mxu0 0.0
        %753 = vmatpush2.msra.mxu0 0.0
        %754 = vmatprep.subr.mxu0 0.0
        %755 = vmatpush2.msra.mxu0 0.0
        %756 = vmatprep.subr.mxu0 0.0
        %757 = vmatpush2.msra.mxu0 0.0
        %758 = vmatprep.subr.mxu0 0.0
        %759 = vmatpush2.msra.mxu0 0.0
        %760 = vmatprep.subr.mxu0 0.0
        %761 = vmatpush2.msra.mxu0 0.0
        %762 = vmatprep.subr.mxu0 0.0
        %763 = vmatpush2.msra.mxu0 0.0
        %764 = vmatprep.subr.mxu0 0.0
        %765 = vmatpush2.msra.mxu0 0.0
        %766 = vmatprep.subr.mxu0 0.0
        %767 = vmatpush2.msra.mxu0 0.0
        %768 = vmatprep.subr.mxu0 0.0
        %769 = vmatpush2.msra.mxu0 0.0
        %770 = vmatprep.subr.mxu0 0.0
        %771 = vmatpush2.msra.mxu0 0.0
        %772 = vmatprep.subr.mxu0 0.0
        %773 = vmatpush2.msra.mxu0 0.0
        %774 = vmatprep.subr.mxu0 0.0
        %775 = vmatpush2.msra.mxu0 0.0
        %776 = vmatprep.subr.mxu0 0.0
        %777 = vmatpush2.msra.mxu0 0.0
        %778 = vmatprep.mubr.f32.mxu0 0.0
        %779 = vmatmul.mubr.f32.gmra.mxu0 %v465
        %v780 = vpop.f32.mrf.mxu0
        %v781 = vadd.f32 0.0, %v780
        %v782 = vpop.f32.mrf.mxu0
        %v783 = vadd.f32 0.0, %v782
        %784 = vmatprep.mubr.f32.mxu0 0.0
        %785 = vmatmul.mubr.f32.gmra.mxu0 %v468
        %v786 = vpop.f32.mrf.mxu0
        %v787 = vadd.f32 0.0, %v786
        %v788 = vpop.f32.mrf.mxu0
        %v789 = vadd.f32 0.0, %v788
        %790 = vmatprep.mubr.f32.mxu0 0.0
        %791 = vmatmul.mubr.f32.gmra.mxu0 %v471
        %v792 = vpop.f32.mrf.mxu0
        %v793 = vadd.f32 0.0, %v792
        %v794 = vpop.f32.mrf.mxu0
        %v795 = vadd.f32 0.0, %v794
        %796 = vmatprep.mubr.f32.mxu0 0.0
        %797 = vmatmul.mubr.f32.gmra.mxu0 %v474
        %v798 = vpop.f32.mrf.mxu0
        %v799 = vadd.f32 0.0, %v798
        %v800 = vpop.f32.mrf.mxu0
        %v801 = vadd.f32 0.0, %v800
        %802 = vmatprep.mubr.f32.mxu0 0.0
        %803 = vmatmul.mubr.f32.gmra.mxu0 %v477
        %v804 = vpop.f32.mrf.mxu0
        %v805 = vadd.f32 0.0, %v804
        %v806 = vpop.f32.mrf.mxu0
        %v807 = vadd.f32 0.0, %v806
        %808 = vmatprep.mubr.f32.mxu0 0.0
        %809 = vmatmul.mubr.f32.gmra.mxu0 %v480
        %v810 = vpop.f32.mrf.mxu0
        %v811 = vadd.f32 0.0, %v810
        %v812 = vpop.f32.mrf.mxu0
        %v813 = vadd.f32 0.0, %v812
        %814 = vmatprep.mubr.f32.mxu0 0.0
        %815 = vmatmul.mubr.f32.gmra.mxu0 %v483
        %v816 = vpop.f32.mrf.mxu0
        %v817 = vadd.f32 0.0, %v816
        %v818 = vpop.f32.mrf.mxu0
        %v819 = vadd.f32 0.0, %v818
        %820 = vmatprep.mubr.f32.mxu0 0.0
        %821 = vmatmul.mubr.f32.gmra.mxu0 %v486
        %v822 = vpop.f32.mrf.mxu0
        %v823 = vadd.f32 0.0, %v822
        %v824 = vpop.f32.mrf.mxu0
        %v825 = vadd.f32 0.0, %v824
        %826 = vdwg.mxu0
        %827 = vmatprep.subr.mxu0 0.0
        %828 = vmatpush1.msra.mxu0 0.0
        %829 = vmatprep.subr.mxu0 0.0
        %830 = vmatpush1.msra.mxu0 0.0
        %831 = vmatprep.subr.mxu0 0.0
        %832 = vmatpush1.msra.mxu0 0.0
        %833 = vmatprep.subr.mxu0 0.0
        %834 = vmatpush1.msra.mxu0 0.0
        %835 = vmatprep.subr.mxu0 0.0
        %836 = vmatpush1.msra.mxu0 0.0
        %837 = vmatprep.subr.mxu0 0.0
        %838 = vmatpush1.msra.mxu0 0.0
        %839 = vmatprep.subr.mxu0 0.0
        %840 = vmatpush1.msra.mxu0 0.0
        %841 = vmatprep.subr.mxu0 0.0
        %842 = vmatpush1.msra.mxu0 0.0
        %843 = vmatprep.subr.mxu0 0.0
        %844 = vmatpush1.msra.mxu0 0.0
        %845 = vmatprep.subr.mxu0 0.0
        %846 = vmatpush1.msra.mxu0 0.0
        %847 = vmatprep.subr.mxu0 %v448
        %848 = vmatpush1.msra.mxu0 %v447
        %849 = vmatprep.subr.mxu0 %v434
        %850 = vmatpush1.msra.mxu0 %v433
        %851 = vmatprep.subr.mxu0 %v420
        %852 = vmatpush1.msra.mxu0 %v419
        %853 = vmatprep.subr.mxu0 %v406
        %854 = vmatpush1.msra.mxu0 %v405
        %855 = vmatprep.subr.mxu0 %v392
        %856 = vmatpush1.msra.mxu0 %v391
        %857 = vmatprep.subr.mxu0 %v378
        %858 = vmatpush1.msra.mxu0 %v377
        %859 = vmatprep.subr.mxu0 0.0
        %860 = vmatpush2.msra.mxu0 0.0
        %861 = vmatprep.subr.mxu0 0.0
        %862 = vmatpush2.msra.mxu0 0.0
        %863 = vmatprep.subr.mxu0 0.0
        %864 = vmatpush2.msra.mxu0 0.0
        %865 = vmatprep.subr.mxu0 0.0
        %866 = vmatpush2.msra.mxu0 0.0
        %867 = vmatprep.subr.mxu0 0.0
        %868 = vmatpush2.msra.mxu0 0.0
        %869 = vmatprep.subr.mxu0 0.0
        %870 = vmatpush2.msra.mxu0 0.0
        %871 = vmatprep.subr.mxu0 0.0
        %872 = vmatpush2.msra.mxu0 0.0
        %873 = vmatprep.subr.mxu0 0.0
        %874 = vmatpush2.msra.mxu0 0.0
        %875 = vmatprep.subr.mxu0 0.0
        %876 = vmatpush2.msra.mxu0 0.0
        %877 = vmatprep.subr.mxu0 0.0
        %878 = vmatpush2.msra.mxu0 0.0
        %879 = vmatprep.subr.mxu0 0.0
        %880 = vmatpush2.msra.mxu0 0.0
        %881 = vmatprep.subr.mxu0 0.0
        %882 = vmatpush2.msra.mxu0 0.0
        %883 = vmatprep.subr.mxu0 0.0
        %884 = vmatpush2.msra.mxu0 0.0
        %885 = vmatprep.subr.mxu0 0.0
        %886 = vmatpush2.msra.mxu0 0.0
        %887 = vmatprep.subr.mxu0 0.0
        %888 = vmatpush2.msra.mxu0 0.0
        %889 = vmatprep.subr.mxu0 0.0
        %890 = vmatpush2.msra.mxu0 0.0
        %891 = vmatprep.mubr.f32.mxu0 0.0
        %892 = vmatmul.mubr.f32.gmra.mxu0 %v465
        %v893 = vpop.f32.mrf.mxu0
        %v894 = vadd.f32 0.0, %v893
        %v895 = vpop.f32.mrf.mxu0
        %v896 = vadd.f32 0.0, %v895
        %897 = vmatprep.mubr.f32.mxu0 0.0
        %898 = vmatmul.mubr.f32.gmra.mxu0 %v468
        %v899 = vpop.f32.mrf.mxu0
        %v900 = vadd.f32 0.0, %v899
        %v901 = vpop.f32.mrf.mxu0
        %v902 = vadd.f32 0.0, %v901
        %903 = vmatprep.mubr.f32.mxu0 0.0
        %904 = vmatmul.mubr.f32.gmra.mxu0 %v471
        %v905 = vpop.f32.mrf.mxu0
        %v906 = vadd.f32 0.0, %v905
        %v907 = vpop.f32.mrf.mxu0
        %v908 = vadd.f32 0.0, %v907
        %909 = vmatprep.mubr.f32.mxu0 0.0
        %910 = vmatmul.mubr.f32.gmra.mxu0 %v474
        %v911 = vpop.f32.mrf.mxu0
        %v912 = vadd.f32 0.0, %v911
        %v913 = vpop.f32.mrf.mxu0
        %v914 = vadd.f32 0.0, %v913
        %915 = vmatprep.mubr.f32.mxu0 0.0
        %916 = vmatmul.mubr.f32.gmra.mxu0 %v477
        %v917 = vpop.f32.mrf.mxu0
        %v918 = vadd.f32 0.0, %v917
        %v919 = vpop.f32.mrf.mxu0
        %v920 = vadd.f32 0.0, %v919
        %921 = vmatprep.mubr.f32.mxu0 0.0
        %922 = vmatmul.mubr.f32.gmra.mxu0 %v480
        %v923 = vpop.f32.mrf.mxu0
        %v924 = vadd.f32 0.0, %v923
        %v925 = vpop.f32.mrf.mxu0
        %v926 = vadd.f32 0.0, %v925
        %927 = vmatprep.mubr.f32.mxu0 0.0
        %928 = vmatmul.mubr.f32.gmra.mxu0 %v483
        %v929 = vpop.f32.mrf.mxu0
        %v930 = vadd.f32 0.0, %v929
        %v931 = vpop.f32.mrf.mxu0
        %v932 = vadd.f32 0.0, %v931
        %933 = vmatprep.mubr.f32.mxu0 0.0
        %934 = vmatmul.mubr.f32.gmra.mxu0 %v486
        %v935 = vpop.f32.mrf.mxu0
        %v936 = vadd.f32 0.0, %v935
        %v937 = vpop.f32.mrf.mxu0
        %v938 = vadd.f32 0.0, %v937
        %939 = vdwg.mxu0
        %940 = vmatprep.subr.mxu0 0.0
        %941 = vmatpush1.msra.mxu0 0.0
        %942 = vmatprep.subr.mxu0 0.0
        %943 = vmatpush1.msra.mxu0 0.0
        %944 = vmatprep.subr.mxu0 0.0
        %945 = vmatpush1.msra.mxu0 0.0
        %946 = vmatprep.subr.mxu0 0.0
        %947 = vmatpush1.msra.mxu0 0.0
        %948 = vmatprep.subr.mxu0 0.0
        %949 = vmatpush1.msra.mxu0 0.0
        %950 = vmatprep.subr.mxu0 0.0
        %951 = vmatpush1.msra.mxu0 0.0
        %952 = vmatprep.subr.mxu0 0.0
        %953 = vmatpush1.msra.mxu0 0.0
        %954 = vmatprep.subr.mxu0 0.0
        %955 = vmatpush1.msra.mxu0 0.0
        %956 = vmatprep.subr.mxu0 0.0
        %957 = vmatpush1.msra.mxu0 0.0
        %958 = vmatprep.subr.mxu0 0.0
        %959 = vmatpush1.msra.mxu0 0.0
        %960 = vmatprep.subr.mxu0 %v450
        %961 = vmatpush1.msra.mxu0 %v449
        %962 = vmatprep.subr.mxu0 %v436
        %963 = vmatpush1.msra.mxu0 %v435
        %964 = vmatprep.subr.mxu0 %v422
        %965 = vmatpush1.msra.mxu0 %v421
        %966 = vmatprep.subr.mxu0 %v408
        %967 = vmatpush1.msra.mxu0 %v407
        %968 = vmatprep.subr.mxu0 %v394
        %969 = vmatpush1.msra.mxu0 %v393
        %970 = vmatprep.subr.mxu0 %v380
        %971 = vmatpush1.msra.mxu0 %v379
        %972 = vmatprep.subr.mxu0 0.0
        %973 = vmatpush2.msra.mxu0 0.0
        %974 = vmatprep.subr.mxu0 0.0
        %975 = vmatpush2.msra.mxu0 0.0
        %976 = vmatprep.subr.mxu0 0.0
        %977 = vmatpush2.msra.mxu0 0.0
        %978 = vmatprep.subr.mxu0 0.0
        %979 = vmatpush2.msra.mxu0 0.0
        %980 = vmatprep.subr.mxu0 0.0
        %981 = vmatpush2.msra.mxu0 0.0
        %982 = vmatprep.subr.mxu0 0.0
        %983 = vmatpush2.msra.mxu0 0.0
        %984 = vmatprep.subr.mxu0 0.0
        %985 = vmatpush2.msra.mxu0 0.0
        %986 = vmatprep.subr.mxu0 0.0
        %987 = vmatpush2.msra.mxu0 0.0
        %988 = vmatprep.subr.mxu0 0.0
        %989 = vmatpush2.msra.mxu0 0.0
        %990 = vmatprep.subr.mxu0 0.0
        %991 = vmatpush2.msra.mxu0 0.0
        %992 = vmatprep.subr.mxu0 0.0
        %993 = vmatpush2.msra.mxu0 0.0
        %994 = vmatprep.subr.mxu0 0.0
        %995 = vmatpush2.msra.mxu0 0.0
        %996 = vmatprep.subr.mxu0 0.0
        %997 = vmatpush2.msra.mxu0 0.0
        %998 = vmatprep.subr.mxu0 0.0
        %999 = vmatpush2.msra.mxu0 0.0
        %1000 = vmatprep.subr.mxu0 0.0
        %1001 = vmatpush2.msra.mxu0 0.0
        %1002 = vmatprep.subr.mxu0 0.0
        %1003 = vmatpush2.msra.mxu0 0.0
        %1004 = vmatprep.mubr.f32.mxu0 0.0
        %1005 = vmatmul.mubr.f32.gmra.mxu0 %v465
        %v1006 = vpop.f32.mrf.mxu0
        %v1007 = vadd.f32 0.0, %v1006
        %v1008 = vpop.f32.mrf.mxu0
        %v1009 = vadd.f32 0.0, %v1008
        %1010 = vmatprep.mubr.f32.mxu0 0.0
        %1011 = vmatmul.mubr.f32.gmra.mxu0 %v468
        %v1012 = vpop.f32.mrf.mxu0
        %v1013 = vadd.f32 0.0, %v1012
        %v1014 = vpop.f32.mrf.mxu0
        %v1015 = vadd.f32 0.0, %v1014
        %1016 = vmatprep.mubr.f32.mxu0 0.0
        %1017 = vmatmul.mubr.f32.gmra.mxu0 %v471
        %v1018 = vpop.f32.mrf.mxu0
        %v1019 = vadd.f32 0.0, %v1018
        %v1020 = vpop.f32.mrf.mxu0
        %v1021 = vadd.f32 0.0, %v1020
        %1022 = vmatprep.mubr.f32.mxu0 0.0
        %1023 = vmatmul.mubr.f32.gmra.mxu0 %v474
        %v1024 = vpop.f32.mrf.mxu0
        %v1025 = vadd.f32 0.0, %v1024
        %v1026 = vpop.f32.mrf.mxu0
        %v1027 = vadd.f32 0.0, %v1026
        %1028 = vmatprep.mubr.f32.mxu0 0.0
        %1029 = vmatmul.mubr.f32.gmra.mxu0 %v477
        %v1030 = vpop.f32.mrf.mxu0
        %v1031 = vadd.f32 0.0, %v1030
        %v1032 = vpop.f32.mrf.mxu0
        %v1033 = vadd.f32 0.0, %v1032
        %1034 = vmatprep.mubr.f32.mxu0 0.0
        %1035 = vmatmul.mubr.f32.gmra.mxu0 %v480
        %v1036 = vpop.f32.mrf.mxu0
        %v1037 = vadd.f32 0.0, %v1036
        %v1038 = vpop.f32.mrf.mxu0
        %v1039 = vadd.f32 0.0, %v1038
        %1040 = vmatprep.mubr.f32.mxu0 0.0
        %1041 = vmatmul.mubr.f32.gmra.mxu0 %v483
        %v1042 = vpop.f32.mrf.mxu0
        %v1043 = vadd.f32 0.0, %v1042
        %v1044 = vpop.f32.mrf.mxu0
        %v1045 = vadd.f32 0.0, %v1044
        %1046 = vmatprep.mubr.f32.mxu0 0.0
        %1047 = vmatmul.mubr.f32.gmra.mxu0 %v486
        %v1048 = vpop.f32.mrf.mxu0
        %v1049 = vadd.f32 0.0, %v1048
        %v1050 = vpop.f32.mrf.mxu0
        %v1051 = vadd.f32 0.0, %v1050
        %1052 = vdwg.mxu0
        %1053 = vmatprep.subr.mxu0 0.0
        %1054 = vmatpush1.msra.mxu0 0.0
        %1055 = vmatprep.subr.mxu0 0.0
        %1056 = vmatpush1.msra.mxu0 0.0
        %1057 = vmatprep.subr.mxu0 0.0
        %1058 = vmatpush1.msra.mxu0 0.0
        %1059 = vmatprep.subr.mxu0 0.0
        %1060 = vmatpush1.msra.mxu0 0.0
        %1061 = vmatprep.subr.mxu0 0.0
        %1062 = vmatpush1.msra.mxu0 0.0
        %1063 = vmatprep.subr.mxu0 0.0
        %1064 = vmatpush1.msra.mxu0 0.0
        %1065 = vmatprep.subr.mxu0 0.0
        %1066 = vmatpush1.msra.mxu0 0.0
        %1067 = vmatprep.subr.mxu0 0.0
        %1068 = vmatpush1.msra.mxu0 0.0
        %1069 = vmatprep.subr.mxu0 0.0
        %1070 = vmatpush1.msra.mxu0 0.0
        %1071 = vmatprep.subr.mxu0 0.0
        %1072 = vmatpush1.msra.mxu0 0.0
        %1073 = vmatprep.subr.mxu0 %v452
        %1074 = vmatpush1.msra.mxu0 %v451
        %1075 = vmatprep.subr.mxu0 %v438
        %1076 = vmatpush1.msra.mxu0 %v437
        %1077 = vmatprep.subr.mxu0 %v424
        %1078 = vmatpush1.msra.mxu0 %v423
        %1079 = vmatprep.subr.mxu0 %v410
        %1080 = vmatpush1.msra.mxu0 %v409
        %1081 = vmatprep.subr.mxu0 %v396
        %1082 = vmatpush1.msra.mxu0 %v395
        %1083 = vmatprep.subr.mxu0 %v382
        %1084 = vmatpush1.msra.mxu0 %v381
        %1085 = vmatprep.subr.mxu0 0.0
        %1086 = vmatpush2.msra.mxu0 0.0
        %1087 = vmatprep.subr.mxu0 0.0
        %1088 = vmatpush2.msra.mxu0 0.0
        %1089 = vmatprep.subr.mxu0 0.0
        %1090 = vmatpush2.msra.mxu0 0.0
        %1091 = vmatprep.subr.mxu0 0.0
        %1092 = vmatpush2.msra.mxu0 0.0
        %1093 = vmatprep.subr.mxu0 0.0
        %1094 = vmatpush2.msra.mxu0 0.0
        %1095 = vmatprep.subr.mxu0 0.0
        %1096 = vmatpush2.msra.mxu0 0.0
        %1097 = vmatprep.subr.mxu0 0.0
        %1098 = vmatpush2.msra.mxu0 0.0
        %1099 = vmatprep.subr.mxu0 0.0
        %1100 = vmatpush2.msra.mxu0 0.0
        %1101 = vmatprep.subr.mxu0 0.0
        %1102 = vmatpush2.msra.mxu0 0.0
        %1103 = vmatprep.subr.mxu0 0.0
        %1104 = vmatpush2.msra.mxu0 0.0
        %1105 = vmatprep.subr.mxu0 0.0
        %1106 = vmatpush2.msra.mxu0 0.0
        %1107 = vmatprep.subr.mxu0 0.0
        %1108 = vmatpush2.msra.mxu0 0.0
        %1109 = vmatprep.subr.mxu0 0.0
        %1110 = vmatpush2.msra.mxu0 0.0
        %1111 = vmatprep.subr.mxu0 0.0
        %1112 = vmatpush2.msra.mxu0 0.0
        %1113 = vmatprep.subr.mxu0 0.0
        %1114 = vmatpush2.msra.mxu0 0.0
        %1115 = vmatprep.subr.mxu0 0.0
        %1116 = vmatpush2.msra.mxu0 0.0
        %1117 = vmatprep.mubr.f32.mxu0 0.0
        %1118 = vmatmul.mubr.f32.gmra.mxu0 %v465
        %v1119 = vpop.f32.mrf.mxu0
        %v1120 = vadd.f32 0.0, %v1119
        %v1121 = vpop.f32.mrf.mxu0
        %v1122 = vadd.f32 0.0, %v1121
        %1123 = vmatprep.mubr.f32.mxu0 0.0
        %1124 = vmatmul.mubr.f32.gmra.mxu0 %v468
        %v1125 = vpop.f32.mrf.mxu0
        %v1126 = vadd.f32 0.0, %v1125
        %v1127 = vpop.f32.mrf.mxu0
        %v1128 = vadd.f32 0.0, %v1127
        %1129 = vmatprep.mubr.f32.mxu0 0.0
        %1130 = vmatmul.mubr.f32.gmra.mxu0 %v471
        %v1131 = vpop.f32.mrf.mxu0
        %v1132 = vadd.f32 0.0, %v1131
        %v1133 = vpop.f32.mrf.mxu0
        %v1134 = vadd.f32 0.0, %v1133
        %1135 = vmatprep.mubr.f32.mxu0 0.0
        %1136 = vmatmul.mubr.f32.gmra.mxu0 %v474
        %v1137 = vpop.f32.mrf.mxu0
        %v1138 = vadd.f32 0.0, %v1137
        %v1139 = vpop.f32.mrf.mxu0
        %v1140 = vadd.f32 0.0, %v1139
        %1141 = vmatprep.mubr.f32.mxu0 0.0
        %1142 = vmatmul.mubr.f32.gmra.mxu0 %v477
        %v1143 = vpop.f32.mrf.mxu0
        %v1144 = vadd.f32 0.0, %v1143
        %v1145 = vpop.f32.mrf.mxu0
        %v1146 = vadd.f32 0.0, %v1145
        %1147 = vmatprep.mubr.f32.mxu0 0.0
        %1148 = vmatmul.mubr.f32.gmra.mxu0 %v480
        %v1149 = vpop.f32.mrf.mxu0
        %v1150 = vadd.f32 0.0, %v1149
        %v1151 = vpop.f32.mrf.mxu0
        %v1152 = vadd.f32 0.0, %v1151
        %1153 = vmatprep.mubr.f32.mxu0 0.0
        %1154 = vmatmul.mubr.f32.gmra.mxu0 %v483
        %v1155 = vpop.f32.mrf.mxu0
        %v1156 = vadd.f32 0.0, %v1155
        %v1157 = vpop.f32.mrf.mxu0
        %v1158 = vadd.f32 0.0, %v1157
        %1159 = vmatprep.mubr.f32.mxu0 0.0
        %1160 = vmatmul.mubr.f32.gmra.mxu0 %v486
        %v1161 = vpop.f32.mrf.mxu0
        %v1162 = vadd.f32 0.0, %v1161
        %v1163 = vpop.f32.mrf.mxu0
        %v1164 = vadd.f32 0.0, %v1163
        %1165 = vdwg.mxu0
        %1166 = vmatprep.subr.mxu0 0.0
        %1167 = vmatpush1.msra.mxu0 0.0
        %1168 = vmatprep.subr.mxu0 0.0
        %1169 = vmatpush1.msra.mxu0 0.0
        %1170 = vmatprep.subr.mxu0 0.0
        %1171 = vmatpush1.msra.mxu0 0.0
        %1172 = vmatprep.subr.mxu0 0.0
        %1173 = vmatpush1.msra.mxu0 0.0
        %1174 = vmatprep.subr.mxu0 0.0
        %1175 = vmatpush1.msra.mxu0 0.0
        %1176 = vmatprep.subr.mxu0 0.0
        %1177 = vmatpush1.msra.mxu0 0.0
        %1178 = vmatprep.subr.mxu0 0.0
        %1179 = vmatpush1.msra.mxu0 0.0
        %1180 = vmatprep.subr.mxu0 0.0
        %1181 = vmatpush1.msra.mxu0 0.0
        %1182 = vmatprep.subr.mxu0 0.0
        %1183 = vmatpush1.msra.mxu0 0.0
        %1184 = vmatprep.subr.mxu0 0.0
        %1185 = vmatpush1.msra.mxu0 0.0
        %1186 = vmatprep.subr.mxu0 %v454
        %1187 = vmatpush1.msra.mxu0 %v453
        %1188 = vmatprep.subr.mxu0 %v440
        %1189 = vmatpush1.msra.mxu0 %v439
        %1190 = vmatprep.subr.mxu0 %v426
        %1191 = vmatpush1.msra.mxu0 %v425
        %1192 = vmatprep.subr.mxu0 %v412
        %1193 = vmatpush1.msra.mxu0 %v411
        %1194 = vmatprep.subr.mxu0 %v398
        %1195 = vmatpush1.msra.mxu0 %v397
        %1196 = vmatprep.subr.mxu0 %v384
        %1197 = vmatpush1.msra.mxu0 %v383
        %1198 = vmatprep.subr.mxu0 0.0
        %1199 = vmatpush2.msra.mxu0 0.0
        %1200 = vmatprep.subr.mxu0 0.0
        %1201 = vmatpush2.msra.mxu0 0.0
        %1202 = vmatprep.subr.mxu0 0.0
        %1203 = vmatpush2.msra.mxu0 0.0
        %1204 = vmatprep.subr.mxu0 0.0
        %1205 = vmatpush2.msra.mxu0 0.0
        %1206 = vmatprep.subr.mxu0 0.0
        %1207 = vmatpush2.msra.mxu0 0.0
        %1208 = vmatprep.subr.mxu0 0.0
        %1209 = vmatpush2.msra.mxu0 0.0
        %1210 = vmatprep.subr.mxu0 0.0
        %1211 = vmatpush2.msra.mxu0 0.0
        %1212 = vmatprep.subr.mxu0 0.0
        %1213 = vmatpush2.msra.mxu0 0.0
        %1214 = vmatprep.subr.mxu0 0.0
        %1215 = vmatpush2.msra.mxu0 0.0
        %1216 = vmatprep.subr.mxu0 0.0
        %1217 = vmatpush2.msra.mxu0 0.0
        %1218 = vmatprep.subr.mxu0 0.0
        %1219 = vmatpush2.msra.mxu0 0.0
        %1220 = vmatprep.subr.mxu0 0.0
        %1221 = vmatpush2.msra.mxu0 0.0
        %1222 = vmatprep.subr.mxu0 0.0
        %1223 = vmatpush2.msra.mxu0 0.0
        %1224 = vmatprep.subr.mxu0 0.0
        %1225 = vmatpush2.msra.mxu0 0.0
        %1226 = vmatprep.subr.mxu0 0.0
        %1227 = vmatpush2.msra.mxu0 0.0
        %1228 = vmatprep.subr.mxu0 0.0
        %1229 = vmatpush2.msra.mxu0 0.0
        %1230 = vmatprep.mubr.f32.mxu0 0.0
        %1231 = vmatmul.mubr.f32.gmra.mxu0 %v465
        %v1232 = vpop.f32.mrf.mxu0
        %v1233 = vadd.f32 0.0, %v1232
        %v1234 = vpop.f32.mrf.mxu0
        %v1235 = vadd.f32 0.0, %v1234
        %1236 = vmatprep.mubr.f32.mxu0 0.0
        %1237 = vmatmul.mubr.f32.gmra.mxu0 %v468
        %v1238 = vpop.f32.mrf.mxu0
        %v1239 = vadd.f32 0.0, %v1238
        %v1240 = vpop.f32.mrf.mxu0
        %v1241 = vadd.f32 0.0, %v1240
        %1242 = vmatprep.mubr.f32.mxu0 0.0
        %1243 = vmatmul.mubr.f32.gmra.mxu0 %v471
        %v1244 = vpop.f32.mrf.mxu0
        %v1245 = vadd.f32 0.0, %v1244
        %v1246 = vpop.f32.mrf.mxu0
        %v1247 = vadd.f32 0.0, %v1246
        %1248 = vmatprep.mubr.f32.mxu0 0.0
        %1249 = vmatmul.mubr.f32.gmra.mxu0 %v474
        %v1250 = vpop.f32.mrf.mxu0
        %v1251 = vadd.f32 0.0, %v1250
        %v1252 = vpop.f32.mrf.mxu0
        %v1253 = vadd.f32 0.0, %v1252
        %1254 = vmatprep.mubr.f32.mxu0 0.0
        %1255 = vmatmul.mubr.f32.gmra.mxu0 %v477
        %v1256 = vpop.f32.mrf.mxu0
        %v1257 = vadd.f32 0.0, %v1256
        %v1258 = vpop.f32.mrf.mxu0
        %v1259 = vadd.f32 0.0, %v1258
        %1260 = vmatprep.mubr.f32.mxu0 0.0
        %1261 = vmatmul.mubr.f32.gmra.mxu0 %v480
        %v1262 = vpop.f32.mrf.mxu0
        %v1263 = vadd.f32 0.0, %v1262
        %v1264 = vpop.f32.mrf.mxu0
        %v1265 = vadd.f32 0.0, %v1264
        %1266 = vmatprep.mubr.f32.mxu0 0.0
        %1267 = vmatmul.mubr.f32.gmra.mxu0 %v483
        %v1268 = vpop.f32.mrf.mxu0
        %v1269 = vadd.f32 0.0, %v1268
        %v1270 = vpop.f32.mrf.mxu0
        %v1271 = vadd.f32 0.0, %v1270
        %1272 = vmatprep.mubr.f32.mxu0 0.0
        %1273 = vmatmul.mubr.f32.gmra.mxu0 %v486
        %v1274 = vpop.f32.mrf.mxu0
        %v1275 = vadd.f32 0.0, %v1274
        %v1276 = vpop.f32.mrf.mxu0
        %v1277 = vadd.f32 0.0, %v1276
        %1278 = vdwg.mxu0
        %v1279 = vmax.f32 %v555, %v567
        %v1280 = vmax.f32 %v557, %v569
        %v1281 = vmax.f32 %v668, %v680
        %v1282 = vmax.f32 %v670, %v682
        %v1283 = vmax.f32 %v781, %v793
        %v1284 = vmax.f32 %v783, %v795
        %v1285 = vmax.f32 %v894, %v906
        %v1286 = vmax.f32 %v896, %v908
        %v1287 = vmax.f32 %v1007, %v1019
        %v1288 = vmax.f32 %v1009, %v1021
        %v1289 = vmax.f32 %v1120, %v1132
        %v1290 = vmax.f32 %v1122, %v1134
        %v1291 = vmax.f32 %v1233, %v1245
        %v1292 = vmax.f32 %v1235, %v1247
        %v1293 = vmax.f32 %v561, %v573
        %v1294 = vmax.f32 %v563, %v575
        %v1295 = vmax.f32 %v674, %v686
        %v1296 = vmax.f32 %v676, %v688
        %v1297 = vmax.f32 %v787, %v799
        %v1298 = vmax.f32 %v789, %v801
        %v1299 = vmax.f32 %v900, %v912
        %v1300 = vmax.f32 %v902, %v914
        %v1301 = vmax.f32 %v1013, %v1025
        %v1302 = vmax.f32 %v1015, %v1027
        %v1303 = vmax.f32 %v1126, %v1138
        %v1304 = vmax.f32 %v1128, %v1140
        %v1305 = vmax.f32 %v1239, %v1251
        %v1306 = vmax.f32 %v1241, %v1253
        %v1307 = vmax.f32 %v579, %v591
        %v1308 = vmax.f32 %v581, %v593
        %v1309 = vmax.f32 %v692, %v704
        %v1310 = vmax.f32 %v694, %v706
        %v1311 = vmax.f32 %v805, %v817
        %v1312 = vmax.f32 %v807, %v819
        %v1313 = vmax.f32 %v918, %v930
        %v1314 = vmax.f32 %v920, %v932
        %v1315 = vmax.f32 %v1031, %v1043
        %v1316 = vmax.f32 %v1033, %v1045
        %v1317 = vmax.f32 %v1144, %v1156
        %v1318 = vmax.f32 %v1146, %v1158
        %v1319 = vmax.f32 %v1257, %v1269
        %v1320 = vmax.f32 %v1259, %v1271
        %v1321 = vmax.f32 %v585, %v597
        %v1322 = vmax.f32 %v587, %v599
        %v1323 = vmax.f32 %v698, %v710
        %v1324 = vmax.f32 %v700, %v712
        %v1325 = vmax.f32 %v811, %v823
        %v1326 = vmax.f32 %v813, %v825
        %v1327 = vmax.f32 %v924, %v936
        %v1328 = vmax.f32 %v926, %v938
        %v1329 = vmax.f32 %v1037, %v1049
        %v1330 = vmax.f32 %v1039, %v1051
        %v1331 = vmax.f32 %v1150, %v1162
        %v1332 = vmax.f32 %v1152, %v1164
        %v1333 = vmax.f32 %v1263, %v1275
        %v1334 = vmax.f32 %v1265, %v1277
        %v1335 = vmax.f32 %v1279, %v1307
        %v1336 = vmax.f32 %v1280, %v1308
        %v1337 = vmax.f32 %v1281, %v1309
        %v1338 = vmax.f32 %v1282, %v1310
        %v1339 = vmax.f32 %v1283, %v1311
        %v1340 = vmax.f32 %v1284, %v1312
        %v1341 = vmax.f32 %v1285, %v1313
        %v1342 = vmax.f32 %v1286, %v1314
        %v1343 = vmax.f32 %v1287, %v1315
        %v1344 = vmax.f32 %v1288, %v1316
        %v1345 = vmax.f32 %v1289, %v1317
        %v1346 = vmax.f32 %v1290, %v1318
        %v1347 = vmax.f32 %v1291, %v1319
        %v1348 = vmax.f32 %v1292, %v1320
        %v1349 = vmax.f32 %v1293, %v1321
        %v1350 = vmax.f32 %v1294, %v1322
        %v1351 = vmax.f32 %v1295, %v1323
        %v1352 = vmax.f32 %v1296, %v1324
        %v1353 = vmax.f32 %v1297, %v1325
        %v1354 = vmax.f32 %v1298, %v1326
        %v1355 = vmax.f32 %v1299, %v1327
        %v1356 = vmax.f32 %v1300, %v1328
        %v1357 = vmax.f32 %v1301, %v1329
        %v1358 = vmax.f32 %v1302, %v1330
        %v1359 = vmax.f32 %v1303, %v1331
        %v1360 = vmax.f32 %v1304, %v1332
        %v1361 = vmax.f32 %v1305, %v1333
        %v1362 = vmax.f32 %v1306, %v1334
        %v1363 = vld [vmem:[%s2] sm:$0xff]
        %v1364 = vld [vmem:[%s2 + $0x8] sm:$0xff]
        %1366 = vset.pattern.permute.xlu0 0
        %1367 = vperm.xlu0 %1366, %v1363
        %v1368 = vpop.permute.xlu0 %1367
        %1371 = vset.pattern.permute.xlu0 0
        %1372 = vperm.xlu0 %1371, %v1364
        %v1373 = vpop.permute.xlu0 %1372
        %v1375 = vadd.f32 %v1335, %v1368
        %v1376 = vadd.f32 %v1336, %v1368
        %v1377 = vadd.f32 %v1337, %v1368
        %v1378 = vadd.f32 %v1338, %v1368
        %v1379 = vadd.f32 %v1339, %v1368
        %v1380 = vadd.f32 %v1340, %v1368
        %v1381 = vadd.f32 %v1341, %v1368
        %v1382 = vadd.f32 %v1342, %v1368
        %v1383 = vadd.f32 %v1343, %v1368
        %v1384 = vadd.f32 %v1344, %v1368
        %v1385 = vadd.f32 %v1345, %v1368
        %v1386 = vadd.f32 %v1346, %v1368
        %v1387 = vadd.f32 %v1347, %v1368
        %v1388 = vadd.f32 %v1348, %v1368
        %v1389 = vadd.f32 %v1349, %v1373
        %v1390 = vadd.f32 %v1350, %v1373
        %v1391 = vadd.f32 %v1351, %v1373
        %v1392 = vadd.f32 %v1352, %v1373
        %v1393 = vadd.f32 %v1353, %v1373
        %v1394 = vadd.f32 %v1354, %v1373
        %v1395 = vadd.f32 %v1355, %v1373
        %v1396 = vadd.f32 %v1356, %v1373
        %v1397 = vadd.f32 %v1357, %v1373
        %v1398 = vadd.f32 %v1358, %v1373
        %v1399 = vadd.f32 %v1359, %v1373
        %v1400 = vadd.f32 %v1360, %v1373
        %v1401 = vadd.f32 %v1361, %v1373
        %v1402 = vadd.f32 %v1362, %v1373
        %v1403 = vmax.f32 %v1375, 0.0
        %v1404 = vmax.f32 %v1376, 0.0
        %v1405 = vmax.f32 %v1377, 0.0
        %v1406 = vmax.f32 %v1378, 0.0
        %v1407 = vmax.f32 %v1379, 0.0
        %v1408 = vmax.f32 %v1380, 0.0
        %v1409 = vmax.f32 %v1381, 0.0
        %v1410 = vmax.f32 %v1382, 0.0
        %v1411 = vmax.f32 %v1383, 0.0
        %v1412 = vmax.f32 %v1384, 0.0
        %v1413 = vmax.f32 %v1385, 0.0
        %v1414 = vmax.f32 %v1386, 0.0
        %v1415 = vmax.f32 %v1387, 0.0
        %v1416 = vmax.f32 %v1388, 0.0
        %v1417 = vmax.f32 %v1389, 0.0
        %v1418 = vmax.f32 %v1390, 0.0
        %v1419 = vmax.f32 %v1391, 0.0
        %v1420 = vmax.f32 %v1392, 0.0
        %v1421 = vmax.f32 %v1393, 0.0
        %v1422 = vmax.f32 %v1394, 0.0
        %v1423 = vmax.f32 %v1395, 0.0
        %v1424 = vmax.f32 %v1396, 0.0
        %v1425 = vmax.f32 %v1397, 0.0
        %v1426 = vmax.f32 %v1398, 0.0
        %v1427 = vmax.f32 %v1399, 0.0
        %v1428 = vmax.f32 %v1400, 0.0
        %v1429 = vmax.f32 %v1401, 0.0
        %v1430 = vmax.f32 %v1402, 0.0
        %v1431 = vpack.c.bf16 %v1417, %v1403
        %v1432 = vpack.c.bf16 %v1418, %v1404
        %v1433 = vpack.c.bf16 %v1419, %v1405
        %v1434 = vpack.c.bf16 %v1420, %v1406
        %v1435 = vpack.c.bf16 %v1421, %v1407
        %v1436 = vpack.c.bf16 %v1422, %v1408
        %v1437 = vpack.c.bf16 %v1423, %v1409
        %v1438 = vpack.c.bf16 %v1424, %v1410
        %v1439 = vpack.c.bf16 %v1425, %v1411
        %v1440 = vpack.c.bf16 %v1426, %v1412
        %v1441 = vpack.c.bf16 %v1427, %v1413
        %v1442 = vpack.c.bf16 %v1428, %v1414
        %v1443 = vpack.c.bf16 %v1429, %v1415
        %v1444 = vpack.c.bf16 %v1430, %v1416
        %v1459 = vunpack.c.l.b16 %v1431
        %v1460 = vunpack.c.l.b16 %v1432
        %v1461 = vunpack.c.l.b16 %v1433
        %v1462 = vunpack.c.l.b16 %v1434
        %v1463 = vunpack.c.l.b16 %v1435
        %v1464 = vunpack.c.l.b16 %v1436
        %v1465 = vunpack.c.l.b16 %v1437
        %v1466 = vunpack.c.l.b16 %v1438
        %v1467 = vunpack.c.l.b16 %v1439
        %v1468 = vunpack.c.l.b16 %v1440
        %v1469 = vunpack.c.l.b16 %v1441
        %v1470 = vunpack.c.l.b16 %v1442
        %v1471 = vunpack.c.l.b16 %v1443
        %v1472 = vunpack.c.l.b16 %v1444
        %v1473 = vunpack.c.h.b16 %v1431
        %v1474 = vunpack.c.h.b16 %v1432
        %v1475 = vunpack.c.h.b16 %v1433
        %v1476 = vunpack.c.h.b16 %v1434
        %v1477 = vunpack.c.h.b16 %v1435
        %v1478 = vunpack.c.h.b16 %v1436
        %v1479 = vunpack.c.h.b16 %v1437
        %v1480 = vunpack.c.h.b16 %v1438
        %v1481 = vunpack.c.h.b16 %v1439
        %v1482 = vunpack.c.h.b16 %v1440
        %v1483 = vunpack.c.h.b16 %v1441
        %v1484 = vunpack.c.h.b16 %v1442
        %v1485 = vunpack.c.h.b16 %v1443
        %v1486 = vunpack.c.h.b16 %v1444
        %v1487 = vpack.c.b16 %v1460, %v1459
        %v1488 = vpack.c.b16 %v1462, %v1461
        %v1489 = vpack.c.b16 %v1464, %v1463
        %v1490 = vpack.c.b16 %v1466, %v1465
        %v1491 = vpack.c.b16 %v1468, %v1467
        %v1492 = vpack.c.b16 %v1470, %v1469
        %v1493 = vpack.c.b16 %v1472, %v1471
        %v1494 = vpack.c.b16 %v1474, %v1473
        %v1495 = vpack.c.b16 %v1476, %v1475
        %v1496 = vpack.c.b16 %v1478, %v1477
        %v1497 = vpack.c.b16 %v1480, %v1479
        %v1498 = vpack.c.b16 %v1482, %v1481
        %v1499 = vpack.c.b16 %v1484, %v1483
        %v1500 = vpack.c.b16 %v1486, %v1485
        %1515 = vst [vmem:[%s368] sm:$0xff] %v1487
        %1516 = vst [vmem:[%s368 + $0x8] sm:$0xff] %v1488
        %1517 = vst [vmem:[%s368 + $0x10] sm:$0xff] %v1489
        %1518 = vst [vmem:[%s368 + $0x18] sm:$0xff] %v1490
        %1519 = vst [vmem:[%s368 + $0x20] sm:$0xff] %v1491
        %1520 = vst [vmem:[%s368 + $0x28] sm:$0xff] %v1492
        %1521 = vst [vmem:[%s368 + $0x30] sm:$0xff] %v1493
        %1522 = vst [vmem:[%s368 + $0x38] sm:$0xff] %v1494
        %1523 = vst [vmem:[%s368 + $0x40] sm:$0xff] %v1495
        %1524 = vst [vmem:[%s368 + $0x48] sm:$0xff] %v1496
        %1525 = vst [vmem:[%s368 + $0x50] sm:$0xff] %v1497
        %1526 = vst [vmem:[%s368 + $0x58] sm:$0xff] %v1498
        %1527 = vst [vmem:[%s368 + $0x60] sm:$0xff] %v1499
        %1528 = vst [vmem:[%s368 + $0x68] sm:$0xff] %v1500
        %s1529 = sand.u32 %s106, 1
        %s1530 = sand.u32 %s106, 1
        %s1531 = smul.addr %s1530, 112
        %s1532 = scalar_lea.vmem [#allocation3], %s1531
        // Predicated region
        $region56: #{simple_cnn_forward.3} parent=50 // pred_check
          %p1533 = pneg %p116
        $region57: #{simple_cnn_forward.3} parent=50 // pred_check_branch
          %1535 = sbr.rel (%p1533) target = $region59
        $region58: #{simple_cnn_forward.3} parent=50 // pred_region
          %s1536 = smul.u32 14, %s19
          %s1537 = smul.addr %s18, 196
          %s1538 = sadd.s32 %s1536, %s1537
          %s1539 = smul.addr %s1538, 4
          %s1540 = scalar_lea.vmem %s3, %s1539
          // Predicated region
          $region60: #{simple_cnn_forward.3} parent=58 // pred_check
            _
          $region61: #{simple_cnn_forward.3} parent=58 // pred_check_branch
            %1542 = sbr.rel (0) target = $region63
          $region62: #{simple_cnn_forward.3} parent=58 // pred_region
            // Predicated region
            $region64: #{simple_cnn_forward.3} parent=62 // pred_check
              _
            $region65: #{simple_cnn_forward.3} parent=62 // pred_check_branch
              %1544 = sbr.rel (0) target = $region67
            $region66: #{simple_cnn_forward.3} parent=62 // pred_region
              loop: start=0, step=1, limit=1
              $region68: #{simple_cnn_forward.3} parent=66 // loop_pre_header
                _
              $region69: #{simple_cnn_forward.3} parent=66 // loop_header
                %s1546 = sphi 0, %s1550
                %p1547 = scmp.ge.s32.totalorder %s1546, 1
                %s1551 = sphi %s1532, %s1532
                %s1552 = sphi %s1540, %s1540
              $region70: #{simple_cnn_forward.3} parent=66 // loop_header_branch
                %1549 = sbr.rel (%p1547) target = $region74
              $region71: #{simple_cnn_forward.3} parent=66 // loop_body
                %v1553 = vld [vmem:[%s1551] sm:$0xff]
                %1554 = vst [vmem:[%s1552] sm:$0xff] %v1553
                %v1555 = vld [vmem:[%s1551 + $0x8] sm:$0xff]
                %1556 = vst [vmem:[%s1552 + $0x8] sm:$0xff] %v1555
                %v1557 = vld [vmem:[%s1551 + $0x10] sm:$0xff]
                %1558 = vst [vmem:[%s1552 + $0x10] sm:$0xff] %v1557
                %v1559 = vld [vmem:[%s1551 + $0x18] sm:$0xff]
                %1560 = vst [vmem:[%s1552 + $0x18] sm:$0xff] %v1559
                %v1561 = vld [vmem:[%s1551 + $0x20] sm:$0xff]
                %1562 = vst [vmem:[%s1552 + $0x20] sm:$0xff] %v1561
                %v1563 = vld [vmem:[%s1551 + $0x28] sm:$0xff]
                %1564 = vst [vmem:[%s1552 + $0x28] sm:$0xff] %v1563
                %v1565 = vld [vmem:[%s1551 + $0x30] sm:$0xff]
                %1566 = vst [vmem:[%s1552 + $0x30] sm:$0xff] %v1565
                %v1567 = vld [vmem:[%s1551 + $0x38] sm:$0xff]
                %1568 = vst [vmem:[%s1552 + $0x188] sm:$0xff] %v1567
                %v1569 = vld [vmem:[%s1551 + $0x40] sm:$0xff]
                %1570 = vst [vmem:[%s1552 + $0x190] sm:$0xff] %v1569
                %v1571 = vld [vmem:[%s1551 + $0x48] sm:$0xff]
                %1572 = vst [vmem:[%s1552 + $0x198] sm:$0xff] %v1571
                %v1573 = vld [vmem:[%s1551 + $0x50] sm:$0xff]
                %1574 = vst [vmem:[%s1552 + $0x1a0] sm:$0xff] %v1573
                %v1575 = vld [vmem:[%s1551 + $0x58] sm:$0xff]
                %1576 = vst [vmem:[%s1552 + $0x1a8] sm:$0xff] %v1575
                %v1577 = vld [vmem:[%s1551 + $0x60] sm:$0xff]
                %1578 = vst [vmem:[%s1552 + $0x1b0] sm:$0xff] %v1577
                %v1579 = vld [vmem:[%s1551 + $0x68] sm:$0xff]
                %1580 = vst [vmem:[%s1552 + $0x1b8] sm:$0xff] %v1579
              $region72: #{simple_cnn_forward.3} parent=66 // loop_footer
                %s1550 = sadd.s32 1, %s1546
              $region73: #{simple_cnn_forward.3} parent=66 // loop_footer_branch
                %1545 = sbr.rel target = $region69
              $region74: #{simple_cnn_forward.3} parent=66 // loop_exit
                _
            $region67: #{simple_cnn_forward.3} parent=62 // pred_fallthru
              _
            // Predicated region
            $region75: #{simple_cnn_forward.3} parent=62 // pred_check
              _
            $region76: #{simple_cnn_forward.3} parent=62 // pred_check_branch
              %1582 = sbr.rel target = $region78
            $region77: #{simple_cnn_forward.3} parent=62 // pred_region
              _
            $region78: #{simple_cnn_forward.3} parent=62 // pred_fallthru
              _
          $region63: #{simple_cnn_forward.3} parent=58 // pred_fallthru
            _
          %1583 = vnop
        $region59: #{simple_cnn_forward.3} parent=50 // pred_fallthru
          _
      $region51: #{simple_cnn_forward.3} parent=5 // pred_fallthru
        _
      %p1584 = scmp.le.s32.totalorder 2, %s9
      // Predicated region
      $region79: #{simple_cnn_forward.3} parent=5 // pred_check
        %p1585 = pneg %p1584
      $region80: #{simple_cnn_forward.3} parent=5 // pred_check_branch
        %1587 = sbr.rel (%p1585) target = $region82
      $region81: #{simple_cnn_forward.3} parent=5 // pred_region
        %s1588 = ssub.s32 %s9, 2
        // Predicated region
        $region83: #{simple_cnn_forward.3} parent=81 // pred_check
          %p1589 = pneg %p122
        $region84: #{simple_cnn_forward.3} parent=81 // pred_check_branch
          %1591 = sbr.rel (%p1589) target = $region86
        $region85: #{simple_cnn_forward.3} parent=81 // pred_region
          %s1592 = sand.u32 %s107, 1
          %s1593 = sand.u32 %s107, 1
          %s1594 = smul.addr %s1593, 112
          %s1595 = scalar_lea.vmem [#allocation3], %s1594
        $region86: #{simple_cnn_forward.3} parent=81 // pred_fallthru
          _
      $region82: #{simple_cnn_forward.3} parent=5 // pred_fallthru
        _
    $region6: #{simple_cnn_forward.3} parent=1 // loop_footer
      %s13 = sadd.s32 1, %s9
    $region7: #{simple_cnn_forward.3} parent=1 // loop_footer_branch
      %8 = sbr.rel target = $region3
    $region8: #{simple_cnn_forward.3} parent=1 // loop_exit
      _

// kernel: simple_cnn_forward.5
$region0: #{simple_cnn_forward.5}
  #allocation0 [shape = 'u32[]', space=smem, size = 0x4, offset = 0x4, fixed_abs, tag = 'smem constant byte address 0x4 - core index']
  #allocation1 [shape = 'u32[144,128]{1,0:T(1,128)}', space=vmem, size = 0x12000, scoped, tag = 'internal scratch']
  %s0 = inlined_call_operand.vmem [shape: f32[2,2,128], index: 0, kind: input, shape index: {}]
  %s1 = inlined_call_operand.vmem [shape: f32[1,128], index: 1, kind: input, shape index: {}]
  %s2 = inlined_call_operand.vmem [shape: f32[128,128], index: 2, kind: input, shape index: {}]
  %s3 = inlined_call_operand.vmem [shape: f32[1,128], index: 3, kind: input, shape index: {}]
  %s4 = inlined_call_operand.hbm [shape: f32[2,128], index: 4, kind: output, shape index: {}]
  %s5 = sld [smem:[#allocation0]]
  $region26: #{simple_cnn_forward.5} parent=0
    _
  %s7 = ssub.s32 1, %s5
  %s8 = scalar_select 0, %s7, %s5
  $region1: #{simple_cnn_forward.5} parent=0
    #allocation2 [shape = 'u8[1024]{0}', space=vmem, size = 0x400, scoped, tag = 'output window, operand 0, single buffered']
    #allocation3 [shape = 's32[1]{0}', space=sflag, size = 0x4, scoped, tag = 'scoped memory for simple_cnn_forward.5']
    %9 = vsyncpa [#allocation3], 0
    // Predicated region
    $region2: #{simple_cnn_forward.5} parent=1 // pred_check
      _
    $region3: #{simple_cnn_forward.5} parent=1 // pred_check_branch
      %11 = sbr.rel (0) target = $region5
    $region4: #{simple_cnn_forward.5} parent=1 // pred_region
      _
    $region5: #{simple_cnn_forward.5} parent=1 // pred_fallthru
      _
    // Predicated region
    $region6: #{simple_cnn_forward.5} parent=1 // pred_check
      _
    $region7: #{simple_cnn_forward.5} parent=1 // pred_check_branch
      %13 = sbr.rel (0) target = $region9
    $region8: #{simple_cnn_forward.5} parent=1 // pred_region
      _
    $region9: #{simple_cnn_forward.5} parent=1 // pred_fallthru
      _
    // Predicated region
    $region10: #{simple_cnn_forward.5} parent=1 // pred_check
      _
    $region11: #{simple_cnn_forward.5} parent=1 // pred_check_branch
      %15 = sbr.rel (0) target = $region13
    $region12: #{simple_cnn_forward.5} parent=1 // pred_region
      _
    $region13: #{simple_cnn_forward.5} parent=1 // pred_fallthru
      _
    // Predicated region
    $region14: #{simple_cnn_forward.5} parent=1 // pred_check
      _
    $region15: #{simple_cnn_forward.5} parent=1 // pred_check_branch
      %17 = sbr.rel (0) target = $region17
    $region16: #{simple_cnn_forward.5} parent=1 // pred_region
      _
    $region17: #{simple_cnn_forward.5} parent=1 // pred_fallthru
      _
    %v18 = vld [vmem:[%s0] sm:$0x3]
    %v19 = vld [vmem:[%s0 + $0x2] sm:$0x3]
    %vm20 = vcmask 1041408
    %v21 = vsel %vm20, %v18, 0.0
    %v22 = vsel %vm20, %v19, 0.0
    %v23 = vadd.f32 %v21, %v22
    %v24 = vld [vmem:[%s1] sm:$0x1]
    %v26 = vlaneseq
    %v27 = vshrl.u32 %v26, 7
    %v28 = vsub.s32 0, %v27
    %v29 = vrot.slane %v24, %v28
    %v31 = vadd.f32 %v23, %v29
    %v32 = vmax.f32 %v31, 0.0
    %v33 = vld [vmem:[%s2] sm:$0xff]
    %v34 = vld [vmem:[%s2 + $0x8] sm:$0xff]
    %v35 = vld [vmem:[%s2 + $0x10] sm:$0xff]
    %v36 = vld [vmem:[%s2 + $0x18] sm:$0xff]
    %v37 = vld [vmem:[%s2 + $0x20] sm:$0xff]
    %v38 = vld [vmem:[%s2 + $0x28] sm:$0xff]
    %v39 = vld [vmem:[%s2 + $0x30] sm:$0xff]
    %v40 = vld [vmem:[%s2 + $0x38] sm:$0xff]
    %v41 = vld [vmem:[%s2 + $0x40] sm:$0xff]
    %v42 = vld [vmem:[%s2 + $0x48] sm:$0xff]
    %v43 = vld [vmem:[%s2 + $0x50] sm:$0xff]
    %v44 = vld [vmem:[%s2 + $0x58] sm:$0xff]
    %v45 = vld [vmem:[%s2 + $0x60] sm:$0xff]
    %v46 = vld [vmem:[%s2 + $0x68] sm:$0xff]
    %v47 = vld [vmem:[%s2 + $0x70] sm:$0xff]
    %v48 = vld [vmem:[%s2 + $0x78] sm:$0xff]
    %v49 = vld [vmem:[%s3] sm:$0x1]
    %v51 = vlaneseq
    %v52 = vshrl.u32 %v51, 7
    %v53 = vsub.s32 0, %v52
    %v54 = vrot.slane %v49, %v53
    %56 = vmatprep.subr.mxu0 0.0
    %57 = vmatpush1.msra.mxu0 %v48
    %58 = vmatprep.subr.mxu0 0.0
    %59 = vmatpush1.msra.mxu0 %v47
    %60 = vmatprep.subr.mxu0 0.0
    %61 = vmatpush1.msra.mxu0 %v46
    %62 = vmatprep.subr.mxu0 0.0
    %63 = vmatpush1.msra.mxu0 %v45
    %64 = vmatprep.subr.mxu0 0.0
    %65 = vmatpush1.msra.mxu0 %v44
    %66 = vmatprep.subr.mxu0 0.0
    %67 = vmatpush1.msra.mxu0 %v43
    %68 = vmatprep.subr.mxu0 0.0
    %69 = vmatpush1.msra.mxu0 %v42
    %70 = vmatprep.subr.mxu0 0.0
    %71 = vmatpush1.msra.mxu0 %v41
    %72 = vmatprep.subr.mxu0 0.0
    %73 = vmatpush1.msra.mxu0 %v40
    %74 = vmatprep.subr.mxu0 0.0
    %75 = vmatpush1.msra.mxu0 %v39
    %76 = vmatprep.subr.mxu0 0.0
    %77 = vmatpush1.msra.mxu0 %v38
    %78 = vmatprep.subr.mxu0 0.0
    %79 = vmatpush1.msra.mxu0 %v37
    %80 = vmatprep.subr.mxu0 0.0
    %81 = vmatpush1.msra.mxu0 %v36
    %82 = vmatprep.subr.mxu0 0.0
    %83 = vmatpush1.msra.mxu0 %v35
    %84 = vmatprep.subr.mxu0 0.0
    %85 = vmatpush1.msra.mxu0 %v34
    %86 = vmatprep.subr.mxu0 0.0
    %87 = vmatpush1.msra.mxu0 %v33
    %88 = vmatprep.subr.mxu0 0.0
    %89 = vmatpush2.msra.mxu0 0.0
    %90 = vmatprep.subr.mxu0 0.0
    %91 = vmatpush2.msra.mxu0 0.0
    %92 = vmatprep.subr.mxu0 0.0
    %93 = vmatpush2.msra.mxu0 0.0
    %94 = vmatprep.subr.mxu0 0.0
    %95 = vmatpush2.msra.mxu0 0.0
    %96 = vmatprep.subr.mxu0 0.0
    %97 = vmatpush2.msra.mxu0 0.0
    %98 = vmatprep.subr.mxu0 0.0
    %99 = vmatpush2.msra.mxu0 0.0
    %100 = vmatprep.subr.mxu0 0.0
    %101 = vmatpush2.msra.mxu0 0.0
    %102 = vmatprep.subr.mxu0 0.0
    %103 = vmatpush2.msra.mxu0 0.0
    %104 = vmatprep.subr.mxu0 0.0
    %105 = vmatpush2.msra.mxu0 0.0
    %106 = vmatprep.subr.mxu0 0.0
    %107 = vmatpush2.msra.mxu0 0.0
    %108 = vmatprep.subr.mxu0 0.0
    %109 = vmatpush2.msra.mxu0 0.0
    %110 = vmatprep.subr.mxu0 0.0
    %111 = vmatpush2.msra.mxu0 0.0
    %112 = vmatprep.subr.mxu0 0.0
    %113 = vmatpush2.msra.mxu0 0.0
    %114 = vmatprep.subr.mxu0 0.0
    %115 = vmatpush2.msra.mxu0 0.0
    %116 = vmatprep.subr.mxu0 0.0
    %117 = vmatpush2.msra.mxu0 0.0
    %118 = vmatprep.subr.mxu0 0.0
    %119 = vmatpush2.msra.mxu0 0.0
    %120 = vmatprep.mubr.f32.mxu0 0.0
    %121 = vmatmul.mubr.f32.gmra.mxu0 %v32
    %v122 = vpop.f32.mrf.mxu0
    %v123 = vadd.f32 %v54, %v122
    %v124 = vpop.f32.mrf.mxu0
    %125 = vdwg.mxu0
    %126 = vst [vmem:[#allocation2] sm:$0x3] %v123
    // Predicated region
    $region18: #{simple_cnn_forward.5} parent=1 // pred_check
      _
    $region19: #{simple_cnn_forward.5} parent=1 // pred_check_branch
      %128 = sbr.rel (0) target = $region21
    $region20: #{simple_cnn_forward.5} parent=1 // pred_region
      %s130 = ssub.s32 32, 32
      %131 = vsyncadd [#allocation3], %s130
      %s133 = sshll.u32 [#allocation2], 4
      %s134 = int_to_ptr.vmem [resolvable:$true] %s133
      %136 = dma.vmem_to_hbm [thread:$0]  %s134, 32, %s4, [#allocation3]
    $region21: #{simple_cnn_forward.5} parent=1 // pred_fallthru
      _
    // Predicated region
    $region22: #{simple_cnn_forward.5} parent=1 // pred_check
      _
    $region23: #{simple_cnn_forward.5} parent=1 // pred_check_branch
      %138 = sbr.rel (0) target = $region25
    $region24: #{simple_cnn_forward.5} parent=1 // pred_region
      %139 = dma.done [#allocation3], 32
    $region25: #{simple_cnn_forward.5} parent=1 // pred_fallthru
      _
    %140 = vsyncpa [#allocation3], 1

// kernel: simple_cnn_forward.4
$region0: #{simple_cnn_forward.4}
  #allocation0 [shape = 'u32[]', space=smem, size = 0x4, offset = 0x4, fixed_abs, tag = 'smem constant byte address 0x4 - core index']
  #allocation1 [shape = 'u32[144,128]{1,0:T(1,128)}', space=vmem, size = 0x12000, scoped, tag = 'internal scratch']
  #allocation2 [shape = 'f32[2,128]{1,0:T(2,128)}', space=vmem, size = 0x400, scoped, tag = 'scratch operand']
  %s0 = inlined_call_operand.vmem [shape: bf16[2,200704], index: 0, kind: input, shape index: {}]
  %s1 = inlined_call_operand.vmem [shape: bf16[200704,128], index: 1, kind: input, shape index: {}]
  %s2 = inlined_call_operand.vmem [shape: f32[2,2,128], index: 2, kind: output, shape index: {}]
  %s3 = sld [smem:[#allocation0]]
  $region49: #{simple_cnn_forward.4} parent=0
    _
  %s5 = ssub.s32 1, %s3
  %s6 = scalar_select 0, %s5, %s3
  loop: start=0, step=1, limit=18
  $region2: #{simple_cnn_forward.4} parent=0 // loop_pre_header
    _
  $region3: #{simple_cnn_forward.4} parent=0 // loop_header
    %s8 = sphi 0, %s12
    %p9 = scmp.ge.s32.totalorder %s8, 18
    %s15 = sphi 0, %s27
    %s16 = sphi 0, %s23
    %s17 = sphi 0, %s15
    %s18 = sphi 0, %s16
    %s19 = sphi 0, %s17
    %s20 = sphi 0, %s18
    %s34 = sphi 0, %s36
    %s37 = sphi 0, %s34
    %s38 = sphi 0, %s37
    %s54 = sphi 0, %s38
    %s64 = sphi 0, %s66
    %s67 = sphi 0, %s64
    %s68 = sphi 0, %s67
    %s84 = sphi 0, %s68
    %s90 = sphi 0, %s92
    %s93 = sphi 0, %s90
    %s94 = sphi 0, %s93
    %s110 = sphi 0, %s94
  $region4: #{simple_cnn_forward.4} parent=0 // loop_header_branch
    %11 = sbr.rel (%p9) target = $region8
  $region5: #{simple_cnn_forward.4} parent=0 // loop_body
    %s13 = ssub.s32 %s8, 1
    %s14 = ssub.s32 %s8, 2
    %s21 = sadd.s32 1, %s16
    %p22 = scmp.ge.s32.totalorder %s21, 8
    %s23 = scalar_select %p22, 0, %s21
    %s24 = sadd.s32 1, %s15
    %s25 = scalar_select %p22, %s24, %s15
    %p26 = scmp.ge.s32.totalorder %s25, 2
    %s27 = scalar_select %p26, 0, %s25
    %s28 = smul.u32 %s15, 8
    %s29 = sadd.s32 %s28, %s16
    %s30 = smul.u32 %s27, 8
    %s31 = sadd.s32 %s30, %s23
    %s32 = ssub.s32 %s29, %s31
    %p33 = scmp.eq.s32.totalorder %s32, 0
    %s35 = sadd.s32 %s34, 1
    %s36 = scalar_select %p33, %s34, %s35
    %p39 = pneg %p33
    %p40 = scmp.eq.s32.totalorder %s8, 15
    %p41 = por %p39, %p40
    %p42 = scmp.ne.s32.totalorder %s34, %s37
    %p43 = scmp.eq.s32.totalorder %s8, 0
    %p44 = por %p42, %p43
    %p45 = scmp.ne.s32.totalorder %s34, %s37
    %p46 = scmp.eq.s32.totalorder %s13, 15
    %p47 = por %p45, %p46
    %p48 = scmp.ne.s32.totalorder %s37, %s38
    %p49 = scmp.eq.s32.totalorder %s13, 0
    %p50 = por %p48, %p49
    %p51 = scmp.ne.s32.totalorder %s37, %s38
    %p52 = scmp.eq.s32.totalorder %s14, 15
    %p53 = por %p51, %p52
    %p55 = scmp.ne.s32.totalorder %s38, %s54
    %p56 = scmp.eq.s32.totalorder %s14, 0
    %p57 = por %p55, %p56
    %s58 = smul.u32 %s15, 8
    %s59 = sadd.s32 %s58, %s16
    %s60 = smul.u32 %s27, 8
    %s61 = sadd.s32 %s60, %s23
    %s62 = ssub.s32 %s59, %s61
    %p63 = scmp.eq.s32.totalorder %s62, 0
    %s65 = sadd.s32 %s64, 1
    %s66 = scalar_select %p63, %s64, %s65
    %p69 = pneg %p63
    %p70 = scmp.eq.s32.totalorder %s8, 15
    %p71 = por %p69, %p70
    %p72 = scmp.ne.s32.totalorder %s64, %s67
    %p73 = scmp.eq.s32.totalorder %s8, 0
    %p74 = por %p72, %p73
    %p75 = scmp.ne.s32.totalorder %s64, %s67
    %p76 = scmp.eq.s32.totalorder %s13, 15
    %p77 = por %p75, %p76
    %p78 = scmp.ne.s32.totalorder %s67, %s68
    %p79 = scmp.eq.s32.totalorder %s13, 0
    %p80 = por %p78, %p79
    %p81 = scmp.ne.s32.totalorder %s67, %s68
    %p82 = scmp.eq.s32.totalorder %s14, 15
    %p83 = por %p81, %p82
    %p85 = scmp.ne.s32.totalorder %s68, %s84
    %p86 = scmp.eq.s32.totalorder %s14, 0
    %p87 = por %p85, %p86
    %s88 = ssub.s32 %s15, %s27
    %p89 = scmp.eq.s32.totalorder %s88, 0
    %s91 = sadd.s32 %s90, 1
    %s92 = scalar_select %p89, %s90, %s91
    %p95 = pneg %p89
    %p96 = scmp.eq.s32.totalorder %s8, 15
    %p97 = por %p95, %p96
    %p98 = scmp.ne.s32.totalorder %s90, %s93
    %p99 = scmp.eq.s32.totalorder %s8, 0
    %p100 = por %p98, %p99
    %p101 = scmp.ne.s32.totalorder %s90, %s93
    %p102 = scmp.eq.s32.totalorder %s13, 15
    %p103 = por %p101, %p102
    %p104 = scmp.ne.s32.totalorder %s93, %s94
    %p105 = scmp.eq.s32.totalorder %s13, 0
    %p106 = por %p104, %p105
    %p107 = scmp.ne.s32.totalorder %s93, %s94
    %p108 = scmp.eq.s32.totalorder %s14, 15
    %p109 = por %p107, %p108
    %p111 = scmp.ne.s32.totalorder %s94, %s110
    %p112 = scmp.eq.s32.totalorder %s14, 0
    %p113 = por %p111, %p112
    %p114 = scmp.le.s32.totalorder 1, %s8
    %p115 = scmp.lt.s32.totalorder %s8, 17
    %p116 = pnand %p114, %p115
    %p117 = pneg %p116
    // Predicated region
    $region9: #{simple_cnn_forward.4} parent=5 // pred_check
      _
    $region10: #{simple_cnn_forward.4} parent=5 // pred_check_branch
      %119 = sbr.rel (%p116) target = $region12
    $region11: #{simple_cnn_forward.4} parent=5 // pred_region
      %s120 = ssub.s32 %s8, 1
    $region12: #{simple_cnn_forward.4} parent=5 // pred_fallthru
      _
    %p121 = scmp.lt.s32.totalorder %s8, 16
    // Predicated region
    $region13: #{simple_cnn_forward.4} parent=5 // pred_check
      %p122 = pneg %p121
    $region14: #{simple_cnn_forward.4} parent=5 // pred_check_branch
      %124 = sbr.rel (%p122) target = $region16
    $region15: #{simple_cnn_forward.4} parent=5 // pred_region
      // Predicated region
      $region17: #{simple_cnn_forward.4} parent=15 // pred_check
        %p125 = pneg %p44
      $region18: #{simple_cnn_forward.4} parent=15 // pred_check_branch
        %127 = sbr.rel (%p125) target = $region20
      $region19: #{simple_cnn_forward.4} parent=15 // pred_region
        %s128 = smul.u32 %s15, 8
        %s129 = sadd.s32 %s128, %s16
        %s130 = smul.u32 98, %s129
        %p131 = scmp.lt.s32.totalorder %s130, 1567
        %s132 = scalar_select %p131, %s130, 1567
        %s133 = scalar_lea.vmem %s0, %s132
        %s134 = smul.u32 %s15, 8
        %s135 = sadd.s32 %s134, %s16
        %s136 = smul.u32 98, %s135
      $region20: #{simple_cnn_forward.4} parent=15 // pred_fallthru
        _
      // Predicated region
      $region21: #{simple_cnn_forward.4} parent=15 // pred_check
        %p137 = pneg %p74
      $region22: #{simple_cnn_forward.4} parent=15 // pred_check_branch
        %139 = sbr.rel (%p137) target = $region24
      $region23: #{simple_cnn_forward.4} parent=15 // pred_region
        %s140 = smul.u32 %s15, 8
        %s141 = sadd.s32 %s140, %s16
        %s142 = smul.u32 1568, %s141
        %p143 = scmp.lt.s32.totalorder %s142, 25087
        %s144 = scalar_select %p143, %s142, 25087
        %s145 = smul.addr %s144, 4
        %s146 = scalar_lea.vmem %s1, %s145
        %s147 = smul.u32 %s15, 8
        %s148 = sadd.s32 %s147, %s16
        %s149 = smul.u32 1568, %s148
      $region24: #{simple_cnn_forward.4} parent=15 // pred_fallthru
        _
    $region16: #{simple_cnn_forward.4} parent=5 // pred_fallthru
      _
    %p150 = scmp.le.s32.totalorder 1, %s8
    %p151 = scmp.lt.s32.totalorder %s8, 17
    %p152 = pnand %p150, %p151
    %p153 = pneg %p152
    // Predicated region
    $region25: #{simple_cnn_forward.4} parent=5 // pred_check
      _
    $region26: #{simple_cnn_forward.4} parent=5 // pred_check_branch
      %155 = sbr.rel (%p152) target = $region28
    $region27: #{simple_cnn_forward.4} parent=5 // pred_region
      %s156 = ssub.s32 %s8, 1
      %s157 = smul.u32 %s17, 8
      %s158 = sadd.s32 %s157, %s18
      %s159 = smul.u32 98, %s158
      %p160 = scmp.lt.s32.totalorder %s159, 1567
      %s161 = scalar_select %p160, %s159, 1567
      %s162 = scalar_lea.vmem %s0, %s161
      %p163 = pneg %p50
      %p164 = pneg %p47
      %s165 = smul.u32 %s17, 8
      %s166 = sadd.s32 %s165, %s18
      %s167 = smul.u32 1568, %s166
      %p168 = scmp.lt.s32.totalorder %s167, 25087
      %s169 = scalar_select %p168, %s167, 25087
      %s170 = smul.addr %s169, 4
      %s171 = scalar_lea.vmem %s1, %s170
      %p172 = pneg %p80
      %p173 = pneg %p77
      %p174 = pneg %p106
      %p175 = pneg %p103
      %p176 = scmp.lt.s32.totalorder %s17, 1
      %s177 = scalar_select %p176, %s17, 1
      %s178 = smul.addr %s177, 2
      %s179 = scalar_lea.vmem %s2, %s178
      %s180 = smul.u32 %s17, 8
      %s181 = sadd.s32 %s180, %s18
      %s182 = smul.u32 98, %s181
      %p183 = scmp.lt.s32.totalorder %s182, 1567
      %s184 = scalar_select %p183, %s182, 1567
      %s185 = scalar_lea.vmem %s0, %s184
      %s186 = smul.u32 %s17, 8
      %s187 = sadd.s32 %s186, %s18
      %s188 = smul.u32 98, %s187
      %s189 = smul.u32 %s17, 8
      %s190 = sadd.s32 %s189, %s18
      %s191 = smul.u32 1568, %s190
      %p192 = scmp.lt.s32.totalorder %s191, 25087
      %s193 = scalar_select %p192, %s191, 25087
      %s194 = smul.addr %s193, 4
      %s195 = scalar_lea.vmem %s1, %s194
      %s196 = smul.u32 %s17, 8
      %s197 = sadd.s32 %s196, %s18
      %s198 = smul.u32 1568, %s197
      %p199 = scmp.lt.s32.totalorder %s17, 1
      %s200 = scalar_select %p199, %s17, 1
      %s201 = smul.addr %s200, 2
      %s202 = scalar_lea.vmem %s2, %s201
      %p204 = scmp.eq.s32.totalorder %s18, 0
      // Predicated region
      $region29: #{simple_cnn_forward.4} parent=27 // pred_check
        %p205 = pneg %p204
      $region30: #{simple_cnn_forward.4} parent=27 // pred_check_branch
        %207 = sbr.rel (%p205) target = $region32
      $region31: #{simple_cnn_forward.4} parent=27 // pred_region
        %208 = vst [vmem:[#allocation2] sm:$0x3] 0.0
      $region32: #{simple_cnn_forward.4} parent=27 // pred_fallthru
        _
      %v209 = vld [vmem:[#allocation2] sm:$0x3]
      %v210 = vld [vmem:[%s185] sm:$0xff]
      %v211 = vld [vmem:[%s185 + $0x8] sm:$0xff]
      %v212 = vld [vmem:[%s185 + $0x10] sm:$0xff]
      %v213 = vld [vmem:[%s185 + $0x18] sm:$0xff]
      %v214 = vld [vmem:[%s185 + $0x20] sm:$0xff]
      %v215 = vld [vmem:[%s185 + $0x28] sm:$0xff]
      %v216 = vld [vmem:[%s185 + $0x30] sm:$0xff]
      %v217 = vld [vmem:[%s185 + $0x38] sm:$0xff]
      %v218 = vld [vmem:[%s185 + $0x40] sm:$0xff]
      %v219 = vld [vmem:[%s185 + $0x48] sm:$0xff]
      %v220 = vld [vmem:[%s185 + $0x50] sm:$0xff]
      %v221 = vld [vmem:[%s185 + $0x58] sm:$0xff]
      %v222 = vld [vmem:[%s185 + $0x60] sm:$0x3]
      %v223 = vld [vmem:[%s195] sm:$0xf]
      %v224 = vld [vmem:[%s195 + $0x4] sm:$0xf]
      %v225 = vld [vmem:[%s195 + $0x8] sm:$0xf]
      %v226 = vld [vmem:[%s195 + $0xc] sm:$0xf]
      %v227 = vld [vmem:[%s195 + $0x10] sm:$0xf]
      %v228 = vld [vmem:[%s195 + $0x14] sm:$0xf]
      %v229 = vld [vmem:[%s195 + $0x18] sm:$0xf]
      %v230 = vld [vmem:[%s195 + $0x1c] sm:$0xf]
      %v231 = vld [vmem:[%s195 + $0x20] sm:$0xf]
      %v232 = vld [vmem:[%s195 + $0x24] sm:$0xf]
      %v233 = vld [vmem:[%s195 + $0x28] sm:$0xf]
      %v234 = vld [vmem:[%s195 + $0x2c] sm:$0xf]
      %v235 = vld [vmem:[%s195 + $0x30] sm:$0xf]
      %v236 = vld [vmem:[%s195 + $0x34] sm:$0xf]
      %v237 = vld [vmem:[%s195 + $0x38] sm:$0xf]
      %v238 = vld [vmem:[%s195 + $0x3c] sm:$0xf]
      %v239 = vld [vmem:[%s195 + $0x40] sm:$0xf]
      %v240 = vld [vmem:[%s195 + $0x44] sm:$0xf]
      %v241 = vld [vmem:[%s195 + $0x48] sm:$0xf]
      %v242 = vld [vmem:[%s195 + $0x4c] sm:$0xf]
      %v243 = vld [vmem:[%s195 + $0x50] sm:$0xf]
      %v244 = vld [vmem:[%s195 + $0x54] sm:$0xf]
      %v245 = vld [vmem:[%s195 + $0x58] sm:$0xf]
      %v246 = vld [vmem:[%s195 + $0x5c] sm:$0xf]
      %v247 = vld [vmem:[%s195 + $0x60] sm:$0xf]
      %v248 = vld [vmem:[%s195 + $0x64] sm:$0xf]
      %v249 = vld [vmem:[%s195 + $0x68] sm:$0xf]
      %v250 = vld [vmem:[%s195 + $0x6c] sm:$0xf]
      %v251 = vld [vmem:[%s195 + $0x70] sm:$0xf]
      %v252 = vld [vmem:[%s195 + $0x74] sm:$0xf]
      %v253 = vld [vmem:[%s195 + $0x78] sm:$0xf]
      %v254 = vld [vmem:[%s195 + $0x7c] sm:$0xf]
      %v255 = vld [vmem:[%s195 + $0x80] sm:$0xf]
      %v256 = vld [vmem:[%s195 + $0x84] sm:$0xf]
      %v257 = vld [vmem:[%s195 + $0x88] sm:$0xf]
      %v258 = vld [vmem:[%s195 + $0x8c] sm:$0xf]
      %v259 = vld [vmem:[%s195 + $0x90] sm:$0xf]
      %v260 = vld [vmem:[%s195 + $0x94] sm:$0xf]
      %v261 = vld [vmem:[%s195 + $0x98] sm:$0xf]
      %v262 = vld [vmem:[%s195 + $0x9c] sm:$0xf]
      %v263 = vld [vmem:[%s195 + $0xa0] sm:$0xf]
      %v264 = vld [vmem:[%s195 + $0xa4] sm:$0xf]
      %v265 = vld [vmem:[%s195 + $0xa8] sm:$0xf]
      %v266 = vld [vmem:[%s195 + $0xac] sm:$0xf]
      %v267 = vld [vmem:[%s195 + $0xb0] sm:$0xf]
      %v268 = vld [vmem:[%s195 + $0xb4] sm:$0xf]
      %v269 = vld [vmem:[%s195 + $0xb8] sm:$0xf]
      %v270 = vld [vmem:[%s195 + $0xbc] sm:$0xf]
      %v271 = vld [vmem:[%s195 + $0xc0] sm:$0xf]
      %v272 = vld [vmem:[%s195 + $0xc4] sm:$0xf]
      %v273 = vld [vmem:[%s195 + $0xc8] sm:$0xf]
      %v274 = vld [vmem:[%s195 + $0xcc] sm:$0xf]
      %v275 = vld [vmem:[%s195 + $0xd0] sm:$0xf]
      %v276 = vld [vmem:[%s195 + $0xd4] sm:$0xf]
      %v277 = vld [vmem:[%s195 + $0xd8] sm:$0xf]
      %v278 = vld [vmem:[%s195 + $0xdc] sm:$0xf]
      %v279 = vld [vmem:[%s195 + $0xe0] sm:$0xf]
      %v280 = vld [vmem:[%s195 + $0xe4] sm:$0xf]
      %v281 = vld [vmem:[%s195 + $0xe8] sm:$0xf]
      %v282 = vld [vmem:[%s195 + $0xec] sm:$0xf]
      %v283 = vld [vmem:[%s195 + $0xf0] sm:$0xf]
      %v284 = vld [vmem:[%s195 + $0xf4] sm:$0xf]
      %v285 = vld [vmem:[%s195 + $0xf8] sm:$0xf]
      %v286 = vld [vmem:[%s195 + $0xfc] sm:$0xf]
      %v287 = vld [vmem:[%s195 + $0x100] sm:$0xf]
      %v288 = vld [vmem:[%s195 + $0x104] sm:$0xf]
      %v289 = vld [vmem:[%s195 + $0x108] sm:$0xf]
      %v290 = vld [vmem:[%s195 + $0x10c] sm:$0xf]
      %v291 = vld [vmem:[%s195 + $0x110] sm:$0xf]
      %v292 = vld [vmem:[%s195 + $0x114] sm:$0xf]
      %v293 = vld [vmem:[%s195 + $0x118] sm:$0xf]
      %v294 = vld [vmem:[%s195 + $0x11c] sm:$0xf]
      %v295 = vld [vmem:[%s195 + $0x120] sm:$0xf]
      %v296 = vld [vmem:[%s195 + $0x124] sm:$0xf]
      %v297 = vld [vmem:[%s195 + $0x128] sm:$0xf]
      %v298 = vld [vmem:[%s195 + $0x12c] sm:$0xf]
      %v299 = vld [vmem:[%s195 + $0x130] sm:$0xf]
      %v300 = vld [vmem:[%s195 + $0x134] sm:$0xf]
      %v301 = vld [vmem:[%s195 + $0x138] sm:$0xf]
      %v302 = vld [vmem:[%s195 + $0x13c] sm:$0xf]
      %v303 = vld [vmem:[%s195 + $0x140] sm:$0xf]
      %v304 = vld [vmem:[%s195 + $0x144] sm:$0xf]
      %v305 = vld [vmem:[%s195 + $0x148] sm:$0xf]
      %v306 = vld [vmem:[%s195 + $0x14c] sm:$0xf]
      %v307 = vld [vmem:[%s195 + $0x150] sm:$0xf]
      %v308 = vld [vmem:[%s195 + $0x154] sm:$0xf]
      %v309 = vld [vmem:[%s195 + $0x158] sm:$0xf]
      %v310 = vld [vmem:[%s195 + $0x15c] sm:$0xf]
      %v311 = vld [vmem:[%s195 + $0x160] sm:$0xf]
      %v312 = vld [vmem:[%s195 + $0x164] sm:$0xf]
      %v313 = vld [vmem:[%s195 + $0x168] sm:$0xf]
      %v314 = vld [vmem:[%s195 + $0x16c] sm:$0xf]
      %v315 = vld [vmem:[%s195 + $0x170] sm:$0xf]
      %v316 = vld [vmem:[%s195 + $0x174] sm:$0xf]
      %v317 = vld [vmem:[%s195 + $0x178] sm:$0xf]
      %v318 = vld [vmem:[%s195 + $0x17c] sm:$0xf]
      %v319 = vld [vmem:[%s195 + $0x180] sm:$0xf]
      %v320 = vld [vmem:[%s195 + $0x184] sm:$0xf]
      %v321 = vld [vmem:[%s195 + $0x188] sm:$0xf]
      %v322 = vld [vmem:[%s195 + $0x18c] sm:$0xf]
      %v323 = vld [vmem:[%s195 + $0x190] sm:$0xf]
      %v324 = vld [vmem:[%s195 + $0x194] sm:$0xf]
      %v325 = vld [vmem:[%s195 + $0x198] sm:$0xf]
      %v326 = vld [vmem:[%s195 + $0x19c] sm:$0xf]
      %v327 = vld [vmem:[%s195 + $0x1a0] sm:$0xf]
      %v328 = vld [vmem:[%s195 + $0x1a4] sm:$0xf]
      %v329 = vld [vmem:[%s195 + $0x1a8] sm:$0xf]
      %v330 = vld [vmem:[%s195 + $0x1ac] sm:$0xf]
      %v331 = vld [vmem:[%s195 + $0x1b0] sm:$0xf]
      %v332 = vld [vmem:[%s195 + $0x1b4] sm:$0xf]
      %v333 = vld [vmem:[%s195 + $0x1b8] sm:$0xf]
      %v334 = vld [vmem:[%s195 + $0x1bc] sm:$0xf]
      %v335 = vld [vmem:[%s195 + $0x1c0] sm:$0xf]
      %v336 = vld [vmem:[%s195 + $0x1c4] sm:$0xf]
      %v337 = vld [vmem:[%s195 + $0x1c8] sm:$0xf]
      %v338 = vld [vmem:[%s195 + $0x1cc] sm:$0xf]
      %v339 = vld [vmem:[%s195 + $0x1d0] sm:$0xf]
      %v340 = vld [vmem:[%s195 + $0x1d4] sm:$0xf]
      %v341 = vld [vmem:[%s195 + $0x1d8] sm:$0xf]
      %v342 = vld [vmem:[%s195 + $0x1dc] sm:$0xf]
      %v343 = vld [vmem:[%s195 + $0x1e0] sm:$0xf]
      %v344 = vld [vmem:[%s195 + $0x1e4] sm:$0xf]
      %v345 = vld [vmem:[%s195 + $0x1e8] sm:$0xf]
      %v346 = vld [vmem:[%s195 + $0x1ec] sm:$0xf]
      %v347 = vld [vmem:[%s195 + $0x1f0] sm:$0xf]
      %v348 = vld [vmem:[%s195 + $0x1f4] sm:$0xf]
      %v349 = vld [vmem:[%s195 + $0x1f8] sm:$0xf]
      %v350 = vld [vmem:[%s195 + $0x1fc] sm:$0xf]
      %v351 = vld [vmem:[%s195 + $0x200] sm:$0xf]
      %v352 = vld [vmem:[%s195 + $0x204] sm:$0xf]
      %v353 = vld [vmem:[%s195 + $0x208] sm:$0xf]
      %v354 = vld [vmem:[%s195 + $0x20c] sm:$0xf]
      %v355 = vld [vmem:[%s195 + $0x210] sm:$0xf]
      %v356 = vld [vmem:[%s195 + $0x214] sm:$0xf]
      %v357 = vld [vmem:[%s195 + $0x218] sm:$0xf]
      %v358 = vld [vmem:[%s195 + $0x21c] sm:$0xf]
      %v359 = vld [vmem:[%s195 + $0x220] sm:$0xf]
      %v360 = vld [vmem:[%s195 + $0x224] sm:$0xf]
      %v361 = vld [vmem:[%s195 + $0x228] sm:$0xf]
      %v362 = vld [vmem:[%s195 + $0x22c] sm:$0xf]
      %v363 = vld [vmem:[%s195 + $0x230] sm:$0xf]
      %v364 = vld [vmem:[%s195 + $0x234] sm:$0xf]
      %v365 = vld [vmem:[%s195 + $0x238] sm:$0xf]
      %v366 = vld [vmem:[%s195 + $0x23c] sm:$0xf]
      %v367 = vld [vmem:[%s195 + $0x240] sm:$0xf]
      %v368 = vld [vmem:[%s195 + $0x244] sm:$0xf]
      %v369 = vld [vmem:[%s195 + $0x248] sm:$0xf]
      %v370 = vld [vmem:[%s195 + $0x24c] sm:$0xf]
      %v371 = vld [vmem:[%s195 + $0x250] sm:$0xf]
      %v372 = vld [vmem:[%s195 + $0x254] sm:$0xf]
      %v373 = vld [vmem:[%s195 + $0x258] sm:$0xf]
      %v374 = vld [vmem:[%s195 + $0x25c] sm:$0xf]
      %v375 = vld [vmem:[%s195 + $0x260] sm:$0xf]
      %v376 = vld [vmem:[%s195 + $0x264] sm:$0xf]
      %v377 = vld [vmem:[%s195 + $0x268] sm:$0xf]
      %v378 = vld [vmem:[%s195 + $0x26c] sm:$0xf]
      %v379 = vld [vmem:[%s195 + $0x270] sm:$0xf]
      %v380 = vld [vmem:[%s195 + $0x274] sm:$0xf]
      %v381 = vld [vmem:[%s195 + $0x278] sm:$0xf]
      %v382 = vld [vmem:[%s195 + $0x27c] sm:$0xf]
      %v383 = vld [vmem:[%s195 + $0x280] sm:$0xf]
      %v384 = vld [vmem:[%s195 + $0x284] sm:$0xf]
      %v385 = vld [vmem:[%s195 + $0x288] sm:$0xf]
      %v386 = vld [vmem:[%s195 + $0x28c] sm:$0xf]
      %v387 = vld [vmem:[%s195 + $0x290] sm:$0xf]
      %v388 = vld [vmem:[%s195 + $0x294] sm:$0xf]
      %v389 = vld [vmem:[%s195 + $0x298] sm:$0xf]
      %v390 = vld [vmem:[%s195 + $0x29c] sm:$0xf]
      %v391 = vld [vmem:[%s195 + $0x2a0] sm:$0xf]
      %v392 = vld [vmem:[%s195 + $0x2a4] sm:$0xf]
      %v393 = vld [vmem:[%s195 + $0x2a8] sm:$0xf]
      %v394 = vld [vmem:[%s195 + $0x2ac] sm:$0xf]
      %v395 = vld [vmem:[%s195 + $0x2b0] sm:$0xf]
      %v396 = vld [vmem:[%s195 + $0x2b4] sm:$0xf]
      %v397 = vld [vmem:[%s195 + $0x2b8] sm:$0xf]
      %v398 = vld [vmem:[%s195 + $0x2bc] sm:$0xf]
      %v399 = vld [vmem:[%s195 + $0x2c0] sm:$0xf]
      %v400 = vld [vmem:[%s195 + $0x2c4] sm:$0xf]
      %v401 = vld [vmem:[%s195 + $0x2c8] sm:$0xf]
      %v402 = vld [vmem:[%s195 + $0x2cc] sm:$0xf]
      %v403 = vld [vmem:[%s195 + $0x2d0] sm:$0xf]
      %v404 = vld [vmem:[%s195 + $0x2d4] sm:$0xf]
      %v405 = vld [vmem:[%s195 + $0x2d8] sm:$0xf]
      %v406 = vld [vmem:[%s195 + $0x2dc] sm:$0xf]
      %v407 = vld [vmem:[%s195 + $0x2e0] sm:$0xf]
      %v408 = vld [vmem:[%s195 + $0x2e4] sm:$0xf]
      %v409 = vld [vmem:[%s195 + $0x2e8] sm:$0xf]
      %v410 = vld [vmem:[%s195 + $0x2ec] sm:$0xf]
      %v411 = vld [vmem:[%s195 + $0x2f0] sm:$0xf]
      %v412 = vld [vmem:[%s195 + $0x2f4] sm:$0xf]
      %v413 = vld [vmem:[%s195 + $0x2f8] sm:$0xf]
      %v414 = vld [vmem:[%s195 + $0x2fc] sm:$0xf]
      %v415 = vld [vmem:[%s195 + $0x300] sm:$0xf]
      %v416 = vld [vmem:[%s195 + $0x304] sm:$0xf]
      %v417 = vld [vmem:[%s195 + $0x308] sm:$0xf]
      %v418 = vld [vmem:[%s195 + $0x30c] sm:$0xf]
      %v419 = vld [vmem:[%s195 + $0x310] sm:$0xf]
      %v420 = vld [vmem:[%s195 + $0x314] sm:$0xf]
      %v421 = vld [vmem:[%s195 + $0x318] sm:$0xf]
      %v422 = vld [vmem:[%s195 + $0x31c] sm:$0xf]
      %v423 = vld [vmem:[%s195 + $0x320] sm:$0xf]
      %v424 = vld [vmem:[%s195 + $0x324] sm:$0xf]
      %v425 = vld [vmem:[%s195 + $0x328] sm:$0xf]
      %v426 = vld [vmem:[%s195 + $0x32c] sm:$0xf]
      %v427 = vld [vmem:[%s195 + $0x330] sm:$0xf]
      %v428 = vld [vmem:[%s195 + $0x334] sm:$0xf]
      %v429 = vld [vmem:[%s195 + $0x338] sm:$0xf]
      %v430 = vld [vmem:[%s195 + $0x33c] sm:$0xf]
      %v431 = vld [vmem:[%s195 + $0x340] sm:$0xf]
      %v432 = vld [vmem:[%s195 + $0x344] sm:$0xf]
      %v433 = vld [vmem:[%s195 + $0x348] sm:$0xf]
      %v434 = vld [vmem:[%s195 + $0x34c] sm:$0xf]
      %v435 = vld [vmem:[%s195 + $0x350] sm:$0xf]
      %v436 = vld [vmem:[%s195 + $0x354] sm:$0xf]
      %v437 = vld [vmem:[%s195 + $0x358] sm:$0xf]
      %v438 = vld [vmem:[%s195 + $0x35c] sm:$0xf]
      %v439 = vld [vmem:[%s195 + $0x360] sm:$0xf]
      %v440 = vld [vmem:[%s195 + $0x364] sm:$0xf]
      %v441 = vld [vmem:[%s195 + $0x368] sm:$0xf]
      %v442 = vld [vmem:[%s195 + $0x36c] sm:$0xf]
      %v443 = vld [vmem:[%s195 + $0x370] sm:$0xf]
      %v444 = vld [vmem:[%s195 + $0x374] sm:$0xf]
      %v445 = vld [vmem:[%s195 + $0x378] sm:$0xf]
      %v446 = vld [vmem:[%s195 + $0x37c] sm:$0xf]
      %v447 = vld [vmem:[%s195 + $0x380] sm:$0xf]
      %v448 = vld [vmem:[%s195 + $0x384] sm:$0xf]
      %v449 = vld [vmem:[%s195 + $0x388] sm:$0xf]
      %v450 = vld [vmem:[%s195 + $0x38c] sm:$0xf]
      %v451 = vld [vmem:[%s195 + $0x390] sm:$0xf]
      %v452 = vld [vmem:[%s195 + $0x394] sm:$0xf]
      %v453 = vld [vmem:[%s195 + $0x398] sm:$0xf]
      %v454 = vld [vmem:[%s195 + $0x39c] sm:$0xf]
      %v455 = vld [vmem:[%s195 + $0x3a0] sm:$0xf]
      %v456 = vld [vmem:[%s195 + $0x3a4] sm:$0xf]
      %v457 = vld [vmem:[%s195 + $0x3a8] sm:$0xf]
      %v458 = vld [vmem:[%s195 + $0x3ac] sm:$0xf]
      %v459 = vld [vmem:[%s195 + $0x3b0] sm:$0xf]
      %v460 = vld [vmem:[%s195 + $0x3b4] sm:$0xf]
      %v461 = vld [vmem:[%s195 + $0x3b8] sm:$0xf]
      %v462 = vld [vmem:[%s195 + $0x3bc] sm:$0xf]
      %v463 = vld [vmem:[%s195 + $0x3c0] sm:$0xf]
      %v464 = vld [vmem:[%s195 + $0x3c4] sm:$0xf]
      %v465 = vld [vmem:[%s195 + $0x3c8] sm:$0xf]
      %v466 = vld [vmem:[%s195 + $0x3cc] sm:$0xf]
      %v467 = vld [vmem:[%s195 + $0x3d0] sm:$0xf]
      %v468 = vld [vmem:[%s195 + $0x3d4] sm:$0xf]
      %v469 = vld [vmem:[%s195 + $0x3d8] sm:$0xf]
      %v470 = vld [vmem:[%s195 + $0x3dc] sm:$0xf]
      %v471 = vld [vmem:[%s195 + $0x3e0] sm:$0xf]
      %v472 = vld [vmem:[%s195 + $0x3e4] sm:$0xf]
      %v473 = vld [vmem:[%s195 + $0x3e8] sm:$0xf]
      %v474 = vld [vmem:[%s195 + $0x3ec] sm:$0xf]
      %v475 = vld [vmem:[%s195 + $0x3f0] sm:$0xf]
      %v476 = vld [vmem:[%s195 + $0x3f4] sm:$0xf]
      %v477 = vld [vmem:[%s195 + $0x3f8] sm:$0xf]
      %v478 = vld [vmem:[%s195 + $0x3fc] sm:$0xf]
      %v479 = vld [vmem:[%s195 + $0x400] sm:$0xf]
      %v480 = vld [vmem:[%s195 + $0x404] sm:$0xf]
      %v481 = vld [vmem:[%s195 + $0x408] sm:$0xf]
      %v482 = vld [vmem:[%s195 + $0x40c] sm:$0xf]
      %v483 = vld [vmem:[%s195 + $0x410] sm:$0xf]
      %v484 = vld [vmem:[%s195 + $0x414] sm:$0xf]
      %v485 = vld [vmem:[%s195 + $0x418] sm:$0xf]
      %v486 = vld [vmem:[%s195 + $0x41c] sm:$0xf]
      %v487 = vld [vmem:[%s195 + $0x420] sm:$0xf]
      %v488 = vld [vmem:[%s195 + $0x424] sm:$0xf]
      %v489 = vld [vmem:[%s195 + $0x428] sm:$0xf]
      %v490 = vld [vmem:[%s195 + $0x42c] sm:$0xf]
      %v491 = vld [vmem:[%s195 + $0x430] sm:$0xf]
      %v492 = vld [vmem:[%s195 + $0x434] sm:$0xf]
      %v493 = vld [vmem:[%s195 + $0x438] sm:$0xf]
      %v494 = vld [vmem:[%s195 + $0x43c] sm:$0xf]
      %v495 = vld [vmem:[%s195 + $0x440] sm:$0xf]
      %v496 = vld [vmem:[%s195 + $0x444] sm:$0xf]
      %v497 = vld [vmem:[%s195 + $0x448] sm:$0xf]
      %v498 = vld [vmem:[%s195 + $0x44c] sm:$0xf]
      %v499 = vld [vmem:[%s195 + $0x450] sm:$0xf]
      %v500 = vld [vmem:[%s195 + $0x454] sm:$0xf]
      %v501 = vld [vmem:[%s195 + $0x458] sm:$0xf]
      %v502 = vld [vmem:[%s195 + $0x45c] sm:$0xf]
      %v503 = vld [vmem:[%s195 + $0x460] sm:$0xf]
      %v504 = vld [vmem:[%s195 + $0x464] sm:$0xf]
      %v505 = vld [vmem:[%s195 + $0x468] sm:$0xf]
      %v506 = vld [vmem:[%s195 + $0x46c] sm:$0xf]
      %v507 = vld [vmem:[%s195 + $0x470] sm:$0xf]
      %v508 = vld [vmem:[%s195 + $0x474] sm:$0xf]
      %v509 = vld [vmem:[%s195 + $0x478] sm:$0xf]
      %v510 = vld [vmem:[%s195 + $0x47c] sm:$0xf]
      %v511 = vld [vmem:[%s195 + $0x480] sm:$0xf]
      %v512 = vld [vmem:[%s195 + $0x484] sm:$0xf]
      %v513 = vld [vmem:[%s195 + $0x488] sm:$0xf]
      %v514 = vld [vmem:[%s195 + $0x48c] sm:$0xf]
      %v515 = vld [vmem:[%s195 + $0x490] sm:$0xf]
      %v516 = vld [vmem:[%s195 + $0x494] sm:$0xf]
      %v517 = vld [vmem:[%s195 + $0x498] sm:$0xf]
      %v518 = vld [vmem:[%s195 + $0x49c] sm:$0xf]
      %v519 = vld [vmem:[%s195 + $0x4a0] sm:$0xf]
      %v520 = vld [vmem:[%s195 + $0x4a4] sm:$0xf]
      %v521 = vld [vmem:[%s195 + $0x4a8] sm:$0xf]
      %v522 = vld [vmem:[%s195 + $0x4ac] sm:$0xf]
      %v523 = vld [vmem:[%s195 + $0x4b0] sm:$0xf]
      %v524 = vld [vmem:[%s195 + $0x4b4] sm:$0xf]
      %v525 = vld [vmem:[%s195 + $0x4b8] sm:$0xf]
      %v526 = vld [vmem:[%s195 + $0x4bc] sm:$0xf]
      %v527 = vld [vmem:[%s195 + $0x4c0] sm:$0xf]
      %v528 = vld [vmem:[%s195 + $0x4c4] sm:$0xf]
      %v529 = vld [vmem:[%s195 + $0x4c8] sm:$0xf]
      %v530 = vld [vmem:[%s195 + $0x4cc] sm:$0xf]
      %v531 = vld [vmem:[%s195 + $0x4d0] sm:$0xf]
      %v532 = vld [vmem:[%s195 + $0x4d4] sm:$0xf]
      %v533 = vld [vmem:[%s195 + $0x4d8] sm:$0xf]
      %v534 = vld [vmem:[%s195 + $0x4dc] sm:$0xf]
      %v535 = vld [vmem:[%s195 + $0x4e0] sm:$0xf]
      %v536 = vld [vmem:[%s195 + $0x4e4] sm:$0xf]
      %v537 = vld [vmem:[%s195 + $0x4e8] sm:$0xf]
      %v538 = vld [vmem:[%s195 + $0x4ec] sm:$0xf]
      %v539 = vld [vmem:[%s195 + $0x4f0] sm:$0xf]
      %v540 = vld [vmem:[%s195 + $0x4f4] sm:$0xf]
      %v541 = vld [vmem:[%s195 + $0x4f8] sm:$0xf]
      %v542 = vld [vmem:[%s195 + $0x4fc] sm:$0xf]
      %v543 = vld [vmem:[%s195 + $0x500] sm:$0xf]
      %v544 = vld [vmem:[%s195 + $0x504] sm:$0xf]
      %v545 = vld [vmem:[%s195 + $0x508] sm:$0xf]
      %v546 = vld [vmem:[%s195 + $0x50c] sm:$0xf]
      %v547 = vld [vmem:[%s195 + $0x510] sm:$0xf]
      %v548 = vld [vmem:[%s195 + $0x514] sm:$0xf]
      %v549 = vld [vmem:[%s195 + $0x518] sm:$0xf]
      %v550 = vld [vmem:[%s195 + $0x51c] sm:$0xf]
      %v551 = vld [vmem:[%s195 + $0x520] sm:$0xf]
      %v552 = vld [vmem:[%s195 + $0x524] sm:$0xf]
      %v553 = vld [vmem:[%s195 + $0x528] sm:$0xf]
      %v554 = vld [vmem:[%s195 + $0x52c] sm:$0xf]
      %v555 = vld [vmem:[%s195 + $0x530] sm:$0xf]
      %v556 = vld [vmem:[%s195 + $0x534] sm:$0xf]
      %v557 = vld [vmem:[%s195 + $0x538] sm:$0xf]
      %v558 = vld [vmem:[%s195 + $0x53c] sm:$0xf]
      %v559 = vld [vmem:[%s195 + $0x540] sm:$0xf]
      %v560 = vld [vmem:[%s195 + $0x544] sm:$0xf]
      %v561 = vld [vmem:[%s195 + $0x548] sm:$0xf]
      %v562 = vld [vmem:[%s195 + $0x54c] sm:$0xf]
      %v563 = vld [vmem:[%s195 + $0x550] sm:$0xf]
      %v564 = vld [vmem:[%s195 + $0x554] sm:$0xf]
      %v565 = vld [vmem:[%s195 + $0x558] sm:$0xf]
      %v566 = vld [vmem:[%s195 + $0x55c] sm:$0xf]
      %v567 = vld [vmem:[%s195 + $0x560] sm:$0xf]
      %v568 = vld [vmem:[%s195 + $0x564] sm:$0xf]
      %v569 = vld [vmem:[%s195 + $0x568] sm:$0xf]
      %v570 = vld [vmem:[%s195 + $0x56c] sm:$0xf]
      %v571 = vld [vmem:[%s195 + $0x570] sm:$0xf]
      %v572 = vld [vmem:[%s195 + $0x574] sm:$0xf]
      %v573 = vld [vmem:[%s195 + $0x578] sm:$0xf]
      %v574 = vld [vmem:[%s195 + $0x57c] sm:$0xf]
      %v575 = vld [vmem:[%s195 + $0x580] sm:$0xf]
      %v576 = vld [vmem:[%s195 + $0x584] sm:$0xf]
      %v577 = vld [vmem:[%s195 + $0x588] sm:$0xf]
      %v578 = vld [vmem:[%s195 + $0x58c] sm:$0xf]
      %v579 = vld [vmem:[%s195 + $0x590] sm:$0xf]
      %v580 = vld [vmem:[%s195 + $0x594] sm:$0xf]
      %v581 = vld [vmem:[%s195 + $0x598] sm:$0xf]
      %v582 = vld [vmem:[%s195 + $0x59c] sm:$0xf]
      %v583 = vld [vmem:[%s195 + $0x5a0] sm:$0xf]
      %v584 = vld [vmem:[%s195 + $0x5a4] sm:$0xf]
      %v585 = vld [vmem:[%s195 + $0x5a8] sm:$0xf]
      %v586 = vld [vmem:[%s195 + $0x5ac] sm:$0xf]
      %v587 = vld [vmem:[%s195 + $0x5b0] sm:$0xf]
      %v588 = vld [vmem:[%s195 + $0x5b4] sm:$0xf]
      %v589 = vld [vmem:[%s195 + $0x5b8] sm:$0xf]
      %v590 = vld [vmem:[%s195 + $0x5bc] sm:$0xf]
      %v591 = vld [vmem:[%s195 + $0x5c0] sm:$0xf]
      %v592 = vld [vmem:[%s195 + $0x5c4] sm:$0xf]
      %v593 = vld [vmem:[%s195 + $0x5c8] sm:$0xf]
      %v594 = vld [vmem:[%s195 + $0x5cc] sm:$0xf]
      %v595 = vld [vmem:[%s195 + $0x5d0] sm:$0xf]
      %v596 = vld [vmem:[%s195 + $0x5d4] sm:$0xf]
      %v597 = vld [vmem:[%s195 + $0x5d8] sm:$0xf]
      %v598 = vld [vmem:[%s195 + $0x5dc] sm:$0xf]
      %v599 = vld [vmem:[%s195 + $0x5e0] sm:$0xf]
      %v600 = vld [vmem:[%s195 + $0x5e4] sm:$0xf]
      %v601 = vld [vmem:[%s195 + $0x5e8] sm:$0xf]
      %v602 = vld [vmem:[%s195 + $0x5ec] sm:$0xf]
      %v603 = vld [vmem:[%s195 + $0x5f0] sm:$0xf]
      %v604 = vld [vmem:[%s195 + $0x5f4] sm:$0xf]
      %v605 = vld [vmem:[%s195 + $0x5f8] sm:$0xf]
      %v606 = vld [vmem:[%s195 + $0x5fc] sm:$0xf]
      %v607 = vld [vmem:[%s195 + $0x600] sm:$0xf]
      %v608 = vld [vmem:[%s195 + $0x604] sm:$0xf]
      %v609 = vld [vmem:[%s195 + $0x608] sm:$0xf]
      %v610 = vld [vmem:[%s195 + $0x60c] sm:$0xf]
      %v611 = vld [vmem:[%s195 + $0x610] sm:$0xf]
      %v612 = vld [vmem:[%s195 + $0x614] sm:$0xf]
      %v613 = vld [vmem:[%s195 + $0x618] sm:$0xf]
      %v614 = vld [vmem:[%s195 + $0x61c] sm:$0xf]
      %v615 = vld [vmem:[%s195 + $0x620] sm:$0xf]
      %v616 = vld [vmem:[%s195 + $0x624] sm:$0xf]
      %v617 = vld [vmem:[%s195 + $0x628] sm:$0xf]
      %v618 = vld [vmem:[%s195 + $0x62c] sm:$0xf]
      %v619 = vld [vmem:[%s195 + $0x630] sm:$0xf]
      %v620 = vld [vmem:[%s195 + $0x634] sm:$0xf]
      %v621 = vld [vmem:[%s195 + $0x638] sm:$0xf]
      %v622 = vld [vmem:[%s195 + $0x63c] sm:$0xf]
      %v623 = vld [vmem:[%s195 + $0x640] sm:$0xf]
      %v624 = vld [vmem:[%s195 + $0x644] sm:$0xf]
      %v625 = vld [vmem:[%s195 + $0x648] sm:$0xf]
      %v626 = vld [vmem:[%s195 + $0x64c] sm:$0xf]
      %v627 = vld [vmem:[%s195 + $0x650] sm:$0xf]
      %v628 = vld [vmem:[%s195 + $0x654] sm:$0xf]
      %v629 = vld [vmem:[%s195 + $0x658] sm:$0xf]
      %v630 = vld [vmem:[%s195 + $0x65c] sm:$0xf]
      %v631 = vld [vmem:[%s195 + $0x660] sm:$0xf]
      %v632 = vld [vmem:[%s195 + $0x664] sm:$0xf]
      %v633 = vld [vmem:[%s195 + $0x668] sm:$0xf]
      %v634 = vld [vmem:[%s195 + $0x66c] sm:$0xf]
      %v635 = vld [vmem:[%s195 + $0x670] sm:$0xf]
      %v636 = vld [vmem:[%s195 + $0x674] sm:$0xf]
      %v637 = vld [vmem:[%s195 + $0x678] sm:$0xf]
      %v638 = vld [vmem:[%s195 + $0x67c] sm:$0xf]
      %v639 = vld [vmem:[%s195 + $0x680] sm:$0xf]
      %v640 = vld [vmem:[%s195 + $0x684] sm:$0xf]
      %v641 = vld [vmem:[%s195 + $0x688] sm:$0xf]
      %v642 = vld [vmem:[%s195 + $0x68c] sm:$0xf]
      %v643 = vld [vmem:[%s195 + $0x690] sm:$0xf]
      %v644 = vld [vmem:[%s195 + $0x694] sm:$0xf]
      %v645 = vld [vmem:[%s195 + $0x698] sm:$0xf]
      %v646 = vld [vmem:[%s195 + $0x69c] sm:$0xf]
      %v647 = vld [vmem:[%s195 + $0x6a0] sm:$0xf]
      %v648 = vld [vmem:[%s195 + $0x6a4] sm:$0xf]
      %v649 = vld [vmem:[%s195 + $0x6a8] sm:$0xf]
      %v650 = vld [vmem:[%s195 + $0x6ac] sm:$0xf]
      %v651 = vld [vmem:[%s195 + $0x6b0] sm:$0xf]
      %v652 = vld [vmem:[%s195 + $0x6b4] sm:$0xf]
      %v653 = vld [vmem:[%s195 + $0x6b8] sm:$0xf]
      %v654 = vld [vmem:[%s195 + $0x6bc] sm:$0xf]
      %v655 = vld [vmem:[%s195 + $0x6c0] sm:$0xf]
      %v656 = vld [vmem:[%s195 + $0x6c4] sm:$0xf]
      %v657 = vld [vmem:[%s195 + $0x6c8] sm:$0xf]
      %v658 = vld [vmem:[%s195 + $0x6cc] sm:$0xf]
      %v659 = vld [vmem:[%s195 + $0x6d0] sm:$0xf]
      %v660 = vld [vmem:[%s195 + $0x6d4] sm:$0xf]
      %v661 = vld [vmem:[%s195 + $0x6d8] sm:$0xf]
      %v662 = vld [vmem:[%s195 + $0x6dc] sm:$0xf]
      %v663 = vld [vmem:[%s195 + $0x6e0] sm:$0xf]
      %v664 = vld [vmem:[%s195 + $0x6e4] sm:$0xf]
      %v665 = vld [vmem:[%s195 + $0x6e8] sm:$0xf]
      %v666 = vld [vmem:[%s195 + $0x6ec] sm:$0xf]
      %v667 = vld [vmem:[%s195 + $0x6f0] sm:$0xf]
      %v668 = vld [vmem:[%s195 + $0x6f4] sm:$0xf]
      %v669 = vld [vmem:[%s195 + $0x6f8] sm:$0xf]
      %v670 = vld [vmem:[%s195 + $0x6fc] sm:$0xf]
      %v671 = vld [vmem:[%s195 + $0x700] sm:$0xf]
      %v672 = vld [vmem:[%s195 + $0x704] sm:$0xf]
      %v673 = vld [vmem:[%s195 + $0x708] sm:$0xf]
      %v674 = vld [vmem:[%s195 + $0x70c] sm:$0xf]
      %v675 = vld [vmem:[%s195 + $0x710] sm:$0xf]
      %v676 = vld [vmem:[%s195 + $0x714] sm:$0xf]
      %v677 = vld [vmem:[%s195 + $0x718] sm:$0xf]
      %v678 = vld [vmem:[%s195 + $0x71c] sm:$0xf]
      %v679 = vld [vmem:[%s195 + $0x720] sm:$0xf]
      %v680 = vld [vmem:[%s195 + $0x724] sm:$0xf]
      %v681 = vld [vmem:[%s195 + $0x728] sm:$0xf]
      %v682 = vld [vmem:[%s195 + $0x72c] sm:$0xf]
      %v683 = vld [vmem:[%s195 + $0x730] sm:$0xf]
      %v684 = vld [vmem:[%s195 + $0x734] sm:$0xf]
      %v685 = vld [vmem:[%s195 + $0x738] sm:$0xf]
      %v686 = vld [vmem:[%s195 + $0x73c] sm:$0xf]
      %v687 = vld [vmem:[%s195 + $0x740] sm:$0xf]
      %v688 = vld [vmem:[%s195 + $0x744] sm:$0xf]
      %v689 = vld [vmem:[%s195 + $0x748] sm:$0xf]
      %v690 = vld [vmem:[%s195 + $0x74c] sm:$0xf]
      %v691 = vld [vmem:[%s195 + $0x750] sm:$0xf]
      %v692 = vld [vmem:[%s195 + $0x754] sm:$0xf]
      %v693 = vld [vmem:[%s195 + $0x758] sm:$0xf]
      %v694 = vld [vmem:[%s195 + $0x75c] sm:$0xf]
      %v695 = vld [vmem:[%s195 + $0x760] sm:$0xf]
      %v696 = vld [vmem:[%s195 + $0x764] sm:$0xf]
      %v697 = vld [vmem:[%s195 + $0x768] sm:$0xf]
      %v698 = vld [vmem:[%s195 + $0x76c] sm:$0xf]
      %v699 = vld [vmem:[%s195 + $0x770] sm:$0xf]
      %v700 = vld [vmem:[%s195 + $0x774] sm:$0xf]
      %v701 = vld [vmem:[%s195 + $0x778] sm:$0xf]
      %v702 = vld [vmem:[%s195 + $0x77c] sm:$0xf]
      %v703 = vld [vmem:[%s195 + $0x780] sm:$0xf]
      %v704 = vld [vmem:[%s195 + $0x784] sm:$0xf]
      %v705 = vld [vmem:[%s195 + $0x788] sm:$0xf]
      %v706 = vld [vmem:[%s195 + $0x78c] sm:$0xf]
      %v707 = vld [vmem:[%s195 + $0x790] sm:$0xf]
      %v708 = vld [vmem:[%s195 + $0x794] sm:$0xf]
      %v709 = vld [vmem:[%s195 + $0x798] sm:$0xf]
      %v710 = vld [vmem:[%s195 + $0x79c] sm:$0xf]
      %v711 = vld [vmem:[%s195 + $0x7a0] sm:$0xf]
      %v712 = vld [vmem:[%s195 + $0x7a4] sm:$0xf]
      %v713 = vld [vmem:[%s195 + $0x7a8] sm:$0xf]
      %v714 = vld [vmem:[%s195 + $0x7ac] sm:$0xf]
      %v715 = vld [vmem:[%s195 + $0x7b0] sm:$0xf]
      %v716 = vld [vmem:[%s195 + $0x7b4] sm:$0xf]
      %v717 = vld [vmem:[%s195 + $0x7b8] sm:$0xf]
      %v718 = vld [vmem:[%s195 + $0x7bc] sm:$0xf]
      %v719 = vld [vmem:[%s195 + $0x7c0] sm:$0xf]
      %v720 = vld [vmem:[%s195 + $0x7c4] sm:$0xf]
      %v721 = vld [vmem:[%s195 + $0x7c8] sm:$0xf]
      %v722 = vld [vmem:[%s195 + $0x7cc] sm:$0xf]
      %v723 = vld [vmem:[%s195 + $0x7d0] sm:$0xf]
      %v724 = vld [vmem:[%s195 + $0x7d4] sm:$0xf]
      %v725 = vld [vmem:[%s195 + $0x7d8] sm:$0xf]
      %v726 = vld [vmem:[%s195 + $0x7dc] sm:$0xf]
      %v727 = vld [vmem:[%s195 + $0x7e0] sm:$0xf]
      %v728 = vld [vmem:[%s195 + $0x7e4] sm:$0xf]
      %v729 = vld [vmem:[%s195 + $0x7e8] sm:$0xf]
      %v730 = vld [vmem:[%s195 + $0x7ec] sm:$0xf]
      %v731 = vld [vmem:[%s195 + $0x7f0] sm:$0xf]
      %v732 = vld [vmem:[%s195 + $0x7f4] sm:$0xf]
      %v733 = vld [vmem:[%s195 + $0x7f8] sm:$0xf]
      %v734 = vld [vmem:[%s195 + $0x7fc] sm:$0xf]
      %v735 = vld [vmem:[%s195 + $0x800] sm:$0xf]
      %v736 = vld [vmem:[%s195 + $0x804] sm:$0xf]
      %v737 = vld [vmem:[%s195 + $0x808] sm:$0xf]
      %v738 = vld [vmem:[%s195 + $0x80c] sm:$0xf]
      %v739 = vld [vmem:[%s195 + $0x810] sm:$0xf]
      %v740 = vld [vmem:[%s195 + $0x814] sm:$0xf]
      %v741 = vld [vmem:[%s195 + $0x818] sm:$0xf]
      %v742 = vld [vmem:[%s195 + $0x81c] sm:$0xf]
      %v743 = vld [vmem:[%s195 + $0x820] sm:$0xf]
      %v744 = vld [vmem:[%s195 + $0x824] sm:$0xf]
      %v745 = vld [vmem:[%s195 + $0x828] sm:$0xf]
      %v746 = vld [vmem:[%s195 + $0x82c] sm:$0xf]
      %v747 = vld [vmem:[%s195 + $0x830] sm:$0xf]
      %v748 = vld [vmem:[%s195 + $0x834] sm:$0xf]
      %v749 = vld [vmem:[%s195 + $0x838] sm:$0xf]
      %v750 = vld [vmem:[%s195 + $0x83c] sm:$0xf]
      %v751 = vld [vmem:[%s195 + $0x840] sm:$0xf]
      %v752 = vld [vmem:[%s195 + $0x844] sm:$0xf]
      %v753 = vld [vmem:[%s195 + $0x848] sm:$0xf]
      %v754 = vld [vmem:[%s195 + $0x84c] sm:$0xf]
      %v755 = vld [vmem:[%s195 + $0x850] sm:$0xf]
      %v756 = vld [vmem:[%s195 + $0x854] sm:$0xf]
      %v757 = vld [vmem:[%s195 + $0x858] sm:$0xf]
      %v758 = vld [vmem:[%s195 + $0x85c] sm:$0xf]
      %v759 = vld [vmem:[%s195 + $0x860] sm:$0xf]
      %v760 = vld [vmem:[%s195 + $0x864] sm:$0xf]
      %v761 = vld [vmem:[%s195 + $0x868] sm:$0xf]
      %v762 = vld [vmem:[%s195 + $0x86c] sm:$0xf]
      %v763 = vld [vmem:[%s195 + $0x870] sm:$0xf]
      %v764 = vld [vmem:[%s195 + $0x874] sm:$0xf]
      %v765 = vld [vmem:[%s195 + $0x878] sm:$0xf]
      %v766 = vld [vmem:[%s195 + $0x87c] sm:$0xf]
      %v767 = vld [vmem:[%s195 + $0x880] sm:$0xf]
      %v768 = vld [vmem:[%s195 + $0x884] sm:$0xf]
      %v769 = vld [vmem:[%s195 + $0x888] sm:$0xf]
      %v770 = vld [vmem:[%s195 + $0x88c] sm:$0xf]
      %v771 = vld [vmem:[%s195 + $0x890] sm:$0xf]
      %v772 = vld [vmem:[%s195 + $0x894] sm:$0xf]
      %v773 = vld [vmem:[%s195 + $0x898] sm:$0xf]
      %v774 = vld [vmem:[%s195 + $0x89c] sm:$0xf]
      %v775 = vld [vmem:[%s195 + $0x8a0] sm:$0xf]
      %v776 = vld [vmem:[%s195 + $0x8a4] sm:$0xf]
      %v777 = vld [vmem:[%s195 + $0x8a8] sm:$0xf]
      %v778 = vld [vmem:[%s195 + $0x8ac] sm:$0xf]
      %v779 = vld [vmem:[%s195 + $0x8b0] sm:$0xf]
      %v780 = vld [vmem:[%s195 + $0x8b4] sm:$0xf]
      %v781 = vld [vmem:[%s195 + $0x8b8] sm:$0xf]
      %v782 = vld [vmem:[%s195 + $0x8bc] sm:$0xf]
      %v783 = vld [vmem:[%s195 + $0x8c0] sm:$0xf]
      %v784 = vld [vmem:[%s195 + $0x8c4] sm:$0xf]
      %v785 = vld [vmem:[%s195 + $0x8c8] sm:$0xf]
      %v786 = vld [vmem:[%s195 + $0x8cc] sm:$0xf]
      %v787 = vld [vmem:[%s195 + $0x8d0] sm:$0xf]
      %v788 = vld [vmem:[%s195 + $0x8d4] sm:$0xf]
      %v789 = vld [vmem:[%s195 + $0x8d8] sm:$0xf]
      %v790 = vld [vmem:[%s195 + $0x8dc] sm:$0xf]
      %v791 = vld [vmem:[%s195 + $0x8e0] sm:$0xf]
      %v792 = vld [vmem:[%s195 + $0x8e4] sm:$0xf]
      %v793 = vld [vmem:[%s195 + $0x8e8] sm:$0xf]
      %v794 = vld [vmem:[%s195 + $0x8ec] sm:$0xf]
      %v795 = vld [vmem:[%s195 + $0x8f0] sm:$0xf]
      %v796 = vld [vmem:[%s195 + $0x8f4] sm:$0xf]
      %v797 = vld [vmem:[%s195 + $0x8f8] sm:$0xf]
      %v798 = vld [vmem:[%s195 + $0x8fc] sm:$0xf]
      %v799 = vld [vmem:[%s195 + $0x900] sm:$0xf]
      %v800 = vld [vmem:[%s195 + $0x904] sm:$0xf]
      %v801 = vld [vmem:[%s195 + $0x908] sm:$0xf]
      %v802 = vld [vmem:[%s195 + $0x90c] sm:$0xf]
      %v803 = vld [vmem:[%s195 + $0x910] sm:$0xf]
      %v804 = vld [vmem:[%s195 + $0x914] sm:$0xf]
      %v805 = vld [vmem:[%s195 + $0x918] sm:$0xf]
      %v806 = vld [vmem:[%s195 + $0x91c] sm:$0xf]
      %v807 = vld [vmem:[%s195 + $0x920] sm:$0xf]
      %v808 = vld [vmem:[%s195 + $0x924] sm:$0xf]
      %v809 = vld [vmem:[%s195 + $0x928] sm:$0xf]
      %v810 = vld [vmem:[%s195 + $0x92c] sm:$0xf]
      %v811 = vld [vmem:[%s195 + $0x930] sm:$0xf]
      %v812 = vld [vmem:[%s195 + $0x934] sm:$0xf]
      %v813 = vld [vmem:[%s195 + $0x938] sm:$0xf]
      %v814 = vld [vmem:[%s195 + $0x93c] sm:$0xf]
      %v815 = vld [vmem:[%s195 + $0x940] sm:$0xf]
      %v816 = vld [vmem:[%s195 + $0x944] sm:$0xf]
      %v817 = vld [vmem:[%s195 + $0x948] sm:$0xf]
      %v818 = vld [vmem:[%s195 + $0x94c] sm:$0xf]
      %v819 = vld [vmem:[%s195 + $0x950] sm:$0xf]
      %v820 = vld [vmem:[%s195 + $0x954] sm:$0xf]
      %v821 = vld [vmem:[%s195 + $0x958] sm:$0xf]
      %v822 = vld [vmem:[%s195 + $0x95c] sm:$0xf]
      %v823 = vld [vmem:[%s195 + $0x960] sm:$0xf]
      %v824 = vld [vmem:[%s195 + $0x964] sm:$0xf]
      %v825 = vld [vmem:[%s195 + $0x968] sm:$0xf]
      %v826 = vld [vmem:[%s195 + $0x96c] sm:$0xf]
      %v827 = vld [vmem:[%s195 + $0x970] sm:$0xf]
      %v828 = vld [vmem:[%s195 + $0x974] sm:$0xf]
      %v829 = vld [vmem:[%s195 + $0x978] sm:$0xf]
      %v830 = vld [vmem:[%s195 + $0x97c] sm:$0xf]
      %v831 = vld [vmem:[%s195 + $0x980] sm:$0xf]
      %v832 = vld [vmem:[%s195 + $0x984] sm:$0xf]
      %v833 = vld [vmem:[%s195 + $0x988] sm:$0xf]
      %v834 = vld [vmem:[%s195 + $0x98c] sm:$0xf]
      %v835 = vld [vmem:[%s195 + $0x990] sm:$0xf]
      %v836 = vld [vmem:[%s195 + $0x994] sm:$0xf]
      %v837 = vld [vmem:[%s195 + $0x998] sm:$0xf]
      %v838 = vld [vmem:[%s195 + $0x99c] sm:$0xf]
      %v839 = vld [vmem:[%s195 + $0x9a0] sm:$0xf]
      %v840 = vld [vmem:[%s195 + $0x9a4] sm:$0xf]
      %v841 = vld [vmem:[%s195 + $0x9a8] sm:$0xf]
      %v842 = vld [vmem:[%s195 + $0x9ac] sm:$0xf]
      %v843 = vld [vmem:[%s195 + $0x9b0] sm:$0xf]
      %v844 = vld [vmem:[%s195 + $0x9b4] sm:$0xf]
      %v845 = vld [vmem:[%s195 + $0x9b8] sm:$0xf]
      %v846 = vld [vmem:[%s195 + $0x9bc] sm:$0xf]
      %v847 = vld [vmem:[%s195 + $0x9c0] sm:$0xf]
      %v848 = vld [vmem:[%s195 + $0x9c4] sm:$0xf]
      %v849 = vld [vmem:[%s195 + $0x9c8] sm:$0xf]
      %v850 = vld [vmem:[%s195 + $0x9cc] sm:$0xf]
      %v851 = vld [vmem:[%s195 + $0x9d0] sm:$0xf]
      %v852 = vld [vmem:[%s195 + $0x9d4] sm:$0xf]
      %v853 = vld [vmem:[%s195 + $0x9d8] sm:$0xf]
      %v854 = vld [vmem:[%s195 + $0x9dc] sm:$0xf]
      %v855 = vld [vmem:[%s195 + $0x9e0] sm:$0xf]
      %v856 = vld [vmem:[%s195 + $0x9e4] sm:$0xf]
      %v857 = vld [vmem:[%s195 + $0x9e8] sm:$0xf]
      %v858 = vld [vmem:[%s195 + $0x9ec] sm:$0xf]
      %v859 = vld [vmem:[%s195 + $0x9f0] sm:$0xf]
      %v860 = vld [vmem:[%s195 + $0x9f4] sm:$0xf]
      %v861 = vld [vmem:[%s195 + $0x9f8] sm:$0xf]
      %v862 = vld [vmem:[%s195 + $0x9fc] sm:$0xf]
      %v863 = vld [vmem:[%s195 + $0xa00] sm:$0xf]
      %v864 = vld [vmem:[%s195 + $0xa04] sm:$0xf]
      %v865 = vld [vmem:[%s195 + $0xa08] sm:$0xf]
      %v866 = vld [vmem:[%s195 + $0xa0c] sm:$0xf]
      %v867 = vld [vmem:[%s195 + $0xa10] sm:$0xf]
      %v868 = vld [vmem:[%s195 + $0xa14] sm:$0xf]
      %v869 = vld [vmem:[%s195 + $0xa18] sm:$0xf]
      %v870 = vld [vmem:[%s195 + $0xa1c] sm:$0xf]
      %v871 = vld [vmem:[%s195 + $0xa20] sm:$0xf]
      %v872 = vld [vmem:[%s195 + $0xa24] sm:$0xf]
      %v873 = vld [vmem:[%s195 + $0xa28] sm:$0xf]
      %v874 = vld [vmem:[%s195 + $0xa2c] sm:$0xf]
      %v875 = vld [vmem:[%s195 + $0xa30] sm:$0xf]
      %v876 = vld [vmem:[%s195 + $0xa34] sm:$0xf]
      %v877 = vld [vmem:[%s195 + $0xa38] sm:$0xf]
      %v878 = vld [vmem:[%s195 + $0xa3c] sm:$0xf]
      %v879 = vld [vmem:[%s195 + $0xa40] sm:$0xf]
      %v880 = vld [vmem:[%s195 + $0xa44] sm:$0xf]
      %v881 = vld [vmem:[%s195 + $0xa48] sm:$0xf]
      %v882 = vld [vmem:[%s195 + $0xa4c] sm:$0xf]
      %v883 = vld [vmem:[%s195 + $0xa50] sm:$0xf]
      %v884 = vld [vmem:[%s195 + $0xa54] sm:$0xf]
      %v885 = vld [vmem:[%s195 + $0xa58] sm:$0xf]
      %v886 = vld [vmem:[%s195 + $0xa5c] sm:$0xf]
      %v887 = vld [vmem:[%s195 + $0xa60] sm:$0xf]
      %v888 = vld [vmem:[%s195 + $0xa64] sm:$0xf]
      %v889 = vld [vmem:[%s195 + $0xa68] sm:$0xf]
      %v890 = vld [vmem:[%s195 + $0xa6c] sm:$0xf]
      %v891 = vld [vmem:[%s195 + $0xa70] sm:$0xf]
      %v892 = vld [vmem:[%s195 + $0xa74] sm:$0xf]
      %v893 = vld [vmem:[%s195 + $0xa78] sm:$0xf]
      %v894 = vld [vmem:[%s195 + $0xa7c] sm:$0xf]
      %v895 = vld [vmem:[%s195 + $0xa80] sm:$0xf]
      %v896 = vld [vmem:[%s195 + $0xa84] sm:$0xf]
      %v897 = vld [vmem:[%s195 + $0xa88] sm:$0xf]
      %v898 = vld [vmem:[%s195 + $0xa8c] sm:$0xf]
      %v899 = vld [vmem:[%s195 + $0xa90] sm:$0xf]
      %v900 = vld [vmem:[%s195 + $0xa94] sm:$0xf]
      %v901 = vld [vmem:[%s195 + $0xa98] sm:$0xf]
      %v902 = vld [vmem:[%s195 + $0xa9c] sm:$0xf]
      %v903 = vld [vmem:[%s195 + $0xaa0] sm:$0xf]
      %v904 = vld [vmem:[%s195 + $0xaa4] sm:$0xf]
      %v905 = vld [vmem:[%s195 + $0xaa8] sm:$0xf]
      %v906 = vld [vmem:[%s195 + $0xaac] sm:$0xf]
      %v907 = vld [vmem:[%s195 + $0xab0] sm:$0xf]
      %v908 = vld [vmem:[%s195 + $0xab4] sm:$0xf]
      %v909 = vld [vmem:[%s195 + $0xab8] sm:$0xf]
      %v910 = vld [vmem:[%s195 + $0xabc] sm:$0xf]
      %v911 = vld [vmem:[%s195 + $0xac0] sm:$0xf]
      %v912 = vld [vmem:[%s195 + $0xac4] sm:$0xf]
      %v913 = vld [vmem:[%s195 + $0xac8] sm:$0xf]
      %v914 = vld [vmem:[%s195 + $0xacc] sm:$0xf]
      %v915 = vld [vmem:[%s195 + $0xad0] sm:$0xf]
      %v916 = vld [vmem:[%s195 + $0xad4] sm:$0xf]
      %v917 = vld [vmem:[%s195 + $0xad8] sm:$0xf]
      %v918 = vld [vmem:[%s195 + $0xadc] sm:$0xf]
      %v919 = vld [vmem:[%s195 + $0xae0] sm:$0xf]
      %v920 = vld [vmem:[%s195 + $0xae4] sm:$0xf]
      %v921 = vld [vmem:[%s195 + $0xae8] sm:$0xf]
      %v922 = vld [vmem:[%s195 + $0xaec] sm:$0xf]
      %v923 = vld [vmem:[%s195 + $0xaf0] sm:$0xf]
      %v924 = vld [vmem:[%s195 + $0xaf4] sm:$0xf]
      %v925 = vld [vmem:[%s195 + $0xaf8] sm:$0xf]
      %v926 = vld [vmem:[%s195 + $0xafc] sm:$0xf]
      %v927 = vld [vmem:[%s195 + $0xb00] sm:$0xf]
      %v928 = vld [vmem:[%s195 + $0xb04] sm:$0xf]
      %v929 = vld [vmem:[%s195 + $0xb08] sm:$0xf]
      %v930 = vld [vmem:[%s195 + $0xb0c] sm:$0xf]
      %v931 = vld [vmem:[%s195 + $0xb10] sm:$0xf]
      %v932 = vld [vmem:[%s195 + $0xb14] sm:$0xf]
      %v933 = vld [vmem:[%s195 + $0xb18] sm:$0xf]
      %v934 = vld [vmem:[%s195 + $0xb1c] sm:$0xf]
      %v935 = vld [vmem:[%s195 + $0xb20] sm:$0xf]
      %v936 = vld [vmem:[%s195 + $0xb24] sm:$0xf]
      %v937 = vld [vmem:[%s195 + $0xb28] sm:$0xf]
      %v938 = vld [vmem:[%s195 + $0xb2c] sm:$0xf]
      %v939 = vld [vmem:[%s195 + $0xb30] sm:$0xf]
      %v940 = vld [vmem:[%s195 + $0xb34] sm:$0xf]
      %v941 = vld [vmem:[%s195 + $0xb38] sm:$0xf]
      %v942 = vld [vmem:[%s195 + $0xb3c] sm:$0xf]
      %v943 = vld [vmem:[%s195 + $0xb40] sm:$0xf]
      %v944 = vld [vmem:[%s195 + $0xb44] sm:$0xf]
      %v945 = vld [vmem:[%s195 + $0xb48] sm:$0xf]
      %v946 = vld [vmem:[%s195 + $0xb4c] sm:$0xf]
      %v947 = vld [vmem:[%s195 + $0xb50] sm:$0xf]
      %v948 = vld [vmem:[%s195 + $0xb54] sm:$0xf]
      %v949 = vld [vmem:[%s195 + $0xb58] sm:$0xf]
      %v950 = vld [vmem:[%s195 + $0xb5c] sm:$0xf]
      %v951 = vld [vmem:[%s195 + $0xb60] sm:$0xf]
      %v952 = vld [vmem:[%s195 + $0xb64] sm:$0xf]
      %v953 = vld [vmem:[%s195 + $0xb68] sm:$0xf]
      %v954 = vld [vmem:[%s195 + $0xb6c] sm:$0xf]
      %v955 = vld [vmem:[%s195 + $0xb70] sm:$0xf]
      %v956 = vld [vmem:[%s195 + $0xb74] sm:$0xf]
      %v957 = vld [vmem:[%s195 + $0xb78] sm:$0xf]
      %v958 = vld [vmem:[%s195 + $0xb7c] sm:$0xf]
      %v959 = vld [vmem:[%s195 + $0xb80] sm:$0xf]
      %v960 = vld [vmem:[%s195 + $0xb84] sm:$0xf]
      %v961 = vld [vmem:[%s195 + $0xb88] sm:$0xf]
      %v962 = vld [vmem:[%s195 + $0xb8c] sm:$0xf]
      %v963 = vld [vmem:[%s195 + $0xb90] sm:$0xf]
      %v964 = vld [vmem:[%s195 + $0xb94] sm:$0xf]
      %v965 = vld [vmem:[%s195 + $0xb98] sm:$0xf]
      %v966 = vld [vmem:[%s195 + $0xb9c] sm:$0xf]
      %v967 = vld [vmem:[%s195 + $0xba0] sm:$0xf]
      %v968 = vld [vmem:[%s195 + $0xba4] sm:$0xf]
      %v969 = vld [vmem:[%s195 + $0xba8] sm:$0xf]
      %v970 = vld [vmem:[%s195 + $0xbac] sm:$0xf]
      %v971 = vld [vmem:[%s195 + $0xbb0] sm:$0xf]
      %v972 = vld [vmem:[%s195 + $0xbb4] sm:$0xf]
      %v973 = vld [vmem:[%s195 + $0xbb8] sm:$0xf]
      %v974 = vld [vmem:[%s195 + $0xbbc] sm:$0xf]
      %v975 = vld [vmem:[%s195 + $0xbc0] sm:$0xf]
      %v976 = vld [vmem:[%s195 + $0xbc4] sm:$0xf]
      %v977 = vld [vmem:[%s195 + $0xbc8] sm:$0xf]
      %v978 = vld [vmem:[%s195 + $0xbcc] sm:$0xf]
      %v979 = vld [vmem:[%s195 + $0xbd0] sm:$0xf]
      %v980 = vld [vmem:[%s195 + $0xbd4] sm:$0xf]
      %v981 = vld [vmem:[%s195 + $0xbd8] sm:$0xf]
      %v982 = vld [vmem:[%s195 + $0xbdc] sm:$0xf]
      %v983 = vld [vmem:[%s195 + $0xbe0] sm:$0xf]
      %v984 = vld [vmem:[%s195 + $0xbe4] sm:$0xf]
      %v985 = vld [vmem:[%s195 + $0xbe8] sm:$0xf]
      %v986 = vld [vmem:[%s195 + $0xbec] sm:$0xf]
      %v987 = vld [vmem:[%s195 + $0xbf0] sm:$0xf]
      %v988 = vld [vmem:[%s195 + $0xbf4] sm:$0xf]
      %v989 = vld [vmem:[%s195 + $0xbf8] sm:$0xf]
      %v990 = vld [vmem:[%s195 + $0xbfc] sm:$0xf]
      %v991 = vld [vmem:[%s195 + $0xc00] sm:$0xf]
      %v992 = vld [vmem:[%s195 + $0xc04] sm:$0xf]
      %v993 = vld [vmem:[%s195 + $0xc08] sm:$0xf]
      %v994 = vld [vmem:[%s195 + $0xc0c] sm:$0xf]
      %v995 = vld [vmem:[%s195 + $0xc10] sm:$0xf]
      %v996 = vld [vmem:[%s195 + $0xc14] sm:$0xf]
      %v997 = vld [vmem:[%s195 + $0xc18] sm:$0xf]
      %v998 = vld [vmem:[%s195 + $0xc1c] sm:$0xf]
      %v999 = vld [vmem:[%s195 + $0xc20] sm:$0xf]
      %v1000 = vld [vmem:[%s195 + $0xc24] sm:$0xf]
      %v1001 = vld [vmem:[%s195 + $0xc28] sm:$0xf]
      %v1002 = vld [vmem:[%s195 + $0xc2c] sm:$0xf]
      %v1003 = vld [vmem:[%s195 + $0xc30] sm:$0xf]
      %v1004 = vld [vmem:[%s195 + $0xc34] sm:$0xf]
      %v1005 = vld [vmem:[%s195 + $0xc38] sm:$0xf]
      %v1006 = vld [vmem:[%s195 + $0xc3c] sm:$0xf]
      %v1007 = vld [vmem:[%s195 + $0xc40] sm:$0xf]
      %v1008 = vld [vmem:[%s195 + $0xc44] sm:$0xf]
      %v1009 = vld [vmem:[%s195 + $0xc48] sm:$0xf]
      %v1010 = vld [vmem:[%s195 + $0xc4c] sm:$0xf]
      %v1011 = vld [vmem:[%s195 + $0xc50] sm:$0xf]
      %v1012 = vld [vmem:[%s195 + $0xc54] sm:$0xf]
      %v1013 = vld [vmem:[%s195 + $0xc58] sm:$0xf]
      %v1014 = vld [vmem:[%s195 + $0xc5c] sm:$0xf]
      %v1015 = vld [vmem:[%s195 + $0xc60] sm:$0xf]
      %v1016 = vld [vmem:[%s195 + $0xc64] sm:$0xf]
      %v1017 = vld [vmem:[%s195 + $0xc68] sm:$0xf]
      %v1018 = vld [vmem:[%s195 + $0xc6c] sm:$0xf]
      %v1019 = vld [vmem:[%s195 + $0xc70] sm:$0xf]
      %v1020 = vld [vmem:[%s195 + $0xc74] sm:$0xf]
      %v1021 = vld [vmem:[%s195 + $0xc78] sm:$0xf]
      %v1022 = vld [vmem:[%s195 + $0xc7c] sm:$0xf]
      %v1023 = vld [vmem:[%s195 + $0xc80] sm:$0xf]
      %v1024 = vld [vmem:[%s195 + $0xc84] sm:$0xf]
      %v1025 = vld [vmem:[%s195 + $0xc88] sm:$0xf]
      %v1026 = vld [vmem:[%s195 + $0xc8c] sm:$0xf]
      %v1027 = vld [vmem:[%s195 + $0xc90] sm:$0xf]
      %v1028 = vld [vmem:[%s195 + $0xc94] sm:$0xf]
      %v1029 = vld [vmem:[%s195 + $0xc98] sm:$0xf]
      %v1030 = vld [vmem:[%s195 + $0xc9c] sm:$0xf]
      %v1031 = vld [vmem:[%s195 + $0xca0] sm:$0xf]
      %v1032 = vld [vmem:[%s195 + $0xca4] sm:$0xf]
      %v1033 = vld [vmem:[%s195 + $0xca8] sm:$0xf]
      %v1034 = vld [vmem:[%s195 + $0xcac] sm:$0xf]
      %v1035 = vld [vmem:[%s195 + $0xcb0] sm:$0xf]
      %v1036 = vld [vmem:[%s195 + $0xcb4] sm:$0xf]
      %v1037 = vld [vmem:[%s195 + $0xcb8] sm:$0xf]
      %v1038 = vld [vmem:[%s195 + $0xcbc] sm:$0xf]
      %v1039 = vld [vmem:[%s195 + $0xcc0] sm:$0xf]
      %v1040 = vld [vmem:[%s195 + $0xcc4] sm:$0xf]
      %v1041 = vld [vmem:[%s195 + $0xcc8] sm:$0xf]
      %v1042 = vld [vmem:[%s195 + $0xccc] sm:$0xf]
      %v1043 = vld [vmem:[%s195 + $0xcd0] sm:$0xf]
      %v1044 = vld [vmem:[%s195 + $0xcd4] sm:$0xf]
      %v1045 = vld [vmem:[%s195 + $0xcd8] sm:$0xf]
      %v1046 = vld [vmem:[%s195 + $0xcdc] sm:$0xf]
      %v1047 = vld [vmem:[%s195 + $0xce0] sm:$0xf]
      %v1048 = vld [vmem:[%s195 + $0xce4] sm:$0xf]
      %v1049 = vld [vmem:[%s195 + $0xce8] sm:$0xf]
      %v1050 = vld [vmem:[%s195 + $0xcec] sm:$0xf]
      %v1051 = vld [vmem:[%s195 + $0xcf0] sm:$0xf]
      %v1052 = vld [vmem:[%s195 + $0xcf4] sm:$0xf]
      %v1053 = vld [vmem:[%s195 + $0xcf8] sm:$0xf]
      %v1054 = vld [vmem:[%s195 + $0xcfc] sm:$0xf]
      %v1055 = vld [vmem:[%s195 + $0xd00] sm:$0xf]
      %v1056 = vld [vmem:[%s195 + $0xd04] sm:$0xf]
      %v1057 = vld [vmem:[%s195 + $0xd08] sm:$0xf]
      %v1058 = vld [vmem:[%s195 + $0xd0c] sm:$0xf]
      %v1059 = vld [vmem:[%s195 + $0xd10] sm:$0xf]
      %v1060 = vld [vmem:[%s195 + $0xd14] sm:$0xf]
      %v1061 = vld [vmem:[%s195 + $0xd18] sm:$0xf]
      %v1062 = vld [vmem:[%s195 + $0xd1c] sm:$0xf]
      %v1063 = vld [vmem:[%s195 + $0xd20] sm:$0xf]
      %v1064 = vld [vmem:[%s195 + $0xd24] sm:$0xf]
      %v1065 = vld [vmem:[%s195 + $0xd28] sm:$0xf]
      %v1066 = vld [vmem:[%s195 + $0xd2c] sm:$0xf]
      %v1067 = vld [vmem:[%s195 + $0xd30] sm:$0xf]
      %v1068 = vld [vmem:[%s195 + $0xd34] sm:$0xf]
      %v1069 = vld [vmem:[%s195 + $0xd38] sm:$0xf]
      %v1070 = vld [vmem:[%s195 + $0xd3c] sm:$0xf]
      %v1071 = vld [vmem:[%s195 + $0xd40] sm:$0xf]
      %v1072 = vld [vmem:[%s195 + $0xd44] sm:$0xf]
      %v1073 = vld [vmem:[%s195 + $0xd48] sm:$0xf]
      %v1074 = vld [vmem:[%s195 + $0xd4c] sm:$0xf]
      %v1075 = vld [vmem:[%s195 + $0xd50] sm:$0xf]
      %v1076 = vld [vmem:[%s195 + $0xd54] sm:$0xf]
      %v1077 = vld [vmem:[%s195 + $0xd58] sm:$0xf]
      %v1078 = vld [vmem:[%s195 + $0xd5c] sm:$0xf]
      %v1079 = vld [vmem:[%s195 + $0xd60] sm:$0xf]
      %v1080 = vld [vmem:[%s195 + $0xd64] sm:$0xf]
      %v1081 = vld [vmem:[%s195 + $0xd68] sm:$0xf]
      %v1082 = vld [vmem:[%s195 + $0xd6c] sm:$0xf]
      %v1083 = vld [vmem:[%s195 + $0xd70] sm:$0xf]
      %v1084 = vld [vmem:[%s195 + $0xd74] sm:$0xf]
      %v1085 = vld [vmem:[%s195 + $0xd78] sm:$0xf]
      %v1086 = vld [vmem:[%s195 + $0xd7c] sm:$0xf]
      %v1087 = vld [vmem:[%s195 + $0xd80] sm:$0xf]
      %v1088 = vld [vmem:[%s195 + $0xd84] sm:$0xf]
      %v1089 = vld [vmem:[%s195 + $0xd88] sm:$0xf]
      %v1090 = vld [vmem:[%s195 + $0xd8c] sm:$0xf]
      %v1091 = vld [vmem:[%s195 + $0xd90] sm:$0xf]
      %v1092 = vld [vmem:[%s195 + $0xd94] sm:$0xf]
      %v1093 = vld [vmem:[%s195 + $0xd98] sm:$0xf]
      %v1094 = vld [vmem:[%s195 + $0xd9c] sm:$0xf]
      %v1095 = vld [vmem:[%s195 + $0xda0] sm:$0xf]
      %v1096 = vld [vmem:[%s195 + $0xda4] sm:$0xf]
      %v1097 = vld [vmem:[%s195 + $0xda8] sm:$0xf]
      %v1098 = vld [vmem:[%s195 + $0xdac] sm:$0xf]
      %v1099 = vld [vmem:[%s195 + $0xdb0] sm:$0xf]
      %v1100 = vld [vmem:[%s195 + $0xdb4] sm:$0xf]
      %v1101 = vld [vmem:[%s195 + $0xdb8] sm:$0xf]
      %v1102 = vld [vmem:[%s195 + $0xdbc] sm:$0xf]
      %v1103 = vld [vmem:[%s195 + $0xdc0] sm:$0xf]
      %v1104 = vld [vmem:[%s195 + $0xdc4] sm:$0xf]
      %v1105 = vld [vmem:[%s195 + $0xdc8] sm:$0xf]
      %v1106 = vld [vmem:[%s195 + $0xdcc] sm:$0xf]
      %v1107 = vld [vmem:[%s195 + $0xdd0] sm:$0xf]
      %v1108 = vld [vmem:[%s195 + $0xdd4] sm:$0xf]
      %v1109 = vld [vmem:[%s195 + $0xdd8] sm:$0xf]
      %v1110 = vld [vmem:[%s195 + $0xddc] sm:$0xf]
      %v1111 = vld [vmem:[%s195 + $0xde0] sm:$0xf]
      %v1112 = vld [vmem:[%s195 + $0xde4] sm:$0xf]
      %v1113 = vld [vmem:[%s195 + $0xde8] sm:$0xf]
      %v1114 = vld [vmem:[%s195 + $0xdec] sm:$0xf]
      %v1115 = vld [vmem:[%s195 + $0xdf0] sm:$0xf]
      %v1116 = vld [vmem:[%s195 + $0xdf4] sm:$0xf]
      %v1117 = vld [vmem:[%s195 + $0xdf8] sm:$0xf]
      %v1118 = vld [vmem:[%s195 + $0xdfc] sm:$0xf]
      %v1119 = vld [vmem:[%s195 + $0xe00] sm:$0xf]
      %v1120 = vld [vmem:[%s195 + $0xe04] sm:$0xf]
      %v1121 = vld [vmem:[%s195 + $0xe08] sm:$0xf]
      %v1122 = vld [vmem:[%s195 + $0xe0c] sm:$0xf]
      %v1123 = vld [vmem:[%s195 + $0xe10] sm:$0xf]
      %v1124 = vld [vmem:[%s195 + $0xe14] sm:$0xf]
      %v1125 = vld [vmem:[%s195 + $0xe18] sm:$0xf]
      %v1126 = vld [vmem:[%s195 + $0xe1c] sm:$0xf]
      %v1127 = vld [vmem:[%s195 + $0xe20] sm:$0xf]
      %v1128 = vld [vmem:[%s195 + $0xe24] sm:$0xf]
      %v1129 = vld [vmem:[%s195 + $0xe28] sm:$0xf]
      %v1130 = vld [vmem:[%s195 + $0xe2c] sm:$0xf]
      %v1131 = vld [vmem:[%s195 + $0xe30] sm:$0xf]
      %v1132 = vld [vmem:[%s195 + $0xe34] sm:$0xf]
      %v1133 = vld [vmem:[%s195 + $0xe38] sm:$0xf]
      %v1134 = vld [vmem:[%s195 + $0xe3c] sm:$0xf]
      %v1135 = vld [vmem:[%s195 + $0xe40] sm:$0xf]
      %v1136 = vld [vmem:[%s195 + $0xe44] sm:$0xf]
      %v1137 = vld [vmem:[%s195 + $0xe48] sm:$0xf]
      %v1138 = vld [vmem:[%s195 + $0xe4c] sm:$0xf]
      %v1139 = vld [vmem:[%s195 + $0xe50] sm:$0xf]
      %v1140 = vld [vmem:[%s195 + $0xe54] sm:$0xf]
      %v1141 = vld [vmem:[%s195 + $0xe58] sm:$0xf]
      %v1142 = vld [vmem:[%s195 + $0xe5c] sm:$0xf]
      %v1143 = vld [vmem:[%s195 + $0xe60] sm:$0xf]
      %v1144 = vld [vmem:[%s195 + $0xe64] sm:$0xf]
      %v1145 = vld [vmem:[%s195 + $0xe68] sm:$0xf]
      %v1146 = vld [vmem:[%s195 + $0xe6c] sm:$0xf]
      %v1147 = vld [vmem:[%s195 + $0xe70] sm:$0xf]
      %v1148 = vld [vmem:[%s195 + $0xe74] sm:$0xf]
      %v1149 = vld [vmem:[%s195 + $0xe78] sm:$0xf]
      %v1150 = vld [vmem:[%s195 + $0xe7c] sm:$0xf]
      %v1151 = vld [vmem:[%s195 + $0xe80] sm:$0xf]
      %v1152 = vld [vmem:[%s195 + $0xe84] sm:$0xf]
      %v1153 = vld [vmem:[%s195 + $0xe88] sm:$0xf]
      %v1154 = vld [vmem:[%s195 + $0xe8c] sm:$0xf]
      %v1155 = vld [vmem:[%s195 + $0xe90] sm:$0xf]
      %v1156 = vld [vmem:[%s195 + $0xe94] sm:$0xf]
      %v1157 = vld [vmem:[%s195 + $0xe98] sm:$0xf]
      %v1158 = vld [vmem:[%s195 + $0xe9c] sm:$0xf]
      %v1159 = vld [vmem:[%s195 + $0xea0] sm:$0xf]
      %v1160 = vld [vmem:[%s195 + $0xea4] sm:$0xf]
      %v1161 = vld [vmem:[%s195 + $0xea8] sm:$0xf]
      %v1162 = vld [vmem:[%s195 + $0xeac] sm:$0xf]
      %v1163 = vld [vmem:[%s195 + $0xeb0] sm:$0xf]
      %v1164 = vld [vmem:[%s195 + $0xeb4] sm:$0xf]
      %v1165 = vld [vmem:[%s195 + $0xeb8] sm:$0xf]
      %v1166 = vld [vmem:[%s195 + $0xebc] sm:$0xf]
      %v1167 = vld [vmem:[%s195 + $0xec0] sm:$0xf]
      %v1168 = vld [vmem:[%s195 + $0xec4] sm:$0xf]
      %v1169 = vld [vmem:[%s195 + $0xec8] sm:$0xf]
      %v1170 = vld [vmem:[%s195 + $0xecc] sm:$0xf]
      %v1171 = vld [vmem:[%s195 + $0xed0] sm:$0xf]
      %v1172 = vld [vmem:[%s195 + $0xed4] sm:$0xf]
      %v1173 = vld [vmem:[%s195 + $0xed8] sm:$0xf]
      %v1174 = vld [vmem:[%s195 + $0xedc] sm:$0xf]
      %v1175 = vld [vmem:[%s195 + $0xee0] sm:$0xf]
      %v1176 = vld [vmem:[%s195 + $0xee4] sm:$0xf]
      %v1177 = vld [vmem:[%s195 + $0xee8] sm:$0xf]
      %v1178 = vld [vmem:[%s195 + $0xeec] sm:$0xf]
      %v1179 = vld [vmem:[%s195 + $0xef0] sm:$0xf]
      %v1180 = vld [vmem:[%s195 + $0xef4] sm:$0xf]
      %v1181 = vld [vmem:[%s195 + $0xef8] sm:$0xf]
      %v1182 = vld [vmem:[%s195 + $0xefc] sm:$0xf]
      %v1183 = vld [vmem:[%s195 + $0xf00] sm:$0xf]
      %v1184 = vld [vmem:[%s195 + $0xf04] sm:$0xf]
      %v1185 = vld [vmem:[%s195 + $0xf08] sm:$0xf]
      %v1186 = vld [vmem:[%s195 + $0xf0c] sm:$0xf]
      %v1187 = vld [vmem:[%s195 + $0xf10] sm:$0xf]
      %v1188 = vld [vmem:[%s195 + $0xf14] sm:$0xf]
      %v1189 = vld [vmem:[%s195 + $0xf18] sm:$0xf]
      %v1190 = vld [vmem:[%s195 + $0xf1c] sm:$0xf]
      %v1191 = vld [vmem:[%s195 + $0xf20] sm:$0xf]
      %v1192 = vld [vmem:[%s195 + $0xf24] sm:$0xf]
      %v1193 = vld [vmem:[%s195 + $0xf28] sm:$0xf]
      %v1194 = vld [vmem:[%s195 + $0xf2c] sm:$0xf]
      %v1195 = vld [vmem:[%s195 + $0xf30] sm:$0xf]
      %v1196 = vld [vmem:[%s195 + $0xf34] sm:$0xf]
      %v1197 = vld [vmem:[%s195 + $0xf38] sm:$0xf]
      %v1198 = vld [vmem:[%s195 + $0xf3c] sm:$0xf]
      %v1199 = vld [vmem:[%s195 + $0xf40] sm:$0xf]
      %v1200 = vld [vmem:[%s195 + $0xf44] sm:$0xf]
      %v1201 = vld [vmem:[%s195 + $0xf48] sm:$0xf]
      %v1202 = vld [vmem:[%s195 + $0xf4c] sm:$0xf]
      %v1203 = vld [vmem:[%s195 + $0xf50] sm:$0xf]
      %v1204 = vld [vmem:[%s195 + $0xf54] sm:$0xf]
      %v1205 = vld [vmem:[%s195 + $0xf58] sm:$0xf]
      %v1206 = vld [vmem:[%s195 + $0xf5c] sm:$0xf]
      %v1207 = vld [vmem:[%s195 + $0xf60] sm:$0xf]
      %v1208 = vld [vmem:[%s195 + $0xf64] sm:$0xf]
      %v1209 = vld [vmem:[%s195 + $0xf68] sm:$0xf]
      %v1210 = vld [vmem:[%s195 + $0xf6c] sm:$0xf]
      %v1211 = vld [vmem:[%s195 + $0xf70] sm:$0xf]
      %v1212 = vld [vmem:[%s195 + $0xf74] sm:$0xf]
      %v1213 = vld [vmem:[%s195 + $0xf78] sm:$0xf]
      %v1214 = vld [vmem:[%s195 + $0xf7c] sm:$0xf]
      %v1215 = vld [vmem:[%s195 + $0xf80] sm:$0xf]
      %v1216 = vld [vmem:[%s195 + $0xf84] sm:$0xf]
      %v1217 = vld [vmem:[%s195 + $0xf88] sm:$0xf]
      %v1218 = vld [vmem:[%s195 + $0xf8c] sm:$0xf]
      %v1219 = vld [vmem:[%s195 + $0xf90] sm:$0xf]
      %v1220 = vld [vmem:[%s195 + $0xf94] sm:$0xf]
      %v1221 = vld [vmem:[%s195 + $0xf98] sm:$0xf]
      %v1222 = vld [vmem:[%s195 + $0xf9c] sm:$0xf]
      %v1223 = vld [vmem:[%s195 + $0xfa0] sm:$0xf]
      %v1224 = vld [vmem:[%s195 + $0xfa4] sm:$0xf]
      %v1225 = vld [vmem:[%s195 + $0xfa8] sm:$0xf]
      %v1226 = vld [vmem:[%s195 + $0xfac] sm:$0xf]
      %v1227 = vld [vmem:[%s195 + $0xfb0] sm:$0xf]
      %v1228 = vld [vmem:[%s195 + $0xfb4] sm:$0xf]
      %v1229 = vld [vmem:[%s195 + $0xfb8] sm:$0xf]
      %v1230 = vld [vmem:[%s195 + $0xfbc] sm:$0xf]
      %v1231 = vld [vmem:[%s195 + $0xfc0] sm:$0xf]
      %v1232 = vld [vmem:[%s195 + $0xfc4] sm:$0xf]
      %v1233 = vld [vmem:[%s195 + $0xfc8] sm:$0xf]
      %v1234 = vld [vmem:[%s195 + $0xfcc] sm:$0xf]
      %v1235 = vld [vmem:[%s195 + $0xfd0] sm:$0xf]
      %v1236 = vld [vmem:[%s195 + $0xfd4] sm:$0xf]
      %v1237 = vld [vmem:[%s195 + $0xfd8] sm:$0xf]
      %v1238 = vld [vmem:[%s195 + $0xfdc] sm:$0xf]
      %v1239 = vld [vmem:[%s195 + $0xfe0] sm:$0xf]
      %v1240 = vld [vmem:[%s195 + $0xfe4] sm:$0xf]
      %v1241 = vld [vmem:[%s195 + $0xfe8] sm:$0xf]
      %v1242 = vld [vmem:[%s195 + $0xfec] sm:$0xf]
      %v1243 = vld [vmem:[%s195 + $0xff0] sm:$0xf]
      %v1244 = vld [vmem:[%s195 + $0xff4] sm:$0xf]
      %v1245 = vld [vmem:[%s195 + $0xff8] sm:$0xf]
      %v1246 = vld [vmem:[%s195 + $0xffc] sm:$0xf]
      %v1247 = vld [vmem:[%s195 + $0x1000] sm:$0xf]
      %v1248 = vld [vmem:[%s195 + $0x1004] sm:$0xf]
      %v1249 = vld [vmem:[%s195 + $0x1008] sm:$0xf]
      %v1250 = vld [vmem:[%s195 + $0x100c] sm:$0xf]
      %v1251 = vld [vmem:[%s195 + $0x1010] sm:$0xf]
      %v1252 = vld [vmem:[%s195 + $0x1014] sm:$0xf]
      %v1253 = vld [vmem:[%s195 + $0x1018] sm:$0xf]
      %v1254 = vld [vmem:[%s195 + $0x101c] sm:$0xf]
      %v1255 = vld [vmem:[%s195 + $0x1020] sm:$0xf]
      %v1256 = vld [vmem:[%s195 + $0x1024] sm:$0xf]
      %v1257 = vld [vmem:[%s195 + $0x1028] sm:$0xf]
      %v1258 = vld [vmem:[%s195 + $0x102c] sm:$0xf]
      %v1259 = vld [vmem:[%s195 + $0x1030] sm:$0xf]
      %v1260 = vld [vmem:[%s195 + $0x1034] sm:$0xf]
      %v1261 = vld [vmem:[%s195 + $0x1038] sm:$0xf]
      %v1262 = vld [vmem:[%s195 + $0x103c] sm:$0xf]
      %v1263 = vld [vmem:[%s195 + $0x1040] sm:$0xf]
      %v1264 = vld [vmem:[%s195 + $0x1044] sm:$0xf]
      %v1265 = vld [vmem:[%s195 + $0x1048] sm:$0xf]
      %v1266 = vld [vmem:[%s195 + $0x104c] sm:$0xf]
      %v1267 = vld [vmem:[%s195 + $0x1050] sm:$0xf]
      %v1268 = vld [vmem:[%s195 + $0x1054] sm:$0xf]
      %v1269 = vld [vmem:[%s195 + $0x1058] sm:$0xf]
      %v1270 = vld [vmem:[%s195 + $0x105c] sm:$0xf]
      %v1271 = vld [vmem:[%s195 + $0x1060] sm:$0xf]
      %v1272 = vld [vmem:[%s195 + $0x1064] sm:$0xf]
      %v1273 = vld [vmem:[%s195 + $0x1068] sm:$0xf]
      %v1274 = vld [vmem:[%s195 + $0x106c] sm:$0xf]
      %v1275 = vld [vmem:[%s195 + $0x1070] sm:$0xf]
      %v1276 = vld [vmem:[%s195 + $0x1074] sm:$0xf]
      %v1277 = vld [vmem:[%s195 + $0x1078] sm:$0xf]
      %v1278 = vld [vmem:[%s195 + $0x107c] sm:$0xf]
      %v1279 = vld [vmem:[%s195 + $0x1080] sm:$0xf]
      %v1280 = vld [vmem:[%s195 + $0x1084] sm:$0xf]
      %v1281 = vld [vmem:[%s195 + $0x1088] sm:$0xf]
      %v1282 = vld [vmem:[%s195 + $0x108c] sm:$0xf]
      %v1283 = vld [vmem:[%s195 + $0x1090] sm:$0xf]
      %v1284 = vld [vmem:[%s195 + $0x1094] sm:$0xf]
      %v1285 = vld [vmem:[%s195 + $0x1098] sm:$0xf]
      %v1286 = vld [vmem:[%s195 + $0x109c] sm:$0xf]
      %v1287 = vld [vmem:[%s195 + $0x10a0] sm:$0xf]
      %v1288 = vld [vmem:[%s195 + $0x10a4] sm:$0xf]
      %v1289 = vld [vmem:[%s195 + $0x10a8] sm:$0xf]
      %v1290 = vld [vmem:[%s195 + $0x10ac] sm:$0xf]
      %v1291 = vld [vmem:[%s195 + $0x10b0] sm:$0xf]
      %v1292 = vld [vmem:[%s195 + $0x10b4] sm:$0xf]
      %v1293 = vld [vmem:[%s195 + $0x10b8] sm:$0xf]
      %v1294 = vld [vmem:[%s195 + $0x10bc] sm:$0xf]
      %v1295 = vld [vmem:[%s195 + $0x10c0] sm:$0xf]
      %v1296 = vld [vmem:[%s195 + $0x10c4] sm:$0xf]
      %v1297 = vld [vmem:[%s195 + $0x10c8] sm:$0xf]
      %v1298 = vld [vmem:[%s195 + $0x10cc] sm:$0xf]
      %v1299 = vld [vmem:[%s195 + $0x10d0] sm:$0xf]
      %v1300 = vld [vmem:[%s195 + $0x10d4] sm:$0xf]
      %v1301 = vld [vmem:[%s195 + $0x10d8] sm:$0xf]
      %v1302 = vld [vmem:[%s195 + $0x10dc] sm:$0xf]
      %v1303 = vld [vmem:[%s195 + $0x10e0] sm:$0xf]
      %v1304 = vld [vmem:[%s195 + $0x10e4] sm:$0xf]
      %v1305 = vld [vmem:[%s195 + $0x10e8] sm:$0xf]
      %v1306 = vld [vmem:[%s195 + $0x10ec] sm:$0xf]
      %v1307 = vld [vmem:[%s195 + $0x10f0] sm:$0xf]
      %v1308 = vld [vmem:[%s195 + $0x10f4] sm:$0xf]
      %v1309 = vld [vmem:[%s195 + $0x10f8] sm:$0xf]
      %v1310 = vld [vmem:[%s195 + $0x10fc] sm:$0xf]
      %v1311 = vld [vmem:[%s195 + $0x1100] sm:$0xf]
      %v1312 = vld [vmem:[%s195 + $0x1104] sm:$0xf]
      %v1313 = vld [vmem:[%s195 + $0x1108] sm:$0xf]
      %v1314 = vld [vmem:[%s195 + $0x110c] sm:$0xf]
      %v1315 = vld [vmem:[%s195 + $0x1110] sm:$0xf]
      %v1316 = vld [vmem:[%s195 + $0x1114] sm:$0xf]
      %v1317 = vld [vmem:[%s195 + $0x1118] sm:$0xf]
      %v1318 = vld [vmem:[%s195 + $0x111c] sm:$0xf]
      %v1319 = vld [vmem:[%s195 + $0x1120] sm:$0xf]
      %v1320 = vld [vmem:[%s195 + $0x1124] sm:$0xf]
      %v1321 = vld [vmem:[%s195 + $0x1128] sm:$0xf]
      %v1322 = vld [vmem:[%s195 + $0x112c] sm:$0xf]
      %v1323 = vld [vmem:[%s195 + $0x1130] sm:$0xf]
      %v1324 = vld [vmem:[%s195 + $0x1134] sm:$0xf]
      %v1325 = vld [vmem:[%s195 + $0x1138] sm:$0xf]
      %v1326 = vld [vmem:[%s195 + $0x113c] sm:$0xf]
      %v1327 = vld [vmem:[%s195 + $0x1140] sm:$0xf]
      %v1328 = vld [vmem:[%s195 + $0x1144] sm:$0xf]
      %v1329 = vld [vmem:[%s195 + $0x1148] sm:$0xf]
      %v1330 = vld [vmem:[%s195 + $0x114c] sm:$0xf]
      %v1331 = vld [vmem:[%s195 + $0x1150] sm:$0xf]
      %v1332 = vld [vmem:[%s195 + $0x1154] sm:$0xf]
      %v1333 = vld [vmem:[%s195 + $0x1158] sm:$0xf]
      %v1334 = vld [vmem:[%s195 + $0x115c] sm:$0xf]
      %v1335 = vld [vmem:[%s195 + $0x1160] sm:$0xf]
      %v1336 = vld [vmem:[%s195 + $0x1164] sm:$0xf]
      %v1337 = vld [vmem:[%s195 + $0x1168] sm:$0xf]
      %v1338 = vld [vmem:[%s195 + $0x116c] sm:$0xf]
      %v1339 = vld [vmem:[%s195 + $0x1170] sm:$0xf]
      %v1340 = vld [vmem:[%s195 + $0x1174] sm:$0xf]
      %v1341 = vld [vmem:[%s195 + $0x1178] sm:$0xf]
      %v1342 = vld [vmem:[%s195 + $0x117c] sm:$0xf]
      %v1343 = vld [vmem:[%s195 + $0x1180] sm:$0xf]
      %v1344 = vld [vmem:[%s195 + $0x1184] sm:$0xf]
      %v1345 = vld [vmem:[%s195 + $0x1188] sm:$0xf]
      %v1346 = vld [vmem:[%s195 + $0x118c] sm:$0xf]
      %v1347 = vld [vmem:[%s195 + $0x1190] sm:$0xf]
      %v1348 = vld [vmem:[%s195 + $0x1194] sm:$0xf]
      %v1349 = vld [vmem:[%s195 + $0x1198] sm:$0xf]
      %v1350 = vld [vmem:[%s195 + $0x119c] sm:$0xf]
      %v1351 = vld [vmem:[%s195 + $0x11a0] sm:$0xf]
      %v1352 = vld [vmem:[%s195 + $0x11a4] sm:$0xf]
      %v1353 = vld [vmem:[%s195 + $0x11a8] sm:$0xf]
      %v1354 = vld [vmem:[%s195 + $0x11ac] sm:$0xf]
      %v1355 = vld [vmem:[%s195 + $0x11b0] sm:$0xf]
      %v1356 = vld [vmem:[%s195 + $0x11b4] sm:$0xf]
      %v1357 = vld [vmem:[%s195 + $0x11b8] sm:$0xf]
      %v1358 = vld [vmem:[%s195 + $0x11bc] sm:$0xf]
      %v1359 = vld [vmem:[%s195 + $0x11c0] sm:$0xf]
      %v1360 = vld [vmem:[%s195 + $0x11c4] sm:$0xf]
      %v1361 = vld [vmem:[%s195 + $0x11c8] sm:$0xf]
      %v1362 = vld [vmem:[%s195 + $0x11cc] sm:$0xf]
      %v1363 = vld [vmem:[%s195 + $0x11d0] sm:$0xf]
      %v1364 = vld [vmem:[%s195 + $0x11d4] sm:$0xf]
      %v1365 = vld [vmem:[%s195 + $0x11d8] sm:$0xf]
      %v1366 = vld [vmem:[%s195 + $0x11dc] sm:$0xf]
      %v1367 = vld [vmem:[%s195 + $0x11e0] sm:$0xf]
      %v1368 = vld [vmem:[%s195 + $0x11e4] sm:$0xf]
      %v1369 = vld [vmem:[%s195 + $0x11e8] sm:$0xf]
      %v1370 = vld [vmem:[%s195 + $0x11ec] sm:$0xf]
      %v1371 = vld [vmem:[%s195 + $0x11f0] sm:$0xf]
      %v1372 = vld [vmem:[%s195 + $0x11f4] sm:$0xf]
      %v1373 = vld [vmem:[%s195 + $0x11f8] sm:$0xf]
      %v1374 = vld [vmem:[%s195 + $0x11fc] sm:$0xf]
      %v1375 = vld [vmem:[%s195 + $0x1200] sm:$0xf]
      %v1376 = vld [vmem:[%s195 + $0x1204] sm:$0xf]
      %v1377 = vld [vmem:[%s195 + $0x1208] sm:$0xf]
      %v1378 = vld [vmem:[%s195 + $0x120c] sm:$0xf]
      %v1379 = vld [vmem:[%s195 + $0x1210] sm:$0xf]
      %v1380 = vld [vmem:[%s195 + $0x1214] sm:$0xf]
      %v1381 = vld [vmem:[%s195 + $0x1218] sm:$0xf]
      %v1382 = vld [vmem:[%s195 + $0x121c] sm:$0xf]
      %v1383 = vld [vmem:[%s195 + $0x1220] sm:$0xf]
      %v1384 = vld [vmem:[%s195 + $0x1224] sm:$0xf]
      %v1385 = vld [vmem:[%s195 + $0x1228] sm:$0xf]
      %v1386 = vld [vmem:[%s195 + $0x122c] sm:$0xf]
      %v1387 = vld [vmem:[%s195 + $0x1230] sm:$0xf]
      %v1388 = vld [vmem:[%s195 + $0x1234] sm:$0xf]
      %v1389 = vld [vmem:[%s195 + $0x1238] sm:$0xf]
      %v1390 = vld [vmem:[%s195 + $0x123c] sm:$0xf]
      %v1391 = vld [vmem:[%s195 + $0x1240] sm:$0xf]
      %v1392 = vld [vmem:[%s195 + $0x1244] sm:$0xf]
      %v1393 = vld [vmem:[%s195 + $0x1248] sm:$0xf]
      %v1394 = vld [vmem:[%s195 + $0x124c] sm:$0xf]
      %v1395 = vld [vmem:[%s195 + $0x1250] sm:$0xf]
      %v1396 = vld [vmem:[%s195 + $0x1254] sm:$0xf]
      %v1397 = vld [vmem:[%s195 + $0x1258] sm:$0xf]
      %v1398 = vld [vmem:[%s195 + $0x125c] sm:$0xf]
      %v1399 = vld [vmem:[%s195 + $0x1260] sm:$0xf]
      %v1400 = vld [vmem:[%s195 + $0x1264] sm:$0xf]
      %v1401 = vld [vmem:[%s195 + $0x1268] sm:$0xf]
      %v1402 = vld [vmem:[%s195 + $0x126c] sm:$0xf]
      %v1403 = vld [vmem:[%s195 + $0x1270] sm:$0xf]
      %v1404 = vld [vmem:[%s195 + $0x1274] sm:$0xf]
      %v1405 = vld [vmem:[%s195 + $0x1278] sm:$0xf]
      %v1406 = vld [vmem:[%s195 + $0x127c] sm:$0xf]
      %v1407 = vld [vmem:[%s195 + $0x1280] sm:$0xf]
      %v1408 = vld [vmem:[%s195 + $0x1284] sm:$0xf]
      %v1409 = vld [vmem:[%s195 + $0x1288] sm:$0xf]
      %v1410 = vld [vmem:[%s195 + $0x128c] sm:$0xf]
      %v1411 = vld [vmem:[%s195 + $0x1290] sm:$0xf]
      %v1412 = vld [vmem:[%s195 + $0x1294] sm:$0xf]
      %v1413 = vld [vmem:[%s195 + $0x1298] sm:$0xf]
      %v1414 = vld [vmem:[%s195 + $0x129c] sm:$0xf]
      %v1415 = vld [vmem:[%s195 + $0x12a0] sm:$0xf]
      %v1416 = vld [vmem:[%s195 + $0x12a4] sm:$0xf]
      %v1417 = vld [vmem:[%s195 + $0x12a8] sm:$0xf]
      %v1418 = vld [vmem:[%s195 + $0x12ac] sm:$0xf]
      %v1419 = vld [vmem:[%s195 + $0x12b0] sm:$0xf]
      %v1420 = vld [vmem:[%s195 + $0x12b4] sm:$0xf]
      %v1421 = vld [vmem:[%s195 + $0x12b8] sm:$0xf]
      %v1422 = vld [vmem:[%s195 + $0x12bc] sm:$0xf]
      %v1423 = vld [vmem:[%s195 + $0x12c0] sm:$0xf]
      %v1424 = vld [vmem:[%s195 + $0x12c4] sm:$0xf]
      %v1425 = vld [vmem:[%s195 + $0x12c8] sm:$0xf]
      %v1426 = vld [vmem:[%s195 + $0x12cc] sm:$0xf]
      %v1427 = vld [vmem:[%s195 + $0x12d0] sm:$0xf]
      %v1428 = vld [vmem:[%s195 + $0x12d4] sm:$0xf]
      %v1429 = vld [vmem:[%s195 + $0x12d8] sm:$0xf]
      %v1430 = vld [vmem:[%s195 + $0x12dc] sm:$0xf]
      %v1431 = vld [vmem:[%s195 + $0x12e0] sm:$0xf]
      %v1432 = vld [vmem:[%s195 + $0x12e4] sm:$0xf]
      %v1433 = vld [vmem:[%s195 + $0x12e8] sm:$0xf]
      %v1434 = vld [vmem:[%s195 + $0x12ec] sm:$0xf]
      %v1435 = vld [vmem:[%s195 + $0x12f0] sm:$0xf]
      %v1436 = vld [vmem:[%s195 + $0x12f4] sm:$0xf]
      %v1437 = vld [vmem:[%s195 + $0x12f8] sm:$0xf]
      %v1438 = vld [vmem:[%s195 + $0x12fc] sm:$0xf]
      %v1439 = vld [vmem:[%s195 + $0x1300] sm:$0xf]
      %v1440 = vld [vmem:[%s195 + $0x1304] sm:$0xf]
      %v1441 = vld [vmem:[%s195 + $0x1308] sm:$0xf]
      %v1442 = vld [vmem:[%s195 + $0x130c] sm:$0xf]
      %v1443 = vld [vmem:[%s195 + $0x1310] sm:$0xf]
      %v1444 = vld [vmem:[%s195 + $0x1314] sm:$0xf]
      %v1445 = vld [vmem:[%s195 + $0x1318] sm:$0xf]
      %v1446 = vld [vmem:[%s195 + $0x131c] sm:$0xf]
      %v1447 = vld [vmem:[%s195 + $0x1320] sm:$0xf]
      %v1448 = vld [vmem:[%s195 + $0x1324] sm:$0xf]
      %v1449 = vld [vmem:[%s195 + $0x1328] sm:$0xf]
      %v1450 = vld [vmem:[%s195 + $0x132c] sm:$0xf]
      %v1451 = vld [vmem:[%s195 + $0x1330] sm:$0xf]
      %v1452 = vld [vmem:[%s195 + $0x1334] sm:$0xf]
      %v1453 = vld [vmem:[%s195 + $0x1338] sm:$0xf]
      %v1454 = vld [vmem:[%s195 + $0x133c] sm:$0xf]
      %v1455 = vld [vmem:[%s195 + $0x1340] sm:$0xf]
      %v1456 = vld [vmem:[%s195 + $0x1344] sm:$0xf]
      %v1457 = vld [vmem:[%s195 + $0x1348] sm:$0xf]
      %v1458 = vld [vmem:[%s195 + $0x134c] sm:$0xf]
      %v1459 = vld [vmem:[%s195 + $0x1350] sm:$0xf]
      %v1460 = vld [vmem:[%s195 + $0x1354] sm:$0xf]
      %v1461 = vld [vmem:[%s195 + $0x1358] sm:$0xf]
      %v1462 = vld [vmem:[%s195 + $0x135c] sm:$0xf]
      %v1463 = vld [vmem:[%s195 + $0x1360] sm:$0xf]
      %v1464 = vld [vmem:[%s195 + $0x1364] sm:$0xf]
      %v1465 = vld [vmem:[%s195 + $0x1368] sm:$0xf]
      %v1466 = vld [vmem:[%s195 + $0x136c] sm:$0xf]
      %v1467 = vld [vmem:[%s195 + $0x1370] sm:$0xf]
      %v1468 = vld [vmem:[%s195 + $0x1374] sm:$0xf]
      %v1469 = vld [vmem:[%s195 + $0x1378] sm:$0xf]
      %v1470 = vld [vmem:[%s195 + $0x137c] sm:$0xf]
      %v1471 = vld [vmem:[%s195 + $0x1380] sm:$0xf]
      %v1472 = vld [vmem:[%s195 + $0x1384] sm:$0xf]
      %v1473 = vld [vmem:[%s195 + $0x1388] sm:$0xf]
      %v1474 = vld [vmem:[%s195 + $0x138c] sm:$0xf]
      %v1475 = vld [vmem:[%s195 + $0x1390] sm:$0xf]
      %v1476 = vld [vmem:[%s195 + $0x1394] sm:$0xf]
      %v1477 = vld [vmem:[%s195 + $0x1398] sm:$0xf]
      %v1478 = vld [vmem:[%s195 + $0x139c] sm:$0xf]
      %v1479 = vld [vmem:[%s195 + $0x13a0] sm:$0xf]
      %v1480 = vld [vmem:[%s195 + $0x13a4] sm:$0xf]
      %v1481 = vld [vmem:[%s195 + $0x13a8] sm:$0xf]
      %v1482 = vld [vmem:[%s195 + $0x13ac] sm:$0xf]
      %v1483 = vld [vmem:[%s195 + $0x13b0] sm:$0xf]
      %v1484 = vld [vmem:[%s195 + $0x13b4] sm:$0xf]
      %v1485 = vld [vmem:[%s195 + $0x13b8] sm:$0xf]
      %v1486 = vld [vmem:[%s195 + $0x13bc] sm:$0xf]
      %v1487 = vld [vmem:[%s195 + $0x13c0] sm:$0xf]
      %v1488 = vld [vmem:[%s195 + $0x13c4] sm:$0xf]
      %v1489 = vld [vmem:[%s195 + $0x13c8] sm:$0xf]
      %v1490 = vld [vmem:[%s195 + $0x13cc] sm:$0xf]
      %v1491 = vld [vmem:[%s195 + $0x13d0] sm:$0xf]
      %v1492 = vld [vmem:[%s195 + $0x13d4] sm:$0xf]
      %v1493 = vld [vmem:[%s195 + $0x13d8] sm:$0xf]
      %v1494 = vld [vmem:[%s195 + $0x13dc] sm:$0xf]
      %v1495 = vld [vmem:[%s195 + $0x13e0] sm:$0xf]
      %v1496 = vld [vmem:[%s195 + $0x13e4] sm:$0xf]
      %v1497 = vld [vmem:[%s195 + $0x13e8] sm:$0xf]
      %v1498 = vld [vmem:[%s195 + $0x13ec] sm:$0xf]
      %v1499 = vld [vmem:[%s195 + $0x13f0] sm:$0xf]
      %v1500 = vld [vmem:[%s195 + $0x13f4] sm:$0xf]
      %v1501 = vld [vmem:[%s195 + $0x13f8] sm:$0xf]
      %v1502 = vld [vmem:[%s195 + $0x13fc] sm:$0xf]
      %v1503 = vld [vmem:[%s195 + $0x1400] sm:$0xf]
      %v1504 = vld [vmem:[%s195 + $0x1404] sm:$0xf]
      %v1505 = vld [vmem:[%s195 + $0x1408] sm:$0xf]
      %v1506 = vld [vmem:[%s195 + $0x140c] sm:$0xf]
      %v1507 = vld [vmem:[%s195 + $0x1410] sm:$0xf]
      %v1508 = vld [vmem:[%s195 + $0x1414] sm:$0xf]
      %v1509 = vld [vmem:[%s195 + $0x1418] sm:$0xf]
      %v1510 = vld [vmem:[%s195 + $0x141c] sm:$0xf]
      %v1511 = vld [vmem:[%s195 + $0x1420] sm:$0xf]
      %v1512 = vld [vmem:[%s195 + $0x1424] sm:$0xf]
      %v1513 = vld [vmem:[%s195 + $0x1428] sm:$0xf]
      %v1514 = vld [vmem:[%s195 + $0x142c] sm:$0xf]
      %v1515 = vld [vmem:[%s195 + $0x1430] sm:$0xf]
      %v1516 = vld [vmem:[%s195 + $0x1434] sm:$0xf]
      %v1517 = vld [vmem:[%s195 + $0x1438] sm:$0xf]
      %v1518 = vld [vmem:[%s195 + $0x143c] sm:$0xf]
      %v1519 = vld [vmem:[%s195 + $0x1440] sm:$0xf]
      %v1520 = vld [vmem:[%s195 + $0x1444] sm:$0xf]
      %v1521 = vld [vmem:[%s195 + $0x1448] sm:$0xf]
      %v1522 = vld [vmem:[%s195 + $0x144c] sm:$0xf]
      %v1523 = vld [vmem:[%s195 + $0x1450] sm:$0xf]
      %v1524 = vld [vmem:[%s195 + $0x1454] sm:$0xf]
      %v1525 = vld [vmem:[%s195 + $0x1458] sm:$0xf]
      %v1526 = vld [vmem:[%s195 + $0x145c] sm:$0xf]
      %v1527 = vld [vmem:[%s195 + $0x1460] sm:$0xf]
      %v1528 = vld [vmem:[%s195 + $0x1464] sm:$0xf]
      %v1529 = vld [vmem:[%s195 + $0x1468] sm:$0xf]
      %v1530 = vld [vmem:[%s195 + $0x146c] sm:$0xf]
      %v1531 = vld [vmem:[%s195 + $0x1470] sm:$0xf]
      %v1532 = vld [vmem:[%s195 + $0x1474] sm:$0xf]
      %v1533 = vld [vmem:[%s195 + $0x1478] sm:$0xf]
      %v1534 = vld [vmem:[%s195 + $0x147c] sm:$0xf]
      %v1535 = vld [vmem:[%s195 + $0x1480] sm:$0xf]
      %v1536 = vld [vmem:[%s195 + $0x1484] sm:$0xf]
      %v1537 = vld [vmem:[%s195 + $0x1488] sm:$0xf]
      %v1538 = vld [vmem:[%s195 + $0x148c] sm:$0xf]
      %v1539 = vld [vmem:[%s195 + $0x1490] sm:$0xf]
      %v1540 = vld [vmem:[%s195 + $0x1494] sm:$0xf]
      %v1541 = vld [vmem:[%s195 + $0x1498] sm:$0xf]
      %v1542 = vld [vmem:[%s195 + $0x149c] sm:$0xf]
      %v1543 = vld [vmem:[%s195 + $0x14a0] sm:$0xf]
      %v1544 = vld [vmem:[%s195 + $0x14a4] sm:$0xf]
      %v1545 = vld [vmem:[%s195 + $0x14a8] sm:$0xf]
      %v1546 = vld [vmem:[%s195 + $0x14ac] sm:$0xf]
      %v1547 = vld [vmem:[%s195 + $0x14b0] sm:$0xf]
      %v1548 = vld [vmem:[%s195 + $0x14b4] sm:$0xf]
      %v1549 = vld [vmem:[%s195 + $0x14b8] sm:$0xf]
      %v1550 = vld [vmem:[%s195 + $0x14bc] sm:$0xf]
      %v1551 = vld [vmem:[%s195 + $0x14c0] sm:$0xf]
      %v1552 = vld [vmem:[%s195 + $0x14c4] sm:$0xf]
      %v1553 = vld [vmem:[%s195 + $0x14c8] sm:$0xf]
      %v1554 = vld [vmem:[%s195 + $0x14cc] sm:$0xf]
      %v1555 = vld [vmem:[%s195 + $0x14d0] sm:$0xf]
      %v1556 = vld [vmem:[%s195 + $0x14d4] sm:$0xf]
      %v1557 = vld [vmem:[%s195 + $0x14d8] sm:$0xf]
      %v1558 = vld [vmem:[%s195 + $0x14dc] sm:$0xf]
      %v1559 = vld [vmem:[%s195 + $0x14e0] sm:$0xf]
      %v1560 = vld [vmem:[%s195 + $0x14e4] sm:$0xf]
      %v1561 = vld [vmem:[%s195 + $0x14e8] sm:$0xf]
      %v1562 = vld [vmem:[%s195 + $0x14ec] sm:$0xf]
      %v1563 = vld [vmem:[%s195 + $0x14f0] sm:$0xf]
      %v1564 = vld [vmem:[%s195 + $0x14f4] sm:$0xf]
      %v1565 = vld [vmem:[%s195 + $0x14f8] sm:$0xf]
      %v1566 = vld [vmem:[%s195 + $0x14fc] sm:$0xf]
      %v1567 = vld [vmem:[%s195 + $0x1500] sm:$0xf]
      %v1568 = vld [vmem:[%s195 + $0x1504] sm:$0xf]
      %v1569 = vld [vmem:[%s195 + $0x1508] sm:$0xf]
      %v1570 = vld [vmem:[%s195 + $0x150c] sm:$0xf]
      %v1571 = vld [vmem:[%s195 + $0x1510] sm:$0xf]
      %v1572 = vld [vmem:[%s195 + $0x1514] sm:$0xf]
      %v1573 = vld [vmem:[%s195 + $0x1518] sm:$0xf]
      %v1574 = vld [vmem:[%s195 + $0x151c] sm:$0xf]
      %v1575 = vld [vmem:[%s195 + $0x1520] sm:$0xf]
      %v1576 = vld [vmem:[%s195 + $0x1524] sm:$0xf]
      %v1577 = vld [vmem:[%s195 + $0x1528] sm:$0xf]
      %v1578 = vld [vmem:[%s195 + $0x152c] sm:$0xf]
      %v1579 = vld [vmem:[%s195 + $0x1530] sm:$0xf]
      %v1580 = vld [vmem:[%s195 + $0x1534] sm:$0xf]
      %v1581 = vld [vmem:[%s195 + $0x1538] sm:$0xf]
      %v1582 = vld [vmem:[%s195 + $0x153c] sm:$0xf]
      %v1583 = vld [vmem:[%s195 + $0x1540] sm:$0xf]
      %v1584 = vld [vmem:[%s195 + $0x1544] sm:$0xf]
      %v1585 = vld [vmem:[%s195 + $0x1548] sm:$0xf]
      %v1586 = vld [vmem:[%s195 + $0x154c] sm:$0xf]
      %v1587 = vld [vmem:[%s195 + $0x1550] sm:$0xf]
      %v1588 = vld [vmem:[%s195 + $0x1554] sm:$0xf]
      %v1589 = vld [vmem:[%s195 + $0x1558] sm:$0xf]
      %v1590 = vld [vmem:[%s195 + $0x155c] sm:$0xf]
      %v1591 = vld [vmem:[%s195 + $0x1560] sm:$0xf]
      %v1592 = vld [vmem:[%s195 + $0x1564] sm:$0xf]
      %v1593 = vld [vmem:[%s195 + $0x1568] sm:$0xf]
      %v1594 = vld [vmem:[%s195 + $0x156c] sm:$0xf]
      %v1595 = vld [vmem:[%s195 + $0x1570] sm:$0xf]
      %v1596 = vld [vmem:[%s195 + $0x1574] sm:$0xf]
      %v1597 = vld [vmem:[%s195 + $0x1578] sm:$0xf]
      %v1598 = vld [vmem:[%s195 + $0x157c] sm:$0xf]
      %v1599 = vld [vmem:[%s195 + $0x1580] sm:$0xf]
      %v1600 = vld [vmem:[%s195 + $0x1584] sm:$0xf]
      %v1601 = vld [vmem:[%s195 + $0x1588] sm:$0xf]
      %v1602 = vld [vmem:[%s195 + $0x158c] sm:$0xf]
      %v1603 = vld [vmem:[%s195 + $0x1590] sm:$0xf]
      %v1604 = vld [vmem:[%s195 + $0x1594] sm:$0xf]
      %v1605 = vld [vmem:[%s195 + $0x1598] sm:$0xf]
      %v1606 = vld [vmem:[%s195 + $0x159c] sm:$0xf]
      %v1607 = vld [vmem:[%s195 + $0x15a0] sm:$0xf]
      %v1608 = vld [vmem:[%s195 + $0x15a4] sm:$0xf]
      %v1609 = vld [vmem:[%s195 + $0x15a8] sm:$0xf]
      %v1610 = vld [vmem:[%s195 + $0x15ac] sm:$0xf]
      %v1611 = vld [vmem:[%s195 + $0x15b0] sm:$0xf]
      %v1612 = vld [vmem:[%s195 + $0x15b4] sm:$0xf]
      %v1613 = vld [vmem:[%s195 + $0x15b8] sm:$0xf]
      %v1614 = vld [vmem:[%s195 + $0x15bc] sm:$0xf]
      %v1615 = vld [vmem:[%s195 + $0x15c0] sm:$0xf]
      %v1616 = vld [vmem:[%s195 + $0x15c4] sm:$0xf]
      %v1617 = vld [vmem:[%s195 + $0x15c8] sm:$0xf]
      %v1618 = vld [vmem:[%s195 + $0x15cc] sm:$0xf]
      %v1619 = vld [vmem:[%s195 + $0x15d0] sm:$0xf]
      %v1620 = vld [vmem:[%s195 + $0x15d4] sm:$0xf]
      %v1621 = vld [vmem:[%s195 + $0x15d8] sm:$0xf]
      %v1622 = vld [vmem:[%s195 + $0x15dc] sm:$0xf]
      %v1623 = vld [vmem:[%s195 + $0x15e0] sm:$0xf]
      %v1624 = vld [vmem:[%s195 + $0x15e4] sm:$0xf]
      %v1625 = vld [vmem:[%s195 + $0x15e8] sm:$0xf]
      %v1626 = vld [vmem:[%s195 + $0x15ec] sm:$0xf]
      %v1627 = vld [vmem:[%s195 + $0x15f0] sm:$0xf]
      %v1628 = vld [vmem:[%s195 + $0x15f4] sm:$0xf]
      %v1629 = vld [vmem:[%s195 + $0x15f8] sm:$0xf]
      %v1630 = vld [vmem:[%s195 + $0x15fc] sm:$0xf]
      %v1631 = vld [vmem:[%s195 + $0x1600] sm:$0xf]
      %v1632 = vld [vmem:[%s195 + $0x1604] sm:$0xf]
      %v1633 = vld [vmem:[%s195 + $0x1608] sm:$0xf]
      %v1634 = vld [vmem:[%s195 + $0x160c] sm:$0xf]
      %v1635 = vld [vmem:[%s195 + $0x1610] sm:$0xf]
      %v1636 = vld [vmem:[%s195 + $0x1614] sm:$0xf]
      %v1637 = vld [vmem:[%s195 + $0x1618] sm:$0xf]
      %v1638 = vld [vmem:[%s195 + $0x161c] sm:$0xf]
      %v1639 = vld [vmem:[%s195 + $0x1620] sm:$0xf]
      %v1640 = vld [vmem:[%s195 + $0x1624] sm:$0xf]
      %v1641 = vld [vmem:[%s195 + $0x1628] sm:$0xf]
      %v1642 = vld [vmem:[%s195 + $0x162c] sm:$0xf]
      %v1643 = vld [vmem:[%s195 + $0x1630] sm:$0xf]
      %v1644 = vld [vmem:[%s195 + $0x1634] sm:$0xf]
      %v1645 = vld [vmem:[%s195 + $0x1638] sm:$0xf]
      %v1646 = vld [vmem:[%s195 + $0x163c] sm:$0xf]
      %v1647 = vld [vmem:[%s195 + $0x1640] sm:$0xf]
      %v1648 = vld [vmem:[%s195 + $0x1644] sm:$0xf]
      %v1649 = vld [vmem:[%s195 + $0x1648] sm:$0xf]
      %v1650 = vld [vmem:[%s195 + $0x164c] sm:$0xf]
      %v1651 = vld [vmem:[%s195 + $0x1650] sm:$0xf]
      %v1652 = vld [vmem:[%s195 + $0x1654] sm:$0xf]
      %v1653 = vld [vmem:[%s195 + $0x1658] sm:$0xf]
      %v1654 = vld [vmem:[%s195 + $0x165c] sm:$0xf]
      %v1655 = vld [vmem:[%s195 + $0x1660] sm:$0xf]
      %v1656 = vld [vmem:[%s195 + $0x1664] sm:$0xf]
      %v1657 = vld [vmem:[%s195 + $0x1668] sm:$0xf]
      %v1658 = vld [vmem:[%s195 + $0x166c] sm:$0xf]
      %v1659 = vld [vmem:[%s195 + $0x1670] sm:$0xf]
      %v1660 = vld [vmem:[%s195 + $0x1674] sm:$0xf]
      %v1661 = vld [vmem:[%s195 + $0x1678] sm:$0xf]
      %v1662 = vld [vmem:[%s195 + $0x167c] sm:$0xf]
      %v1663 = vld [vmem:[%s195 + $0x1680] sm:$0xf]
      %v1664 = vld [vmem:[%s195 + $0x1684] sm:$0xf]
      %v1665 = vld [vmem:[%s195 + $0x1688] sm:$0xf]
      %v1666 = vld [vmem:[%s195 + $0x168c] sm:$0xf]
      %v1667 = vld [vmem:[%s195 + $0x1690] sm:$0xf]
      %v1668 = vld [vmem:[%s195 + $0x1694] sm:$0xf]
      %v1669 = vld [vmem:[%s195 + $0x1698] sm:$0xf]
      %v1670 = vld [vmem:[%s195 + $0x169c] sm:$0xf]
      %v1671 = vld [vmem:[%s195 + $0x16a0] sm:$0xf]
      %v1672 = vld [vmem:[%s195 + $0x16a4] sm:$0xf]
      %v1673 = vld [vmem:[%s195 + $0x16a8] sm:$0xf]
      %v1674 = vld [vmem:[%s195 + $0x16ac] sm:$0xf]
      %v1675 = vld [vmem:[%s195 + $0x16b0] sm:$0xf]
      %v1676 = vld [vmem:[%s195 + $0x16b4] sm:$0xf]
      %v1677 = vld [vmem:[%s195 + $0x16b8] sm:$0xf]
      %v1678 = vld [vmem:[%s195 + $0x16bc] sm:$0xf]
      %v1679 = vld [vmem:[%s195 + $0x16c0] sm:$0xf]
      %v1680 = vld [vmem:[%s195 + $0x16c4] sm:$0xf]
      %v1681 = vld [vmem:[%s195 + $0x16c8] sm:$0xf]
      %v1682 = vld [vmem:[%s195 + $0x16cc] sm:$0xf]
      %v1683 = vld [vmem:[%s195 + $0x16d0] sm:$0xf]
      %v1684 = vld [vmem:[%s195 + $0x16d4] sm:$0xf]
      %v1685 = vld [vmem:[%s195 + $0x16d8] sm:$0xf]
      %v1686 = vld [vmem:[%s195 + $0x16dc] sm:$0xf]
      %v1687 = vld [vmem:[%s195 + $0x16e0] sm:$0xf]
      %v1688 = vld [vmem:[%s195 + $0x16e4] sm:$0xf]
      %v1689 = vld [vmem:[%s195 + $0x16e8] sm:$0xf]
      %v1690 = vld [vmem:[%s195 + $0x16ec] sm:$0xf]
      %v1691 = vld [vmem:[%s195 + $0x16f0] sm:$0xf]
      %v1692 = vld [vmem:[%s195 + $0x16f4] sm:$0xf]
      %v1693 = vld [vmem:[%s195 + $0x16f8] sm:$0xf]
      %v1694 = vld [vmem:[%s195 + $0x16fc] sm:$0xf]
      %v1695 = vld [vmem:[%s195 + $0x1700] sm:$0xf]
      %v1696 = vld [vmem:[%s195 + $0x1704] sm:$0xf]
      %v1697 = vld [vmem:[%s195 + $0x1708] sm:$0xf]
      %v1698 = vld [vmem:[%s195 + $0x170c] sm:$0xf]
      %v1699 = vld [vmem:[%s195 + $0x1710] sm:$0xf]
      %v1700 = vld [vmem:[%s195 + $0x1714] sm:$0xf]
      %v1701 = vld [vmem:[%s195 + $0x1718] sm:$0xf]
      %v1702 = vld [vmem:[%s195 + $0x171c] sm:$0xf]
      %v1703 = vld [vmem:[%s195 + $0x1720] sm:$0xf]
      %v1704 = vld [vmem:[%s195 + $0x1724] sm:$0xf]
      %v1705 = vld [vmem:[%s195 + $0x1728] sm:$0xf]
      %v1706 = vld [vmem:[%s195 + $0x172c] sm:$0xf]
      %v1707 = vld [vmem:[%s195 + $0x1730] sm:$0xf]
      %v1708 = vld [vmem:[%s195 + $0x1734] sm:$0xf]
      %v1709 = vld [vmem:[%s195 + $0x1738] sm:$0xf]
      %v1710 = vld [vmem:[%s195 + $0x173c] sm:$0xf]
      %v1711 = vld [vmem:[%s195 + $0x1740] sm:$0xf]
      %v1712 = vld [vmem:[%s195 + $0x1744] sm:$0xf]
      %v1713 = vld [vmem:[%s195 + $0x1748] sm:$0xf]
      %v1714 = vld [vmem:[%s195 + $0x174c] sm:$0xf]
      %v1715 = vld [vmem:[%s195 + $0x1750] sm:$0xf]
      %v1716 = vld [vmem:[%s195 + $0x1754] sm:$0xf]
      %v1717 = vld [vmem:[%s195 + $0x1758] sm:$0xf]
      %v1718 = vld [vmem:[%s195 + $0x175c] sm:$0xf]
      %v1719 = vld [vmem:[%s195 + $0x1760] sm:$0xf]
      %v1720 = vld [vmem:[%s195 + $0x1764] sm:$0xf]
      %v1721 = vld [vmem:[%s195 + $0x1768] sm:$0xf]
      %v1722 = vld [vmem:[%s195 + $0x176c] sm:$0xf]
      %v1723 = vld [vmem:[%s195 + $0x1770] sm:$0xf]
      %v1724 = vld [vmem:[%s195 + $0x1774] sm:$0xf]
      %v1725 = vld [vmem:[%s195 + $0x1778] sm:$0xf]
      %v1726 = vld [vmem:[%s195 + $0x177c] sm:$0xf]
      %v1727 = vld [vmem:[%s195 + $0x1780] sm:$0xf]
      %v1728 = vld [vmem:[%s195 + $0x1784] sm:$0xf]
      %v1729 = vld [vmem:[%s195 + $0x1788] sm:$0xf]
      %v1730 = vld [vmem:[%s195 + $0x178c] sm:$0xf]
      %v1731 = vld [vmem:[%s195 + $0x1790] sm:$0xf]
      %v1732 = vld [vmem:[%s195 + $0x1794] sm:$0xf]
      %v1733 = vld [vmem:[%s195 + $0x1798] sm:$0xf]
      %v1734 = vld [vmem:[%s195 + $0x179c] sm:$0xf]
      %v1735 = vld [vmem:[%s195 + $0x17a0] sm:$0xf]
      %v1736 = vld [vmem:[%s195 + $0x17a4] sm:$0xf]
      %v1737 = vld [vmem:[%s195 + $0x17a8] sm:$0xf]
      %v1738 = vld [vmem:[%s195 + $0x17ac] sm:$0xf]
      %v1739 = vld [vmem:[%s195 + $0x17b0] sm:$0xf]
      %v1740 = vld [vmem:[%s195 + $0x17b4] sm:$0xf]
      %v1741 = vld [vmem:[%s195 + $0x17b8] sm:$0xf]
      %v1742 = vld [vmem:[%s195 + $0x17bc] sm:$0xf]
      %v1743 = vld [vmem:[%s195 + $0x17c0] sm:$0xf]
      %v1744 = vld [vmem:[%s195 + $0x17c4] sm:$0xf]
      %v1745 = vld [vmem:[%s195 + $0x17c8] sm:$0xf]
      %v1746 = vld [vmem:[%s195 + $0x17cc] sm:$0xf]
      %v1747 = vld [vmem:[%s195 + $0x17d0] sm:$0xf]
      %v1748 = vld [vmem:[%s195 + $0x17d4] sm:$0xf]
      %v1749 = vld [vmem:[%s195 + $0x17d8] sm:$0xf]
      %v1750 = vld [vmem:[%s195 + $0x17dc] sm:$0xf]
      %v1751 = vld [vmem:[%s195 + $0x17e0] sm:$0xf]
      %v1752 = vld [vmem:[%s195 + $0x17e4] sm:$0xf]
      %v1753 = vld [vmem:[%s195 + $0x17e8] sm:$0xf]
      %v1754 = vld [vmem:[%s195 + $0x17ec] sm:$0xf]
      %v1755 = vld [vmem:[%s195 + $0x17f0] sm:$0xf]
      %v1756 = vld [vmem:[%s195 + $0x17f4] sm:$0xf]
      %v1757 = vld [vmem:[%s195 + $0x17f8] sm:$0xf]
      %v1758 = vld [vmem:[%s195 + $0x17fc] sm:$0xf]
      %v1759 = vld [vmem:[%s195 + $0x1800] sm:$0xf]
      %v1760 = vld [vmem:[%s195 + $0x1804] sm:$0xf]
      %v1761 = vld [vmem:[%s195 + $0x1808] sm:$0xf]
      %v1762 = vld [vmem:[%s195 + $0x180c] sm:$0xf]
      %v1763 = vld [vmem:[%s195 + $0x1810] sm:$0xf]
      %v1764 = vld [vmem:[%s195 + $0x1814] sm:$0xf]
      %v1765 = vld [vmem:[%s195 + $0x1818] sm:$0xf]
      %v1766 = vld [vmem:[%s195 + $0x181c] sm:$0xf]
      %v1767 = vld [vmem:[%s195 + $0x1820] sm:$0xf]
      %v1768 = vld [vmem:[%s195 + $0x1824] sm:$0xf]
      %v1769 = vld [vmem:[%s195 + $0x1828] sm:$0xf]
      %v1770 = vld [vmem:[%s195 + $0x182c] sm:$0xf]
      %v1771 = vld [vmem:[%s195 + $0x1830] sm:$0xf]
      %v1772 = vld [vmem:[%s195 + $0x1834] sm:$0xf]
      %v1773 = vld [vmem:[%s195 + $0x1838] sm:$0xf]
      %v1774 = vld [vmem:[%s195 + $0x183c] sm:$0xf]
      %v1775 = vld [vmem:[%s195 + $0x1840] sm:$0xf]
      %v1776 = vld [vmem:[%s195 + $0x1844] sm:$0xf]
      %v1777 = vld [vmem:[%s195 + $0x1848] sm:$0xf]
      %v1778 = vld [vmem:[%s195 + $0x184c] sm:$0xf]
      %v1779 = vld [vmem:[%s195 + $0x1850] sm:$0xf]
      %v1780 = vld [vmem:[%s195 + $0x1854] sm:$0xf]
      %v1781 = vld [vmem:[%s195 + $0x1858] sm:$0xf]
      %v1782 = vld [vmem:[%s195 + $0x185c] sm:$0xf]
      %v1783 = vld [vmem:[%s195 + $0x1860] sm:$0xf]
      %v1784 = vld [vmem:[%s195 + $0x1864] sm:$0xf]
      %v1785 = vld [vmem:[%s195 + $0x1868] sm:$0xf]
      %v1786 = vld [vmem:[%s195 + $0x186c] sm:$0xf]
      %v1787 = vld [vmem:[%s195 + $0x1870] sm:$0xf]
      %v1788 = vld [vmem:[%s195 + $0x1874] sm:$0xf]
      %v1789 = vld [vmem:[%s195 + $0x1878] sm:$0xf]
      %v1790 = vld [vmem:[%s195 + $0x187c] sm:$0xf]
      %v1804 = vcombine.high %v210, %v210
      %v1806 = vunpack.c.l.s4 1966171168
      %v1807 = vunpack.c.0.s8 %v1806
      %v1808 = vlaneseq
      %v1809 = vshrl.u32 %v1808, 7
      %v1810 = vsub.s32 %v1807, %v1809
      %v1811 = vrot.slane %v210, %v1810
      %v1813 = vunpack.c.l.s4 1966171168
      %v1814 = vunpack.c.0.s8 %v1813
      %v1815 = vlaneseq
      %v1816 = vshrl.u32 %v1815, 7
      %v1817 = vsub.s32 %v1814, %v1816
      %v1818 = vrot.slane %v1804, %v1817
      %v1819 = vcombine.high %v1811, %v1811
      %v1820 = vcombine.high %v1818, %v1818
      %v1822 = vunpack.c.l.s4 1966171168
      %v1823 = vunpack.c.0.s8 %v1822
      %v1824 = vlaneseq
      %v1825 = vshrl.u32 %v1824, 7
      %v1826 = vsub.s32 %v1823, %v1825
      %v1827 = vrot.slane %v1811, %v1826
      %v1829 = vunpack.c.l.s4 1966171168
      %v1830 = vunpack.c.0.s8 %v1829
      %v1831 = vlaneseq
      %v1832 = vshrl.u32 %v1831, 7
      %v1833 = vsub.s32 %v1830, %v1832
      %v1834 = vrot.slane %v1818, %v1833
      %v1836 = vunpack.c.l.s4 1966171168
      %v1837 = vunpack.c.0.s8 %v1836
      %v1838 = vlaneseq
      %v1839 = vshrl.u32 %v1838, 7
      %v1840 = vsub.s32 %v1837, %v1839
      %v1841 = vrot.slane %v1819, %v1840
      %v1843 = vunpack.c.l.s4 1966171168
      %v1844 = vunpack.c.0.s8 %v1843
      %v1845 = vlaneseq
      %v1846 = vshrl.u32 %v1845, 7
      %v1847 = vsub.s32 %v1844, %v1846
      %v1848 = vrot.slane %v1820, %v1847
      %v1849 = vcombine.high %v1827, %v1827
      %v1850 = vcombine.high %v1834, %v1834
      %v1851 = vcombine.high %v1841, %v1841
      %v1852 = vcombine.high %v1848, %v1848
      %v1853 = vcombine.high %v211, %v211
      %v1855 = vunpack.c.l.s4 1966171168
      %v1856 = vunpack.c.0.s8 %v1855
      %v1857 = vlaneseq
      %v1858 = vshrl.u32 %v1857, 7
      %v1859 = vsub.s32 %v1856, %v1858
      %v1860 = vrot.slane %v211, %v1859
      %v1862 = vunpack.c.l.s4 1966171168
      %v1863 = vunpack.c.0.s8 %v1862
      %v1864 = vlaneseq
      %v1865 = vshrl.u32 %v1864, 7
      %v1866 = vsub.s32 %v1863, %v1865
      %v1867 = vrot.slane %v1853, %v1866
      %v1868 = vcombine.high %v1860, %v1860
      %v1869 = vcombine.high %v1867, %v1867
      %v1871 = vunpack.c.l.s4 1966171168
      %v1872 = vunpack.c.0.s8 %v1871
      %v1873 = vlaneseq
      %v1874 = vshrl.u32 %v1873, 7
      %v1875 = vsub.s32 %v1872, %v1874
      %v1876 = vrot.slane %v1860, %v1875
      %v1878 = vunpack.c.l.s4 1966171168
      %v1879 = vunpack.c.0.s8 %v1878
      %v1880 = vlaneseq
      %v1881 = vshrl.u32 %v1880, 7
      %v1882 = vsub.s32 %v1879, %v1881
      %v1883 = vrot.slane %v1867, %v1882
      %v1885 = vunpack.c.l.s4 1966171168
      %v1886 = vunpack.c.0.s8 %v1885
      %v1887 = vlaneseq
      %v1888 = vshrl.u32 %v1887, 7
      %v1889 = vsub.s32 %v1886, %v1888
      %v1890 = vrot.slane %v1868, %v1889
      %v1892 = vunpack.c.l.s4 1966171168
      %v1893 = vunpack.c.0.s8 %v1892
      %v1894 = vlaneseq
      %v1895 = vshrl.u32 %v1894, 7
      %v1896 = vsub.s32 %v1893, %v1895
      %v1897 = vrot.slane %v1869, %v1896
      %v1898 = vcombine.high %v1876, %v1876
      %v1899 = vcombine.high %v1883, %v1883
      %v1900 = vcombine.high %v1890, %v1890
      %v1901 = vcombine.high %v1897, %v1897
      %v1902 = vcombine.high %v212, %v212
      %v1904 = vunpack.c.l.s4 1966171168
      %v1905 = vunpack.c.0.s8 %v1904
      %v1906 = vlaneseq
      %v1907 = vshrl.u32 %v1906, 7
      %v1908 = vsub.s32 %v1905, %v1907
      %v1909 = vrot.slane %v212, %v1908
      %v1911 = vunpack.c.l.s4 1966171168
      %v1912 = vunpack.c.0.s8 %v1911
      %v1913 = vlaneseq
      %v1914 = vshrl.u32 %v1913, 7
      %v1915 = vsub.s32 %v1912, %v1914
      %v1916 = vrot.slane %v1902, %v1915
      %v1917 = vcombine.high %v1909, %v1909
      %v1918 = vcombine.high %v1916, %v1916
      %v1920 = vunpack.c.l.s4 1966171168
      %v1921 = vunpack.c.0.s8 %v1920
      %v1922 = vlaneseq
      %v1923 = vshrl.u32 %v1922, 7
      %v1924 = vsub.s32 %v1921, %v1923
      %v1925 = vrot.slane %v1909, %v1924
      %v1927 = vunpack.c.l.s4 1966171168
      %v1928 = vunpack.c.0.s8 %v1927
      %v1929 = vlaneseq
      %v1930 = vshrl.u32 %v1929, 7
      %v1931 = vsub.s32 %v1928, %v1930
      %v1932 = vrot.slane %v1916, %v1931
      %v1934 = vunpack.c.l.s4 1966171168
      %v1935 = vunpack.c.0.s8 %v1934
      %v1936 = vlaneseq
      %v1937 = vshrl.u32 %v1936, 7
      %v1938 = vsub.s32 %v1935, %v1937
      %v1939 = vrot.slane %v1917, %v1938
      %v1941 = vunpack.c.l.s4 1966171168
      %v1942 = vunpack.c.0.s8 %v1941
      %v1943 = vlaneseq
      %v1944 = vshrl.u32 %v1943, 7
      %v1945 = vsub.s32 %v1942, %v1944
      %v1946 = vrot.slane %v1918, %v1945
      %v1947 = vcombine.high %v1925, %v1925
      %v1948 = vcombine.high %v1932, %v1932
      %v1949 = vcombine.high %v1939, %v1939
      %v1950 = vcombine.high %v1946, %v1946
      %v1951 = vcombine.high %v213, %v213
      %v1953 = vunpack.c.l.s4 1966171168
      %v1954 = vunpack.c.0.s8 %v1953
      %v1955 = vlaneseq
      %v1956 = vshrl.u32 %v1955, 7
      %v1957 = vsub.s32 %v1954, %v1956
      %v1958 = vrot.slane %v213, %v1957
      %v1960 = vunpack.c.l.s4 1966171168
      %v1961 = vunpack.c.0.s8 %v1960
      %v1962 = vlaneseq
      %v1963 = vshrl.u32 %v1962, 7
      %v1964 = vsub.s32 %v1961, %v1963
      %v1965 = vrot.slane %v1951, %v1964
      %v1966 = vcombine.high %v1958, %v1958
      %v1967 = vcombine.high %v1965, %v1965
      %v1969 = vunpack.c.l.s4 1966171168
      %v1970 = vunpack.c.0.s8 %v1969
      %v1971 = vlaneseq
      %v1972 = vshrl.u32 %v1971, 7
      %v1973 = vsub.s32 %v1970, %v1972
      %v1974 = vrot.slane %v1958, %v1973
      %v1976 = vunpack.c.l.s4 1966171168
      %v1977 = vunpack.c.0.s8 %v1976
      %v1978 = vlaneseq
      %v1979 = vshrl.u32 %v1978, 7
      %v1980 = vsub.s32 %v1977, %v1979
      %v1981 = vrot.slane %v1965, %v1980
      %v1983 = vunpack.c.l.s4 1966171168
      %v1984 = vunpack.c.0.s8 %v1983
      %v1985 = vlaneseq
      %v1986 = vshrl.u32 %v1985, 7
      %v1987 = vsub.s32 %v1984, %v1986
      %v1988 = vrot.slane %v1966, %v1987
      %v1990 = vunpack.c.l.s4 1966171168
      %v1991 = vunpack.c.0.s8 %v1990
      %v1992 = vlaneseq
      %v1993 = vshrl.u32 %v1992, 7
      %v1994 = vsub.s32 %v1991, %v1993
      %v1995 = vrot.slane %v1967, %v1994
      %v1996 = vcombine.high %v1974, %v1974
      %v1997 = vcombine.high %v1981, %v1981
      %v1998 = vcombine.high %v1988, %v1988
      %v1999 = vcombine.high %v1995, %v1995
      %v2000 = vcombine.high %v214, %v214
      %v2002 = vunpack.c.l.s4 1966171168
      %v2003 = vunpack.c.0.s8 %v2002
      %v2004 = vlaneseq
      %v2005 = vshrl.u32 %v2004, 7
      %v2006 = vsub.s32 %v2003, %v2005
      %v2007 = vrot.slane %v214, %v2006
      %v2009 = vunpack.c.l.s4 1966171168
      %v2010 = vunpack.c.0.s8 %v2009
      %v2011 = vlaneseq
      %v2012 = vshrl.u32 %v2011, 7
      %v2013 = vsub.s32 %v2010, %v2012
      %v2014 = vrot.slane %v2000, %v2013
      %v2015 = vcombine.high %v2007, %v2007
      %v2016 = vcombine.high %v2014, %v2014
      %v2018 = vunpack.c.l.s4 1966171168
      %v2019 = vunpack.c.0.s8 %v2018
      %v2020 = vlaneseq
      %v2021 = vshrl.u32 %v2020, 7
      %v2022 = vsub.s32 %v2019, %v2021
      %v2023 = vrot.slane %v2007, %v2022
      %v2025 = vunpack.c.l.s4 1966171168
      %v2026 = vunpack.c.0.s8 %v2025
      %v2027 = vlaneseq
      %v2028 = vshrl.u32 %v2027, 7
      %v2029 = vsub.s32 %v2026, %v2028
      %v2030 = vrot.slane %v2014, %v2029
      %v2032 = vunpack.c.l.s4 1966171168
      %v2033 = vunpack.c.0.s8 %v2032
      %v2034 = vlaneseq
      %v2035 = vshrl.u32 %v2034, 7
      %v2036 = vsub.s32 %v2033, %v2035
      %v2037 = vrot.slane %v2015, %v2036
      %v2039 = vunpack.c.l.s4 1966171168
      %v2040 = vunpack.c.0.s8 %v2039
      %v2041 = vlaneseq
      %v2042 = vshrl.u32 %v2041, 7
      %v2043 = vsub.s32 %v2040, %v2042
      %v2044 = vrot.slane %v2016, %v2043
      %v2045 = vcombine.high %v2023, %v2023
      %v2046 = vcombine.high %v2030, %v2030
      %v2047 = vcombine.high %v2037, %v2037
      %v2048 = vcombine.high %v2044, %v2044
      %v2049 = vcombine.high %v215, %v215
      %v2051 = vunpack.c.l.s4 1966171168
      %v2052 = vunpack.c.0.s8 %v2051
      %v2053 = vlaneseq
      %v2054 = vshrl.u32 %v2053, 7
      %v2055 = vsub.s32 %v2052, %v2054
      %v2056 = vrot.slane %v215, %v2055
      %v2058 = vunpack.c.l.s4 1966171168
      %v2059 = vunpack.c.0.s8 %v2058
      %v2060 = vlaneseq
      %v2061 = vshrl.u32 %v2060, 7
      %v2062 = vsub.s32 %v2059, %v2061
      %v2063 = vrot.slane %v2049, %v2062
      %v2064 = vcombine.high %v2056, %v2056
      %v2065 = vcombine.high %v2063, %v2063
      %v2067 = vunpack.c.l.s4 1966171168
      %v2068 = vunpack.c.0.s8 %v2067
      %v2069 = vlaneseq
      %v2070 = vshrl.u32 %v2069, 7
      %v2071 = vsub.s32 %v2068, %v2070
      %v2072 = vrot.slane %v2056, %v2071
      %v2074 = vunpack.c.l.s4 1966171168
      %v2075 = vunpack.c.0.s8 %v2074
      %v2076 = vlaneseq
      %v2077 = vshrl.u32 %v2076, 7
      %v2078 = vsub.s32 %v2075, %v2077
      %v2079 = vrot.slane %v2063, %v2078
      %v2081 = vunpack.c.l.s4 1966171168
      %v2082 = vunpack.c.0.s8 %v2081
      %v2083 = vlaneseq
      %v2084 = vshrl.u32 %v2083, 7
      %v2085 = vsub.s32 %v2082, %v2084
      %v2086 = vrot.slane %v2064, %v2085
      %v2088 = vunpack.c.l.s4 1966171168
      %v2089 = vunpack.c.0.s8 %v2088
      %v2090 = vlaneseq
      %v2091 = vshrl.u32 %v2090, 7
      %v2092 = vsub.s32 %v2089, %v2091
      %v2093 = vrot.slane %v2065, %v2092
      %v2094 = vcombine.high %v2072, %v2072
      %v2095 = vcombine.high %v2079, %v2079
      %v2096 = vcombine.high %v2086, %v2086
      %v2097 = vcombine.high %v2093, %v2093
      %v2098 = vcombine.high %v216, %v216
      %v2100 = vunpack.c.l.s4 1966171168
      %v2101 = vunpack.c.0.s8 %v2100
      %v2102 = vlaneseq
      %v2103 = vshrl.u32 %v2102, 7
      %v2104 = vsub.s32 %v2101, %v2103
      %v2105 = vrot.slane %v216, %v2104
      %v2107 = vunpack.c.l.s4 1966171168
      %v2108 = vunpack.c.0.s8 %v2107
      %v2109 = vlaneseq
      %v2110 = vshrl.u32 %v2109, 7
      %v2111 = vsub.s32 %v2108, %v2110
      %v2112 = vrot.slane %v2098, %v2111
      %v2113 = vcombine.high %v2105, %v2105
      %v2114 = vcombine.high %v2112, %v2112
      %v2116 = vunpack.c.l.s4 1966171168
      %v2117 = vunpack.c.0.s8 %v2116
      %v2118 = vlaneseq
      %v2119 = vshrl.u32 %v2118, 7
      %v2120 = vsub.s32 %v2117, %v2119
      %v2121 = vrot.slane %v2105, %v2120
      %v2123 = vunpack.c.l.s4 1966171168
      %v2124 = vunpack.c.0.s8 %v2123
      %v2125 = vlaneseq
      %v2126 = vshrl.u32 %v2125, 7
      %v2127 = vsub.s32 %v2124, %v2126
      %v2128 = vrot.slane %v2112, %v2127
      %v2130 = vunpack.c.l.s4 1966171168
      %v2131 = vunpack.c.0.s8 %v2130
      %v2132 = vlaneseq
      %v2133 = vshrl.u32 %v2132, 7
      %v2134 = vsub.s32 %v2131, %v2133
      %v2135 = vrot.slane %v2113, %v2134
      %v2137 = vunpack.c.l.s4 1966171168
      %v2138 = vunpack.c.0.s8 %v2137
      %v2139 = vlaneseq
      %v2140 = vshrl.u32 %v2139, 7
      %v2141 = vsub.s32 %v2138, %v2140
      %v2142 = vrot.slane %v2114, %v2141
      %v2143 = vcombine.high %v2121, %v2121
      %v2144 = vcombine.high %v2128, %v2128
      %v2145 = vcombine.high %v2135, %v2135
      %v2146 = vcombine.high %v2142, %v2142
      %v2147 = vcombine.high %v217, %v217
      %v2149 = vunpack.c.l.s4 1966171168
      %v2150 = vunpack.c.0.s8 %v2149
      %v2151 = vlaneseq
      %v2152 = vshrl.u32 %v2151, 7
      %v2153 = vsub.s32 %v2150, %v2152
      %v2154 = vrot.slane %v217, %v2153
      %v2156 = vunpack.c.l.s4 1966171168
      %v2157 = vunpack.c.0.s8 %v2156
      %v2158 = vlaneseq
      %v2159 = vshrl.u32 %v2158, 7
      %v2160 = vsub.s32 %v2157, %v2159
      %v2161 = vrot.slane %v2147, %v2160
      %v2162 = vcombine.high %v2154, %v2154
      %v2163 = vcombine.high %v2161, %v2161
      %v2165 = vunpack.c.l.s4 1966171168
      %v2166 = vunpack.c.0.s8 %v2165
      %v2167 = vlaneseq
      %v2168 = vshrl.u32 %v2167, 7
      %v2169 = vsub.s32 %v2166, %v2168
      %v2170 = vrot.slane %v2154, %v2169
      %v2172 = vunpack.c.l.s4 1966171168
      %v2173 = vunpack.c.0.s8 %v2172
      %v2174 = vlaneseq
      %v2175 = vshrl.u32 %v2174, 7
      %v2176 = vsub.s32 %v2173, %v2175
      %v2177 = vrot.slane %v2161, %v2176
      %v2179 = vunpack.c.l.s4 1966171168
      %v2180 = vunpack.c.0.s8 %v2179
      %v2181 = vlaneseq
      %v2182 = vshrl.u32 %v2181, 7
      %v2183 = vsub.s32 %v2180, %v2182
      %v2184 = vrot.slane %v2162, %v2183
      %v2186 = vunpack.c.l.s4 1966171168
      %v2187 = vunpack.c.0.s8 %v2186
      %v2188 = vlaneseq
      %v2189 = vshrl.u32 %v2188, 7
      %v2190 = vsub.s32 %v2187, %v2189
      %v2191 = vrot.slane %v2163, %v2190
      %v2192 = vcombine.high %v2170, %v2170
      %v2193 = vcombine.high %v2177, %v2177
      %v2194 = vcombine.high %v2184, %v2184
      %v2195 = vcombine.high %v2191, %v2191
      %v2196 = vcombine.high %v218, %v218
      %v2198 = vunpack.c.l.s4 1966171168
      %v2199 = vunpack.c.0.s8 %v2198
      %v2200 = vlaneseq
      %v2201 = vshrl.u32 %v2200, 7
      %v2202 = vsub.s32 %v2199, %v2201
      %v2203 = vrot.slane %v218, %v2202
      %v2205 = vunpack.c.l.s4 1966171168
      %v2206 = vunpack.c.0.s8 %v2205
      %v2207 = vlaneseq
      %v2208 = vshrl.u32 %v2207, 7
      %v2209 = vsub.s32 %v2206, %v2208
      %v2210 = vrot.slane %v2196, %v2209
      %v2211 = vcombine.high %v2203, %v2203
      %v2212 = vcombine.high %v2210, %v2210
      %v2214 = vunpack.c.l.s4 1966171168
      %v2215 = vunpack.c.0.s8 %v2214
      %v2216 = vlaneseq
      %v2217 = vshrl.u32 %v2216, 7
      %v2218 = vsub.s32 %v2215, %v2217
      %v2219 = vrot.slane %v2203, %v2218
      %v2221 = vunpack.c.l.s4 1966171168
      %v2222 = vunpack.c.0.s8 %v2221
      %v2223 = vlaneseq
      %v2224 = vshrl.u32 %v2223, 7
      %v2225 = vsub.s32 %v2222, %v2224
      %v2226 = vrot.slane %v2210, %v2225
      %v2228 = vunpack.c.l.s4 1966171168
      %v2229 = vunpack.c.0.s8 %v2228
      %v2230 = vlaneseq
      %v2231 = vshrl.u32 %v2230, 7
      %v2232 = vsub.s32 %v2229, %v2231
      %v2233 = vrot.slane %v2211, %v2232
      %v2235 = vunpack.c.l.s4 1966171168
      %v2236 = vunpack.c.0.s8 %v2235
      %v2237 = vlaneseq
      %v2238 = vshrl.u32 %v2237, 7
      %v2239 = vsub.s32 %v2236, %v2238
      %v2240 = vrot.slane %v2212, %v2239
      %v2241 = vcombine.high %v2219, %v2219
      %v2242 = vcombine.high %v2226, %v2226
      %v2243 = vcombine.high %v2233, %v2233
      %v2244 = vcombine.high %v2240, %v2240
      %v2245 = vcombine.high %v219, %v219
      %v2247 = vunpack.c.l.s4 1966171168
      %v2248 = vunpack.c.0.s8 %v2247
      %v2249 = vlaneseq
      %v2250 = vshrl.u32 %v2249, 7
      %v2251 = vsub.s32 %v2248, %v2250
      %v2252 = vrot.slane %v219, %v2251
      %v2254 = vunpack.c.l.s4 1966171168
      %v2255 = vunpack.c.0.s8 %v2254
      %v2256 = vlaneseq
      %v2257 = vshrl.u32 %v2256, 7
      %v2258 = vsub.s32 %v2255, %v2257
      %v2259 = vrot.slane %v2245, %v2258
      %v2260 = vcombine.high %v2252, %v2252
      %v2261 = vcombine.high %v2259, %v2259
      %v2263 = vunpack.c.l.s4 1966171168
      %v2264 = vunpack.c.0.s8 %v2263
      %v2265 = vlaneseq
      %v2266 = vshrl.u32 %v2265, 7
      %v2267 = vsub.s32 %v2264, %v2266
      %v2268 = vrot.slane %v2252, %v2267
      %v2270 = vunpack.c.l.s4 1966171168
      %v2271 = vunpack.c.0.s8 %v2270
      %v2272 = vlaneseq
      %v2273 = vshrl.u32 %v2272, 7
      %v2274 = vsub.s32 %v2271, %v2273
      %v2275 = vrot.slane %v2259, %v2274
      %v2277 = vunpack.c.l.s4 1966171168
      %v2278 = vunpack.c.0.s8 %v2277
      %v2279 = vlaneseq
      %v2280 = vshrl.u32 %v2279, 7
      %v2281 = vsub.s32 %v2278, %v2280
      %v2282 = vrot.slane %v2260, %v2281
      %v2284 = vunpack.c.l.s4 1966171168
      %v2285 = vunpack.c.0.s8 %v2284
      %v2286 = vlaneseq
      %v2287 = vshrl.u32 %v2286, 7
      %v2288 = vsub.s32 %v2285, %v2287
      %v2289 = vrot.slane %v2261, %v2288
      %v2290 = vcombine.high %v2268, %v2268
      %v2291 = vcombine.high %v2275, %v2275
      %v2292 = vcombine.high %v2282, %v2282
      %v2293 = vcombine.high %v2289, %v2289
      %v2294 = vcombine.high %v220, %v220
      %v2296 = vunpack.c.l.s4 1966171168
      %v2297 = vunpack.c.0.s8 %v2296
      %v2298 = vlaneseq
      %v2299 = vshrl.u32 %v2298, 7
      %v2300 = vsub.s32 %v2297, %v2299
      %v2301 = vrot.slane %v220, %v2300
      %v2303 = vunpack.c.l.s4 1966171168
      %v2304 = vunpack.c.0.s8 %v2303
      %v2305 = vlaneseq
      %v2306 = vshrl.u32 %v2305, 7
      %v2307 = vsub.s32 %v2304, %v2306
      %v2308 = vrot.slane %v2294, %v2307
      %v2309 = vcombine.high %v2301, %v2301
      %v2310 = vcombine.high %v2308, %v2308
      %v2312 = vunpack.c.l.s4 1966171168
      %v2313 = vunpack.c.0.s8 %v2312
      %v2314 = vlaneseq
      %v2315 = vshrl.u32 %v2314, 7
      %v2316 = vsub.s32 %v2313, %v2315
      %v2317 = vrot.slane %v2301, %v2316
      %v2319 = vunpack.c.l.s4 1966171168
      %v2320 = vunpack.c.0.s8 %v2319
      %v2321 = vlaneseq
      %v2322 = vshrl.u32 %v2321, 7
      %v2323 = vsub.s32 %v2320, %v2322
      %v2324 = vrot.slane %v2308, %v2323
      %v2326 = vunpack.c.l.s4 1966171168
      %v2327 = vunpack.c.0.s8 %v2326
      %v2328 = vlaneseq
      %v2329 = vshrl.u32 %v2328, 7
      %v2330 = vsub.s32 %v2327, %v2329
      %v2331 = vrot.slane %v2309, %v2330
      %v2333 = vunpack.c.l.s4 1966171168
      %v2334 = vunpack.c.0.s8 %v2333
      %v2335 = vlaneseq
      %v2336 = vshrl.u32 %v2335, 7
      %v2337 = vsub.s32 %v2334, %v2336
      %v2338 = vrot.slane %v2310, %v2337
      %v2339 = vcombine.high %v2317, %v2317
      %v2340 = vcombine.high %v2324, %v2324
      %v2341 = vcombine.high %v2331, %v2331
      %v2342 = vcombine.high %v2338, %v2338
      %v2343 = vcombine.high %v221, %v221
      %v2345 = vunpack.c.l.s4 1966171168
      %v2346 = vunpack.c.0.s8 %v2345
      %v2347 = vlaneseq
      %v2348 = vshrl.u32 %v2347, 7
      %v2349 = vsub.s32 %v2346, %v2348
      %v2350 = vrot.slane %v221, %v2349
      %v2352 = vunpack.c.l.s4 1966171168
      %v2353 = vunpack.c.0.s8 %v2352
      %v2354 = vlaneseq
      %v2355 = vshrl.u32 %v2354, 7
      %v2356 = vsub.s32 %v2353, %v2355
      %v2357 = vrot.slane %v2343, %v2356
      %v2358 = vcombine.high %v2350, %v2350
      %v2359 = vcombine.high %v2357, %v2357
      %v2361 = vunpack.c.l.s4 1966171168
      %v2362 = vunpack.c.0.s8 %v2361
      %v2363 = vlaneseq
      %v2364 = vshrl.u32 %v2363, 7
      %v2365 = vsub.s32 %v2362, %v2364
      %v2366 = vrot.slane %v2350, %v2365
      %v2368 = vunpack.c.l.s4 1966171168
      %v2369 = vunpack.c.0.s8 %v2368
      %v2370 = vlaneseq
      %v2371 = vshrl.u32 %v2370, 7
      %v2372 = vsub.s32 %v2369, %v2371
      %v2373 = vrot.slane %v2357, %v2372
      %v2375 = vunpack.c.l.s4 1966171168
      %v2376 = vunpack.c.0.s8 %v2375
      %v2377 = vlaneseq
      %v2378 = vshrl.u32 %v2377, 7
      %v2379 = vsub.s32 %v2376, %v2378
      %v2380 = vrot.slane %v2358, %v2379
      %v2382 = vunpack.c.l.s4 1966171168
      %v2383 = vunpack.c.0.s8 %v2382
      %v2384 = vlaneseq
      %v2385 = vshrl.u32 %v2384, 7
      %v2386 = vsub.s32 %v2383, %v2385
      %v2387 = vrot.slane %v2359, %v2386
      %v2388 = vcombine.high %v2366, %v2366
      %v2389 = vcombine.high %v2373, %v2373
      %v2390 = vcombine.high %v2380, %v2380
      %v2391 = vcombine.high %v2387, %v2387
      %v2393 = vunpack.c.l.s4 1966171168
      %v2394 = vunpack.c.0.s8 %v2393
      %v2395 = vlaneseq
      %v2396 = vshrl.u32 %v2395, 7
      %v2397 = vsub.s32 %v2394, %v2396
      %v2398 = vrot.slane %v222, %v2397
      %v2399 = vcombine.high %v2398, %v2398
      %v2401 = vunpack.c.l.s4 1966171168
      %v2402 = vunpack.c.0.s8 %v2401
      %v2403 = vlaneseq
      %v2404 = vshrl.u32 %v2403, 7
      %v2405 = vsub.s32 %v2402, %v2404
      %v2406 = vrot.slane %v2398, %v2405
      %v2408 = vunpack.c.l.s4 1966171168
      %v2409 = vunpack.c.0.s8 %v2408
      %v2410 = vlaneseq
      %v2411 = vshrl.u32 %v2410, 7
      %v2412 = vsub.s32 %v2409, %v2411
      %v2413 = vrot.slane %v2399, %v2412
      %v4080 = vunpack.c.l.b16 %v223
      %v4081 = vunpack.c.l.b16 %v224
      %v4082 = vunpack.c.l.b16 %v225
      %v4083 = vunpack.c.l.b16 %v226
      %v4084 = vunpack.c.l.b16 %v227
      %v4085 = vunpack.c.l.b16 %v228
      %v4086 = vunpack.c.l.b16 %v229
      %v4087 = vunpack.c.l.b16 %v230
      %v4088 = vunpack.c.l.b16 %v231
      %v4089 = vunpack.c.l.b16 %v232
      %v4090 = vunpack.c.l.b16 %v233
      %v4091 = vunpack.c.l.b16 %v234
      %v4092 = vunpack.c.l.b16 %v235
      %v4093 = vunpack.c.l.b16 %v236
      %v4094 = vunpack.c.l.b16 %v237
      %v4095 = vunpack.c.l.b16 %v238
      %v4096 = vunpack.c.l.b16 %v239
      %v4097 = vunpack.c.l.b16 %v240
      %v4098 = vunpack.c.l.b16 %v241
      %v4099 = vunpack.c.l.b16 %v242
      %v4100 = vunpack.c.l.b16 %v243
      %v4101 = vunpack.c.l.b16 %v244
      %v4102 = vunpack.c.l.b16 %v245
      %v4103 = vunpack.c.l.b16 %v246
      %v4104 = vunpack.c.l.b16 %v247
      %v4105 = vunpack.c.l.b16 %v248
      %v4106 = vunpack.c.l.b16 %v249
      %v4107 = vunpack.c.l.b16 %v250
      %v4108 = vunpack.c.l.b16 %v251
      %v4109 = vunpack.c.l.b16 %v252
      %v4110 = vunpack.c.l.b16 %v253
      %v4111 = vunpack.c.l.b16 %v254
      %v4112 = vunpack.c.l.b16 %v255
      %v4113 = vunpack.c.l.b16 %v256
      %v4114 = vunpack.c.l.b16 %v257
      %v4115 = vunpack.c.l.b16 %v258
      %v4116 = vunpack.c.l.b16 %v259
      %v4117 = vunpack.c.l.b16 %v260
      %v4118 = vunpack.c.l.b16 %v261
      %v4119 = vunpack.c.l.b16 %v262
      %v4120 = vunpack.c.l.b16 %v263
      %v4121 = vunpack.c.l.b16 %v264
      %v4122 = vunpack.c.l.b16 %v265
      %v4123 = vunpack.c.l.b16 %v266
      %v4124 = vunpack.c.l.b16 %v267
      %v4125 = vunpack.c.l.b16 %v268
      %v4126 = vunpack.c.l.b16 %v269
      %v4127 = vunpack.c.l.b16 %v270
      %v4128 = vunpack.c.l.b16 %v271
      %v4129 = vunpack.c.l.b16 %v272
      %v4130 = vunpack.c.l.b16 %v273
      %v4131 = vunpack.c.l.b16 %v274
      %v4132 = vunpack.c.l.b16 %v275
      %v4133 = vunpack.c.l.b16 %v276
      %v4134 = vunpack.c.l.b16 %v277
      %v4135 = vunpack.c.l.b16 %v278
      %v4136 = vunpack.c.l.b16 %v279
      %v4137 = vunpack.c.l.b16 %v280
      %v4138 = vunpack.c.l.b16 %v281
      %v4139 = vunpack.c.l.b16 %v282
      %v4140 = vunpack.c.l.b16 %v283
      %v4141 = vunpack.c.l.b16 %v284
      %v4142 = vunpack.c.l.b16 %v285
      %v4143 = vunpack.c.l.b16 %v286
      %v4144 = vunpack.c.l.b16 %v287
      %v4145 = vunpack.c.l.b16 %v288
      %v4146 = vunpack.c.l.b16 %v289
      %v4147 = vunpack.c.l.b16 %v290
      %v4148 = vunpack.c.l.b16 %v291
      %v4149 = vunpack.c.l.b16 %v292
      %v4150 = vunpack.c.l.b16 %v293
      %v4151 = vunpack.c.l.b16 %v294
      %v4152 = vunpack.c.l.b16 %v295
      %v4153 = vunpack.c.l.b16 %v296
      %v4154 = vunpack.c.l.b16 %v297
      %v4155 = vunpack.c.l.b16 %v298
      %v4156 = vunpack.c.l.b16 %v299
      %v4157 = vunpack.c.l.b16 %v300
      %v4158 = vunpack.c.l.b16 %v301
      %v4159 = vunpack.c.l.b16 %v302
      %v4160 = vunpack.c.l.b16 %v303
      %v4161 = vunpack.c.l.b16 %v304
      %v4162 = vunpack.c.l.b16 %v305
      %v4163 = vunpack.c.l.b16 %v306
      %v4164 = vunpack.c.l.b16 %v307
      %v4165 = vunpack.c.l.b16 %v308
      %v4166 = vunpack.c.l.b16 %v309
      %v4167 = vunpack.c.l.b16 %v310
      %v4168 = vunpack.c.l.b16 %v311
      %v4169 = vunpack.c.l.b16 %v312
      %v4170 = vunpack.c.l.b16 %v313
      %v4171 = vunpack.c.l.b16 %v314
      %v4172 = vunpack.c.l.b16 %v315
      %v4173 = vunpack.c.l.b16 %v316
      %v4174 = vunpack.c.l.b16 %v317
      %v4175 = vunpack.c.l.b16 %v318
      %v4176 = vunpack.c.l.b16 %v319
      %v4177 = vunpack.c.l.b16 %v320
      %v4178 = vunpack.c.l.b16 %v321
      %v4179 = vunpack.c.l.b16 %v322
      %v4180 = vunpack.c.l.b16 %v323
      %v4181 = vunpack.c.l.b16 %v324
      %v4182 = vunpack.c.l.b16 %v325
      %v4183 = vunpack.c.l.b16 %v326
      %v4184 = vunpack.c.l.b16 %v327
      %v4185 = vunpack.c.l.b16 %v328
      %v4186 = vunpack.c.l.b16 %v329
      %v4187 = vunpack.c.l.b16 %v330
      %v4188 = vunpack.c.l.b16 %v331
      %v4189 = vunpack.c.l.b16 %v332
      %v4190 = vunpack.c.l.b16 %v333
      %v4191 = vunpack.c.l.b16 %v334
      %v4192 = vunpack.c.l.b16 %v335
      %v4193 = vunpack.c.l.b16 %v336
      %v4194 = vunpack.c.l.b16 %v337
      %v4195 = vunpack.c.l.b16 %v338
      %v4196 = vunpack.c.l.b16 %v339
      %v4197 = vunpack.c.l.b16 %v340
      %v4198 = vunpack.c.l.b16 %v341
      %v4199 = vunpack.c.l.b16 %v342
      %v4200 = vunpack.c.l.b16 %v343
      %v4201 = vunpack.c.l.b16 %v344
      %v4202 = vunpack.c.l.b16 %v345
      %v4203 = vunpack.c.l.b16 %v346
      %v4204 = vunpack.c.l.b16 %v347
      %v4205 = vunpack.c.l.b16 %v348
      %v4206 = vunpack.c.l.b16 %v349
      %v4207 = vunpack.c.l.b16 %v350
      %v4208 = vunpack.c.l.b16 %v351
      %v4209 = vunpack.c.l.b16 %v352
      %v4210 = vunpack.c.l.b16 %v353
      %v4211 = vunpack.c.l.b16 %v354
      %v4212 = vunpack.c.l.b16 %v355
      %v4213 = vunpack.c.l.b16 %v356
      %v4214 = vunpack.c.l.b16 %v357
      %v4215 = vunpack.c.l.b16 %v358
      %v4216 = vunpack.c.l.b16 %v359
      %v4217 = vunpack.c.l.b16 %v360
      %v4218 = vunpack.c.l.b16 %v361
      %v4219 = vunpack.c.l.b16 %v362
      %v4220 = vunpack.c.l.b16 %v363
      %v4221 = vunpack.c.l.b16 %v364
      %v4222 = vunpack.c.l.b16 %v365
      %v4223 = vunpack.c.l.b16 %v366
      %v4224 = vunpack.c.l.b16 %v367
      %v4225 = vunpack.c.l.b16 %v368
      %v4226 = vunpack.c.l.b16 %v369
      %v4227 = vunpack.c.l.b16 %v370
      %v4228 = vunpack.c.l.b16 %v371
      %v4229 = vunpack.c.l.b16 %v372
      %v4230 = vunpack.c.l.b16 %v373
      %v4231 = vunpack.c.l.b16 %v374
      %v4232 = vunpack.c.l.b16 %v375
      %v4233 = vunpack.c.l.b16 %v376
      %v4234 = vunpack.c.l.b16 %v377
      %v4235 = vunpack.c.l.b16 %v378
      %v4236 = vunpack.c.l.b16 %v379
      %v4237 = vunpack.c.l.b16 %v380
      %v4238 = vunpack.c.l.b16 %v381
      %v4239 = vunpack.c.l.b16 %v382
      %v4240 = vunpack.c.l.b16 %v383
      %v4241 = vunpack.c.l.b16 %v384
      %v4242 = vunpack.c.l.b16 %v385
      %v4243 = vunpack.c.l.b16 %v386
      %v4244 = vunpack.c.l.b16 %v387
      %v4245 = vunpack.c.l.b16 %v388
      %v4246 = vunpack.c.l.b16 %v389
      %v4247 = vunpack.c.l.b16 %v390
      %v4248 = vunpack.c.l.b16 %v391
      %v4249 = vunpack.c.l.b16 %v392
      %v4250 = vunpack.c.l.b16 %v393
      %v4251 = vunpack.c.l.b16 %v394
      %v4252 = vunpack.c.l.b16 %v395
      %v4253 = vunpack.c.l.b16 %v396
      %v4254 = vunpack.c.l.b16 %v397
      %v4255 = vunpack.c.l.b16 %v398
      %v4256 = vunpack.c.l.b16 %v399
      %v4257 = vunpack.c.l.b16 %v400
      %v4258 = vunpack.c.l.b16 %v401
      %v4259 = vunpack.c.l.b16 %v402
      %v4260 = vunpack.c.l.b16 %v403
      %v4261 = vunpack.c.l.b16 %v404
      %v4262 = vunpack.c.l.b16 %v405
      %v4263 = vunpack.c.l.b16 %v406
      %v4264 = vunpack.c.l.b16 %v407
      %v4265 = vunpack.c.l.b16 %v408
      %v4266 = vunpack.c.l.b16 %v409
      %v4267 = vunpack.c.l.b16 %v410
      %v4268 = vunpack.c.l.b16 %v411
      %v4269 = vunpack.c.l.b16 %v412
      %v4270 = vunpack.c.l.b16 %v413
      %v4271 = vunpack.c.l.b16 %v414
      %v4272 = vunpack.c.l.b16 %v415
      %v4273 = vunpack.c.l.b16 %v416
      %v4274 = vunpack.c.l.b16 %v417
      %v4275 = vunpack.c.l.b16 %v418
      %v4276 = vunpack.c.l.b16 %v419
      %v4277 = vunpack.c.l.b16 %v420
      %v4278 = vunpack.c.l.b16 %v421
      %v4279 = vunpack.c.l.b16 %v422
      %v4280 = vunpack.c.l.b16 %v423
      %v4281 = vunpack.c.l.b16 %v424
      %v4282 = vunpack.c.l.b16 %v425
      %v4283 = vunpack.c.l.b16 %v426
      %v4284 = vunpack.c.l.b16 %v427
      %v4285 = vunpack.c.l.b16 %v428
      %v4286 = vunpack.c.l.b16 %v429
      %v4287 = vunpack.c.l.b16 %v430
      %v4288 = vunpack.c.l.b16 %v431
      %v4289 = vunpack.c.l.b16 %v432
      %v4290 = vunpack.c.l.b16 %v433
      %v4291 = vunpack.c.l.b16 %v434
      %v4292 = vunpack.c.l.b16 %v435
      %v4293 = vunpack.c.l.b16 %v436
      %v4294 = vunpack.c.l.b16 %v437
      %v4295 = vunpack.c.l.b16 %v438
      %v4296 = vunpack.c.l.b16 %v439
      %v4297 = vunpack.c.l.b16 %v440
      %v4298 = vunpack.c.l.b16 %v441
      %v4299 = vunpack.c.l.b16 %v442
      %v4300 = vunpack.c.l.b16 %v443
      %v4301 = vunpack.c.l.b16 %v444
      %v4302 = vunpack.c.l.b16 %v445
      %v4303 = vunpack.c.l.b16 %v446
      %v4304 = vunpack.c.l.b16 %v447
      %v4305 = vunpack.c.l.b16 %v448
      %v4306 = vunpack.c.l.b16 %v449
      %v4307 = vunpack.c.l.b16 %v450
      %v4308 = vunpack.c.l.b16 %v451
      %v4309 = vunpack.c.l.b16 %v452
      %v4310 = vunpack.c.l.b16 %v453
      %v4311 = vunpack.c.l.b16 %v454
      %v4312 = vunpack.c.l.b16 %v455
      %v4313 = vunpack.c.l.b16 %v456
      %v4314 = vunpack.c.l.b16 %v457
      %v4315 = vunpack.c.l.b16 %v458
      %v4316 = vunpack.c.l.b16 %v459
      %v4317 = vunpack.c.l.b16 %v460
      %v4318 = vunpack.c.l.b16 %v461
      %v4319 = vunpack.c.l.b16 %v462
      %v4320 = vunpack.c.l.b16 %v463
      %v4321 = vunpack.c.l.b16 %v464
      %v4322 = vunpack.c.l.b16 %v465
      %v4323 = vunpack.c.l.b16 %v466
      %v4324 = vunpack.c.l.b16 %v467
      %v4325 = vunpack.c.l.b16 %v468
      %v4326 = vunpack.c.l.b16 %v469
      %v4327 = vunpack.c.l.b16 %v470
      %v4328 = vunpack.c.l.b16 %v471
      %v4329 = vunpack.c.l.b16 %v472
      %v4330 = vunpack.c.l.b16 %v473
      %v4331 = vunpack.c.l.b16 %v474
      %v4332 = vunpack.c.l.b16 %v475
      %v4333 = vunpack.c.l.b16 %v476
      %v4334 = vunpack.c.l.b16 %v477
      %v4335 = vunpack.c.l.b16 %v478
      %v4336 = vunpack.c.l.b16 %v479
      %v4337 = vunpack.c.l.b16 %v480
      %v4338 = vunpack.c.l.b16 %v481
      %v4339 = vunpack.c.l.b16 %v482
      %v4340 = vunpack.c.l.b16 %v483
      %v4341 = vunpack.c.l.b16 %v484
      %v4342 = vunpack.c.l.b16 %v485
      %v4343 = vunpack.c.l.b16 %v486
      %v4344 = vunpack.c.l.b16 %v487
      %v4345 = vunpack.c.l.b16 %v488
      %v4346 = vunpack.c.l.b16 %v489
      %v4347 = vunpack.c.l.b16 %v490
      %v4348 = vunpack.c.l.b16 %v491
      %v4349 = vunpack.c.l.b16 %v492
      %v4350 = vunpack.c.l.b16 %v493
      %v4351 = vunpack.c.l.b16 %v494
      %v4352 = vunpack.c.l.b16 %v495
      %v4353 = vunpack.c.l.b16 %v496
      %v4354 = vunpack.c.l.b16 %v497
      %v4355 = vunpack.c.l.b16 %v498
      %v4356 = vunpack.c.l.b16 %v499
      %v4357 = vunpack.c.l.b16 %v500
      %v4358 = vunpack.c.l.b16 %v501
      %v4359 = vunpack.c.l.b16 %v502
      %v4360 = vunpack.c.l.b16 %v503
      %v4361 = vunpack.c.l.b16 %v504
      %v4362 = vunpack.c.l.b16 %v505
      %v4363 = vunpack.c.l.b16 %v506
      %v4364 = vunpack.c.l.b16 %v507
      %v4365 = vunpack.c.l.b16 %v508
      %v4366 = vunpack.c.l.b16 %v509
      %v4367 = vunpack.c.l.b16 %v510
      %v4368 = vunpack.c.l.b16 %v511
      %v4369 = vunpack.c.l.b16 %v512
      %v4370 = vunpack.c.l.b16 %v513
      %v4371 = vunpack.c.l.b16 %v514
      %v4372 = vunpack.c.l.b16 %v515
      %v4373 = vunpack.c.l.b16 %v516
      %v4374 = vunpack.c.l.b16 %v517
      %v4375 = vunpack.c.l.b16 %v518
      %v4376 = vunpack.c.l.b16 %v519
      %v4377 = vunpack.c.l.b16 %v520
      %v4378 = vunpack.c.l.b16 %v521
      %v4379 = vunpack.c.l.b16 %v522
      %v4380 = vunpack.c.l.b16 %v523
      %v4381 = vunpack.c.l.b16 %v524
      %v4382 = vunpack.c.l.b16 %v525
      %v4383 = vunpack.c.l.b16 %v526
      %v4384 = vunpack.c.l.b16 %v527
      %v4385 = vunpack.c.l.b16 %v528
      %v4386 = vunpack.c.l.b16 %v529
      %v4387 = vunpack.c.l.b16 %v530
      %v4388 = vunpack.c.l.b16 %v531
      %v4389 = vunpack.c.l.b16 %v532
      %v4390 = vunpack.c.l.b16 %v533
      %v4391 = vunpack.c.l.b16 %v534
      %v4392 = vunpack.c.l.b16 %v535
      %v4393 = vunpack.c.l.b16 %v536
      %v4394 = vunpack.c.l.b16 %v537
      %v4395 = vunpack.c.l.b16 %v538
      %v4396 = vunpack.c.l.b16 %v539
      %v4397 = vunpack.c.l.b16 %v540
      %v4398 = vunpack.c.l.b16 %v541
      %v4399 = vunpack.c.l.b16 %v542
      %v4400 = vunpack.c.l.b16 %v543
      %v4401 = vunpack.c.l.b16 %v544
      %v4402 = vunpack.c.l.b16 %v545
      %v4403 = vunpack.c.l.b16 %v546
      %v4404 = vunpack.c.l.b16 %v547
      %v4405 = vunpack.c.l.b16 %v548
      %v4406 = vunpack.c.l.b16 %v549
      %v4407 = vunpack.c.l.b16 %v550
      %v4408 = vunpack.c.l.b16 %v551
      %v4409 = vunpack.c.l.b16 %v552
      %v4410 = vunpack.c.l.b16 %v553
      %v4411 = vunpack.c.l.b16 %v554
      %v4412 = vunpack.c.l.b16 %v555
      %v4413 = vunpack.c.l.b16 %v556
      %v4414 = vunpack.c.l.b16 %v557
      %v4415 = vunpack.c.l.b16 %v558
      %v4416 = vunpack.c.l.b16 %v559
      %v4417 = vunpack.c.l.b16 %v560
      %v4418 = vunpack.c.l.b16 %v561
      %v4419 = vunpack.c.l.b16 %v562
      %v4420 = vunpack.c.l.b16 %v563
      %v4421 = vunpack.c.l.b16 %v564
      %v4422 = vunpack.c.l.b16 %v565
      %v4423 = vunpack.c.l.b16 %v566
      %v4424 = vunpack.c.l.b16 %v567
      %v4425 = vunpack.c.l.b16 %v568
      %v4426 = vunpack.c.l.b16 %v569
      %v4427 = vunpack.c.l.b16 %v570
      %v4428 = vunpack.c.l.b16 %v571
      %v4429 = vunpack.c.l.b16 %v572
      %v4430 = vunpack.c.l.b16 %v573
      %v4431 = vunpack.c.l.b16 %v574
      %v4432 = vunpack.c.l.b16 %v575
      %v4433 = vunpack.c.l.b16 %v576
      %v4434 = vunpack.c.l.b16 %v577
      %v4435 = vunpack.c.l.b16 %v578
      %v4436 = vunpack.c.l.b16 %v579
      %v4437 = vunpack.c.l.b16 %v580
      %v4438 = vunpack.c.l.b16 %v581
      %v4439 = vunpack.c.l.b16 %v582
      %v4440 = vunpack.c.l.b16 %v583
      %v4441 = vunpack.c.l.b16 %v584
      %v4442 = vunpack.c.l.b16 %v585
      %v4443 = vunpack.c.l.b16 %v586
      %v4444 = vunpack.c.l.b16 %v587
      %v4445 = vunpack.c.l.b16 %v588
      %v4446 = vunpack.c.l.b16 %v589
      %v4447 = vunpack.c.l.b16 %v590
      %v4448 = vunpack.c.l.b16 %v591
      %v4449 = vunpack.c.l.b16 %v592
      %v4450 = vunpack.c.l.b16 %v593
      %v4451 = vunpack.c.l.b16 %v594
      %v4452 = vunpack.c.l.b16 %v595
      %v4453 = vunpack.c.l.b16 %v596
      %v4454 = vunpack.c.l.b16 %v597
      %v4455 = vunpack.c.l.b16 %v598
      %v4456 = vunpack.c.l.b16 %v599
      %v4457 = vunpack.c.l.b16 %v600
      %v4458 = vunpack.c.l.b16 %v601
      %v4459 = vunpack.c.l.b16 %v602
      %v4460 = vunpack.c.l.b16 %v603
      %v4461 = vunpack.c.l.b16 %v604
      %v4462 = vunpack.c.l.b16 %v605
      %v4463 = vunpack.c.l.b16 %v606
      %v4464 = vunpack.c.l.b16 %v607
      %v4465 = vunpack.c.l.b16 %v608
      %v4466 = vunpack.c.l.b16 %v609
      %v4467 = vunpack.c.l.b16 %v610
      %v4468 = vunpack.c.l.b16 %v611
      %v4469 = vunpack.c.l.b16 %v612
      %v4470 = vunpack.c.l.b16 %v613
      %v4471 = vunpack.c.l.b16 %v614
      %v4472 = vunpack.c.l.b16 %v615
      %v4473 = vunpack.c.l.b16 %v616
      %v4474 = vunpack.c.l.b16 %v617
      %v4475 = vunpack.c.l.b16 %v618
      %v4476 = vunpack.c.l.b16 %v619
      %v4477 = vunpack.c.l.b16 %v620
      %v4478 = vunpack.c.l.b16 %v621
      %v4479 = vunpack.c.l.b16 %v622
      %v4480 = vunpack.c.l.b16 %v623
      %v4481 = vunpack.c.l.b16 %v624
      %v4482 = vunpack.c.l.b16 %v625
      %v4483 = vunpack.c.l.b16 %v626
      %v4484 = vunpack.c.l.b16 %v627
      %v4485 = vunpack.c.l.b16 %v628
      %v4486 = vunpack.c.l.b16 %v629
      %v4487 = vunpack.c.l.b16 %v630
      %v4488 = vunpack.c.l.b16 %v631
      %v4489 = vunpack.c.l.b16 %v632
      %v4490 = vunpack.c.l.b16 %v633
      %v4491 = vunpack.c.l.b16 %v634
      %v4492 = vunpack.c.l.b16 %v635
      %v4493 = vunpack.c.l.b16 %v636
      %v4494 = vunpack.c.l.b16 %v637
      %v4495 = vunpack.c.l.b16 %v638
      %v4496 = vunpack.c.l.b16 %v639
      %v4497 = vunpack.c.l.b16 %v640
      %v4498 = vunpack.c.l.b16 %v641
      %v4499 = vunpack.c.l.b16 %v642
      %v4500 = vunpack.c.l.b16 %v643
      %v4501 = vunpack.c.l.b16 %v644
      %v4502 = vunpack.c.l.b16 %v645
      %v4503 = vunpack.c.l.b16 %v646
      %v4504 = vunpack.c.l.b16 %v647
      %v4505 = vunpack.c.l.b16 %v648
      %v4506 = vunpack.c.l.b16 %v649
      %v4507 = vunpack.c.l.b16 %v650
      %v4508 = vunpack.c.l.b16 %v651
      %v4509 = vunpack.c.l.b16 %v652
      %v4510 = vunpack.c.l.b16 %v653
      %v4511 = vunpack.c.l.b16 %v654
      %v4512 = vunpack.c.l.b16 %v655
      %v4513 = vunpack.c.l.b16 %v656
      %v4514 = vunpack.c.l.b16 %v657
      %v4515 = vunpack.c.l.b16 %v658
      %v4516 = vunpack.c.l.b16 %v659
      %v4517 = vunpack.c.l.b16 %v660
      %v4518 = vunpack.c.l.b16 %v661
      %v4519 = vunpack.c.l.b16 %v662
      %v4520 = vunpack.c.l.b16 %v663
      %v4521 = vunpack.c.l.b16 %v664
      %v4522 = vunpack.c.l.b16 %v665
      %v4523 = vunpack.c.l.b16 %v666
      %v4524 = vunpack.c.l.b16 %v667
      %v4525 = vunpack.c.l.b16 %v668
      %v4526 = vunpack.c.l.b16 %v669
      %v4527 = vunpack.c.l.b16 %v670
      %v4528 = vunpack.c.l.b16 %v671
      %v4529 = vunpack.c.l.b16 %v672
      %v4530 = vunpack.c.l.b16 %v673
      %v4531 = vunpack.c.l.b16 %v674
      %v4532 = vunpack.c.l.b16 %v675
      %v4533 = vunpack.c.l.b16 %v676
      %v4534 = vunpack.c.l.b16 %v677
      %v4535 = vunpack.c.l.b16 %v678
      %v4536 = vunpack.c.l.b16 %v679
      %v4537 = vunpack.c.l.b16 %v680
      %v4538 = vunpack.c.l.b16 %v681
      %v4539 = vunpack.c.l.b16 %v682
      %v4540 = vunpack.c.l.b16 %v683
      %v4541 = vunpack.c.l.b16 %v684
      %v4542 = vunpack.c.l.b16 %v685
      %v4543 = vunpack.c.l.b16 %v686
      %v4544 = vunpack.c.l.b16 %v687
      %v4545 = vunpack.c.l.b16 %v688
      %v4546 = vunpack.c.l.b16 %v689
      %v4547 = vunpack.c.l.b16 %v690
      %v4548 = vunpack.c.l.b16 %v691
      %v4549 = vunpack.c.l.b16 %v692
      %v4550 = vunpack.c.l.b16 %v693
      %v4551 = vunpack.c.l.b16 %v694
      %v4552 = vunpack.c.l.b16 %v695
      %v4553 = vunpack.c.l.b16 %v696
      %v4554 = vunpack.c.l.b16 %v697
      %v4555 = vunpack.c.l.b16 %v698
      %v4556 = vunpack.c.l.b16 %v699
      %v4557 = vunpack.c.l.b16 %v700
      %v4558 = vunpack.c.l.b16 %v701
      %v4559 = vunpack.c.l.b16 %v702
      %v4560 = vunpack.c.l.b16 %v703
      %v4561 = vunpack.c.l.b16 %v704
      %v4562 = vunpack.c.l.b16 %v705
      %v4563 = vunpack.c.l.b16 %v706
      %v4564 = vunpack.c.l.b16 %v707
      %v4565 = vunpack.c.l.b16 %v708
      %v4566 = vunpack.c.l.b16 %v709
      %v4567 = vunpack.c.l.b16 %v710
      %v4568 = vunpack.c.l.b16 %v711
      %v4569 = vunpack.c.l.b16 %v712
      %v4570 = vunpack.c.l.b16 %v713
      %v4571 = vunpack.c.l.b16 %v714
      %v4572 = vunpack.c.l.b16 %v715
      %v4573 = vunpack.c.l.b16 %v716
      %v4574 = vunpack.c.l.b16 %v717
      %v4575 = vunpack.c.l.b16 %v718
      %v4576 = vunpack.c.l.b16 %v719
      %v4577 = vunpack.c.l.b16 %v720
      %v4578 = vunpack.c.l.b16 %v721
      %v4579 = vunpack.c.l.b16 %v722
      %v4580 = vunpack.c.l.b16 %v723
      %v4581 = vunpack.c.l.b16 %v724
      %v4582 = vunpack.c.l.b16 %v725
      %v4583 = vunpack.c.l.b16 %v726
      %v4584 = vunpack.c.l.b16 %v727
      %v4585 = vunpack.c.l.b16 %v728
      %v4586 = vunpack.c.l.b16 %v729
      %v4587 = vunpack.c.l.b16 %v730
      %v4588 = vunpack.c.l.b16 %v731
      %v4589 = vunpack.c.l.b16 %v732
      %v4590 = vunpack.c.l.b16 %v733
      %v4591 = vunpack.c.l.b16 %v734
      %v4592 = vunpack.c.l.b16 %v735
      %v4593 = vunpack.c.l.b16 %v736
      %v4594 = vunpack.c.l.b16 %v737
      %v4595 = vunpack.c.l.b16 %v738
      %v4596 = vunpack.c.l.b16 %v739
      %v4597 = vunpack.c.l.b16 %v740
      %v4598 = vunpack.c.l.b16 %v741
      %v4599 = vunpack.c.l.b16 %v742
      %v4600 = vunpack.c.l.b16 %v743
      %v4601 = vunpack.c.l.b16 %v744
      %v4602 = vunpack.c.l.b16 %v745
      %v4603 = vunpack.c.l.b16 %v746
      %v4604 = vunpack.c.l.b16 %v747
      %v4605 = vunpack.c.l.b16 %v748
      %v4606 = vunpack.c.l.b16 %v749
      %v4607 = vunpack.c.l.b16 %v750
      %v4608 = vunpack.c.l.b16 %v751
      %v4609 = vunpack.c.l.b16 %v752
      %v4610 = vunpack.c.l.b16 %v753
      %v4611 = vunpack.c.l.b16 %v754
      %v4612 = vunpack.c.l.b16 %v755
      %v4613 = vunpack.c.l.b16 %v756
      %v4614 = vunpack.c.l.b16 %v757
      %v4615 = vunpack.c.l.b16 %v758
      %v4616 = vunpack.c.l.b16 %v759
      %v4617 = vunpack.c.l.b16 %v760
      %v4618 = vunpack.c.l.b16 %v761
      %v4619 = vunpack.c.l.b16 %v762
      %v4620 = vunpack.c.l.b16 %v763
      %v4621 = vunpack.c.l.b16 %v764
      %v4622 = vunpack.c.l.b16 %v765
      %v4623 = vunpack.c.l.b16 %v766
      %v4624 = vunpack.c.l.b16 %v767
      %v4625 = vunpack.c.l.b16 %v768
      %v4626 = vunpack.c.l.b16 %v769
      %v4627 = vunpack.c.l.b16 %v770
      %v4628 = vunpack.c.l.b16 %v771
      %v4629 = vunpack.c.l.b16 %v772
      %v4630 = vunpack.c.l.b16 %v773
      %v4631 = vunpack.c.l.b16 %v774
      %v4632 = vunpack.c.l.b16 %v775
      %v4633 = vunpack.c.l.b16 %v776
      %v4634 = vunpack.c.l.b16 %v777
      %v4635 = vunpack.c.l.b16 %v778
      %v4636 = vunpack.c.l.b16 %v779
      %v4637 = vunpack.c.l.b16 %v780
      %v4638 = vunpack.c.l.b16 %v781
      %v4639 = vunpack.c.l.b16 %v782
      %v4640 = vunpack.c.l.b16 %v783
      %v4641 = vunpack.c.l.b16 %v784
      %v4642 = vunpack.c.l.b16 %v785
      %v4643 = vunpack.c.l.b16 %v786
      %v4644 = vunpack.c.l.b16 %v787
      %v4645 = vunpack.c.l.b16 %v788
      %v4646 = vunpack.c.l.b16 %v789
      %v4647 = vunpack.c.l.b16 %v790
      %v4648 = vunpack.c.l.b16 %v791
      %v4649 = vunpack.c.l.b16 %v792
      %v4650 = vunpack.c.l.b16 %v793
      %v4651 = vunpack.c.l.b16 %v794
      %v4652 = vunpack.c.l.b16 %v795
      %v4653 = vunpack.c.l.b16 %v796
      %v4654 = vunpack.c.l.b16 %v797
      %v4655 = vunpack.c.l.b16 %v798
      %v4656 = vunpack.c.l.b16 %v799
      %v4657 = vunpack.c.l.b16 %v800
      %v4658 = vunpack.c.l.b16 %v801
      %v4659 = vunpack.c.l.b16 %v802
      %v4660 = vunpack.c.l.b16 %v803
      %v4661 = vunpack.c.l.b16 %v804
      %v4662 = vunpack.c.l.b16 %v805
      %v4663 = vunpack.c.l.b16 %v806
      %v4664 = vunpack.c.l.b16 %v807
      %v4665 = vunpack.c.l.b16 %v808
      %v4666 = vunpack.c.l.b16 %v809
      %v4667 = vunpack.c.l.b16 %v810
      %v4668 = vunpack.c.l.b16 %v811
      %v4669 = vunpack.c.l.b16 %v812
      %v4670 = vunpack.c.l.b16 %v813
      %v4671 = vunpack.c.l.b16 %v814
      %v4672 = vunpack.c.l.b16 %v815
      %v4673 = vunpack.c.l.b16 %v816
      %v4674 = vunpack.c.l.b16 %v817
      %v4675 = vunpack.c.l.b16 %v818
      %v4676 = vunpack.c.l.b16 %v819
      %v4677 = vunpack.c.l.b16 %v820
      %v4678 = vunpack.c.l.b16 %v821
      %v4679 = vunpack.c.l.b16 %v822
      %v4680 = vunpack.c.l.b16 %v823
      %v4681 = vunpack.c.l.b16 %v824
      %v4682 = vunpack.c.l.b16 %v825
      %v4683 = vunpack.c.l.b16 %v826
      %v4684 = vunpack.c.l.b16 %v827
      %v4685 = vunpack.c.l.b16 %v828
      %v4686 = vunpack.c.l.b16 %v829
      %v4687 = vunpack.c.l.b16 %v830
      %v4688 = vunpack.c.l.b16 %v831
      %v4689 = vunpack.c.l.b16 %v832
      %v4690 = vunpack.c.l.b16 %v833
      %v4691 = vunpack.c.l.b16 %v834
      %v4692 = vunpack.c.l.b16 %v835
      %v4693 = vunpack.c.l.b16 %v836
      %v4694 = vunpack.c.l.b16 %v837
      %v4695 = vunpack.c.l.b16 %v838
      %v4696 = vunpack.c.l.b16 %v839
      %v4697 = vunpack.c.l.b16 %v840
      %v4698 = vunpack.c.l.b16 %v841
      %v4699 = vunpack.c.l.b16 %v842
      %v4700 = vunpack.c.l.b16 %v843
      %v4701 = vunpack.c.l.b16 %v844
      %v4702 = vunpack.c.l.b16 %v845
      %v4703 = vunpack.c.l.b16 %v846
      %v4704 = vunpack.c.l.b16 %v847
      %v4705 = vunpack.c.l.b16 %v848
      %v4706 = vunpack.c.l.b16 %v849
      %v4707 = vunpack.c.l.b16 %v850
      %v4708 = vunpack.c.l.b16 %v851
      %v4709 = vunpack.c.l.b16 %v852
      %v4710 = vunpack.c.l.b16 %v853
      %v4711 = vunpack.c.l.b16 %v854
      %v4712 = vunpack.c.l.b16 %v855
      %v4713 = vunpack.c.l.b16 %v856
      %v4714 = vunpack.c.l.b16 %v857
      %v4715 = vunpack.c.l.b16 %v858
      %v4716 = vunpack.c.l.b16 %v859
      %v4717 = vunpack.c.l.b16 %v860
      %v4718 = vunpack.c.l.b16 %v861
      %v4719 = vunpack.c.l.b16 %v862
      %v4720 = vunpack.c.l.b16 %v863
      %v4721 = vunpack.c.l.b16 %v864
      %v4722 = vunpack.c.l.b16 %v865
      %v4723 = vunpack.c.l.b16 %v866
      %v4724 = vunpack.c.l.b16 %v867
      %v4725 = vunpack.c.l.b16 %v868
      %v4726 = vunpack.c.l.b16 %v869
      %v4727 = vunpack.c.l.b16 %v870
      %v4728 = vunpack.c.l.b16 %v871
      %v4729 = vunpack.c.l.b16 %v872
      %v4730 = vunpack.c.l.b16 %v873
      %v4731 = vunpack.c.l.b16 %v874
      %v4732 = vunpack.c.l.b16 %v875
      %v4733 = vunpack.c.l.b16 %v876
      %v4734 = vunpack.c.l.b16 %v877
      %v4735 = vunpack.c.l.b16 %v878
      %v4736 = vunpack.c.l.b16 %v879
      %v4737 = vunpack.c.l.b16 %v880
      %v4738 = vunpack.c.l.b16 %v881
      %v4739 = vunpack.c.l.b16 %v882
      %v4740 = vunpack.c.l.b16 %v883
      %v4741 = vunpack.c.l.b16 %v884
      %v4742 = vunpack.c.l.b16 %v885
      %v4743 = vunpack.c.l.b16 %v886
      %v4744 = vunpack.c.l.b16 %v887
      %v4745 = vunpack.c.l.b16 %v888
      %v4746 = vunpack.c.l.b16 %v889
      %v4747 = vunpack.c.l.b16 %v890
      %v4748 = vunpack.c.l.b16 %v891
      %v4749 = vunpack.c.l.b16 %v892
      %v4750 = vunpack.c.l.b16 %v893
      %v4751 = vunpack.c.l.b16 %v894
      %v4752 = vunpack.c.l.b16 %v895
      %v4753 = vunpack.c.l.b16 %v896
      %v4754 = vunpack.c.l.b16 %v897
      %v4755 = vunpack.c.l.b16 %v898
      %v4756 = vunpack.c.l.b16 %v899
      %v4757 = vunpack.c.l.b16 %v900
      %v4758 = vunpack.c.l.b16 %v901
      %v4759 = vunpack.c.l.b16 %v902
      %v4760 = vunpack.c.l.b16 %v903
      %v4761 = vunpack.c.l.b16 %v904
      %v4762 = vunpack.c.l.b16 %v905
      %v4763 = vunpack.c.l.b16 %v906
      %v4764 = vunpack.c.l.b16 %v907
      %v4765 = vunpack.c.l.b16 %v908
      %v4766 = vunpack.c.l.b16 %v909
      %v4767 = vunpack.c.l.b16 %v910
      %v4768 = vunpack.c.l.b16 %v911
      %v4769 = vunpack.c.l.b16 %v912
      %v4770 = vunpack.c.l.b16 %v913
      %v4771 = vunpack.c.l.b16 %v914
      %v4772 = vunpack.c.l.b16 %v915
      %v4773 = vunpack.c.l.b16 %v916
      %v4774 = vunpack.c.l.b16 %v917
      %v4775 = vunpack.c.l.b16 %v918
      %v4776 = vunpack.c.l.b16 %v919
      %v4777 = vunpack.c.l.b16 %v920
      %v4778 = vunpack.c.l.b16 %v921
      %v4779 = vunpack.c.l.b16 %v922
      %v4780 = vunpack.c.l.b16 %v923
      %v4781 = vunpack.c.l.b16 %v924
      %v4782 = vunpack.c.l.b16 %v925
      %v4783 = vunpack.c.l.b16 %v926
      %v4784 = vunpack.c.l.b16 %v927
      %v4785 = vunpack.c.l.b16 %v928
      %v4786 = vunpack.c.l.b16 %v929
      %v4787 = vunpack.c.l.b16 %v930
      %v4788 = vunpack.c.l.b16 %v931
      %v4789 = vunpack.c.l.b16 %v932
      %v4790 = vunpack.c.l.b16 %v933
      %v4791 = vunpack.c.l.b16 %v934
      %v4792 = vunpack.c.l.b16 %v935
      %v4793 = vunpack.c.l.b16 %v936
      %v4794 = vunpack.c.l.b16 %v937
      %v4795 = vunpack.c.l.b16 %v938
      %v4796 = vunpack.c.l.b16 %v939
      %v4797 = vunpack.c.l.b16 %v940
      %v4798 = vunpack.c.l.b16 %v941
      %v4799 = vunpack.c.l.b16 %v942
      %v4800 = vunpack.c.l.b16 %v943
      %v4801 = vunpack.c.l.b16 %v944
      %v4802 = vunpack.c.l.b16 %v945
      %v4803 = vunpack.c.l.b16 %v946
      %v4804 = vunpack.c.l.b16 %v947
      %v4805 = vunpack.c.l.b16 %v948
      %v4806 = vunpack.c.l.b16 %v949
      %v4807 = vunpack.c.l.b16 %v950
      %v4808 = vunpack.c.l.b16 %v951
      %v4809 = vunpack.c.l.b16 %v952
      %v4810 = vunpack.c.l.b16 %v953
      %v4811 = vunpack.c.l.b16 %v954
      %v4812 = vunpack.c.l.b16 %v955
      %v4813 = vunpack.c.l.b16 %v956
      %v4814 = vunpack.c.l.b16 %v957
      %v4815 = vunpack.c.l.b16 %v958
      %v4816 = vunpack.c.l.b16 %v959
      %v4817 = vunpack.c.l.b16 %v960
      %v4818 = vunpack.c.l.b16 %v961
      %v4819 = vunpack.c.l.b16 %v962
      %v4820 = vunpack.c.l.b16 %v963
      %v4821 = vunpack.c.l.b16 %v964
      %v4822 = vunpack.c.l.b16 %v965
      %v4823 = vunpack.c.l.b16 %v966
      %v4824 = vunpack.c.l.b16 %v967
      %v4825 = vunpack.c.l.b16 %v968
      %v4826 = vunpack.c.l.b16 %v969
      %v4827 = vunpack.c.l.b16 %v970
      %v4828 = vunpack.c.l.b16 %v971
      %v4829 = vunpack.c.l.b16 %v972
      %v4830 = vunpack.c.l.b16 %v973
      %v4831 = vunpack.c.l.b16 %v974
      %v4832 = vunpack.c.l.b16 %v975
      %v4833 = vunpack.c.l.b16 %v976
      %v4834 = vunpack.c.l.b16 %v977
      %v4835 = vunpack.c.l.b16 %v978
      %v4836 = vunpack.c.l.b16 %v979
      %v4837 = vunpack.c.l.b16 %v980
      %v4838 = vunpack.c.l.b16 %v981
      %v4839 = vunpack.c.l.b16 %v982
      %v4840 = vunpack.c.l.b16 %v983
      %v4841 = vunpack.c.l.b16 %v984
      %v4842 = vunpack.c.l.b16 %v985
      %v4843 = vunpack.c.l.b16 %v986
      %v4844 = vunpack.c.l.b16 %v987
      %v4845 = vunpack.c.l.b16 %v988
      %v4846 = vunpack.c.l.b16 %v989
      %v4847 = vunpack.c.l.b16 %v990
      %v4848 = vunpack.c.l.b16 %v991
      %v4849 = vunpack.c.l.b16 %v992
      %v4850 = vunpack.c.l.b16 %v993
      %v4851 = vunpack.c.l.b16 %v994
      %v4852 = vunpack.c.l.b16 %v995
      %v4853 = vunpack.c.l.b16 %v996
      %v4854 = vunpack.c.l.b16 %v997
      %v4855 = vunpack.c.l.b16 %v998
      %v4856 = vunpack.c.l.b16 %v999
      %v4857 = vunpack.c.l.b16 %v1000
      %v4858 = vunpack.c.l.b16 %v1001
      %v4859 = vunpack.c.l.b16 %v1002
      %v4860 = vunpack.c.l.b16 %v1003
      %v4861 = vunpack.c.l.b16 %v1004
      %v4862 = vunpack.c.l.b16 %v1005
      %v4863 = vunpack.c.l.b16 %v1006
      %v4864 = vunpack.c.l.b16 %v1007
      %v4865 = vunpack.c.l.b16 %v1008
      %v4866 = vunpack.c.l.b16 %v1009
      %v4867 = vunpack.c.l.b16 %v1010
      %v4868 = vunpack.c.l.b16 %v1011
      %v4869 = vunpack.c.l.b16 %v1012
      %v4870 = vunpack.c.l.b16 %v1013
      %v4871 = vunpack.c.l.b16 %v1014
      %v4872 = vunpack.c.l.b16 %v1015
      %v4873 = vunpack.c.l.b16 %v1016
      %v4874 = vunpack.c.l.b16 %v1017
      %v4875 = vunpack.c.l.b16 %v1018
      %v4876 = vunpack.c.l.b16 %v1019
      %v4877 = vunpack.c.l.b16 %v1020
      %v4878 = vunpack.c.l.b16 %v1021
      %v4879 = vunpack.c.l.b16 %v1022
      %v4880 = vunpack.c.l.b16 %v1023
      %v4881 = vunpack.c.l.b16 %v1024
      %v4882 = vunpack.c.l.b16 %v1025
      %v4883 = vunpack.c.l.b16 %v1026
      %v4884 = vunpack.c.l.b16 %v1027
      %v4885 = vunpack.c.l.b16 %v1028
      %v4886 = vunpack.c.l.b16 %v1029
      %v4887 = vunpack.c.l.b16 %v1030
      %v4888 = vunpack.c.l.b16 %v1031
      %v4889 = vunpack.c.l.b16 %v1032
      %v4890 = vunpack.c.l.b16 %v1033
      %v4891 = vunpack.c.l.b16 %v1034
      %v4892 = vunpack.c.l.b16 %v1035
      %v4893 = vunpack.c.l.b16 %v1036
      %v4894 = vunpack.c.l.b16 %v1037
      %v4895 = vunpack.c.l.b16 %v1038
      %v4896 = vunpack.c.l.b16 %v1039
      %v4897 = vunpack.c.l.b16 %v1040
      %v4898 = vunpack.c.l.b16 %v1041
      %v4899 = vunpack.c.l.b16 %v1042
      %v4900 = vunpack.c.l.b16 %v1043
      %v4901 = vunpack.c.l.b16 %v1044
      %v4902 = vunpack.c.l.b16 %v1045
      %v4903 = vunpack.c.l.b16 %v1046
      %v4904 = vunpack.c.l.b16 %v1047
      %v4905 = vunpack.c.l.b16 %v1048
      %v4906 = vunpack.c.l.b16 %v1049
      %v4907 = vunpack.c.l.b16 %v1050
      %v4908 = vunpack.c.l.b16 %v1051
      %v4909 = vunpack.c.l.b16 %v1052
      %v4910 = vunpack.c.l.b16 %v1053
      %v4911 = vunpack.c.l.b16 %v1054
      %v4912 = vunpack.c.l.b16 %v1055
      %v4913 = vunpack.c.l.b16 %v1056
      %v4914 = vunpack.c.l.b16 %v1057
      %v4915 = vunpack.c.l.b16 %v1058
      %v4916 = vunpack.c.l.b16 %v1059
      %v4917 = vunpack.c.l.b16 %v1060
      %v4918 = vunpack.c.l.b16 %v1061
      %v4919 = vunpack.c.l.b16 %v1062
      %v4920 = vunpack.c.l.b16 %v1063
      %v4921 = vunpack.c.l.b16 %v1064
      %v4922 = vunpack.c.l.b16 %v1065
      %v4923 = vunpack.c.l.b16 %v1066
      %v4924 = vunpack.c.l.b16 %v1067
      %v4925 = vunpack.c.l.b16 %v1068
      %v4926 = vunpack.c.l.b16 %v1069
      %v4927 = vunpack.c.l.b16 %v1070
      %v4928 = vunpack.c.l.b16 %v1071
      %v4929 = vunpack.c.l.b16 %v1072
      %v4930 = vunpack.c.l.b16 %v1073
      %v4931 = vunpack.c.l.b16 %v1074
      %v4932 = vunpack.c.l.b16 %v1075
      %v4933 = vunpack.c.l.b16 %v1076
      %v4934 = vunpack.c.l.b16 %v1077
      %v4935 = vunpack.c.l.b16 %v1078
      %v4936 = vunpack.c.l.b16 %v1079
      %v4937 = vunpack.c.l.b16 %v1080
      %v4938 = vunpack.c.l.b16 %v1081
      %v4939 = vunpack.c.l.b16 %v1082
      %v4940 = vunpack.c.l.b16 %v1083
      %v4941 = vunpack.c.l.b16 %v1084
      %v4942 = vunpack.c.l.b16 %v1085
      %v4943 = vunpack.c.l.b16 %v1086
      %v4944 = vunpack.c.l.b16 %v1087
      %v4945 = vunpack.c.l.b16 %v1088
      %v4946 = vunpack.c.l.b16 %v1089
      %v4947 = vunpack.c.l.b16 %v1090
      %v4948 = vunpack.c.l.b16 %v1091
      %v4949 = vunpack.c.l.b16 %v1092
      %v4950 = vunpack.c.l.b16 %v1093
      %v4951 = vunpack.c.l.b16 %v1094
      %v4952 = vunpack.c.l.b16 %v1095
      %v4953 = vunpack.c.l.b16 %v1096
      %v4954 = vunpack.c.l.b16 %v1097
      %v4955 = vunpack.c.l.b16 %v1098
      %v4956 = vunpack.c.l.b16 %v1099
      %v4957 = vunpack.c.l.b16 %v1100
      %v4958 = vunpack.c.l.b16 %v1101
      %v4959 = vunpack.c.l.b16 %v1102
      %v4960 = vunpack.c.l.b16 %v1103
      %v4961 = vunpack.c.l.b16 %v1104
      %v4962 = vunpack.c.l.b16 %v1105
      %v4963 = vunpack.c.l.b16 %v1106
      %v4964 = vunpack.c.l.b16 %v1107
      %v4965 = vunpack.c.l.b16 %v1108
      %v4966 = vunpack.c.l.b16 %v1109
      %v4967 = vunpack.c.l.b16 %v1110
      %v4968 = vunpack.c.l.b16 %v1111
      %v4969 = vunpack.c.l.b16 %v1112
      %v4970 = vunpack.c.l.b16 %v1113
      %v4971 = vunpack.c.l.b16 %v1114
      %v4972 = vunpack.c.l.b16 %v1115
      %v4973 = vunpack.c.l.b16 %v1116
      %v4974 = vunpack.c.l.b16 %v1117
      %v4975 = vunpack.c.l.b16 %v1118
      %v4976 = vunpack.c.l.b16 %v1119
      %v4977 = vunpack.c.l.b16 %v1120
      %v4978 = vunpack.c.l.b16 %v1121
      %v4979 = vunpack.c.l.b16 %v1122
      %v4980 = vunpack.c.l.b16 %v1123
      %v4981 = vunpack.c.l.b16 %v1124
      %v4982 = vunpack.c.l.b16 %v1125
      %v4983 = vunpack.c.l.b16 %v1126
      %v4984 = vunpack.c.l.b16 %v1127
      %v4985 = vunpack.c.l.b16 %v1128
      %v4986 = vunpack.c.l.b16 %v1129
      %v4987 = vunpack.c.l.b16 %v1130
      %v4988 = vunpack.c.l.b16 %v1131
      %v4989 = vunpack.c.l.b16 %v1132
      %v4990 = vunpack.c.l.b16 %v1133
      %v4991 = vunpack.c.l.b16 %v1134
      %v4992 = vunpack.c.l.b16 %v1135
      %v4993 = vunpack.c.l.b16 %v1136
      %v4994 = vunpack.c.l.b16 %v1137
      %v4995 = vunpack.c.l.b16 %v1138
      %v4996 = vunpack.c.l.b16 %v1139
      %v4997 = vunpack.c.l.b16 %v1140
      %v4998 = vunpack.c.l.b16 %v1141
      %v4999 = vunpack.c.l.b16 %v1142
      %v5000 = vunpack.c.l.b16 %v1143
      %v5001 = vunpack.c.l.b16 %v1144
      %v5002 = vunpack.c.l.b16 %v1145
      %v5003 = vunpack.c.l.b16 %v1146
      %v5004 = vunpack.c.l.b16 %v1147
      %v5005 = vunpack.c.l.b16 %v1148
      %v5006 = vunpack.c.l.b16 %v1149
      %v5007 = vunpack.c.l.b16 %v1150
      %v5008 = vunpack.c.l.b16 %v1151
      %v5009 = vunpack.c.l.b16 %v1152
      %v5010 = vunpack.c.l.b16 %v1153
      %v5011 = vunpack.c.l.b16 %v1154
      %v5012 = vunpack.c.l.b16 %v1155
      %v5013 = vunpack.c.l.b16 %v1156
      %v5014 = vunpack.c.l.b16 %v1157
      %v5015 = vunpack.c.l.b16 %v1158
      %v5016 = vunpack.c.l.b16 %v1159
      %v5017 = vunpack.c.l.b16 %v1160
      %v5018 = vunpack.c.l.b16 %v1161
      %v5019 = vunpack.c.l.b16 %v1162
      %v5020 = vunpack.c.l.b16 %v1163
      %v5021 = vunpack.c.l.b16 %v1164
      %v5022 = vunpack.c.l.b16 %v1165
      %v5023 = vunpack.c.l.b16 %v1166
      %v5024 = vunpack.c.l.b16 %v1167
      %v5025 = vunpack.c.l.b16 %v1168
      %v5026 = vunpack.c.l.b16 %v1169
      %v5027 = vunpack.c.l.b16 %v1170
      %v5028 = vunpack.c.l.b16 %v1171
      %v5029 = vunpack.c.l.b16 %v1172
      %v5030 = vunpack.c.l.b16 %v1173
      %v5031 = vunpack.c.l.b16 %v1174
      %v5032 = vunpack.c.l.b16 %v1175
      %v5033 = vunpack.c.l.b16 %v1176
      %v5034 = vunpack.c.l.b16 %v1177
      %v5035 = vunpack.c.l.b16 %v1178
      %v5036 = vunpack.c.l.b16 %v1179
      %v5037 = vunpack.c.l.b16 %v1180
      %v5038 = vunpack.c.l.b16 %v1181
      %v5039 = vunpack.c.l.b16 %v1182
      %v5040 = vunpack.c.l.b16 %v1183
      %v5041 = vunpack.c.l.b16 %v1184
      %v5042 = vunpack.c.l.b16 %v1185
      %v5043 = vunpack.c.l.b16 %v1186
      %v5044 = vunpack.c.l.b16 %v1187
      %v5045 = vunpack.c.l.b16 %v1188
      %v5046 = vunpack.c.l.b16 %v1189
      %v5047 = vunpack.c.l.b16 %v1190
      %v5048 = vunpack.c.l.b16 %v1191
      %v5049 = vunpack.c.l.b16 %v1192
      %v5050 = vunpack.c.l.b16 %v1193
      %v5051 = vunpack.c.l.b16 %v1194
      %v5052 = vunpack.c.l.b16 %v1195
      %v5053 = vunpack.c.l.b16 %v1196
      %v5054 = vunpack.c.l.b16 %v1197
      %v5055 = vunpack.c.l.b16 %v1198
      %v5056 = vunpack.c.l.b16 %v1199
      %v5057 = vunpack.c.l.b16 %v1200
      %v5058 = vunpack.c.l.b16 %v1201
      %v5059 = vunpack.c.l.b16 %v1202
      %v5060 = vunpack.c.l.b16 %v1203
      %v5061 = vunpack.c.l.b16 %v1204
      %v5062 = vunpack.c.l.b16 %v1205
      %v5063 = vunpack.c.l.b16 %v1206
      %v5064 = vunpack.c.l.b16 %v1207
      %v5065 = vunpack.c.l.b16 %v1208
      %v5066 = vunpack.c.l.b16 %v1209
      %v5067 = vunpack.c.l.b16 %v1210
      %v5068 = vunpack.c.l.b16 %v1211
      %v5069 = vunpack.c.l.b16 %v1212
      %v5070 = vunpack.c.l.b16 %v1213
      %v5071 = vunpack.c.l.b16 %v1214
      %v5072 = vunpack.c.l.b16 %v1215
      %v5073 = vunpack.c.l.b16 %v1216
      %v5074 = vunpack.c.l.b16 %v1217
      %v5075 = vunpack.c.l.b16 %v1218
      %v5076 = vunpack.c.l.b16 %v1219
      %v5077 = vunpack.c.l.b16 %v1220
      %v5078 = vunpack.c.l.b16 %v1221
      %v5079 = vunpack.c.l.b16 %v1222
      %v5080 = vunpack.c.l.b16 %v1223
      %v5081 = vunpack.c.l.b16 %v1224
      %v5082 = vunpack.c.l.b16 %v1225
      %v5083 = vunpack.c.l.b16 %v1226
      %v5084 = vunpack.c.l.b16 %v1227
      %v5085 = vunpack.c.l.b16 %v1228
      %v5086 = vunpack.c.l.b16 %v1229
      %v5087 = vunpack.c.l.b16 %v1230
      %v5088 = vunpack.c.l.b16 %v1231
      %v5089 = vunpack.c.l.b16 %v1232
      %v5090 = vunpack.c.l.b16 %v1233
      %v5091 = vunpack.c.l.b16 %v1234
      %v5092 = vunpack.c.l.b16 %v1235
      %v5093 = vunpack.c.l.b16 %v1236
      %v5094 = vunpack.c.l.b16 %v1237
      %v5095 = vunpack.c.l.b16 %v1238
      %v5096 = vunpack.c.l.b16 %v1239
      %v5097 = vunpack.c.l.b16 %v1240
      %v5098 = vunpack.c.l.b16 %v1241
      %v5099 = vunpack.c.l.b16 %v1242
      %v5100 = vunpack.c.l.b16 %v1243
      %v5101 = vunpack.c.l.b16 %v1244
      %v5102 = vunpack.c.l.b16 %v1245
      %v5103 = vunpack.c.l.b16 %v1246
      %v5104 = vunpack.c.l.b16 %v1247
      %v5105 = vunpack.c.l.b16 %v1248
      %v5106 = vunpack.c.l.b16 %v1249
      %v5107 = vunpack.c.l.b16 %v1250
      %v5108 = vunpack.c.l.b16 %v1251
      %v5109 = vunpack.c.l.b16 %v1252
      %v5110 = vunpack.c.l.b16 %v1253
      %v5111 = vunpack.c.l.b16 %v1254
      %v5112 = vunpack.c.l.b16 %v1255
      %v5113 = vunpack.c.l.b16 %v1256
      %v5114 = vunpack.c.l.b16 %v1257
      %v5115 = vunpack.c.l.b16 %v1258
      %v5116 = vunpack.c.l.b16 %v1259
      %v5117 = vunpack.c.l.b16 %v1260
      %v5118 = vunpack.c.l.b16 %v1261
      %v5119 = vunpack.c.l.b16 %v1262
      %v5120 = vunpack.c.l.b16 %v1263
      %v5121 = vunpack.c.l.b16 %v1264
      %v5122 = vunpack.c.l.b16 %v1265
      %v5123 = vunpack.c.l.b16 %v1266
      %v5124 = vunpack.c.l.b16 %v1267
      %v5125 = vunpack.c.l.b16 %v1268
      %v5126 = vunpack.c.l.b16 %v1269
      %v5127 = vunpack.c.l.b16 %v1270
      %v5128 = vunpack.c.l.b16 %v1271
      %v5129 = vunpack.c.l.b16 %v1272
      %v5130 = vunpack.c.l.b16 %v1273
      %v5131 = vunpack.c.l.b16 %v1274
      %v5132 = vunpack.c.l.b16 %v1275
      %v5133 = vunpack.c.l.b16 %v1276
      %v5134 = vunpack.c.l.b16 %v1277
      %v5135 = vunpack.c.l.b16 %v1278
      %v5136 = vunpack.c.l.b16 %v1279
      %v5137 = vunpack.c.l.b16 %v1280
      %v5138 = vunpack.c.l.b16 %v1281
      %v5139 = vunpack.c.l.b16 %v1282
      %v5140 = vunpack.c.l.b16 %v1283
      %v5141 = vunpack.c.l.b16 %v1284
      %v5142 = vunpack.c.l.b16 %v1285
      %v5143 = vunpack.c.l.b16 %v1286
      %v5144 = vunpack.c.l.b16 %v1287
      %v5145 = vunpack.c.l.b16 %v1288
      %v5146 = vunpack.c.l.b16 %v1289
      %v5147 = vunpack.c.l.b16 %v1290
      %v5148 = vunpack.c.l.b16 %v1291
      %v5149 = vunpack.c.l.b16 %v1292
      %v5150 = vunpack.c.l.b16 %v1293
      %v5151 = vunpack.c.l.b16 %v1294
      %v5152 = vunpack.c.l.b16 %v1295
      %v5153 = vunpack.c.l.b16 %v1296
      %v5154 = vunpack.c.l.b16 %v1297
      %v5155 = vunpack.c.l.b16 %v1298
      %v5156 = vunpack.c.l.b16 %v1299
      %v5157 = vunpack.c.l.b16 %v1300
      %v5158 = vunpack.c.l.b16 %v1301
      %v5159 = vunpack.c.l.b16 %v1302
      %v5160 = vunpack.c.l.b16 %v1303
      %v5161 = vunpack.c.l.b16 %v1304
      %v5162 = vunpack.c.l.b16 %v1305
      %v5163 = vunpack.c.l.b16 %v1306
      %v5164 = vunpack.c.l.b16 %v1307
      %v5165 = vunpack.c.l.b16 %v1308
      %v5166 = vunpack.c.l.b16 %v1309
      %v5167 = vunpack.c.l.b16 %v1310
      %v5168 = vunpack.c.l.b16 %v1311
      %v5169 = vunpack.c.l.b16 %v1312
      %v5170 = vunpack.c.l.b16 %v1313
      %v5171 = vunpack.c.l.b16 %v1314
      %v5172 = vunpack.c.l.b16 %v1315
      %v5173 = vunpack.c.l.b16 %v1316
      %v5174 = vunpack.c.l.b16 %v1317
      %v5175 = vunpack.c.l.b16 %v1318
      %v5176 = vunpack.c.l.b16 %v1319
      %v5177 = vunpack.c.l.b16 %v1320
      %v5178 = vunpack.c.l.b16 %v1321
      %v5179 = vunpack.c.l.b16 %v1322
      %v5180 = vunpack.c.l.b16 %v1323
      %v5181 = vunpack.c.l.b16 %v1324
      %v5182 = vunpack.c.l.b16 %v1325
      %v5183 = vunpack.c.l.b16 %v1326
      %v5184 = vunpack.c.l.b16 %v1327
      %v5185 = vunpack.c.l.b16 %v1328
      %v5186 = vunpack.c.l.b16 %v1329
      %v5187 = vunpack.c.l.b16 %v1330
      %v5188 = vunpack.c.l.b16 %v1331
      %v5189 = vunpack.c.l.b16 %v1332
      %v5190 = vunpack.c.l.b16 %v1333
      %v5191 = vunpack.c.l.b16 %v1334
      %v5192 = vunpack.c.l.b16 %v1335
      %v5193 = vunpack.c.l.b16 %v1336
      %v5194 = vunpack.c.l.b16 %v1337
      %v5195 = vunpack.c.l.b16 %v1338
      %v5196 = vunpack.c.l.b16 %v1339
      %v5197 = vunpack.c.l.b16 %v1340
      %v5198 = vunpack.c.l.b16 %v1341
      %v5199 = vunpack.c.l.b16 %v1342
      %v5200 = vunpack.c.l.b16 %v1343
      %v5201 = vunpack.c.l.b16 %v1344
      %v5202 = vunpack.c.l.b16 %v1345
      %v5203 = vunpack.c.l.b16 %v1346
      %v5204 = vunpack.c.l.b16 %v1347
      %v5205 = vunpack.c.l.b16 %v1348
      %v5206 = vunpack.c.l.b16 %v1349
      %v5207 = vunpack.c.l.b16 %v1350
      %v5208 = vunpack.c.l.b16 %v1351
      %v5209 = vunpack.c.l.b16 %v1352
      %v5210 = vunpack.c.l.b16 %v1353
      %v5211 = vunpack.c.l.b16 %v1354
      %v5212 = vunpack.c.l.b16 %v1355
      %v5213 = vunpack.c.l.b16 %v1356
      %v5214 = vunpack.c.l.b16 %v1357
      %v5215 = vunpack.c.l.b16 %v1358
      %v5216 = vunpack.c.l.b16 %v1359
      %v5217 = vunpack.c.l.b16 %v1360
      %v5218 = vunpack.c.l.b16 %v1361
      %v5219 = vunpack.c.l.b16 %v1362
      %v5220 = vunpack.c.l.b16 %v1363
      %v5221 = vunpack.c.l.b16 %v1364
      %v5222 = vunpack.c.l.b16 %v1365
      %v5223 = vunpack.c.l.b16 %v1366
      %v5224 = vunpack.c.l.b16 %v1367
      %v5225 = vunpack.c.l.b16 %v1368
      %v5226 = vunpack.c.l.b16 %v1369
      %v5227 = vunpack.c.l.b16 %v1370
      %v5228 = vunpack.c.l.b16 %v1371
      %v5229 = vunpack.c.l.b16 %v1372
      %v5230 = vunpack.c.l.b16 %v1373
      %v5231 = vunpack.c.l.b16 %v1374
      %v5232 = vunpack.c.l.b16 %v1375
      %v5233 = vunpack.c.l.b16 %v1376
      %v5234 = vunpack.c.l.b16 %v1377
      %v5235 = vunpack.c.l.b16 %v1378
      %v5236 = vunpack.c.l.b16 %v1379
      %v5237 = vunpack.c.l.b16 %v1380
      %v5238 = vunpack.c.l.b16 %v1381
      %v5239 = vunpack.c.l.b16 %v1382
      %v5240 = vunpack.c.l.b16 %v1383
      %v5241 = vunpack.c.l.b16 %v1384
      %v5242 = vunpack.c.l.b16 %v1385
      %v5243 = vunpack.c.l.b16 %v1386
      %v5244 = vunpack.c.l.b16 %v1387
      %v5245 = vunpack.c.l.b16 %v1388
      %v5246 = vunpack.c.l.b16 %v1389
      %v5247 = vunpack.c.l.b16 %v1390
      %v5248 = vunpack.c.l.b16 %v1391
      %v5249 = vunpack.c.l.b16 %v1392
      %v5250 = vunpack.c.l.b16 %v1393
      %v5251 = vunpack.c.l.b16 %v1394
      %v5252 = vunpack.c.l.b16 %v1395
      %v5253 = vunpack.c.l.b16 %v1396
      %v5254 = vunpack.c.l.b16 %v1397
      %v5255 = vunpack.c.l.b16 %v1398
      %v5256 = vunpack.c.l.b16 %v1399
      %v5257 = vunpack.c.l.b16 %v1400
      %v5258 = vunpack.c.l.b16 %v1401
      %v5259 = vunpack.c.l.b16 %v1402
      %v5260 = vunpack.c.l.b16 %v1403
      %v5261 = vunpack.c.l.b16 %v1404
      %v5262 = vunpack.c.l.b16 %v1405
      %v5263 = vunpack.c.l.b16 %v1406
      %v5264 = vunpack.c.l.b16 %v1407
      %v5265 = vunpack.c.l.b16 %v1408
      %v5266 = vunpack.c.l.b16 %v1409
      %v5267 = vunpack.c.l.b16 %v1410
      %v5268 = vunpack.c.l.b16 %v1411
      %v5269 = vunpack.c.l.b16 %v1412
      %v5270 = vunpack.c.l.b16 %v1413
      %v5271 = vunpack.c.l.b16 %v1414
      %v5272 = vunpack.c.l.b16 %v1415
      %v5273 = vunpack.c.l.b16 %v1416
      %v5274 = vunpack.c.l.b16 %v1417
      %v5275 = vunpack.c.l.b16 %v1418
      %v5276 = vunpack.c.l.b16 %v1419
      %v5277 = vunpack.c.l.b16 %v1420
      %v5278 = vunpack.c.l.b16 %v1421
      %v5279 = vunpack.c.l.b16 %v1422
      %v5280 = vunpack.c.l.b16 %v1423
      %v5281 = vunpack.c.l.b16 %v1424
      %v5282 = vunpack.c.l.b16 %v1425
      %v5283 = vunpack.c.l.b16 %v1426
      %v5284 = vunpack.c.l.b16 %v1427
      %v5285 = vunpack.c.l.b16 %v1428
      %v5286 = vunpack.c.l.b16 %v1429
      %v5287 = vunpack.c.l.b16 %v1430
      %v5288 = vunpack.c.l.b16 %v1431
      %v5289 = vunpack.c.l.b16 %v1432
      %v5290 = vunpack.c.l.b16 %v1433
      %v5291 = vunpack.c.l.b16 %v1434
      %v5292 = vunpack.c.l.b16 %v1435
      %v5293 = vunpack.c.l.b16 %v1436
      %v5294 = vunpack.c.l.b16 %v1437
      %v5295 = vunpack.c.l.b16 %v1438
      %v5296 = vunpack.c.l.b16 %v1439
      %v5297 = vunpack.c.l.b16 %v1440
      %v5298 = vunpack.c.l.b16 %v1441
      %v5299 = vunpack.c.l.b16 %v1442
      %v5300 = vunpack.c.l.b16 %v1443
      %v5301 = vunpack.c.l.b16 %v1444
      %v5302 = vunpack.c.l.b16 %v1445
      %v5303 = vunpack.c.l.b16 %v1446
      %v5304 = vunpack.c.l.b16 %v1447
      %v5305 = vunpack.c.l.b16 %v1448
      %v5306 = vunpack.c.l.b16 %v1449
      %v5307 = vunpack.c.l.b16 %v1450
      %v5308 = vunpack.c.l.b16 %v1451
      %v5309 = vunpack.c.l.b16 %v1452
      %v5310 = vunpack.c.l.b16 %v1453
      %v5311 = vunpack.c.l.b16 %v1454
      %v5312 = vunpack.c.l.b16 %v1455
      %v5313 = vunpack.c.l.b16 %v1456
      %v5314 = vunpack.c.l.b16 %v1457
      %v5315 = vunpack.c.l.b16 %v1458
      %v5316 = vunpack.c.l.b16 %v1459
      %v5317 = vunpack.c.l.b16 %v1460
      %v5318 = vunpack.c.l.b16 %v1461
      %v5319 = vunpack.c.l.b16 %v1462
      %v5320 = vunpack.c.l.b16 %v1463
      %v5321 = vunpack.c.l.b16 %v1464
      %v5322 = vunpack.c.l.b16 %v1465
      %v5323 = vunpack.c.l.b16 %v1466
      %v5324 = vunpack.c.l.b16 %v1467
      %v5325 = vunpack.c.l.b16 %v1468
      %v5326 = vunpack.c.l.b16 %v1469
      %v5327 = vunpack.c.l.b16 %v1470
      %v5328 = vunpack.c.l.b16 %v1471
      %v5329 = vunpack.c.l.b16 %v1472
      %v5330 = vunpack.c.l.b16 %v1473
      %v5331 = vunpack.c.l.b16 %v1474
      %v5332 = vunpack.c.l.b16 %v1475
      %v5333 = vunpack.c.l.b16 %v1476
      %v5334 = vunpack.c.l.b16 %v1477
      %v5335 = vunpack.c.l.b16 %v1478
      %v5336 = vunpack.c.l.b16 %v1479
      %v5337 = vunpack.c.l.b16 %v1480
      %v5338 = vunpack.c.l.b16 %v1481
      %v5339 = vunpack.c.l.b16 %v1482
      %v5340 = vunpack.c.l.b16 %v1483
      %v5341 = vunpack.c.l.b16 %v1484
      %v5342 = vunpack.c.l.b16 %v1485
      %v5343 = vunpack.c.l.b16 %v1486
      %v5344 = vunpack.c.l.b16 %v1487
      %v5345 = vunpack.c.l.b16 %v1488
      %v5346 = vunpack.c.l.b16 %v1489
      %v5347 = vunpack.c.l.b16 %v1490
      %v5348 = vunpack.c.l.b16 %v1491
      %v5349 = vunpack.c.l.b16 %v1492
      %v5350 = vunpack.c.l.b16 %v1493
      %v5351 = vunpack.c.l.b16 %v1494
      %v5352 = vunpack.c.l.b16 %v1495
      %v5353 = vunpack.c.l.b16 %v1496
      %v5354 = vunpack.c.l.b16 %v1497
      %v5355 = vunpack.c.l.b16 %v1498
      %v5356 = vunpack.c.l.b16 %v1499
      %v5357 = vunpack.c.l.b16 %v1500
      %v5358 = vunpack.c.l.b16 %v1501
      %v5359 = vunpack.c.l.b16 %v1502
      %v5360 = vunpack.c.l.b16 %v1503
      %v5361 = vunpack.c.l.b16 %v1504
      %v5362 = vunpack.c.l.b16 %v1505
      %v5363 = vunpack.c.l.b16 %v1506
      %v5364 = vunpack.c.l.b16 %v1507
      %v5365 = vunpack.c.l.b16 %v1508
      %v5366 = vunpack.c.l.b16 %v1509
      %v5367 = vunpack.c.l.b16 %v1510
      %v5368 = vunpack.c.l.b16 %v1511
      %v5369 = vunpack.c.l.b16 %v1512
      %v5370 = vunpack.c.l.b16 %v1513
      %v5371 = vunpack.c.l.b16 %v1514
      %v5372 = vunpack.c.l.b16 %v1515
      %v5373 = vunpack.c.l.b16 %v1516
      %v5374 = vunpack.c.l.b16 %v1517
      %v5375 = vunpack.c.l.b16 %v1518
      %v5376 = vunpack.c.l.b16 %v1519
      %v5377 = vunpack.c.l.b16 %v1520
      %v5378 = vunpack.c.l.b16 %v1521
      %v5379 = vunpack.c.l.b16 %v1522
      %v5380 = vunpack.c.l.b16 %v1523
      %v5381 = vunpack.c.l.b16 %v1524
      %v5382 = vunpack.c.l.b16 %v1525
      %v5383 = vunpack.c.l.b16 %v1526
      %v5384 = vunpack.c.l.b16 %v1527
      %v5385 = vunpack.c.l.b16 %v1528
      %v5386 = vunpack.c.l.b16 %v1529
      %v5387 = vunpack.c.l.b16 %v1530
      %v5388 = vunpack.c.l.b16 %v1531
      %v5389 = vunpack.c.l.b16 %v1532
      %v5390 = vunpack.c.l.b16 %v1533
      %v5391 = vunpack.c.l.b16 %v1534
      %v5392 = vunpack.c.l.b16 %v1535
      %v5393 = vunpack.c.l.b16 %v1536
      %v5394 = vunpack.c.l.b16 %v1537
      %v5395 = vunpack.c.l.b16 %v1538
      %v5396 = vunpack.c.l.b16 %v1539
      %v5397 = vunpack.c.l.b16 %v1540
      %v5398 = vunpack.c.l.b16 %v1541
      %v5399 = vunpack.c.l.b16 %v1542
      %v5400 = vunpack.c.l.b16 %v1543
      %v5401 = vunpack.c.l.b16 %v1544
      %v5402 = vunpack.c.l.b16 %v1545
      %v5403 = vunpack.c.l.b16 %v1546
      %v5404 = vunpack.c.l.b16 %v1547
      %v5405 = vunpack.c.l.b16 %v1548
      %v5406 = vunpack.c.l.b16 %v1549
      %v5407 = vunpack.c.l.b16 %v1550
      %v5408 = vunpack.c.l.b16 %v1551
      %v5409 = vunpack.c.l.b16 %v1552
      %v5410 = vunpack.c.l.b16 %v1553
      %v5411 = vunpack.c.l.b16 %v1554
      %v5412 = vunpack.c.l.b16 %v1555
      %v5413 = vunpack.c.l.b16 %v1556
      %v5414 = vunpack.c.l.b16 %v1557
      %v5415 = vunpack.c.l.b16 %v1558
      %v5416 = vunpack.c.l.b16 %v1559
      %v5417 = vunpack.c.l.b16 %v1560
      %v5418 = vunpack.c.l.b16 %v1561
      %v5419 = vunpack.c.l.b16 %v1562
      %v5420 = vunpack.c.l.b16 %v1563
      %v5421 = vunpack.c.l.b16 %v1564
      %v5422 = vunpack.c.l.b16 %v1565
      %v5423 = vunpack.c.l.b16 %v1566
      %v5424 = vunpack.c.l.b16 %v1567
      %v5425 = vunpack.c.l.b16 %v1568
      %v5426 = vunpack.c.l.b16 %v1569
      %v5427 = vunpack.c.l.b16 %v1570
      %v5428 = vunpack.c.l.b16 %v1571
      %v5429 = vunpack.c.l.b16 %v1572
      %v5430 = vunpack.c.l.b16 %v1573
      %v5431 = vunpack.c.l.b16 %v1574
      %v5432 = vunpack.c.l.b16 %v1575
      %v5433 = vunpack.c.l.b16 %v1576
      %v5434 = vunpack.c.l.b16 %v1577
      %v5435 = vunpack.c.l.b16 %v1578
      %v5436 = vunpack.c.l.b16 %v1579
      %v5437 = vunpack.c.l.b16 %v1580
      %v5438 = vunpack.c.l.b16 %v1581
      %v5439 = vunpack.c.l.b16 %v1582
      %v5440 = vunpack.c.l.b16 %v1583
      %v5441 = vunpack.c.l.b16 %v1584
      %v5442 = vunpack.c.l.b16 %v1585
      %v5443 = vunpack.c.l.b16 %v1586
      %v5444 = vunpack.c.l.b16 %v1587
      %v5445 = vunpack.c.l.b16 %v1588
      %v5446 = vunpack.c.l.b16 %v1589
      %v5447 = vunpack.c.l.b16 %v1590
      %v5448 = vunpack.c.l.b16 %v1591
      %v5449 = vunpack.c.l.b16 %v1592
      %v5450 = vunpack.c.l.b16 %v1593
      %v5451 = vunpack.c.l.b16 %v1594
      %v5452 = vunpack.c.l.b16 %v1595
      %v5453 = vunpack.c.l.b16 %v1596
      %v5454 = vunpack.c.l.b16 %v1597
      %v5455 = vunpack.c.l.b16 %v1598
      %v5456 = vunpack.c.l.b16 %v1599
      %v5457 = vunpack.c.l.b16 %v1600
      %v5458 = vunpack.c.l.b16 %v1601
      %v5459 = vunpack.c.l.b16 %v1602
      %v5460 = vunpack.c.l.b16 %v1603
      %v5461 = vunpack.c.l.b16 %v1604
      %v5462 = vunpack.c.l.b16 %v1605
      %v5463 = vunpack.c.l.b16 %v1606
      %v5464 = vunpack.c.l.b16 %v1607
      %v5465 = vunpack.c.l.b16 %v1608
      %v5466 = vunpack.c.l.b16 %v1609
      %v5467 = vunpack.c.l.b16 %v1610
      %v5468 = vunpack.c.l.b16 %v1611
      %v5469 = vunpack.c.l.b16 %v1612
      %v5470 = vunpack.c.l.b16 %v1613
      %v5471 = vunpack.c.l.b16 %v1614
      %v5472 = vunpack.c.l.b16 %v1615
      %v5473 = vunpack.c.l.b16 %v1616
      %v5474 = vunpack.c.l.b16 %v1617
      %v5475 = vunpack.c.l.b16 %v1618
      %v5476 = vunpack.c.l.b16 %v1619
      %v5477 = vunpack.c.l.b16 %v1620
      %v5478 = vunpack.c.l.b16 %v1621
      %v5479 = vunpack.c.l.b16 %v1622
      %v5480 = vunpack.c.l.b16 %v1623
      %v5481 = vunpack.c.l.b16 %v1624
      %v5482 = vunpack.c.l.b16 %v1625
      %v5483 = vunpack.c.l.b16 %v1626
      %v5484 = vunpack.c.l.b16 %v1627
      %v5485 = vunpack.c.l.b16 %v1628
      %v5486 = vunpack.c.l.b16 %v1629
      %v5487 = vunpack.c.l.b16 %v1630
      %v5488 = vunpack.c.l.b16 %v1631
      %v5489 = vunpack.c.l.b16 %v1632
      %v5490 = vunpack.c.l.b16 %v1633
      %v5491 = vunpack.c.l.b16 %v1634
      %v5492 = vunpack.c.l.b16 %v1635
      %v5493 = vunpack.c.l.b16 %v1636
      %v5494 = vunpack.c.l.b16 %v1637
      %v5495 = vunpack.c.l.b16 %v1638
      %v5496 = vunpack.c.l.b16 %v1639
      %v5497 = vunpack.c.l.b16 %v1640
      %v5498 = vunpack.c.l.b16 %v1641
      %v5499 = vunpack.c.l.b16 %v1642
      %v5500 = vunpack.c.l.b16 %v1643
      %v5501 = vunpack.c.l.b16 %v1644
      %v5502 = vunpack.c.l.b16 %v1645
      %v5503 = vunpack.c.l.b16 %v1646
      %v5504 = vunpack.c.l.b16 %v1647
      %v5505 = vunpack.c.l.b16 %v1648
      %v5506 = vunpack.c.l.b16 %v1649
      %v5507 = vunpack.c.l.b16 %v1650
      %v5508 = vunpack.c.l.b16 %v1651
      %v5509 = vunpack.c.l.b16 %v1652
      %v5510 = vunpack.c.l.b16 %v1653
      %v5511 = vunpack.c.l.b16 %v1654
      %v5512 = vunpack.c.l.b16 %v1655
      %v5513 = vunpack.c.l.b16 %v1656
      %v5514 = vunpack.c.l.b16 %v1657
      %v5515 = vunpack.c.l.b16 %v1658
      %v5516 = vunpack.c.l.b16 %v1659
      %v5517 = vunpack.c.l.b16 %v1660
      %v5518 = vunpack.c.l.b16 %v1661
      %v5519 = vunpack.c.l.b16 %v1662
      %v5520 = vunpack.c.l.b16 %v1663
      %v5521 = vunpack.c.l.b16 %v1664
      %v5522 = vunpack.c.l.b16 %v1665
      %v5523 = vunpack.c.l.b16 %v1666
      %v5524 = vunpack.c.l.b16 %v1667
      %v5525 = vunpack.c.l.b16 %v1668
      %v5526 = vunpack.c.l.b16 %v1669
      %v5527 = vunpack.c.l.b16 %v1670
      %v5528 = vunpack.c.l.b16 %v1671
      %v5529 = vunpack.c.l.b16 %v1672
      %v5530 = vunpack.c.l.b16 %v1673
      %v5531 = vunpack.c.l.b16 %v1674
      %v5532 = vunpack.c.l.b16 %v1675
      %v5533 = vunpack.c.l.b16 %v1676
      %v5534 = vunpack.c.l.b16 %v1677
      %v5535 = vunpack.c.l.b16 %v1678
      %v5536 = vunpack.c.l.b16 %v1679
      %v5537 = vunpack.c.l.b16 %v1680
      %v5538 = vunpack.c.l.b16 %v1681
      %v5539 = vunpack.c.l.b16 %v1682
      %v5540 = vunpack.c.l.b16 %v1683
      %v5541 = vunpack.c.l.b16 %v1684
      %v5542 = vunpack.c.l.b16 %v1685
      %v5543 = vunpack.c.l.b16 %v1686
      %v5544 = vunpack.c.l.b16 %v1687
      %v5545 = vunpack.c.l.b16 %v1688
      %v5546 = vunpack.c.l.b16 %v1689
      %v5547 = vunpack.c.l.b16 %v1690
      %v5548 = vunpack.c.l.b16 %v1691
      %v5549 = vunpack.c.l.b16 %v1692
      %v5550 = vunpack.c.l.b16 %v1693
      %v5551 = vunpack.c.l.b16 %v1694
      %v5552 = vunpack.c.l.b16 %v1695
      %v5553 = vunpack.c.l.b16 %v1696
      %v5554 = vunpack.c.l.b16 %v1697
      %v5555 = vunpack.c.l.b16 %v1698
      %v5556 = vunpack.c.l.b16 %v1699
      %v5557 = vunpack.c.l.b16 %v1700
      %v5558 = vunpack.c.l.b16 %v1701
      %v5559 = vunpack.c.l.b16 %v1702
      %v5560 = vunpack.c.l.b16 %v1703
      %v5561 = vunpack.c.l.b16 %v1704
      %v5562 = vunpack.c.l.b16 %v1705
      %v5563 = vunpack.c.l.b16 %v1706
      %v5564 = vunpack.c.l.b16 %v1707
      %v5565 = vunpack.c.l.b16 %v1708
      %v5566 = vunpack.c.l.b16 %v1709
      %v5567 = vunpack.c.l.b16 %v1710
      %v5568 = vunpack.c.l.b16 %v1711
      %v5569 = vunpack.c.l.b16 %v1712
      %v5570 = vunpack.c.l.b16 %v1713
      %v5571 = vunpack.c.l.b16 %v1714
      %v5572 = vunpack.c.l.b16 %v1715
      %v5573 = vunpack.c.l.b16 %v1716
      %v5574 = vunpack.c.l.b16 %v1717
      %v5575 = vunpack.c.l.b16 %v1718
      %v5576 = vunpack.c.l.b16 %v1719
      %v5577 = vunpack.c.l.b16 %v1720
      %v5578 = vunpack.c.l.b16 %v1721
      %v5579 = vunpack.c.l.b16 %v1722
      %v5580 = vunpack.c.l.b16 %v1723
      %v5581 = vunpack.c.l.b16 %v1724
      %v5582 = vunpack.c.l.b16 %v1725
      %v5583 = vunpack.c.l.b16 %v1726
      %v5584 = vunpack.c.l.b16 %v1727
      %v5585 = vunpack.c.l.b16 %v1728
      %v5586 = vunpack.c.l.b16 %v1729
      %v5587 = vunpack.c.l.b16 %v1730
      %v5588 = vunpack.c.l.b16 %v1731
      %v5589 = vunpack.c.l.b16 %v1732
      %v5590 = vunpack.c.l.b16 %v1733
      %v5591 = vunpack.c.l.b16 %v1734
      %v5592 = vunpack.c.l.b16 %v1735
      %v5593 = vunpack.c.l.b16 %v1736
      %v5594 = vunpack.c.l.b16 %v1737
      %v5595 = vunpack.c.l.b16 %v1738
      %v5596 = vunpack.c.l.b16 %v1739
      %v5597 = vunpack.c.l.b16 %v1740
      %v5598 = vunpack.c.l.b16 %v1741
      %v5599 = vunpack.c.l.b16 %v1742
      %v5600 = vunpack.c.l.b16 %v1743
      %v5601 = vunpack.c.l.b16 %v1744
      %v5602 = vunpack.c.l.b16 %v1745
      %v5603 = vunpack.c.l.b16 %v1746
      %v5604 = vunpack.c.l.b16 %v1747
      %v5605 = vunpack.c.l.b16 %v1748
      %v5606 = vunpack.c.l.b16 %v1749
      %v5607 = vunpack.c.l.b16 %v1750
      %v5608 = vunpack.c.l.b16 %v1751
      %v5609 = vunpack.c.l.b16 %v1752
      %v5610 = vunpack.c.l.b16 %v1753
      %v5611 = vunpack.c.l.b16 %v1754
      %v5612 = vunpack.c.l.b16 %v1755
      %v5613 = vunpack.c.l.b16 %v1756
      %v5614 = vunpack.c.l.b16 %v1757
      %v5615 = vunpack.c.l.b16 %v1758
      %v5616 = vunpack.c.l.b16 %v1759
      %v5617 = vunpack.c.l.b16 %v1760
      %v5618 = vunpack.c.l.b16 %v1761
      %v5619 = vunpack.c.l.b16 %v1762
      %v5620 = vunpack.c.l.b16 %v1763
      %v5621 = vunpack.c.l.b16 %v1764
      %v5622 = vunpack.c.l.b16 %v1765
      %v5623 = vunpack.c.l.b16 %v1766
      %v5624 = vunpack.c.l.b16 %v1767
      %v5625 = vunpack.c.l.b16 %v1768
      %v5626 = vunpack.c.l.b16 %v1769
      %v5627 = vunpack.c.l.b16 %v1770
      %v5628 = vunpack.c.l.b16 %v1771
      %v5629 = vunpack.c.l.b16 %v1772
      %v5630 = vunpack.c.l.b16 %v1773
      %v5631 = vunpack.c.l.b16 %v1774
      %v5632 = vunpack.c.l.b16 %v1775
      %v5633 = vunpack.c.l.b16 %v1776
      %v5634 = vunpack.c.l.b16 %v1777
      %v5635 = vunpack.c.l.b16 %v1778
      %v5636 = vunpack.c.l.b16 %v1779
      %v5637 = vunpack.c.l.b16 %v1780
      %v5638 = vunpack.c.l.b16 %v1781
      %v5639 = vunpack.c.l.b16 %v1782
      %v5640 = vunpack.c.l.b16 %v1783
      %v5641 = vunpack.c.l.b16 %v1784
      %v5642 = vunpack.c.l.b16 %v1785
      %v5643 = vunpack.c.l.b16 %v1786
      %v5644 = vunpack.c.l.b16 %v1787
      %v5645 = vunpack.c.l.b16 %v1788
      %v5646 = vunpack.c.l.b16 %v1789
      %v5647 = vunpack.c.l.b16 %v1790
      %v5648 = vpack.c.b16 %v4081, %v4080
      %v5649 = vpack.c.b16 %v4083, %v4082
      %v5650 = vpack.c.b16 %v4085, %v4084
      %v5651 = vpack.c.b16 %v4087, %v4086
      %v5652 = vpack.c.b16 %v4089, %v4088
      %v5653 = vpack.c.b16 %v4091, %v4090
      %v5654 = vpack.c.b16 %v4093, %v4092
      %v5655 = vpack.c.b16 %v4095, %v4094
      %v5656 = vpack.c.b16 %v4097, %v4096
      %v5657 = vpack.c.b16 %v4099, %v4098
      %v5658 = vpack.c.b16 %v4101, %v4100
      %v5659 = vpack.c.b16 %v4103, %v4102
      %v5660 = vpack.c.b16 %v4105, %v4104
      %v5661 = vpack.c.b16 %v4107, %v4106
      %v5662 = vpack.c.b16 %v4109, %v4108
      %v5663 = vpack.c.b16 %v4111, %v4110
      %v5664 = vpack.c.b16 %v4113, %v4112
      %v5665 = vpack.c.b16 %v4115, %v4114
      %v5666 = vpack.c.b16 %v4117, %v4116
      %v5667 = vpack.c.b16 %v4119, %v4118
      %v5668 = vpack.c.b16 %v4121, %v4120
      %v5669 = vpack.c.b16 %v4123, %v4122
      %v5670 = vpack.c.b16 %v4125, %v4124
      %v5671 = vpack.c.b16 %v4127, %v4126
      %v5672 = vpack.c.b16 %v4129, %v4128
      %v5673 = vpack.c.b16 %v4131, %v4130
      %v5674 = vpack.c.b16 %v4133, %v4132
      %v5675 = vpack.c.b16 %v4135, %v4134
      %v5676 = vpack.c.b16 %v4137, %v4136
      %v5677 = vpack.c.b16 %v4139, %v4138
      %v5678 = vpack.c.b16 %v4141, %v4140
      %v5679 = vpack.c.b16 %v4143, %v4142
      %v5680 = vpack.c.b16 %v4145, %v4144
      %v5681 = vpack.c.b16 %v4147, %v4146
      %v5682 = vpack.c.b16 %v4149, %v4148
      %v5683 = vpack.c.b16 %v4151, %v4150
      %v5684 = vpack.c.b16 %v4153, %v4152
      %v5685 = vpack.c.b16 %v4155, %v4154
      %v5686 = vpack.c.b16 %v4157, %v4156
      %v5687 = vpack.c.b16 %v4159, %v4158
      %v5688 = vpack.c.b16 %v4161, %v4160
      %v5689 = vpack.c.b16 %v4163, %v4162
      %v5690 = vpack.c.b16 %v4165, %v4164
      %v5691 = vpack.c.b16 %v4167, %v4166
      %v5692 = vpack.c.b16 %v4169, %v4168
      %v5693 = vpack.c.b16 %v4171, %v4170
      %v5694 = vpack.c.b16 %v4173, %v4172
      %v5695 = vpack.c.b16 %v4175, %v4174
      %v5696 = vpack.c.b16 %v4177, %v4176
      %v5697 = vpack.c.b16 %v4179, %v4178
      %v5698 = vpack.c.b16 %v4181, %v4180
      %v5699 = vpack.c.b16 %v4183, %v4182
      %v5700 = vpack.c.b16 %v4185, %v4184
      %v5701 = vpack.c.b16 %v4187, %v4186
      %v5702 = vpack.c.b16 %v4189, %v4188
      %v5703 = vpack.c.b16 %v4191, %v4190
      %v5704 = vpack.c.b16 %v4193, %v4192
      %v5705 = vpack.c.b16 %v4195, %v4194
      %v5706 = vpack.c.b16 %v4197, %v4196
      %v5707 = vpack.c.b16 %v4199, %v4198
      %v5708 = vpack.c.b16 %v4201, %v4200
      %v5709 = vpack.c.b16 %v4203, %v4202
      %v5710 = vpack.c.b16 %v4205, %v4204
      %v5711 = vpack.c.b16 %v4207, %v4206
      %v5712 = vpack.c.b16 %v4209, %v4208
      %v5713 = vpack.c.b16 %v4211, %v4210
      %v5714 = vpack.c.b16 %v4213, %v4212
      %v5715 = vpack.c.b16 %v4215, %v4214
      %v5716 = vpack.c.b16 %v4217, %v4216
      %v5717 = vpack.c.b16 %v4219, %v4218
      %v5718 = vpack.c.b16 %v4221, %v4220
      %v5719 = vpack.c.b16 %v4223, %v4222
      %v5720 = vpack.c.b16 %v4225, %v4224
      %v5721 = vpack.c.b16 %v4227, %v4226
      %v5722 = vpack.c.b16 %v4229, %v4228
      %v5723 = vpack.c.b16 %v4231, %v4230
      %v5724 = vpack.c.b16 %v4233, %v4232
      %v5725 = vpack.c.b16 %v4235, %v4234
      %v5726 = vpack.c.b16 %v4237, %v4236
      %v5727 = vpack.c.b16 %v4239, %v4238
      %v5728 = vpack.c.b16 %v4241, %v4240
      %v5729 = vpack.c.b16 %v4243, %v4242
      %v5730 = vpack.c.b16 %v4245, %v4244
      %v5731 = vpack.c.b16 %v4247, %v4246
      %v5732 = vpack.c.b16 %v4249, %v4248
      %v5733 = vpack.c.b16 %v4251, %v4250
      %v5734 = vpack.c.b16 %v4253, %v4252
      %v5735 = vpack.c.b16 %v4255, %v4254
      %v5736 = vpack.c.b16 %v4257, %v4256
      %v5737 = vpack.c.b16 %v4259, %v4258
      %v5738 = vpack.c.b16 %v4261, %v4260
      %v5739 = vpack.c.b16 %v4263, %v4262
      %v5740 = vpack.c.b16 %v4265, %v4264
      %v5741 = vpack.c.b16 %v4267, %v4266
      %v5742 = vpack.c.b16 %v4269, %v4268
      %v5743 = vpack.c.b16 %v4271, %v4270
      %v5744 = vpack.c.b16 %v4273, %v4272
      %v5745 = vpack.c.b16 %v4275, %v4274
      %v5746 = vpack.c.b16 %v4277, %v4276
      %v5747 = vpack.c.b16 %v4279, %v4278
      %v5748 = vpack.c.b16 %v4281, %v4280
      %v5749 = vpack.c.b16 %v4283, %v4282
      %v5750 = vpack.c.b16 %v4285, %v4284
      %v5751 = vpack.c.b16 %v4287, %v4286
      %v5752 = vpack.c.b16 %v4289, %v4288
      %v5753 = vpack.c.b16 %v4291, %v4290
      %v5754 = vpack.c.b16 %v4293, %v4292
      %v5755 = vpack.c.b16 %v4295, %v4294
      %v5756 = vpack.c.b16 %v4297, %v4296
      %v5757 = vpack.c.b16 %v4299, %v4298
      %v5758 = vpack.c.b16 %v4301, %v4300
      %v5759 = vpack.c.b16 %v4303, %v4302
      %v5760 = vpack.c.b16 %v4305, %v4304
      %v5761 = vpack.c.b16 %v4307, %v4306
      %v5762 = vpack.c.b16 %v4309, %v4308
      %v5763 = vpack.c.b16 %v4311, %v4310
      %v5764 = vpack.c.b16 %v4313, %v4312
      %v5765 = vpack.c.b16 %v4315, %v4314
      %v5766 = vpack.c.b16 %v4317, %v4316
      %v5767 = vpack.c.b16 %v4319, %v4318
      %v5768 = vpack.c.b16 %v4321, %v4320
      %v5769 = vpack.c.b16 %v4323, %v4322
      %v5770 = vpack.c.b16 %v4325, %v4324
      %v5771 = vpack.c.b16 %v4327, %v4326
      %v5772 = vpack.c.b16 %v4329, %v4328
      %v5773 = vpack.c.b16 %v4331, %v4330
      %v5774 = vpack.c.b16 %v4333, %v4332
      %v5775 = vpack.c.b16 %v4335, %v4334
      %v5776 = vpack.c.b16 %v4337, %v4336
      %v5777 = vpack.c.b16 %v4339, %v4338
      %v5778 = vpack.c.b16 %v4341, %v4340
      %v5779 = vpack.c.b16 %v4343, %v4342
      %v5780 = vpack.c.b16 %v4345, %v4344
      %v5781 = vpack.c.b16 %v4347, %v4346
      %v5782 = vpack.c.b16 %v4349, %v4348
      %v5783 = vpack.c.b16 %v4351, %v4350
      %v5784 = vpack.c.b16 %v4353, %v4352
      %v5785 = vpack.c.b16 %v4355, %v4354
      %v5786 = vpack.c.b16 %v4357, %v4356
      %v5787 = vpack.c.b16 %v4359, %v4358
      %v5788 = vpack.c.b16 %v4361, %v4360
      %v5789 = vpack.c.b16 %v4363, %v4362
      %v5790 = vpack.c.b16 %v4365, %v4364
      %v5791 = vpack.c.b16 %v4367, %v4366
      %v5792 = vpack.c.b16 %v4369, %v4368
      %v5793 = vpack.c.b16 %v4371, %v4370
      %v5794 = vpack.c.b16 %v4373, %v4372
      %v5795 = vpack.c.b16 %v4375, %v4374
      %v5796 = vpack.c.b16 %v4377, %v4376
      %v5797 = vpack.c.b16 %v4379, %v4378
      %v5798 = vpack.c.b16 %v4381, %v4380
      %v5799 = vpack.c.b16 %v4383, %v4382
      %v5800 = vpack.c.b16 %v4385, %v4384
      %v5801 = vpack.c.b16 %v4387, %v4386
      %v5802 = vpack.c.b16 %v4389, %v4388
      %v5803 = vpack.c.b16 %v4391, %v4390
      %v5804 = vpack.c.b16 %v4393, %v4392
      %v5805 = vpack.c.b16 %v4395, %v4394
      %v5806 = vpack.c.b16 %v4397, %v4396
      %v5807 = vpack.c.b16 %v4399, %v4398
      %v5808 = vpack.c.b16 %v4401, %v4400
      %v5809 = vpack.c.b16 %v4403, %v4402
      %v5810 = vpack.c.b16 %v4405, %v4404
      %v5811 = vpack.c.b16 %v4407, %v4406
      %v5812 = vpack.c.b16 %v4409, %v4408
      %v5813 = vpack.c.b16 %v4411, %v4410
      %v5814 = vpack.c.b16 %v4413, %v4412
      %v5815 = vpack.c.b16 %v4415, %v4414
      %v5816 = vpack.c.b16 %v4417, %v4416
      %v5817 = vpack.c.b16 %v4419, %v4418
      %v5818 = vpack.c.b16 %v4421, %v4420
      %v5819 = vpack.c.b16 %v4423, %v4422
      %v5820 = vpack.c.b16 %v4425, %v4424
      %v5821 = vpack.c.b16 %v4427, %v4426
      %v5822 = vpack.c.b16 %v4429, %v4428
      %v5823 = vpack.c.b16 %v4431, %v4430
      %v5824 = vpack.c.b16 %v4433, %v4432
      %v5825 = vpack.c.b16 %v4435, %v4434
      %v5826 = vpack.c.b16 %v4437, %v4436
      %v5827 = vpack.c.b16 %v4439, %v4438
      %v5828 = vpack.c.b16 %v4441, %v4440
      %v5829 = vpack.c.b16 %v4443, %v4442
      %v5830 = vpack.c.b16 %v4445, %v4444
      %v5831 = vpack.c.b16 %v4447, %v4446
      %v5832 = vpack.c.b16 %v4449, %v4448
      %v5833 = vpack.c.b16 %v4451, %v4450
      %v5834 = vpack.c.b16 %v4453, %v4452
      %v5835 = vpack.c.b16 %v4455, %v4454
      %v5836 = vpack.c.b16 %v4457, %v4456
      %v5837 = vpack.c.b16 %v4459, %v4458
      %v5838 = vpack.c.b16 %v4461, %v4460
      %v5839 = vpack.c.b16 %v4463, %v4462
      %v5840 = vpack.c.b16 %v4465, %v4464
      %v5841 = vpack.c.b16 %v4467, %v4466
      %v5842 = vpack.c.b16 %v4469, %v4468
      %v5843 = vpack.c.b16 %v4471, %v4470
      %v5844 = vpack.c.b16 %v4473, %v4472
      %v5845 = vpack.c.b16 %v4475, %v4474
      %v5846 = vpack.c.b16 %v4477, %v4476
      %v5847 = vpack.c.b16 %v4479, %v4478
      %v5848 = vpack.c.b16 %v4481, %v4480
      %v5849 = vpack.c.b16 %v4483, %v4482
      %v5850 = vpack.c.b16 %v4485, %v4484
      %v5851 = vpack.c.b16 %v4487, %v4486
      %v5852 = vpack.c.b16 %v4489, %v4488
      %v5853 = vpack.c.b16 %v4491, %v4490
      %v5854 = vpack.c.b16 %v4493, %v4492
      %v5855 = vpack.c.b16 %v4495, %v4494
      %v5856 = vpack.c.b16 %v4497, %v4496
      %v5857 = vpack.c.b16 %v4499, %v4498
      %v5858 = vpack.c.b16 %v4501, %v4500
      %v5859 = vpack.c.b16 %v4503, %v4502
      %v5860 = vpack.c.b16 %v4505, %v4504
      %v5861 = vpack.c.b16 %v4507, %v4506
      %v5862 = vpack.c.b16 %v4509, %v4508
      %v5863 = vpack.c.b16 %v4511, %v4510
      %v5864 = vpack.c.b16 %v4513, %v4512
      %v5865 = vpack.c.b16 %v4515, %v4514
      %v5866 = vpack.c.b16 %v4517, %v4516
      %v5867 = vpack.c.b16 %v4519, %v4518
      %v5868 = vpack.c.b16 %v4521, %v4520
      %v5869 = vpack.c.b16 %v4523, %v4522
      %v5870 = vpack.c.b16 %v4525, %v4524
      %v5871 = vpack.c.b16 %v4527, %v4526
      %v5872 = vpack.c.b16 %v4529, %v4528
      %v5873 = vpack.c.b16 %v4531, %v4530
      %v5874 = vpack.c.b16 %v4533, %v4532
      %v5875 = vpack.c.b16 %v4535, %v4534
      %v5876 = vpack.c.b16 %v4537, %v4536
      %v5877 = vpack.c.b16 %v4539, %v4538
      %v5878 = vpack.c.b16 %v4541, %v4540
      %v5879 = vpack.c.b16 %v4543, %v4542
      %v5880 = vpack.c.b16 %v4545, %v4544
      %v5881 = vpack.c.b16 %v4547, %v4546
      %v5882 = vpack.c.b16 %v4549, %v4548
      %v5883 = vpack.c.b16 %v4551, %v4550
      %v5884 = vpack.c.b16 %v4553, %v4552
      %v5885 = vpack.c.b16 %v4555, %v4554
      %v5886 = vpack.c.b16 %v4557, %v4556
      %v5887 = vpack.c.b16 %v4559, %v4558
      %v5888 = vpack.c.b16 %v4561, %v4560
      %v5889 = vpack.c.b16 %v4563, %v4562
      %v5890 = vpack.c.b16 %v4565, %v4564
      %v5891 = vpack.c.b16 %v4567, %v4566
      %v5892 = vpack.c.b16 %v4569, %v4568
      %v5893 = vpack.c.b16 %v4571, %v4570
      %v5894 = vpack.c.b16 %v4573, %v4572
      %v5895 = vpack.c.b16 %v4575, %v4574
      %v5896 = vpack.c.b16 %v4577, %v4576
      %v5897 = vpack.c.b16 %v4579, %v4578
      %v5898 = vpack.c.b16 %v4581, %v4580
      %v5899 = vpack.c.b16 %v4583, %v4582
      %v5900 = vpack.c.b16 %v4585, %v4584
      %v5901 = vpack.c.b16 %v4587, %v4586
      %v5902 = vpack.c.b16 %v4589, %v4588
      %v5903 = vpack.c.b16 %v4591, %v4590
      %v5904 = vpack.c.b16 %v4593, %v4592
      %v5905 = vpack.c.b16 %v4595, %v4594
      %v5906 = vpack.c.b16 %v4597, %v4596
      %v5907 = vpack.c.b16 %v4599, %v4598
      %v5908 = vpack.c.b16 %v4601, %v4600
      %v5909 = vpack.c.b16 %v4603, %v4602
      %v5910 = vpack.c.b16 %v4605, %v4604
      %v5911 = vpack.c.b16 %v4607, %v4606
      %v5912 = vpack.c.b16 %v4609, %v4608
      %v5913 = vpack.c.b16 %v4611, %v4610
      %v5914 = vpack.c.b16 %v4613, %v4612
      %v5915 = vpack.c.b16 %v4615, %v4614
      %v5916 = vpack.c.b16 %v4617, %v4616
      %v5917 = vpack.c.b16 %v4619, %v4618
      %v5918 = vpack.c.b16 %v4621, %v4620
      %v5919 = vpack.c.b16 %v4623, %v4622
      %v5920 = vpack.c.b16 %v4625, %v4624
      %v5921 = vpack.c.b16 %v4627, %v4626
      %v5922 = vpack.c.b16 %v4629, %v4628
      %v5923 = vpack.c.b16 %v4631, %v4630
      %v5924 = vpack.c.b16 %v4633, %v4632
      %v5925 = vpack.c.b16 %v4635, %v4634
      %v5926 = vpack.c.b16 %v4637, %v4636
      %v5927 = vpack.c.b16 %v4639, %v4638
      %v5928 = vpack.c.b16 %v4641, %v4640
      %v5929 = vpack.c.b16 %v4643, %v4642
      %v5930 = vpack.c.b16 %v4645, %v4644
      %v5931 = vpack.c.b16 %v4647, %v4646
      %v5932 = vpack.c.b16 %v4649, %v4648
      %v5933 = vpack.c.b16 %v4651, %v4650
      %v5934 = vpack.c.b16 %v4653, %v4652
      %v5935 = vpack.c.b16 %v4655, %v4654
      %v5936 = vpack.c.b16 %v4657, %v4656
      %v5937 = vpack.c.b16 %v4659, %v4658
      %v5938 = vpack.c.b16 %v4661, %v4660
      %v5939 = vpack.c.b16 %v4663, %v4662
      %v5940 = vpack.c.b16 %v4665, %v4664
      %v5941 = vpack.c.b16 %v4667, %v4666
      %v5942 = vpack.c.b16 %v4669, %v4668
      %v5943 = vpack.c.b16 %v4671, %v4670
      %v5944 = vpack.c.b16 %v4673, %v4672
      %v5945 = vpack.c.b16 %v4675, %v4674
      %v5946 = vpack.c.b16 %v4677, %v4676
      %v5947 = vpack.c.b16 %v4679, %v4678
      %v5948 = vpack.c.b16 %v4681, %v4680
      %v5949 = vpack.c.b16 %v4683, %v4682
      %v5950 = vpack.c.b16 %v4685, %v4684
      %v5951 = vpack.c.b16 %v4687, %v4686
      %v5952 = vpack.c.b16 %v4689, %v4688
      %v5953 = vpack.c.b16 %v4691, %v4690
      %v5954 = vpack.c.b16 %v4693, %v4692
      %v5955 = vpack.c.b16 %v4695, %v4694
      %v5956 = vpack.c.b16 %v4697, %v4696
      %v5957 = vpack.c.b16 %v4699, %v4698
      %v5958 = vpack.c.b16 %v4701, %v4700
      %v5959 = vpack.c.b16 %v4703, %v4702
      %v5960 = vpack.c.b16 %v4705, %v4704
      %v5961 = vpack.c.b16 %v4707, %v4706
      %v5962 = vpack.c.b16 %v4709, %v4708
      %v5963 = vpack.c.b16 %v4711, %v4710
      %v5964 = vpack.c.b16 %v4713, %v4712
      %v5965 = vpack.c.b16 %v4715, %v4714
      %v5966 = vpack.c.b16 %v4717, %v4716
      %v5967 = vpack.c.b16 %v4719, %v4718
      %v5968 = vpack.c.b16 %v4721, %v4720
      %v5969 = vpack.c.b16 %v4723, %v4722
      %v5970 = vpack.c.b16 %v4725, %v4724
      %v5971 = vpack.c.b16 %v4727, %v4726
      %v5972 = vpack.c.b16 %v4729, %v4728
      %v5973 = vpack.c.b16 %v4731, %v4730
      %v5974 = vpack.c.b16 %v4733, %v4732
      %v5975 = vpack.c.b16 %v4735, %v4734
      %v5976 = vpack.c.b16 %v4737, %v4736
      %v5977 = vpack.c.b16 %v4739, %v4738
      %v5978 = vpack.c.b16 %v4741, %v4740
      %v5979 = vpack.c.b16 %v4743, %v4742
      %v5980 = vpack.c.b16 %v4745, %v4744
      %v5981 = vpack.c.b16 %v4747, %v4746
      %v5982 = vpack.c.b16 %v4749, %v4748
      %v5983 = vpack.c.b16 %v4751, %v4750
      %v5984 = vpack.c.b16 %v4753, %v4752
      %v5985 = vpack.c.b16 %v4755, %v4754
      %v5986 = vpack.c.b16 %v4757, %v4756
      %v5987 = vpack.c.b16 %v4759, %v4758
      %v5988 = vpack.c.b16 %v4761, %v4760
      %v5989 = vpack.c.b16 %v4763, %v4762
      %v5990 = vpack.c.b16 %v4765, %v4764
      %v5991 = vpack.c.b16 %v4767, %v4766
      %v5992 = vpack.c.b16 %v4769, %v4768
      %v5993 = vpack.c.b16 %v4771, %v4770
      %v5994 = vpack.c.b16 %v4773, %v4772
      %v5995 = vpack.c.b16 %v4775, %v4774
      %v5996 = vpack.c.b16 %v4777, %v4776
      %v5997 = vpack.c.b16 %v4779, %v4778
      %v5998 = vpack.c.b16 %v4781, %v4780
      %v5999 = vpack.c.b16 %v4783, %v4782
      %v6000 = vpack.c.b16 %v4785, %v4784
      %v6001 = vpack.c.b16 %v4787, %v4786
      %v6002 = vpack.c.b16 %v4789, %v4788
      %v6003 = vpack.c.b16 %v4791, %v4790
      %v6004 = vpack.c.b16 %v4793, %v4792
      %v6005 = vpack.c.b16 %v4795, %v4794
      %v6006 = vpack.c.b16 %v4797, %v4796
      %v6007 = vpack.c.b16 %v4799, %v4798
      %v6008 = vpack.c.b16 %v4801, %v4800
      %v6009 = vpack.c.b16 %v4803, %v4802
      %v6010 = vpack.c.b16 %v4805, %v4804
      %v6011 = vpack.c.b16 %v4807, %v4806
      %v6012 = vpack.c.b16 %v4809, %v4808
      %v6013 = vpack.c.b16 %v4811, %v4810
      %v6014 = vpack.c.b16 %v4813, %v4812
      %v6015 = vpack.c.b16 %v4815, %v4814
      %v6016 = vpack.c.b16 %v4817, %v4816
      %v6017 = vpack.c.b16 %v4819, %v4818
      %v6018 = vpack.c.b16 %v4821, %v4820
      %v6019 = vpack.c.b16 %v4823, %v4822
      %v6020 = vpack.c.b16 %v4825, %v4824
      %v6021 = vpack.c.b16 %v4827, %v4826
      %v6022 = vpack.c.b16 %v4829, %v4828
      %v6023 = vpack.c.b16 %v4831, %v4830
      %v6024 = vpack.c.b16 %v4833, %v4832
      %v6025 = vpack.c.b16 %v4835, %v4834
      %v6026 = vpack.c.b16 %v4837, %v4836
      %v6027 = vpack.c.b16 %v4839, %v4838
      %v6028 = vpack.c.b16 %v4841, %v4840
      %v6029 = vpack.c.b16 %v4843, %v4842
      %v6030 = vpack.c.b16 %v4845, %v4844
      %v6031 = vpack.c.b16 %v4847, %v4846
      %v6032 = vpack.c.b16 %v4849, %v4848
      %v6033 = vpack.c.b16 %v4851, %v4850
      %v6034 = vpack.c.b16 %v4853, %v4852
      %v6035 = vpack.c.b16 %v4855, %v4854
      %v6036 = vpack.c.b16 %v4857, %v4856
      %v6037 = vpack.c.b16 %v4859, %v4858
      %v6038 = vpack.c.b16 %v4861, %v4860
      %v6039 = vpack.c.b16 %v4863, %v4862
      %v6040 = vpack.c.b16 %v4865, %v4864
      %v6041 = vpack.c.b16 %v4867, %v4866
      %v6042 = vpack.c.b16 %v4869, %v4868
      %v6043 = vpack.c.b16 %v4871, %v4870
      %v6044 = vpack.c.b16 %v4873, %v4872
      %v6045 = vpack.c.b16 %v4875, %v4874
      %v6046 = vpack.c.b16 %v4877, %v4876
      %v6047 = vpack.c.b16 %v4879, %v4878
      %v6048 = vpack.c.b16 %v4881, %v4880
      %v6049 = vpack.c.b16 %v4883, %v4882
      %v6050 = vpack.c.b16 %v4885, %v4884
      %v6051 = vpack.c.b16 %v4887, %v4886
      %v6052 = vpack.c.b16 %v4889, %v4888
      %v6053 = vpack.c.b16 %v4891, %v4890
      %v6054 = vpack.c.b16 %v4893, %v4892
      %v6055 = vpack.c.b16 %v4895, %v4894
      %v6056 = vpack.c.b16 %v4897, %v4896
      %v6057 = vpack.c.b16 %v4899, %v4898
      %v6058 = vpack.c.b16 %v4901, %v4900
      %v6059 = vpack.c.b16 %v4903, %v4902
      %v6060 = vpack.c.b16 %v4905, %v4904
      %v6061 = vpack.c.b16 %v4907, %v4906
      %v6062 = vpack.c.b16 %v4909, %v4908
      %v6063 = vpack.c.b16 %v4911, %v4910
      %v6064 = vpack.c.b16 %v4913, %v4912
      %v6065 = vpack.c.b16 %v4915, %v4914
      %v6066 = vpack.c.b16 %v4917, %v4916
      %v6067 = vpack.c.b16 %v4919, %v4918
      %v6068 = vpack.c.b16 %v4921, %v4920
      %v6069 = vpack.c.b16 %v4923, %v4922
      %v6070 = vpack.c.b16 %v4925, %v4924
      %v6071 = vpack.c.b16 %v4927, %v4926
      %v6072 = vpack.c.b16 %v4929, %v4928
      %v6073 = vpack.c.b16 %v4931, %v4930
      %v6074 = vpack.c.b16 %v4933, %v4932
      %v6075 = vpack.c.b16 %v4935, %v4934
      %v6076 = vpack.c.b16 %v4937, %v4936
      %v6077 = vpack.c.b16 %v4939, %v4938
      %v6078 = vpack.c.b16 %v4941, %v4940
      %v6079 = vpack.c.b16 %v4943, %v4942
      %v6080 = vpack.c.b16 %v4945, %v4944
      %v6081 = vpack.c.b16 %v4947, %v4946
      %v6082 = vpack.c.b16 %v4949, %v4948
      %v6083 = vpack.c.b16 %v4951, %v4950
      %v6084 = vpack.c.b16 %v4953, %v4952
      %v6085 = vpack.c.b16 %v4955, %v4954
      %v6086 = vpack.c.b16 %v4957, %v4956
      %v6087 = vpack.c.b16 %v4959, %v4958
      %v6088 = vpack.c.b16 %v4961, %v4960
      %v6089 = vpack.c.b16 %v4963, %v4962
      %v6090 = vpack.c.b16 %v4965, %v4964
      %v6091 = vpack.c.b16 %v4967, %v4966
      %v6092 = vpack.c.b16 %v4969, %v4968
      %v6093 = vpack.c.b16 %v4971, %v4970
      %v6094 = vpack.c.b16 %v4973, %v4972
      %v6095 = vpack.c.b16 %v4975, %v4974
      %v6096 = vpack.c.b16 %v4977, %v4976
      %v6097 = vpack.c.b16 %v4979, %v4978
      %v6098 = vpack.c.b16 %v4981, %v4980
      %v6099 = vpack.c.b16 %v4983, %v4982
      %v6100 = vpack.c.b16 %v4985, %v4984
      %v6101 = vpack.c.b16 %v4987, %v4986
      %v6102 = vpack.c.b16 %v4989, %v4988
      %v6103 = vpack.c.b16 %v4991, %v4990
      %v6104 = vpack.c.b16 %v4993, %v4992
      %v6105 = vpack.c.b16 %v4995, %v4994
      %v6106 = vpack.c.b16 %v4997, %v4996
      %v6107 = vpack.c.b16 %v4999, %v4998
      %v6108 = vpack.c.b16 %v5001, %v5000
      %v6109 = vpack.c.b16 %v5003, %v5002
      %v6110 = vpack.c.b16 %v5005, %v5004
      %v6111 = vpack.c.b16 %v5007, %v5006
      %v6112 = vpack.c.b16 %v5009, %v5008
      %v6113 = vpack.c.b16 %v5011, %v5010
      %v6114 = vpack.c.b16 %v5013, %v5012
      %v6115 = vpack.c.b16 %v5015, %v5014
      %v6116 = vpack.c.b16 %v5017, %v5016
      %v6117 = vpack.c.b16 %v5019, %v5018
      %v6118 = vpack.c.b16 %v5021, %v5020
      %v6119 = vpack.c.b16 %v5023, %v5022
      %v6120 = vpack.c.b16 %v5025, %v5024
      %v6121 = vpack.c.b16 %v5027, %v5026
      %v6122 = vpack.c.b16 %v5029, %v5028
      %v6123 = vpack.c.b16 %v5031, %v5030
      %v6124 = vpack.c.b16 %v5033, %v5032
      %v6125 = vpack.c.b16 %v5035, %v5034
      %v6126 = vpack.c.b16 %v5037, %v5036
      %v6127 = vpack.c.b16 %v5039, %v5038
      %v6128 = vpack.c.b16 %v5041, %v5040
      %v6129 = vpack.c.b16 %v5043, %v5042
      %v6130 = vpack.c.b16 %v5045, %v5044
      %v6131 = vpack.c.b16 %v5047, %v5046
      %v6132 = vpack.c.b16 %v5049, %v5048
      %v6133 = vpack.c.b16 %v5051, %v5050
      %v6134 = vpack.c.b16 %v5053, %v5052
      %v6135 = vpack.c.b16 %v5055, %v5054
      %v6136 = vpack.c.b16 %v5057, %v5056
      %v6137 = vpack.c.b16 %v5059, %v5058
      %v6138 = vpack.c.b16 %v5061, %v5060
      %v6139 = vpack.c.b16 %v5063, %v5062
      %v6140 = vpack.c.b16 %v5065, %v5064
      %v6141 = vpack.c.b16 %v5067, %v5066
      %v6142 = vpack.c.b16 %v5069, %v5068
      %v6143 = vpack.c.b16 %v5071, %v5070
      %v6144 = vpack.c.b16 %v5073, %v5072
      %v6145 = vpack.c.b16 %v5075, %v5074
      %v6146 = vpack.c.b16 %v5077, %v5076
      %v6147 = vpack.c.b16 %v5079, %v5078
      %v6148 = vpack.c.b16 %v5081, %v5080
      %v6149 = vpack.c.b16 %v5083, %v5082
      %v6150 = vpack.c.b16 %v5085, %v5084
      %v6151 = vpack.c.b16 %v5087, %v5086
      %v6152 = vpack.c.b16 %v5089, %v5088
      %v6153 = vpack.c.b16 %v5091, %v5090
      %v6154 = vpack.c.b16 %v5093, %v5092
      %v6155 = vpack.c.b16 %v5095, %v5094
      %v6156 = vpack.c.b16 %v5097, %v5096
      %v6157 = vpack.c.b16 %v5099, %v5098
      %v6158 = vpack.c.b16 %v5101, %v5100
      %v6159 = vpack.c.b16 %v5103, %v5102
      %v6160 = vpack.c.b16 %v5105, %v5104
      %v6161 = vpack.c.b16 %v5107, %v5106
      %v6162 = vpack.c.b16 %v5109, %v5108
      %v6163 = vpack.c.b16 %v5111, %v5110
      %v6164 = vpack.c.b16 %v5113, %v5112
      %v6165 = vpack.c.b16 %v5115, %v5114
      %v6166 = vpack.c.b16 %v5117, %v5116
      %v6167 = vpack.c.b16 %v5119, %v5118
      %v6168 = vpack.c.b16 %v5121, %v5120
      %v6169 = vpack.c.b16 %v5123, %v5122
      %v6170 = vpack.c.b16 %v5125, %v5124
      %v6171 = vpack.c.b16 %v5127, %v5126
      %v6172 = vpack.c.b16 %v5129, %v5128
      %v6173 = vpack.c.b16 %v5131, %v5130
      %v6174 = vpack.c.b16 %v5133, %v5132
      %v6175 = vpack.c.b16 %v5135, %v5134
      %v6176 = vpack.c.b16 %v5137, %v5136
      %v6177 = vpack.c.b16 %v5139, %v5138
      %v6178 = vpack.c.b16 %v5141, %v5140
      %v6179 = vpack.c.b16 %v5143, %v5142
      %v6180 = vpack.c.b16 %v5145, %v5144
      %v6181 = vpack.c.b16 %v5147, %v5146
      %v6182 = vpack.c.b16 %v5149, %v5148
      %v6183 = vpack.c.b16 %v5151, %v5150
      %v6184 = vpack.c.b16 %v5153, %v5152
      %v6185 = vpack.c.b16 %v5155, %v5154
      %v6186 = vpack.c.b16 %v5157, %v5156
      %v6187 = vpack.c.b16 %v5159, %v5158
      %v6188 = vpack.c.b16 %v5161, %v5160
      %v6189 = vpack.c.b16 %v5163, %v5162
      %v6190 = vpack.c.b16 %v5165, %v5164
      %v6191 = vpack.c.b16 %v5167, %v5166
      %v6192 = vpack.c.b16 %v5169, %v5168
      %v6193 = vpack.c.b16 %v5171, %v5170
      %v6194 = vpack.c.b16 %v5173, %v5172
      %v6195 = vpack.c.b16 %v5175, %v5174
      %v6196 = vpack.c.b16 %v5177, %v5176
      %v6197 = vpack.c.b16 %v5179, %v5178
      %v6198 = vpack.c.b16 %v5181, %v5180
      %v6199 = vpack.c.b16 %v5183, %v5182
      %v6200 = vpack.c.b16 %v5185, %v5184
      %v6201 = vpack.c.b16 %v5187, %v5186
      %v6202 = vpack.c.b16 %v5189, %v5188
      %v6203 = vpack.c.b16 %v5191, %v5190
      %v6204 = vpack.c.b16 %v5193, %v5192
      %v6205 = vpack.c.b16 %v5195, %v5194
      %v6206 = vpack.c.b16 %v5197, %v5196
      %v6207 = vpack.c.b16 %v5199, %v5198
      %v6208 = vpack.c.b16 %v5201, %v5200
      %v6209 = vpack.c.b16 %v5203, %v5202
      %v6210 = vpack.c.b16 %v5205, %v5204
      %v6211 = vpack.c.b16 %v5207, %v5206
      %v6212 = vpack.c.b16 %v5209, %v5208
      %v6213 = vpack.c.b16 %v5211, %v5210
      %v6214 = vpack.c.b16 %v5213, %v5212
      %v6215 = vpack.c.b16 %v5215, %v5214
      %v6216 = vpack.c.b16 %v5217, %v5216
      %v6217 = vpack.c.b16 %v5219, %v5218
      %v6218 = vpack.c.b16 %v5221, %v5220
      %v6219 = vpack.c.b16 %v5223, %v5222
      %v6220 = vpack.c.b16 %v5225, %v5224
      %v6221 = vpack.c.b16 %v5227, %v5226
      %v6222 = vpack.c.b16 %v5229, %v5228
      %v6223 = vpack.c.b16 %v5231, %v5230
      %v6224 = vpack.c.b16 %v5233, %v5232
      %v6225 = vpack.c.b16 %v5235, %v5234
      %v6226 = vpack.c.b16 %v5237, %v5236
      %v6227 = vpack.c.b16 %v5239, %v5238
      %v6228 = vpack.c.b16 %v5241, %v5240
      %v6229 = vpack.c.b16 %v5243, %v5242
      %v6230 = vpack.c.b16 %v5245, %v5244
      %v6231 = vpack.c.b16 %v5247, %v5246
      %v6232 = vpack.c.b16 %v5249, %v5248
      %v6233 = vpack.c.b16 %v5251, %v5250
      %v6234 = vpack.c.b16 %v5253, %v5252
      %v6235 = vpack.c.b16 %v5255, %v5254
      %v6236 = vpack.c.b16 %v5257, %v5256
      %v6237 = vpack.c.b16 %v5259, %v5258
      %v6238 = vpack.c.b16 %v5261, %v5260
      %v6239 = vpack.c.b16 %v5263, %v5262
      %v6240 = vpack.c.b16 %v5265, %v5264
      %v6241 = vpack.c.b16 %v5267, %v5266
      %v6242 = vpack.c.b16 %v5269, %v5268
      %v6243 = vpack.c.b16 %v5271, %v5270
      %v6244 = vpack.c.b16 %v5273, %v5272
      %v6245 = vpack.c.b16 %v5275, %v5274
      %v6246 = vpack.c.b16 %v5277, %v5276
      %v6247 = vpack.c.b16 %v5279, %v5278
      %v6248 = vpack.c.b16 %v5281, %v5280
      %v6249 = vpack.c.b16 %v5283, %v5282
      %v6250 = vpack.c.b16 %v5285, %v5284
      %v6251 = vpack.c.b16 %v5287, %v5286
      %v6252 = vpack.c.b16 %v5289, %v5288
      %v6253 = vpack.c.b16 %v5291, %v5290
      %v6254 = vpack.c.b16 %v5293, %v5292
      %v6255 = vpack.c.b16 %v5295, %v5294
      %v6256 = vpack.c.b16 %v5297, %v5296
      %v6257 = vpack.c.b16 %v5299, %v5298
      %v6258 = vpack.c.b16 %v5301, %v5300
      %v6259 = vpack.c.b16 %v5303, %v5302
      %v6260 = vpack.c.b16 %v5305, %v5304
      %v6261 = vpack.c.b16 %v5307, %v5306
      %v6262 = vpack.c.b16 %v5309, %v5308
      %v6263 = vpack.c.b16 %v5311, %v5310
      %v6264 = vpack.c.b16 %v5313, %v5312
      %v6265 = vpack.c.b16 %v5315, %v5314
      %v6266 = vpack.c.b16 %v5317, %v5316
      %v6267 = vpack.c.b16 %v5319, %v5318
      %v6268 = vpack.c.b16 %v5321, %v5320
      %v6269 = vpack.c.b16 %v5323, %v5322
      %v6270 = vpack.c.b16 %v5325, %v5324
      %v6271 = vpack.c.b16 %v5327, %v5326
      %v6272 = vpack.c.b16 %v5329, %v5328
      %v6273 = vpack.c.b16 %v5331, %v5330
      %v6274 = vpack.c.b16 %v5333, %v5332
      %v6275 = vpack.c.b16 %v5335, %v5334
      %v6276 = vpack.c.b16 %v5337, %v5336
      %v6277 = vpack.c.b16 %v5339, %v5338
      %v6278 = vpack.c.b16 %v5341, %v5340
      %v6279 = vpack.c.b16 %v5343, %v5342
      %v6280 = vpack.c.b16 %v5345, %v5344
      %v6281 = vpack.c.b16 %v5347, %v5346
      %v6282 = vpack.c.b16 %v5349, %v5348
      %v6283 = vpack.c.b16 %v5351, %v5350
      %v6284 = vpack.c.b16 %v5353, %v5352
      %v6285 = vpack.c.b16 %v5355, %v5354
      %v6286 = vpack.c.b16 %v5357, %v5356
      %v6287 = vpack.c.b16 %v5359, %v5358
      %v6288 = vpack.c.b16 %v5361, %v5360
      %v6289 = vpack.c.b16 %v5363, %v5362
      %v6290 = vpack.c.b16 %v5365, %v5364
      %v6291 = vpack.c.b16 %v5367, %v5366
      %v6292 = vpack.c.b16 %v5369, %v5368
      %v6293 = vpack.c.b16 %v5371, %v5370
      %v6294 = vpack.c.b16 %v5373, %v5372
      %v6295 = vpack.c.b16 %v5375, %v5374
      %v6296 = vpack.c.b16 %v5377, %v5376
      %v6297 = vpack.c.b16 %v5379, %v5378
      %v6298 = vpack.c.b16 %v5381, %v5380
      %v6299 = vpack.c.b16 %v5383, %v5382
      %v6300 = vpack.c.b16 %v5385, %v5384
      %v6301 = vpack.c.b16 %v5387, %v5386
      %v6302 = vpack.c.b16 %v5389, %v5388
      %v6303 = vpack.c.b16 %v5391, %v5390
      %v6304 = vpack.c.b16 %v5393, %v5392
      %v6305 = vpack.c.b16 %v5395, %v5394
      %v6306 = vpack.c.b16 %v5397, %v5396
      %v6307 = vpack.c.b16 %v5399, %v5398
      %v6308 = vpack.c.b16 %v5401, %v5400
      %v6309 = vpack.c.b16 %v5403, %v5402
      %v6310 = vpack.c.b16 %v5405, %v5404
      %v6311 = vpack.c.b16 %v5407, %v5406
      %v6312 = vpack.c.b16 %v5409, %v5408
      %v6313 = vpack.c.b16 %v5411, %v5410
      %v6314 = vpack.c.b16 %v5413, %v5412
      %v6315 = vpack.c.b16 %v5415, %v5414
      %v6316 = vpack.c.b16 %v5417, %v5416
      %v6317 = vpack.c.b16 %v5419, %v5418
      %v6318 = vpack.c.b16 %v5421, %v5420
      %v6319 = vpack.c.b16 %v5423, %v5422
      %v6320 = vpack.c.b16 %v5425, %v5424
      %v6321 = vpack.c.b16 %v5427, %v5426
      %v6322 = vpack.c.b16 %v5429, %v5428
      %v6323 = vpack.c.b16 %v5431, %v5430
      %v6324 = vpack.c.b16 %v5433, %v5432
      %v6325 = vpack.c.b16 %v5435, %v5434
      %v6326 = vpack.c.b16 %v5437, %v5436
      %v6327 = vpack.c.b16 %v5439, %v5438
      %v6328 = vpack.c.b16 %v5441, %v5440
      %v6329 = vpack.c.b16 %v5443, %v5442
      %v6330 = vpack.c.b16 %v5445, %v5444
      %v6331 = vpack.c.b16 %v5447, %v5446
      %v6332 = vpack.c.b16 %v5449, %v5448
      %v6333 = vpack.c.b16 %v5451, %v5450
      %v6334 = vpack.c.b16 %v5453, %v5452
      %v6335 = vpack.c.b16 %v5455, %v5454
      %v6336 = vpack.c.b16 %v5457, %v5456
      %v6337 = vpack.c.b16 %v5459, %v5458
      %v6338 = vpack.c.b16 %v5461, %v5460
      %v6339 = vpack.c.b16 %v5463, %v5462
      %v6340 = vpack.c.b16 %v5465, %v5464
      %v6341 = vpack.c.b16 %v5467, %v5466
      %v6342 = vpack.c.b16 %v5469, %v5468
      %v6343 = vpack.c.b16 %v5471, %v5470
      %v6344 = vpack.c.b16 %v5473, %v5472
      %v6345 = vpack.c.b16 %v5475, %v5474
      %v6346 = vpack.c.b16 %v5477, %v5476
      %v6347 = vpack.c.b16 %v5479, %v5478
      %v6348 = vpack.c.b16 %v5481, %v5480
      %v6349 = vpack.c.b16 %v5483, %v5482
      %v6350 = vpack.c.b16 %v5485, %v5484
      %v6351 = vpack.c.b16 %v5487, %v5486
      %v6352 = vpack.c.b16 %v5489, %v5488
      %v6353 = vpack.c.b16 %v5491, %v5490
      %v6354 = vpack.c.b16 %v5493, %v5492
      %v6355 = vpack.c.b16 %v5495, %v5494
      %v6356 = vpack.c.b16 %v5497, %v5496
      %v6357 = vpack.c.b16 %v5499, %v5498
      %v6358 = vpack.c.b16 %v5501, %v5500
      %v6359 = vpack.c.b16 %v5503, %v5502
      %v6360 = vpack.c.b16 %v5505, %v5504
      %v6361 = vpack.c.b16 %v5507, %v5506
      %v6362 = vpack.c.b16 %v5509, %v5508
      %v6363 = vpack.c.b16 %v5511, %v5510
      %v6364 = vpack.c.b16 %v5513, %v5512
      %v6365 = vpack.c.b16 %v5515, %v5514
      %v6366 = vpack.c.b16 %v5517, %v5516
      %v6367 = vpack.c.b16 %v5519, %v5518
      %v6368 = vpack.c.b16 %v5521, %v5520
      %v6369 = vpack.c.b16 %v5523, %v5522
      %v6370 = vpack.c.b16 %v5525, %v5524
      %v6371 = vpack.c.b16 %v5527, %v5526
      %v6372 = vpack.c.b16 %v5529, %v5528
      %v6373 = vpack.c.b16 %v5531, %v5530
      %v6374 = vpack.c.b16 %v5533, %v5532
      %v6375 = vpack.c.b16 %v5535, %v5534
      %v6376 = vpack.c.b16 %v5537, %v5536
      %v6377 = vpack.c.b16 %v5539, %v5538
      %v6378 = vpack.c.b16 %v5541, %v5540
      %v6379 = vpack.c.b16 %v5543, %v5542
      %v6380 = vpack.c.b16 %v5545, %v5544
      %v6381 = vpack.c.b16 %v5547, %v5546
      %v6382 = vpack.c.b16 %v5549, %v5548
      %v6383 = vpack.c.b16 %v5551, %v5550
      %v6384 = vpack.c.b16 %v5553, %v5552
      %v6385 = vpack.c.b16 %v5555, %v5554
      %v6386 = vpack.c.b16 %v5557, %v5556
      %v6387 = vpack.c.b16 %v5559, %v5558
      %v6388 = vpack.c.b16 %v5561, %v5560
      %v6389 = vpack.c.b16 %v5563, %v5562
      %v6390 = vpack.c.b16 %v5565, %v5564
      %v6391 = vpack.c.b16 %v5567, %v5566
      %v6392 = vpack.c.b16 %v5569, %v5568
      %v6393 = vpack.c.b16 %v5571, %v5570
      %v6394 = vpack.c.b16 %v5573, %v5572
      %v6395 = vpack.c.b16 %v5575, %v5574
      %v6396 = vpack.c.b16 %v5577, %v5576
      %v6397 = vpack.c.b16 %v5579, %v5578
      %v6398 = vpack.c.b16 %v5581, %v5580
      %v6399 = vpack.c.b16 %v5583, %v5582
      %v6400 = vpack.c.b16 %v5585, %v5584
      %v6401 = vpack.c.b16 %v5587, %v5586
      %v6402 = vpack.c.b16 %v5589, %v5588
      %v6403 = vpack.c.b16 %v5591, %v5590
      %v6404 = vpack.c.b16 %v5593, %v5592
      %v6405 = vpack.c.b16 %v5595, %v5594
      %v6406 = vpack.c.b16 %v5597, %v5596
      %v6407 = vpack.c.b16 %v5599, %v5598
      %v6408 = vpack.c.b16 %v5601, %v5600
      %v6409 = vpack.c.b16 %v5603, %v5602
      %v6410 = vpack.c.b16 %v5605, %v5604
      %v6411 = vpack.c.b16 %v5607, %v5606
      %v6412 = vpack.c.b16 %v5609, %v5608
      %v6413 = vpack.c.b16 %v5611, %v5610
      %v6414 = vpack.c.b16 %v5613, %v5612
      %v6415 = vpack.c.b16 %v5615, %v5614
      %v6416 = vpack.c.b16 %v5617, %v5616
      %v6417 = vpack.c.b16 %v5619, %v5618
      %v6418 = vpack.c.b16 %v5621, %v5620
      %v6419 = vpack.c.b16 %v5623, %v5622
      %v6420 = vpack.c.b16 %v5625, %v5624
      %v6421 = vpack.c.b16 %v5627, %v5626
      %v6422 = vpack.c.b16 %v5629, %v5628
      %v6423 = vpack.c.b16 %v5631, %v5630
      %v6424 = vpack.c.b16 %v5633, %v5632
      %v6425 = vpack.c.b16 %v5635, %v5634
      %v6426 = vpack.c.b16 %v5637, %v5636
      %v6427 = vpack.c.b16 %v5639, %v5638
      %v6428 = vpack.c.b16 %v5641, %v5640
      %v6429 = vpack.c.b16 %v5643, %v5642
      %v6430 = vpack.c.b16 %v5645, %v5644
      %v6431 = vpack.c.b16 %v5647, %v5646
      %7216 = vmatprep.subr.bf16.mxu0 0
      %7217 = vmatpush1.bf16.msra.mxu0 %v5655
      %7218 = vmatprep.subr.bf16.mxu0 0
      %7219 = vmatpush1.bf16.msra.mxu0 %v5654
      %7220 = vmatprep.subr.bf16.mxu0 0
      %7221 = vmatpush1.bf16.msra.mxu0 %v5653
      %7222 = vmatprep.subr.bf16.mxu0 0
      %7223 = vmatpush1.bf16.msra.mxu0 %v5652
      %7224 = vmatprep.subr.bf16.mxu0 0
      %7225 = vmatpush1.bf16.msra.mxu0 %v5651
      %7226 = vmatprep.subr.bf16.mxu0 0
      %7227 = vmatpush1.bf16.msra.mxu0 %v5650
      %7228 = vmatprep.subr.bf16.mxu0 0
      %7229 = vmatpush1.bf16.msra.mxu0 %v5649
      %7230 = vmatprep.subr.bf16.mxu0 0
      %7231 = vmatpush1.bf16.msra.mxu0 %v5648
      %7232 = vmatprep.subr.bf16.mxu0 0
      %7233 = vmatpush2.bf16.msra.mxu0 %v5663
      %7234 = vmatprep.subr.bf16.mxu0 0
      %7235 = vmatpush2.bf16.msra.mxu0 %v5662
      %7236 = vmatprep.subr.bf16.mxu0 0
      %7237 = vmatpush2.bf16.msra.mxu0 %v5661
      %7238 = vmatprep.subr.bf16.mxu0 0
      %7239 = vmatpush2.bf16.msra.mxu0 %v5660
      %7240 = vmatprep.subr.bf16.mxu0 0
      %7241 = vmatpush2.bf16.msra.mxu0 %v5659
      %7242 = vmatprep.subr.bf16.mxu0 0
      %7243 = vmatpush2.bf16.msra.mxu0 %v5658
      %7244 = vmatprep.subr.bf16.mxu0 0
      %7245 = vmatpush2.bf16.msra.mxu0 %v5657
      %7246 = vmatprep.subr.bf16.mxu0 0
      %7247 = vmatpush2.bf16.msra.mxu0 %v5656
      %7248 = vmatprep.mubr.bf16.mxu0 %v1841
      %7249 = vmatmul.mubr.bf16.gmra.mxu0 %v1827
      %v7250 = vpop.f32.mrf.mxu0
      %v7251 = vadd.f32 0.0, %v7250
      %v7252 = vpop.f32.mrf.mxu0
      %v7253 = vpop.f32.mrf.mxu0
      %v7254 = vpop.f32.mrf.mxu0
      %7255 = vdwg.mxu0
      %7256 = vmatprep.subr.bf16.mxu0 0
      %7257 = vmatpush1.bf16.msra.mxu0 %v5671
      %7258 = vmatprep.subr.bf16.mxu0 0
      %7259 = vmatpush1.bf16.msra.mxu0 %v5670
      %7260 = vmatprep.subr.bf16.mxu0 0
      %7261 = vmatpush1.bf16.msra.mxu0 %v5669
      %7262 = vmatprep.subr.bf16.mxu0 0
      %7263 = vmatpush1.bf16.msra.mxu0 %v5668
      %7264 = vmatprep.subr.bf16.mxu0 0
      %7265 = vmatpush1.bf16.msra.mxu0 %v5667
      %7266 = vmatprep.subr.bf16.mxu0 0
      %7267 = vmatpush1.bf16.msra.mxu0 %v5666
      %7268 = vmatprep.subr.bf16.mxu0 0
      %7269 = vmatpush1.bf16.msra.mxu0 %v5665
      %7270 = vmatprep.subr.bf16.mxu0 0
      %7271 = vmatpush1.bf16.msra.mxu0 %v5664
      %7272 = vmatprep.subr.bf16.mxu0 0
      %7273 = vmatpush2.bf16.msra.mxu0 %v5679
      %7274 = vmatprep.subr.bf16.mxu0 0
      %7275 = vmatpush2.bf16.msra.mxu0 %v5678
      %7276 = vmatprep.subr.bf16.mxu0 0
      %7277 = vmatpush2.bf16.msra.mxu0 %v5677
      %7278 = vmatprep.subr.bf16.mxu0 0
      %7279 = vmatpush2.bf16.msra.mxu0 %v5676
      %7280 = vmatprep.subr.bf16.mxu0 0
      %7281 = vmatpush2.bf16.msra.mxu0 %v5675
      %7282 = vmatprep.subr.bf16.mxu0 0
      %7283 = vmatpush2.bf16.msra.mxu0 %v5674
      %7284 = vmatprep.subr.bf16.mxu0 0
      %7285 = vmatpush2.bf16.msra.mxu0 %v5673
      %7286 = vmatprep.subr.bf16.mxu0 0
      %7287 = vmatpush2.bf16.msra.mxu0 %v5672
      %7288 = vmatprep.mubr.bf16.mxu0 %v1851
      %7289 = vmatmul.mubr.bf16.gmra.mxu0 %v1849
      %v7290 = vpop.f32.mrf.mxu0
      %v7291 = vadd.f32 %v7251, %v7290
      %v7292 = vpop.f32.mrf.mxu0
      %v7293 = vpop.f32.mrf.mxu0
      %v7294 = vpop.f32.mrf.mxu0
      %7295 = vdwg.mxu0
      %7296 = vmatprep.subr.bf16.mxu0 0
      %7297 = vmatpush1.bf16.msra.mxu0 %v5687
      %7298 = vmatprep.subr.bf16.mxu0 0
      %7299 = vmatpush1.bf16.msra.mxu0 %v5686
      %7300 = vmatprep.subr.bf16.mxu0 0
      %7301 = vmatpush1.bf16.msra.mxu0 %v5685
      %7302 = vmatprep.subr.bf16.mxu0 0
      %7303 = vmatpush1.bf16.msra.mxu0 %v5684
      %7304 = vmatprep.subr.bf16.mxu0 0
      %7305 = vmatpush1.bf16.msra.mxu0 %v5683
      %7306 = vmatprep.subr.bf16.mxu0 0
      %7307 = vmatpush1.bf16.msra.mxu0 %v5682
      %7308 = vmatprep.subr.bf16.mxu0 0
      %7309 = vmatpush1.bf16.msra.mxu0 %v5681
      %7310 = vmatprep.subr.bf16.mxu0 0
      %7311 = vmatpush1.bf16.msra.mxu0 %v5680
      %7312 = vmatprep.subr.bf16.mxu0 0
      %7313 = vmatpush2.bf16.msra.mxu0 %v5695
      %7314 = vmatprep.subr.bf16.mxu0 0
      %7315 = vmatpush2.bf16.msra.mxu0 %v5694
      %7316 = vmatprep.subr.bf16.mxu0 0
      %7317 = vmatpush2.bf16.msra.mxu0 %v5693
      %7318 = vmatprep.subr.bf16.mxu0 0
      %7319 = vmatpush2.bf16.msra.mxu0 %v5692
      %7320 = vmatprep.subr.bf16.mxu0 0
      %7321 = vmatpush2.bf16.msra.mxu0 %v5691
      %7322 = vmatprep.subr.bf16.mxu0 0
      %7323 = vmatpush2.bf16.msra.mxu0 %v5690
      %7324 = vmatprep.subr.bf16.mxu0 0
      %7325 = vmatpush2.bf16.msra.mxu0 %v5689
      %7326 = vmatprep.subr.bf16.mxu0 0
      %7327 = vmatpush2.bf16.msra.mxu0 %v5688
      %7328 = vmatprep.mubr.bf16.mxu0 %v1848
      %7329 = vmatmul.mubr.bf16.gmra.mxu0 %v1834
      %v7330 = vpop.f32.mrf.mxu0
      %v7331 = vadd.f32 %v7291, %v7330
      %v7332 = vpop.f32.mrf.mxu0
      %v7333 = vpop.f32.mrf.mxu0
      %v7334 = vpop.f32.mrf.mxu0
      %7335 = vdwg.mxu0
      %7336 = vmatprep.subr.bf16.mxu0 0
      %7337 = vmatpush1.bf16.msra.mxu0 %v5703
      %7338 = vmatprep.subr.bf16.mxu0 0
      %7339 = vmatpush1.bf16.msra.mxu0 %v5702
      %7340 = vmatprep.subr.bf16.mxu0 0
      %7341 = vmatpush1.bf16.msra.mxu0 %v5701
      %7342 = vmatprep.subr.bf16.mxu0 0
      %7343 = vmatpush1.bf16.msra.mxu0 %v5700
      %7344 = vmatprep.subr.bf16.mxu0 0
      %7345 = vmatpush1.bf16.msra.mxu0 %v5699
      %7346 = vmatprep.subr.bf16.mxu0 0
      %7347 = vmatpush1.bf16.msra.mxu0 %v5698
      %7348 = vmatprep.subr.bf16.mxu0 0
      %7349 = vmatpush1.bf16.msra.mxu0 %v5697
      %7350 = vmatprep.subr.bf16.mxu0 0
      %7351 = vmatpush1.bf16.msra.mxu0 %v5696
      %7352 = vmatprep.subr.bf16.mxu0 0
      %7353 = vmatpush2.bf16.msra.mxu0 %v5711
      %7354 = vmatprep.subr.bf16.mxu0 0
      %7355 = vmatpush2.bf16.msra.mxu0 %v5710
      %7356 = vmatprep.subr.bf16.mxu0 0
      %7357 = vmatpush2.bf16.msra.mxu0 %v5709
      %7358 = vmatprep.subr.bf16.mxu0 0
      %7359 = vmatpush2.bf16.msra.mxu0 %v5708
      %7360 = vmatprep.subr.bf16.mxu0 0
      %7361 = vmatpush2.bf16.msra.mxu0 %v5707
      %7362 = vmatprep.subr.bf16.mxu0 0
      %7363 = vmatpush2.bf16.msra.mxu0 %v5706
      %7364 = vmatprep.subr.bf16.mxu0 0
      %7365 = vmatpush2.bf16.msra.mxu0 %v5705
      %7366 = vmatprep.subr.bf16.mxu0 0
      %7367 = vmatpush2.bf16.msra.mxu0 %v5704
      %7368 = vmatprep.mubr.bf16.mxu0 %v1852
      %7369 = vmatmul.mubr.bf16.gmra.mxu0 %v1850
      %v7370 = vpop.f32.mrf.mxu0
      %v7371 = vadd.f32 %v7331, %v7370
      %v7372 = vpop.f32.mrf.mxu0
      %v7373 = vpop.f32.mrf.mxu0
      %v7374 = vpop.f32.mrf.mxu0
      %7375 = vdwg.mxu0
      %7376 = vmatprep.subr.bf16.mxu0 0
      %7377 = vmatpush1.bf16.msra.mxu0 %v5719
      %7378 = vmatprep.subr.bf16.mxu0 0
      %7379 = vmatpush1.bf16.msra.mxu0 %v5718
      %7380 = vmatprep.subr.bf16.mxu0 0
      %7381 = vmatpush1.bf16.msra.mxu0 %v5717
      %7382 = vmatprep.subr.bf16.mxu0 0
      %7383 = vmatpush1.bf16.msra.mxu0 %v5716
      %7384 = vmatprep.subr.bf16.mxu0 0
      %7385 = vmatpush1.bf16.msra.mxu0 %v5715
      %7386 = vmatprep.subr.bf16.mxu0 0
      %7387 = vmatpush1.bf16.msra.mxu0 %v5714
      %7388 = vmatprep.subr.bf16.mxu0 0
      %7389 = vmatpush1.bf16.msra.mxu0 %v5713
      %7390 = vmatprep.subr.bf16.mxu0 0
      %7391 = vmatpush1.bf16.msra.mxu0 %v5712
      %7392 = vmatprep.subr.bf16.mxu0 0
      %7393 = vmatpush2.bf16.msra.mxu0 %v5727
      %7394 = vmatprep.subr.bf16.mxu0 0
      %7395 = vmatpush2.bf16.msra.mxu0 %v5726
      %7396 = vmatprep.subr.bf16.mxu0 0
      %7397 = vmatpush2.bf16.msra.mxu0 %v5725
      %7398 = vmatprep.subr.bf16.mxu0 0
      %7399 = vmatpush2.bf16.msra.mxu0 %v5724
      %7400 = vmatprep.subr.bf16.mxu0 0
      %7401 = vmatpush2.bf16.msra.mxu0 %v5723
      %7402 = vmatprep.subr.bf16.mxu0 0
      %7403 = vmatpush2.bf16.msra.mxu0 %v5722
      %7404 = vmatprep.subr.bf16.mxu0 0
      %7405 = vmatpush2.bf16.msra.mxu0 %v5721
      %7406 = vmatprep.subr.bf16.mxu0 0
      %7407 = vmatpush2.bf16.msra.mxu0 %v5720
      %7408 = vmatprep.mubr.bf16.mxu0 %v1890
      %7409 = vmatmul.mubr.bf16.gmra.mxu0 %v1876
      %v7410 = vpop.f32.mrf.mxu0
      %v7411 = vadd.f32 %v7371, %v7410
      %v7412 = vpop.f32.mrf.mxu0
      %v7413 = vpop.f32.mrf.mxu0
      %v7414 = vpop.f32.mrf.mxu0
      %7415 = vdwg.mxu0
      %7416 = vmatprep.subr.bf16.mxu0 0
      %7417 = vmatpush1.bf16.msra.mxu0 %v5735
      %7418 = vmatprep.subr.bf16.mxu0 0
      %7419 = vmatpush1.bf16.msra.mxu0 %v5734
      %7420 = vmatprep.subr.bf16.mxu0 0
      %7421 = vmatpush1.bf16.msra.mxu0 %v5733
      %7422 = vmatprep.subr.bf16.mxu0 0
      %7423 = vmatpush1.bf16.msra.mxu0 %v5732
      %7424 = vmatprep.subr.bf16.mxu0 0
      %7425 = vmatpush1.bf16.msra.mxu0 %v5731
      %7426 = vmatprep.subr.bf16.mxu0 0
      %7427 = vmatpush1.bf16.msra.mxu0 %v5730
      %7428 = vmatprep.subr.bf16.mxu0 0
      %7429 = vmatpush1.bf16.msra.mxu0 %v5729
      %7430 = vmatprep.subr.bf16.mxu0 0
      %7431 = vmatpush1.bf16.msra.mxu0 %v5728
      %7432 = vmatprep.subr.bf16.mxu0 0
      %7433 = vmatpush2.bf16.msra.mxu0 %v5743
      %7434 = vmatprep.subr.bf16.mxu0 0
      %7435 = vmatpush2.bf16.msra.mxu0 %v5742
      %7436 = vmatprep.subr.bf16.mxu0 0
      %7437 = vmatpush2.bf16.msra.mxu0 %v5741
      %7438 = vmatprep.subr.bf16.mxu0 0
      %7439 = vmatpush2.bf16.msra.mxu0 %v5740
      %7440 = vmatprep.subr.bf16.mxu0 0
      %7441 = vmatpush2.bf16.msra.mxu0 %v5739
      %7442 = vmatprep.subr.bf16.mxu0 0
      %7443 = vmatpush2.bf16.msra.mxu0 %v5738
      %7444 = vmatprep.subr.bf16.mxu0 0
      %7445 = vmatpush2.bf16.msra.mxu0 %v5737
      %7446 = vmatprep.subr.bf16.mxu0 0
      %7447 = vmatpush2.bf16.msra.mxu0 %v5736
      %7448 = vmatprep.mubr.bf16.mxu0 %v1900
      %7449 = vmatmul.mubr.bf16.gmra.mxu0 %v1898
      %v7450 = vpop.f32.mrf.mxu0
      %v7451 = vadd.f32 %v7411, %v7450
      %v7452 = vpop.f32.mrf.mxu0
      %v7453 = vpop.f32.mrf.mxu0
      %v7454 = vpop.f32.mrf.mxu0
      %7455 = vdwg.mxu0
      %7456 = vmatprep.subr.bf16.mxu0 0
      %7457 = vmatpush1.bf16.msra.mxu0 %v5751
      %7458 = vmatprep.subr.bf16.mxu0 0
      %7459 = vmatpush1.bf16.msra.mxu0 %v5750
      %7460 = vmatprep.subr.bf16.mxu0 0
      %7461 = vmatpush1.bf16.msra.mxu0 %v5749
      %7462 = vmatprep.subr.bf16.mxu0 0
      %7463 = vmatpush1.bf16.msra.mxu0 %v5748
      %7464 = vmatprep.subr.bf16.mxu0 0
      %7465 = vmatpush1.bf16.msra.mxu0 %v5747
      %7466 = vmatprep.subr.bf16.mxu0 0
      %7467 = vmatpush1.bf16.msra.mxu0 %v5746
      %7468 = vmatprep.subr.bf16.mxu0 0
      %7469 = vmatpush1.bf16.msra.mxu0 %v5745
      %7470 = vmatprep.subr.bf16.mxu0 0
      %7471 = vmatpush1.bf16.msra.mxu0 %v5744
      %7472 = vmatprep.subr.bf16.mxu0 0
      %7473 = vmatpush2.bf16.msra.mxu0 %v5759
      %7474 = vmatprep.subr.bf16.mxu0 0
      %7475 = vmatpush2.bf16.msra.mxu0 %v5758
      %7476 = vmatprep.subr.bf16.mxu0 0
      %7477 = vmatpush2.bf16.msra.mxu0 %v5757
      %7478 = vmatprep.subr.bf16.mxu0 0
      %7479 = vmatpush2.bf16.msra.mxu0 %v5756
      %7480 = vmatprep.subr.bf16.mxu0 0
      %7481 = vmatpush2.bf16.msra.mxu0 %v5755
      %7482 = vmatprep.subr.bf16.mxu0 0
      %7483 = vmatpush2.bf16.msra.mxu0 %v5754
      %7484 = vmatprep.subr.bf16.mxu0 0
      %7485 = vmatpush2.bf16.msra.mxu0 %v5753
      %7486 = vmatprep.subr.bf16.mxu0 0
      %7487 = vmatpush2.bf16.msra.mxu0 %v5752
      %7488 = vmatprep.mubr.bf16.mxu0 %v1897
      %7489 = vmatmul.mubr.bf16.gmra.mxu0 %v1883
      %v7490 = vpop.f32.mrf.mxu0
      %v7491 = vadd.f32 %v7451, %v7490
      %v7492 = vpop.f32.mrf.mxu0
      %v7493 = vpop.f32.mrf.mxu0
      %v7494 = vpop.f32.mrf.mxu0
      %7495 = vdwg.mxu0
      %7496 = vmatprep.subr.bf16.mxu0 0
      %7497 = vmatpush1.bf16.msra.mxu0 %v5767
      %7498 = vmatprep.subr.bf16.mxu0 0
      %7499 = vmatpush1.bf16.msra.mxu0 %v5766
      %7500 = vmatprep.subr.bf16.mxu0 0
      %7501 = vmatpush1.bf16.msra.mxu0 %v5765
      %7502 = vmatprep.subr.bf16.mxu0 0
      %7503 = vmatpush1.bf16.msra.mxu0 %v5764
      %7504 = vmatprep.subr.bf16.mxu0 0
      %7505 = vmatpush1.bf16.msra.mxu0 %v5763
      %7506 = vmatprep.subr.bf16.mxu0 0
      %7507 = vmatpush1.bf16.msra.mxu0 %v5762
      %7508 = vmatprep.subr.bf16.mxu0 0
      %7509 = vmatpush1.bf16.msra.mxu0 %v5761
      %7510 = vmatprep.subr.bf16.mxu0 0
      %7511 = vmatpush1.bf16.msra.mxu0 %v5760
      %7512 = vmatprep.subr.bf16.mxu0 0
      %7513 = vmatpush2.bf16.msra.mxu0 %v5775
      %7514 = vmatprep.subr.bf16.mxu0 0
      %7515 = vmatpush2.bf16.msra.mxu0 %v5774
      %7516 = vmatprep.subr.bf16.mxu0 0
      %7517 = vmatpush2.bf16.msra.mxu0 %v5773
      %7518 = vmatprep.subr.bf16.mxu0 0
      %7519 = vmatpush2.bf16.msra.mxu0 %v5772
      %7520 = vmatprep.subr.bf16.mxu0 0
      %7521 = vmatpush2.bf16.msra.mxu0 %v5771
      %7522 = vmatprep.subr.bf16.mxu0 0
      %7523 = vmatpush2.bf16.msra.mxu0 %v5770
      %7524 = vmatprep.subr.bf16.mxu0 0
      %7525 = vmatpush2.bf16.msra.mxu0 %v5769
      %7526 = vmatprep.subr.bf16.mxu0 0
      %7527 = vmatpush2.bf16.msra.mxu0 %v5768
      %7528 = vmatprep.mubr.bf16.mxu0 %v1901
      %7529 = vmatmul.mubr.bf16.gmra.mxu0 %v1899
      %v7530 = vpop.f32.mrf.mxu0
      %v7531 = vadd.f32 %v7491, %v7530
      %v7532 = vpop.f32.mrf.mxu0
      %v7533 = vpop.f32.mrf.mxu0
      %v7534 = vpop.f32.mrf.mxu0
      %7535 = vdwg.mxu0
      %7536 = vmatprep.subr.bf16.mxu0 0
      %7537 = vmatpush1.bf16.msra.mxu0 %v5783
      %7538 = vmatprep.subr.bf16.mxu0 0
      %7539 = vmatpush1.bf16.msra.mxu0 %v5782
      %7540 = vmatprep.subr.bf16.mxu0 0
      %7541 = vmatpush1.bf16.msra.mxu0 %v5781
      %7542 = vmatprep.subr.bf16.mxu0 0
      %7543 = vmatpush1.bf16.msra.mxu0 %v5780
      %7544 = vmatprep.subr.bf16.mxu0 0
      %7545 = vmatpush1.bf16.msra.mxu0 %v5779
      %7546 = vmatprep.subr.bf16.mxu0 0
      %7547 = vmatpush1.bf16.msra.mxu0 %v5778
      %7548 = vmatprep.subr.bf16.mxu0 0
      %7549 = vmatpush1.bf16.msra.mxu0 %v5777
      %7550 = vmatprep.subr.bf16.mxu0 0
      %7551 = vmatpush1.bf16.msra.mxu0 %v5776
      %7552 = vmatprep.subr.bf16.mxu0 0
      %7553 = vmatpush2.bf16.msra.mxu0 %v5791
      %7554 = vmatprep.subr.bf16.mxu0 0
      %7555 = vmatpush2.bf16.msra.mxu0 %v5790
      %7556 = vmatprep.subr.bf16.mxu0 0
      %7557 = vmatpush2.bf16.msra.mxu0 %v5789
      %7558 = vmatprep.subr.bf16.mxu0 0
      %7559 = vmatpush2.bf16.msra.mxu0 %v5788
      %7560 = vmatprep.subr.bf16.mxu0 0
      %7561 = vmatpush2.bf16.msra.mxu0 %v5787
      %7562 = vmatprep.subr.bf16.mxu0 0
      %7563 = vmatpush2.bf16.msra.mxu0 %v5786
      %7564 = vmatprep.subr.bf16.mxu0 0
      %7565 = vmatpush2.bf16.msra.mxu0 %v5785
      %7566 = vmatprep.subr.bf16.mxu0 0
      %7567 = vmatpush2.bf16.msra.mxu0 %v5784
      %7568 = vmatprep.mubr.bf16.mxu0 %v1939
      %7569 = vmatmul.mubr.bf16.gmra.mxu0 %v1925
      %v7570 = vpop.f32.mrf.mxu0
      %v7571 = vadd.f32 %v7531, %v7570
      %v7572 = vpop.f32.mrf.mxu0
      %v7573 = vpop.f32.mrf.mxu0
      %v7574 = vpop.f32.mrf.mxu0
      %7575 = vdwg.mxu0
      %7576 = vmatprep.subr.bf16.mxu0 0
      %7577 = vmatpush1.bf16.msra.mxu0 %v5799
      %7578 = vmatprep.subr.bf16.mxu0 0
      %7579 = vmatpush1.bf16.msra.mxu0 %v5798
      %7580 = vmatprep.subr.bf16.mxu0 0
      %7581 = vmatpush1.bf16.msra.mxu0 %v5797
      %7582 = vmatprep.subr.bf16.mxu0 0
      %7583 = vmatpush1.bf16.msra.mxu0 %v5796
      %7584 = vmatprep.subr.bf16.mxu0 0
      %7585 = vmatpush1.bf16.msra.mxu0 %v5795
      %7586 = vmatprep.subr.bf16.mxu0 0
      %7587 = vmatpush1.bf16.msra.mxu0 %v5794
      %7588 = vmatprep.subr.bf16.mxu0 0
      %7589 = vmatpush1.bf16.msra.mxu0 %v5793
      %7590 = vmatprep.subr.bf16.mxu0 0
      %7591 = vmatpush1.bf16.msra.mxu0 %v5792
      %7592 = vmatprep.subr.bf16.mxu0 0
      %7593 = vmatpush2.bf16.msra.mxu0 %v5807
      %7594 = vmatprep.subr.bf16.mxu0 0
      %7595 = vmatpush2.bf16.msra.mxu0 %v5806
      %7596 = vmatprep.subr.bf16.mxu0 0
      %7597 = vmatpush2.bf16.msra.mxu0 %v5805
      %7598 = vmatprep.subr.bf16.mxu0 0
      %7599 = vmatpush2.bf16.msra.mxu0 %v5804
      %7600 = vmatprep.subr.bf16.mxu0 0
      %7601 = vmatpush2.bf16.msra.mxu0 %v5803
      %7602 = vmatprep.subr.bf16.mxu0 0
      %7603 = vmatpush2.bf16.msra.mxu0 %v5802
      %7604 = vmatprep.subr.bf16.mxu0 0
      %7605 = vmatpush2.bf16.msra.mxu0 %v5801
      %7606 = vmatprep.subr.bf16.mxu0 0
      %7607 = vmatpush2.bf16.msra.mxu0 %v5800
      %7608 = vmatprep.mubr.bf16.mxu0 %v1949
      %7609 = vmatmul.mubr.bf16.gmra.mxu0 %v1947
      %v7610 = vpop.f32.mrf.mxu0
      %v7611 = vadd.f32 %v7571, %v7610
      %v7612 = vpop.f32.mrf.mxu0
      %v7613 = vpop.f32.mrf.mxu0
      %v7614 = vpop.f32.mrf.mxu0
      %7615 = vdwg.mxu0
      %7616 = vmatprep.subr.bf16.mxu0 0
      %7617 = vmatpush1.bf16.msra.mxu0 %v5815
      %7618 = vmatprep.subr.bf16.mxu0 0
      %7619 = vmatpush1.bf16.msra.mxu0 %v5814
      %7620 = vmatprep.subr.bf16.mxu0 0
      %7621 = vmatpush1.bf16.msra.mxu0 %v5813
      %7622 = vmatprep.subr.bf16.mxu0 0
      %7623 = vmatpush1.bf16.msra.mxu0 %v5812
      %7624 = vmatprep.subr.bf16.mxu0 0
      %7625 = vmatpush1.bf16.msra.mxu0 %v5811
      %7626 = vmatprep.subr.bf16.mxu0 0
      %7627 = vmatpush1.bf16.msra.mxu0 %v5810
      %7628 = vmatprep.subr.bf16.mxu0 0
      %7629 = vmatpush1.bf16.msra.mxu0 %v5809
      %7630 = vmatprep.subr.bf16.mxu0 0
      %7631 = vmatpush1.bf16.msra.mxu0 %v5808
      %7632 = vmatprep.subr.bf16.mxu0 0
      %7633 = vmatpush2.bf16.msra.mxu0 %v5823
      %7634 = vmatprep.subr.bf16.mxu0 0
      %7635 = vmatpush2.bf16.msra.mxu0 %v5822
      %7636 = vmatprep.subr.bf16.mxu0 0
      %7637 = vmatpush2.bf16.msra.mxu0 %v5821
      %7638 = vmatprep.subr.bf16.mxu0 0
      %7639 = vmatpush2.bf16.msra.mxu0 %v5820
      %7640 = vmatprep.subr.bf16.mxu0 0
      %7641 = vmatpush2.bf16.msra.mxu0 %v5819
      %7642 = vmatprep.subr.bf16.mxu0 0
      %7643 = vmatpush2.bf16.msra.mxu0 %v5818
      %7644 = vmatprep.subr.bf16.mxu0 0
      %7645 = vmatpush2.bf16.msra.mxu0 %v5817
      %7646 = vmatprep.subr.bf16.mxu0 0
      %7647 = vmatpush2.bf16.msra.mxu0 %v5816
      %7648 = vmatprep.mubr.bf16.mxu0 %v1946
      %7649 = vmatmul.mubr.bf16.gmra.mxu0 %v1932
      %v7650 = vpop.f32.mrf.mxu0
      %v7651 = vadd.f32 %v7611, %v7650
      %v7652 = vpop.f32.mrf.mxu0
      %v7653 = vpop.f32.mrf.mxu0
      %v7654 = vpop.f32.mrf.mxu0
      %7655 = vdwg.mxu0
      %7656 = vmatprep.subr.bf16.mxu0 0
      %7657 = vmatpush1.bf16.msra.mxu0 %v5831
      %7658 = vmatprep.subr.bf16.mxu0 0
      %7659 = vmatpush1.bf16.msra.mxu0 %v5830
      %7660 = vmatprep.subr.bf16.mxu0 0
      %7661 = vmatpush1.bf16.msra.mxu0 %v5829
      %7662 = vmatprep.subr.bf16.mxu0 0
      %7663 = vmatpush1.bf16.msra.mxu0 %v5828
      %7664 = vmatprep.subr.bf16.mxu0 0
      %7665 = vmatpush1.bf16.msra.mxu0 %v5827
      %7666 = vmatprep.subr.bf16.mxu0 0
      %7667 = vmatpush1.bf16.msra.mxu0 %v5826
      %7668 = vmatprep.subr.bf16.mxu0 0
      %7669 = vmatpush1.bf16.msra.mxu0 %v5825
      %7670 = vmatprep.subr.bf16.mxu0 0
      %7671 = vmatpush1.bf16.msra.mxu0 %v5824
      %7672 = vmatprep.subr.bf16.mxu0 0
      %7673 = vmatpush2.bf16.msra.mxu0 %v5839
      %7674 = vmatprep.subr.bf16.mxu0 0
      %7675 = vmatpush2.bf16.msra.mxu0 %v5838
      %7676 = vmatprep.subr.bf16.mxu0 0
      %7677 = vmatpush2.bf16.msra.mxu0 %v5837
      %7678 = vmatprep.subr.bf16.mxu0 0
      %7679 = vmatpush2.bf16.msra.mxu0 %v5836
      %7680 = vmatprep.subr.bf16.mxu0 0
      %7681 = vmatpush2.bf16.msra.mxu0 %v5835
      %7682 = vmatprep.subr.bf16.mxu0 0
      %7683 = vmatpush2.bf16.msra.mxu0 %v5834
      %7684 = vmatprep.subr.bf16.mxu0 0
      %7685 = vmatpush2.bf16.msra.mxu0 %v5833
      %7686 = vmatprep.subr.bf16.mxu0 0
      %7687 = vmatpush2.bf16.msra.mxu0 %v5832
      %7688 = vmatprep.mubr.bf16.mxu0 %v1950
      %7689 = vmatmul.mubr.bf16.gmra.mxu0 %v1948
      %v7690 = vpop.f32.mrf.mxu0
      %v7691 = vadd.f32 %v7651, %v7690
      %v7692 = vpop.f32.mrf.mxu0
      %v7693 = vpop.f32.mrf.mxu0
      %v7694 = vpop.f32.mrf.mxu0
      %7695 = vdwg.mxu0
      %7696 = vmatprep.subr.bf16.mxu0 0
      %7697 = vmatpush1.bf16.msra.mxu0 %v5847
      %7698 = vmatprep.subr.bf16.mxu0 0
      %7699 = vmatpush1.bf16.msra.mxu0 %v5846
      %7700 = vmatprep.subr.bf16.mxu0 0
      %7701 = vmatpush1.bf16.msra.mxu0 %v5845
      %7702 = vmatprep.subr.bf16.mxu0 0
      %7703 = vmatpush1.bf16.msra.mxu0 %v5844
      %7704 = vmatprep.subr.bf16.mxu0 0
      %7705 = vmatpush1.bf16.msra.mxu0 %v5843
      %7706 = vmatprep.subr.bf16.mxu0 0
      %7707 = vmatpush1.bf16.msra.mxu0 %v5842
      %7708 = vmatprep.subr.bf16.mxu0 0
      %7709 = vmatpush1.bf16.msra.mxu0 %v5841
      %7710 = vmatprep.subr.bf16.mxu0 0
      %7711 = vmatpush1.bf16.msra.mxu0 %v5840
      %7712 = vmatprep.subr.bf16.mxu0 0
      %7713 = vmatpush2.bf16.msra.mxu0 %v5855
      %7714 = vmatprep.subr.bf16.mxu0 0
      %7715 = vmatpush2.bf16.msra.mxu0 %v5854
      %7716 = vmatprep.subr.bf16.mxu0 0
      %7717 = vmatpush2.bf16.msra.mxu0 %v5853
      %7718 = vmatprep.subr.bf16.mxu0 0
      %7719 = vmatpush2.bf16.msra.mxu0 %v5852
      %7720 = vmatprep.subr.bf16.mxu0 0
      %7721 = vmatpush2.bf16.msra.mxu0 %v5851
      %7722 = vmatprep.subr.bf16.mxu0 0
      %7723 = vmatpush2.bf16.msra.mxu0 %v5850
      %7724 = vmatprep.subr.bf16.mxu0 0
      %7725 = vmatpush2.bf16.msra.mxu0 %v5849
      %7726 = vmatprep.subr.bf16.mxu0 0
      %7727 = vmatpush2.bf16.msra.mxu0 %v5848
      %7728 = vmatprep.mubr.bf16.mxu0 %v1988
      %7729 = vmatmul.mubr.bf16.gmra.mxu0 %v1974
      %v7730 = vpop.f32.mrf.mxu0
      %v7731 = vadd.f32 %v7691, %v7730
      %v7732 = vpop.f32.mrf.mxu0
      %v7733 = vpop.f32.mrf.mxu0
      %v7734 = vpop.f32.mrf.mxu0
      %7735 = vdwg.mxu0
      %7736 = vmatprep.subr.bf16.mxu0 0
      %7737 = vmatpush1.bf16.msra.mxu0 %v5863
      %7738 = vmatprep.subr.bf16.mxu0 0
      %7739 = vmatpush1.bf16.msra.mxu0 %v5862
      %7740 = vmatprep.subr.bf16.mxu0 0
      %7741 = vmatpush1.bf16.msra.mxu0 %v5861
      %7742 = vmatprep.subr.bf16.mxu0 0
      %7743 = vmatpush1.bf16.msra.mxu0 %v5860
      %7744 = vmatprep.subr.bf16.mxu0 0
      %7745 = vmatpush1.bf16.msra.mxu0 %v5859
      %7746 = vmatprep.subr.bf16.mxu0 0
      %7747 = vmatpush1.bf16.msra.mxu0 %v5858
      %7748 = vmatprep.subr.bf16.mxu0 0
      %7749 = vmatpush1.bf16.msra.mxu0 %v5857
      %7750 = vmatprep.subr.bf16.mxu0 0
      %7751 = vmatpush1.bf16.msra.mxu0 %v5856
      %7752 = vmatprep.subr.bf16.mxu0 0
      %7753 = vmatpush2.bf16.msra.mxu0 %v5871
      %7754 = vmatprep.subr.bf16.mxu0 0
      %7755 = vmatpush2.bf16.msra.mxu0 %v5870
      %7756 = vmatprep.subr.bf16.mxu0 0
      %7757 = vmatpush2.bf16.msra.mxu0 %v5869
      %7758 = vmatprep.subr.bf16.mxu0 0
      %7759 = vmatpush2.bf16.msra.mxu0 %v5868
      %7760 = vmatprep.subr.bf16.mxu0 0
      %7761 = vmatpush2.bf16.msra.mxu0 %v5867
      %7762 = vmatprep.subr.bf16.mxu0 0
      %7763 = vmatpush2.bf16.msra.mxu0 %v5866
      %7764 = vmatprep.subr.bf16.mxu0 0
      %7765 = vmatpush2.bf16.msra.mxu0 %v5865
      %7766 = vmatprep.subr.bf16.mxu0 0
      %7767 = vmatpush2.bf16.msra.mxu0 %v5864
      %7768 = vmatprep.mubr.bf16.mxu0 %v1998
      %7769 = vmatmul.mubr.bf16.gmra.mxu0 %v1996
      %v7770 = vpop.f32.mrf.mxu0
      %v7771 = vadd.f32 %v7731, %v7770
      %v7772 = vpop.f32.mrf.mxu0
      %v7773 = vpop.f32.mrf.mxu0
      %v7774 = vpop.f32.mrf.mxu0
      %7775 = vdwg.mxu0
      %7776 = vmatprep.subr.bf16.mxu0 0
      %7777 = vmatpush1.bf16.msra.mxu0 %v5879
      %7778 = vmatprep.subr.bf16.mxu0 0
      %7779 = vmatpush1.bf16.msra.mxu0 %v5878
      %7780 = vmatprep.subr.bf16.mxu0 0
      %7781 = vmatpush1.bf16.msra.mxu0 %v5877
      %7782 = vmatprep.subr.bf16.mxu0 0
      %7783 = vmatpush1.bf16.msra.mxu0 %v5876
      %7784 = vmatprep.subr.bf16.mxu0 0
      %7785 = vmatpush1.bf16.msra.mxu0 %v5875
      %7786 = vmatprep.subr.bf16.mxu0 0
      %7787 = vmatpush1.bf16.msra.mxu0 %v5874
      %7788 = vmatprep.subr.bf16.mxu0 0
      %7789 = vmatpush1.bf16.msra.mxu0 %v5873
      %7790 = vmatprep.subr.bf16.mxu0 0
      %7791 = vmatpush1.bf16.msra.mxu0 %v5872
      %7792 = vmatprep.subr.bf16.mxu0 0
      %7793 = vmatpush2.bf16.msra.mxu0 %v5887
      %7794 = vmatprep.subr.bf16.mxu0 0
      %7795 = vmatpush2.bf16.msra.mxu0 %v5886
      %7796 = vmatprep.subr.bf16.mxu0 0
      %7797 = vmatpush2.bf16.msra.mxu0 %v5885
      %7798 = vmatprep.subr.bf16.mxu0 0
      %7799 = vmatpush2.bf16.msra.mxu0 %v5884
      %7800 = vmatprep.subr.bf16.mxu0 0
      %7801 = vmatpush2.bf16.msra.mxu0 %v5883
      %7802 = vmatprep.subr.bf16.mxu0 0
      %7803 = vmatpush2.bf16.msra.mxu0 %v5882
      %7804 = vmatprep.subr.bf16.mxu0 0
      %7805 = vmatpush2.bf16.msra.mxu0 %v5881
      %7806 = vmatprep.subr.bf16.mxu0 0
      %7807 = vmatpush2.bf16.msra.mxu0 %v5880
      %7808 = vmatprep.mubr.bf16.mxu0 %v1995
      %7809 = vmatmul.mubr.bf16.gmra.mxu0 %v1981
      %v7810 = vpop.f32.mrf.mxu0
      %v7811 = vadd.f32 %v7771, %v7810
      %v7812 = vpop.f32.mrf.mxu0
      %v7813 = vpop.f32.mrf.mxu0
      %v7814 = vpop.f32.mrf.mxu0
      %7815 = vdwg.mxu0
      %7816 = vmatprep.subr.bf16.mxu0 0
      %7817 = vmatpush1.bf16.msra.mxu0 %v5895
      %7818 = vmatprep.subr.bf16.mxu0 0
      %7819 = vmatpush1.bf16.msra.mxu0 %v5894
      %7820 = vmatprep.subr.bf16.mxu0 0
      %7821 = vmatpush1.bf16.msra.mxu0 %v5893
      %7822 = vmatprep.subr.bf16.mxu0 0
      %7823 = vmatpush1.bf16.msra.mxu0 %v5892
      %7824 = vmatprep.subr.bf16.mxu0 0
      %7825 = vmatpush1.bf16.msra.mxu0 %v5891
      %7826 = vmatprep.subr.bf16.mxu0 0
      %7827 = vmatpush1.bf16.msra.mxu0 %v5890
      %7828 = vmatprep.subr.bf16.mxu0 0
      %7829 = vmatpush1.bf16.msra.mxu0 %v5889
      %7830 = vmatprep.subr.bf16.mxu0 0
      %7831 = vmatpush1.bf16.msra.mxu0 %v5888
      %7832 = vmatprep.subr.bf16.mxu0 0
      %7833 = vmatpush2.bf16.msra.mxu0 %v5903
      %7834 = vmatprep.subr.bf16.mxu0 0
      %7835 = vmatpush2.bf16.msra.mxu0 %v5902
      %7836 = vmatprep.subr.bf16.mxu0 0
      %7837 = vmatpush2.bf16.msra.mxu0 %v5901
      %7838 = vmatprep.subr.bf16.mxu0 0
      %7839 = vmatpush2.bf16.msra.mxu0 %v5900
      %7840 = vmatprep.subr.bf16.mxu0 0
      %7841 = vmatpush2.bf16.msra.mxu0 %v5899
      %7842 = vmatprep.subr.bf16.mxu0 0
      %7843 = vmatpush2.bf16.msra.mxu0 %v5898
      %7844 = vmatprep.subr.bf16.mxu0 0
      %7845 = vmatpush2.bf16.msra.mxu0 %v5897
      %7846 = vmatprep.subr.bf16.mxu0 0
      %7847 = vmatpush2.bf16.msra.mxu0 %v5896
      %7848 = vmatprep.mubr.bf16.mxu0 %v1999
      %7849 = vmatmul.mubr.bf16.gmra.mxu0 %v1997
      %v7850 = vpop.f32.mrf.mxu0
      %v7851 = vadd.f32 %v7811, %v7850
      %v7852 = vpop.f32.mrf.mxu0
      %v7853 = vpop.f32.mrf.mxu0
      %v7854 = vpop.f32.mrf.mxu0
      %7855 = vdwg.mxu0
      %7856 = vmatprep.subr.bf16.mxu0 0
      %7857 = vmatpush1.bf16.msra.mxu0 %v5911
      %7858 = vmatprep.subr.bf16.mxu0 0
      %7859 = vmatpush1.bf16.msra.mxu0 %v5910
      %7860 = vmatprep.subr.bf16.mxu0 0
      %7861 = vmatpush1.bf16.msra.mxu0 %v5909
      %7862 = vmatprep.subr.bf16.mxu0 0
      %7863 = vmatpush1.bf16.msra.mxu0 %v5908
      %7864 = vmatprep.subr.bf16.mxu0 0
      %7865 = vmatpush1.bf16.msra.mxu0 %v5907
      %7866 = vmatprep.subr.bf16.mxu0 0
      %7867 = vmatpush1.bf16.msra.mxu0 %v5906
      %7868 = vmatprep.subr.bf16.mxu0 0
      %7869 = vmatpush1.bf16.msra.mxu0 %v5905
      %7870 = vmatprep.subr.bf16.mxu0 0
      %7871 = vmatpush1.bf16.msra.mxu0 %v5904
      %7872 = vmatprep.subr.bf16.mxu0 0
      %7873 = vmatpush2.bf16.msra.mxu0 %v5919
      %7874 = vmatprep.subr.bf16.mxu0 0
      %7875 = vmatpush2.bf16.msra.mxu0 %v5918
      %7876 = vmatprep.subr.bf16.mxu0 0
      %7877 = vmatpush2.bf16.msra.mxu0 %v5917
      %7878 = vmatprep.subr.bf16.mxu0 0
      %7879 = vmatpush2.bf16.msra.mxu0 %v5916
      %7880 = vmatprep.subr.bf16.mxu0 0
      %7881 = vmatpush2.bf16.msra.mxu0 %v5915
      %7882 = vmatprep.subr.bf16.mxu0 0
      %7883 = vmatpush2.bf16.msra.mxu0 %v5914
      %7884 = vmatprep.subr.bf16.mxu0 0
      %7885 = vmatpush2.bf16.msra.mxu0 %v5913
      %7886 = vmatprep.subr.bf16.mxu0 0
      %7887 = vmatpush2.bf16.msra.mxu0 %v5912
      %7888 = vmatprep.mubr.bf16.mxu0 %v2037
      %7889 = vmatmul.mubr.bf16.gmra.mxu0 %v2023
      %v7890 = vpop.f32.mrf.mxu0
      %v7891 = vadd.f32 %v7851, %v7890
      %v7892 = vpop.f32.mrf.mxu0
      %v7893 = vpop.f32.mrf.mxu0
      %v7894 = vpop.f32.mrf.mxu0
      %7895 = vdwg.mxu0
      %7896 = vmatprep.subr.bf16.mxu0 0
      %7897 = vmatpush1.bf16.msra.mxu0 %v5927
      %7898 = vmatprep.subr.bf16.mxu0 0
      %7899 = vmatpush1.bf16.msra.mxu0 %v5926
      %7900 = vmatprep.subr.bf16.mxu0 0
      %7901 = vmatpush1.bf16.msra.mxu0 %v5925
      %7902 = vmatprep.subr.bf16.mxu0 0
      %7903 = vmatpush1.bf16.msra.mxu0 %v5924
      %7904 = vmatprep.subr.bf16.mxu0 0
      %7905 = vmatpush1.bf16.msra.mxu0 %v5923
      %7906 = vmatprep.subr.bf16.mxu0 0
      %7907 = vmatpush1.bf16.msra.mxu0 %v5922
      %7908 = vmatprep.subr.bf16.mxu0 0
      %7909 = vmatpush1.bf16.msra.mxu0 %v5921
      %7910 = vmatprep.subr.bf16.mxu0 0
      %7911 = vmatpush1.bf16.msra.mxu0 %v5920
      %7912 = vmatprep.subr.bf16.mxu0 0
      %7913 = vmatpush2.bf16.msra.mxu0 %v5935
      %7914 = vmatprep.subr.bf16.mxu0 0
      %7915 = vmatpush2.bf16.msra.mxu0 %v5934
      %7916 = vmatprep.subr.bf16.mxu0 0
      %7917 = vmatpush2.bf16.msra.mxu0 %v5933
      %7918 = vmatprep.subr.bf16.mxu0 0
      %7919 = vmatpush2.bf16.msra.mxu0 %v5932
      %7920 = vmatprep.subr.bf16.mxu0 0
      %7921 = vmatpush2.bf16.msra.mxu0 %v5931
      %7922 = vmatprep.subr.bf16.mxu0 0
      %7923 = vmatpush2.bf16.msra.mxu0 %v5930
      %7924 = vmatprep.subr.bf16.mxu0 0
      %7925 = vmatpush2.bf16.msra.mxu0 %v5929
      %7926 = vmatprep.subr.bf16.mxu0 0
      %7927 = vmatpush2.bf16.msra.mxu0 %v5928
      %7928 = vmatprep.mubr.bf16.mxu0 %v2047
      %7929 = vmatmul.mubr.bf16.gmra.mxu0 %v2045
      %v7930 = vpop.f32.mrf.mxu0
      %v7931 = vadd.f32 %v7891, %v7930
      %v7932 = vpop.f32.mrf.mxu0
      %v7933 = vpop.f32.mrf.mxu0
      %v7934 = vpop.f32.mrf.mxu0
      %7935 = vdwg.mxu0
      %7936 = vmatprep.subr.bf16.mxu0 0
      %7937 = vmatpush1.bf16.msra.mxu0 %v5943
      %7938 = vmatprep.subr.bf16.mxu0 0
      %7939 = vmatpush1.bf16.msra.mxu0 %v5942
      %7940 = vmatprep.subr.bf16.mxu0 0
      %7941 = vmatpush1.bf16.msra.mxu0 %v5941
      %7942 = vmatprep.subr.bf16.mxu0 0
      %7943 = vmatpush1.bf16.msra.mxu0 %v5940
      %7944 = vmatprep.subr.bf16.mxu0 0
      %7945 = vmatpush1.bf16.msra.mxu0 %v5939
      %7946 = vmatprep.subr.bf16.mxu0 0
      %7947 = vmatpush1.bf16.msra.mxu0 %v5938
      %7948 = vmatprep.subr.bf16.mxu0 0
      %7949 = vmatpush1.bf16.msra.mxu0 %v5937
      %7950 = vmatprep.subr.bf16.mxu0 0
      %7951 = vmatpush1.bf16.msra.mxu0 %v5936
      %7952 = vmatprep.subr.bf16.mxu0 0
      %7953 = vmatpush2.bf16.msra.mxu0 %v5951
      %7954 = vmatprep.subr.bf16.mxu0 0
      %7955 = vmatpush2.bf16.msra.mxu0 %v5950
      %7956 = vmatprep.subr.bf16.mxu0 0
      %7957 = vmatpush2.bf16.msra.mxu0 %v5949
      %7958 = vmatprep.subr.bf16.mxu0 0
      %7959 = vmatpush2.bf16.msra.mxu0 %v5948
      %7960 = vmatprep.subr.bf16.mxu0 0
      %7961 = vmatpush2.bf16.msra.mxu0 %v5947
      %7962 = vmatprep.subr.bf16.mxu0 0
      %7963 = vmatpush2.bf16.msra.mxu0 %v5946
      %7964 = vmatprep.subr.bf16.mxu0 0
      %7965 = vmatpush2.bf16.msra.mxu0 %v5945
      %7966 = vmatprep.subr.bf16.mxu0 0
      %7967 = vmatpush2.bf16.msra.mxu0 %v5944
      %7968 = vmatprep.mubr.bf16.mxu0 %v2044
      %7969 = vmatmul.mubr.bf16.gmra.mxu0 %v2030
      %v7970 = vpop.f32.mrf.mxu0
      %v7971 = vadd.f32 %v7931, %v7970
      %v7972 = vpop.f32.mrf.mxu0
      %v7973 = vpop.f32.mrf.mxu0
      %v7974 = vpop.f32.mrf.mxu0
      %7975 = vdwg.mxu0
      %7976 = vmatprep.subr.bf16.mxu0 0
      %7977 = vmatpush1.bf16.msra.mxu0 %v5959
      %7978 = vmatprep.subr.bf16.mxu0 0
      %7979 = vmatpush1.bf16.msra.mxu0 %v5958
      %7980 = vmatprep.subr.bf16.mxu0 0
      %7981 = vmatpush1.bf16.msra.mxu0 %v5957
      %7982 = vmatprep.subr.bf16.mxu0 0
      %7983 = vmatpush1.bf16.msra.mxu0 %v5956
      %7984 = vmatprep.subr.bf16.mxu0 0
      %7985 = vmatpush1.bf16.msra.mxu0 %v5955
      %7986 = vmatprep.subr.bf16.mxu0 0
      %7987 = vmatpush1.bf16.msra.mxu0 %v5954
      %7988 = vmatprep.subr.bf16.mxu0 0
      %7989 = vmatpush1.bf16.msra.mxu0 %v5953
      %7990 = vmatprep.subr.bf16.mxu0 0
      %7991 = vmatpush1.bf16.msra.mxu0 %v5952
      %7992 = vmatprep.subr.bf16.mxu0 0
      %7993 = vmatpush2.bf16.msra.mxu0 %v5967
      %7994 = vmatprep.subr.bf16.mxu0 0
      %7995 = vmatpush2.bf16.msra.mxu0 %v5966
      %7996 = vmatprep.subr.bf16.mxu0 0
      %7997 = vmatpush2.bf16.msra.mxu0 %v5965
      %7998 = vmatprep.subr.bf16.mxu0 0
      %7999 = vmatpush2.bf16.msra.mxu0 %v5964
      %8000 = vmatprep.subr.bf16.mxu0 0
      %8001 = vmatpush2.bf16.msra.mxu0 %v5963
      %8002 = vmatprep.subr.bf16.mxu0 0
      %8003 = vmatpush2.bf16.msra.mxu0 %v5962
      %8004 = vmatprep.subr.bf16.mxu0 0
      %8005 = vmatpush2.bf16.msra.mxu0 %v5961
      %8006 = vmatprep.subr.bf16.mxu0 0
      %8007 = vmatpush2.bf16.msra.mxu0 %v5960
      %8008 = vmatprep.mubr.bf16.mxu0 %v2048
      %8009 = vmatmul.mubr.bf16.gmra.mxu0 %v2046
      %v8010 = vpop.f32.mrf.mxu0
      %v8011 = vadd.f32 %v7971, %v8010
      %v8012 = vpop.f32.mrf.mxu0
      %v8013 = vpop.f32.mrf.mxu0
      %v8014 = vpop.f32.mrf.mxu0
      %8015 = vdwg.mxu0
      %8016 = vmatprep.subr.bf16.mxu0 0
      %8017 = vmatpush1.bf16.msra.mxu0 %v5975
      %8018 = vmatprep.subr.bf16.mxu0 0
      %8019 = vmatpush1.bf16.msra.mxu0 %v5974
      %8020 = vmatprep.subr.bf16.mxu0 0
      %8021 = vmatpush1.bf16.msra.mxu0 %v5973
      %8022 = vmatprep.subr.bf16.mxu0 0
      %8023 = vmatpush1.bf16.msra.mxu0 %v5972
      %8024 = vmatprep.subr.bf16.mxu0 0
      %8025 = vmatpush1.bf16.msra.mxu0 %v5971
      %8026 = vmatprep.subr.bf16.mxu0 0
      %8027 = vmatpush1.bf16.msra.mxu0 %v5970
      %8028 = vmatprep.subr.bf16.mxu0 0
      %8029 = vmatpush1.bf16.msra.mxu0 %v5969
      %8030 = vmatprep.subr.bf16.mxu0 0
      %8031 = vmatpush1.bf16.msra.mxu0 %v5968
      %8032 = vmatprep.subr.bf16.mxu0 0
      %8033 = vmatpush2.bf16.msra.mxu0 %v5983
      %8034 = vmatprep.subr.bf16.mxu0 0
      %8035 = vmatpush2.bf16.msra.mxu0 %v5982
      %8036 = vmatprep.subr.bf16.mxu0 0
      %8037 = vmatpush2.bf16.msra.mxu0 %v5981
      %8038 = vmatprep.subr.bf16.mxu0 0
      %8039 = vmatpush2.bf16.msra.mxu0 %v5980
      %8040 = vmatprep.subr.bf16.mxu0 0
      %8041 = vmatpush2.bf16.msra.mxu0 %v5979
      %8042 = vmatprep.subr.bf16.mxu0 0
      %8043 = vmatpush2.bf16.msra.mxu0 %v5978
      %8044 = vmatprep.subr.bf16.mxu0 0
      %8045 = vmatpush2.bf16.msra.mxu0 %v5977
      %8046 = vmatprep.subr.bf16.mxu0 0
      %8047 = vmatpush2.bf16.msra.mxu0 %v5976
      %8048 = vmatprep.mubr.bf16.mxu0 %v2086
      %8049 = vmatmul.mubr.bf16.gmra.mxu0 %v2072
      %v8050 = vpop.f32.mrf.mxu0
      %v8051 = vadd.f32 %v8011, %v8050
      %v8052 = vpop.f32.mrf.mxu0
      %v8053 = vpop.f32.mrf.mxu0
      %v8054 = vpop.f32.mrf.mxu0
      %8055 = vdwg.mxu0
      %8056 = vmatprep.subr.bf16.mxu0 0
      %8057 = vmatpush1.bf16.msra.mxu0 %v5991
      %8058 = vmatprep.subr.bf16.mxu0 0
      %8059 = vmatpush1.bf16.msra.mxu0 %v5990
      %8060 = vmatprep.subr.bf16.mxu0 0
      %8061 = vmatpush1.bf16.msra.mxu0 %v5989
      %8062 = vmatprep.subr.bf16.mxu0 0
      %8063 = vmatpush1.bf16.msra.mxu0 %v5988
      %8064 = vmatprep.subr.bf16.mxu0 0
      %8065 = vmatpush1.bf16.msra.mxu0 %v5987
      %8066 = vmatprep.subr.bf16.mxu0 0
      %8067 = vmatpush1.bf16.msra.mxu0 %v5986
      %8068 = vmatprep.subr.bf16.mxu0 0
      %8069 = vmatpush1.bf16.msra.mxu0 %v5985
      %8070 = vmatprep.subr.bf16.mxu0 0
      %8071 = vmatpush1.bf16.msra.mxu0 %v5984
      %8072 = vmatprep.subr.bf16.mxu0 0
      %8073 = vmatpush2.bf16.msra.mxu0 %v5999
      %8074 = vmatprep.subr.bf16.mxu0 0
      %8075 = vmatpush2.bf16.msra.mxu0 %v5998
      %8076 = vmatprep.subr.bf16.mxu0 0
      %8077 = vmatpush2.bf16.msra.mxu0 %v5997
      %8078 = vmatprep.subr.bf16.mxu0 0
      %8079 = vmatpush2.bf16.msra.mxu0 %v5996
      %8080 = vmatprep.subr.bf16.mxu0 0
      %8081 = vmatpush2.bf16.msra.mxu0 %v5995
      %8082 = vmatprep.subr.bf16.mxu0 0
      %8083 = vmatpush2.bf16.msra.mxu0 %v5994
      %8084 = vmatprep.subr.bf16.mxu0 0
      %8085 = vmatpush2.bf16.msra.mxu0 %v5993
      %8086 = vmatprep.subr.bf16.mxu0 0
      %8087 = vmatpush2.bf16.msra.mxu0 %v5992
      %8088 = vmatprep.mubr.bf16.mxu0 %v2096
      %8089 = vmatmul.mubr.bf16.gmra.mxu0 %v2094
      %v8090 = vpop.f32.mrf.mxu0
      %v8091 = vadd.f32 %v8051, %v8090
      %v8092 = vpop.f32.mrf.mxu0
      %v8093 = vpop.f32.mrf.mxu0
      %v8094 = vpop.f32.mrf.mxu0
      %8095 = vdwg.mxu0
      %8096 = vmatprep.subr.bf16.mxu0 0
      %8097 = vmatpush1.bf16.msra.mxu0 %v6007
      %8098 = vmatprep.subr.bf16.mxu0 0
      %8099 = vmatpush1.bf16.msra.mxu0 %v6006
      %8100 = vmatprep.subr.bf16.mxu0 0
      %8101 = vmatpush1.bf16.msra.mxu0 %v6005
      %8102 = vmatprep.subr.bf16.mxu0 0
      %8103 = vmatpush1.bf16.msra.mxu0 %v6004
      %8104 = vmatprep.subr.bf16.mxu0 0
      %8105 = vmatpush1.bf16.msra.mxu0 %v6003
      %8106 = vmatprep.subr.bf16.mxu0 0
      %8107 = vmatpush1.bf16.msra.mxu0 %v6002
      %8108 = vmatprep.subr.bf16.mxu0 0
      %8109 = vmatpush1.bf16.msra.mxu0 %v6001
      %8110 = vmatprep.subr.bf16.mxu0 0
      %8111 = vmatpush1.bf16.msra.mxu0 %v6000
      %8112 = vmatprep.subr.bf16.mxu0 0
      %8113 = vmatpush2.bf16.msra.mxu0 %v6015
      %8114 = vmatprep.subr.bf16.mxu0 0
      %8115 = vmatpush2.bf16.msra.mxu0 %v6014
      %8116 = vmatprep.subr.bf16.mxu0 0
      %8117 = vmatpush2.bf16.msra.mxu0 %v6013
      %8118 = vmatprep.subr.bf16.mxu0 0
      %8119 = vmatpush2.bf16.msra.mxu0 %v6012
      %8120 = vmatprep.subr.bf16.mxu0 0
      %8121 = vmatpush2.bf16.msra.mxu0 %v6011
      %8122 = vmatprep.subr.bf16.mxu0 0
      %8123 = vmatpush2.bf16.msra.mxu0 %v6010
      %8124 = vmatprep.subr.bf16.mxu0 0
      %8125 = vmatpush2.bf16.msra.mxu0 %v6009
      %8126 = vmatprep.subr.bf16.mxu0 0
      %8127 = vmatpush2.bf16.msra.mxu0 %v6008
      %8128 = vmatprep.mubr.bf16.mxu0 %v2093
      %8129 = vmatmul.mubr.bf16.gmra.mxu0 %v2079
      %v8130 = vpop.f32.mrf.mxu0
      %v8131 = vadd.f32 %v8091, %v8130
      %v8132 = vpop.f32.mrf.mxu0
      %v8133 = vpop.f32.mrf.mxu0
      %v8134 = vpop.f32.mrf.mxu0
      %8135 = vdwg.mxu0
      %8136 = vmatprep.subr.bf16.mxu0 0
      %8137 = vmatpush1.bf16.msra.mxu0 %v6023
      %8138 = vmatprep.subr.bf16.mxu0 0
      %8139 = vmatpush1.bf16.msra.mxu0 %v6022
      %8140 = vmatprep.subr.bf16.mxu0 0
      %8141 = vmatpush1.bf16.msra.mxu0 %v6021
      %8142 = vmatprep.subr.bf16.mxu0 0
      %8143 = vmatpush1.bf16.msra.mxu0 %v6020
      %8144 = vmatprep.subr.bf16.mxu0 0
      %8145 = vmatpush1.bf16.msra.mxu0 %v6019
      %8146 = vmatprep.subr.bf16.mxu0 0
      %8147 = vmatpush1.bf16.msra.mxu0 %v6018
      %8148 = vmatprep.subr.bf16.mxu0 0
      %8149 = vmatpush1.bf16.msra.mxu0 %v6017
      %8150 = vmatprep.subr.bf16.mxu0 0
      %8151 = vmatpush1.bf16.msra.mxu0 %v6016
      %8152 = vmatprep.subr.bf16.mxu0 0
      %8153 = vmatpush2.bf16.msra.mxu0 %v6031
      %8154 = vmatprep.subr.bf16.mxu0 0
      %8155 = vmatpush2.bf16.msra.mxu0 %v6030
      %8156 = vmatprep.subr.bf16.mxu0 0
      %8157 = vmatpush2.bf16.msra.mxu0 %v6029
      %8158 = vmatprep.subr.bf16.mxu0 0
      %8159 = vmatpush2.bf16.msra.mxu0 %v6028
      %8160 = vmatprep.subr.bf16.mxu0 0
      %8161 = vmatpush2.bf16.msra.mxu0 %v6027
      %8162 = vmatprep.subr.bf16.mxu0 0
      %8163 = vmatpush2.bf16.msra.mxu0 %v6026
      %8164 = vmatprep.subr.bf16.mxu0 0
      %8165 = vmatpush2.bf16.msra.mxu0 %v6025
      %8166 = vmatprep.subr.bf16.mxu0 0
      %8167 = vmatpush2.bf16.msra.mxu0 %v6024
      %8168 = vmatprep.mubr.bf16.mxu0 %v2097
      %8169 = vmatmul.mubr.bf16.gmra.mxu0 %v2095
      %v8170 = vpop.f32.mrf.mxu0
      %v8171 = vadd.f32 %v8131, %v8170
      %v8172 = vpop.f32.mrf.mxu0
      %v8173 = vpop.f32.mrf.mxu0
      %v8174 = vpop.f32.mrf.mxu0
      %8175 = vdwg.mxu0
      %8176 = vmatprep.subr.bf16.mxu0 0
      %8177 = vmatpush1.bf16.msra.mxu0 %v6039
      %8178 = vmatprep.subr.bf16.mxu0 0
      %8179 = vmatpush1.bf16.msra.mxu0 %v6038
      %8180 = vmatprep.subr.bf16.mxu0 0
      %8181 = vmatpush1.bf16.msra.mxu0 %v6037
      %8182 = vmatprep.subr.bf16.mxu0 0
      %8183 = vmatpush1.bf16.msra.mxu0 %v6036
      %8184 = vmatprep.subr.bf16.mxu0 0
      %8185 = vmatpush1.bf16.msra.mxu0 %v6035
      %8186 = vmatprep.subr.bf16.mxu0 0
      %8187 = vmatpush1.bf16.msra.mxu0 %v6034
      %8188 = vmatprep.subr.bf16.mxu0 0
      %8189 = vmatpush1.bf16.msra.mxu0 %v6033
      %8190 = vmatprep.subr.bf16.mxu0 0
      %8191 = vmatpush1.bf16.msra.mxu0 %v6032
      %8192 = vmatprep.subr.bf16.mxu0 0
      %8193 = vmatpush2.bf16.msra.mxu0 %v6047
      %8194 = vmatprep.subr.bf16.mxu0 0
      %8195 = vmatpush2.bf16.msra.mxu0 %v6046
      %8196 = vmatprep.subr.bf16.mxu0 0
      %8197 = vmatpush2.bf16.msra.mxu0 %v6045
      %8198 = vmatprep.subr.bf16.mxu0 0
      %8199 = vmatpush2.bf16.msra.mxu0 %v6044
      %8200 = vmatprep.subr.bf16.mxu0 0
      %8201 = vmatpush2.bf16.msra.mxu0 %v6043
      %8202 = vmatprep.subr.bf16.mxu0 0
      %8203 = vmatpush2.bf16.msra.mxu0 %v6042
      %8204 = vmatprep.subr.bf16.mxu0 0
      %8205 = vmatpush2.bf16.msra.mxu0 %v6041
      %8206 = vmatprep.subr.bf16.mxu0 0
      %8207 = vmatpush2.bf16.msra.mxu0 %v6040
      %8208 = vmatprep.mubr.bf16.mxu0 %v2135
      %8209 = vmatmul.mubr.bf16.gmra.mxu0 %v2121
      %v8210 = vpop.f32.mrf.mxu0
      %v8211 = vadd.f32 %v8171, %v8210
      %v8212 = vpop.f32.mrf.mxu0
      %v8213 = vpop.f32.mrf.mxu0
      %v8214 = vpop.f32.mrf.mxu0
      %8215 = vdwg.mxu0
      %8216 = vmatprep.subr.bf16.mxu0 0
      %8217 = vmatpush1.bf16.msra.mxu0 %v6055
      %8218 = vmatprep.subr.bf16.mxu0 0
      %8219 = vmatpush1.bf16.msra.mxu0 %v6054
      %8220 = vmatprep.subr.bf16.mxu0 0
      %8221 = vmatpush1.bf16.msra.mxu0 %v6053
      %8222 = vmatprep.subr.bf16.mxu0 0
      %8223 = vmatpush1.bf16.msra.mxu0 %v6052
      %8224 = vmatprep.subr.bf16.mxu0 0
      %8225 = vmatpush1.bf16.msra.mxu0 %v6051
      %8226 = vmatprep.subr.bf16.mxu0 0
      %8227 = vmatpush1.bf16.msra.mxu0 %v6050
      %8228 = vmatprep.subr.bf16.mxu0 0
      %8229 = vmatpush1.bf16.msra.mxu0 %v6049
      %8230 = vmatprep.subr.bf16.mxu0 0
      %8231 = vmatpush1.bf16.msra.mxu0 %v6048
      %8232 = vmatprep.subr.bf16.mxu0 0
      %8233 = vmatpush2.bf16.msra.mxu0 %v6063
      %8234 = vmatprep.subr.bf16.mxu0 0
      %8235 = vmatpush2.bf16.msra.mxu0 %v6062
      %8236 = vmatprep.subr.bf16.mxu0 0
      %8237 = vmatpush2.bf16.msra.mxu0 %v6061
      %8238 = vmatprep.subr.bf16.mxu0 0
      %8239 = vmatpush2.bf16.msra.mxu0 %v6060
      %8240 = vmatprep.subr.bf16.mxu0 0
      %8241 = vmatpush2.bf16.msra.mxu0 %v6059
      %8242 = vmatprep.subr.bf16.mxu0 0
      %8243 = vmatpush2.bf16.msra.mxu0 %v6058
      %8244 = vmatprep.subr.bf16.mxu0 0
      %8245 = vmatpush2.bf16.msra.mxu0 %v6057
      %8246 = vmatprep.subr.bf16.mxu0 0
      %8247 = vmatpush2.bf16.msra.mxu0 %v6056
      %8248 = vmatprep.mubr.bf16.mxu0 %v2145
      %8249 = vmatmul.mubr.bf16.gmra.mxu0 %v2143
      %v8250 = vpop.f32.mrf.mxu0
      %v8251 = vadd.f32 %v8211, %v8250
      %v8252 = vpop.f32.mrf.mxu0
      %v8253 = vpop.f32.mrf.mxu0
      %v8254 = vpop.f32.mrf.mxu0
      %8255 = vdwg.mxu0
      %8256 = vmatprep.subr.bf16.mxu0 0
      %8257 = vmatpush1.bf16.msra.mxu0 %v6071
      %8258 = vmatprep.subr.bf16.mxu0 0
      %8259 = vmatpush1.bf16.msra.mxu0 %v6070
      %8260 = vmatprep.subr.bf16.mxu0 0
      %8261 = vmatpush1.bf16.msra.mxu0 %v6069
      %8262 = vmatprep.subr.bf16.mxu0 0
      %8263 = vmatpush1.bf16.msra.mxu0 %v6068
      %8264 = vmatprep.subr.bf16.mxu0 0
      %8265 = vmatpush1.bf16.msra.mxu0 %v6067
      %8266 = vmatprep.subr.bf16.mxu0 0
      %8267 = vmatpush1.bf16.msra.mxu0 %v6066
      %8268 = vmatprep.subr.bf16.mxu0 0
      %8269 = vmatpush1.bf16.msra.mxu0 %v6065
      %8270 = vmatprep.subr.bf16.mxu0 0
      %8271 = vmatpush1.bf16.msra.mxu0 %v6064
      %8272 = vmatprep.subr.bf16.mxu0 0
      %8273 = vmatpush2.bf16.msra.mxu0 %v6079
      %8274 = vmatprep.subr.bf16.mxu0 0
      %8275 = vmatpush2.bf16.msra.mxu0 %v6078
      %8276 = vmatprep.subr.bf16.mxu0 0
      %8277 = vmatpush2.bf16.msra.mxu0 %v6077
      %8278 = vmatprep.subr.bf16.mxu0 0
      %8279 = vmatpush2.bf16.msra.mxu0 %v6076
      %8280 = vmatprep.subr.bf16.mxu0 0
      %8281 = vmatpush2.bf16.msra.mxu0 %v6075
      %8282 = vmatprep.subr.bf16.mxu0 0
      %8283 = vmatpush2.bf16.msra.mxu0 %v6074
      %8284 = vmatprep.subr.bf16.mxu0 0
      %8285 = vmatpush2.bf16.msra.mxu0 %v6073
      %8286 = vmatprep.subr.bf16.mxu0 0
      %8287 = vmatpush2.bf16.msra.mxu0 %v6072
      %8288 = vmatprep.mubr.bf16.mxu0 %v2142
      %8289 = vmatmul.mubr.bf16.gmra.mxu0 %v2128
      %v8290 = vpop.f32.mrf.mxu0
      %v8291 = vadd.f32 %v8251, %v8290
      %v8292 = vpop.f32.mrf.mxu0
      %v8293 = vpop.f32.mrf.mxu0
      %v8294 = vpop.f32.mrf.mxu0
      %8295 = vdwg.mxu0
      %8296 = vmatprep.subr.bf16.mxu0 0
      %8297 = vmatpush1.bf16.msra.mxu0 %v6087
      %8298 = vmatprep.subr.bf16.mxu0 0
      %8299 = vmatpush1.bf16.msra.mxu0 %v6086
      %8300 = vmatprep.subr.bf16.mxu0 0
      %8301 = vmatpush1.bf16.msra.mxu0 %v6085
      %8302 = vmatprep.subr.bf16.mxu0 0
      %8303 = vmatpush1.bf16.msra.mxu0 %v6084
      %8304 = vmatprep.subr.bf16.mxu0 0
      %8305 = vmatpush1.bf16.msra.mxu0 %v6083
      %8306 = vmatprep.subr.bf16.mxu0 0
      %8307 = vmatpush1.bf16.msra.mxu0 %v6082
      %8308 = vmatprep.subr.bf16.mxu0 0
      %8309 = vmatpush1.bf16.msra.mxu0 %v6081
      %8310 = vmatprep.subr.bf16.mxu0 0
      %8311 = vmatpush1.bf16.msra.mxu0 %v6080
      %8312 = vmatprep.subr.bf16.mxu0 0
      %8313 = vmatpush2.bf16.msra.mxu0 %v6095
      %8314 = vmatprep.subr.bf16.mxu0 0
      %8315 = vmatpush2.bf16.msra.mxu0 %v6094
      %8316 = vmatprep.subr.bf16.mxu0 0
      %8317 = vmatpush2.bf16.msra.mxu0 %v6093
      %8318 = vmatprep.subr.bf16.mxu0 0
      %8319 = vmatpush2.bf16.msra.mxu0 %v6092
      %8320 = vmatprep.subr.bf16.mxu0 0
      %8321 = vmatpush2.bf16.msra.mxu0 %v6091
      %8322 = vmatprep.subr.bf16.mxu0 0
      %8323 = vmatpush2.bf16.msra.mxu0 %v6090
      %8324 = vmatprep.subr.bf16.mxu0 0
      %8325 = vmatpush2.bf16.msra.mxu0 %v6089
      %8326 = vmatprep.subr.bf16.mxu0 0
      %8327 = vmatpush2.bf16.msra.mxu0 %v6088
      %8328 = vmatprep.mubr.bf16.mxu0 %v2146
      %8329 = vmatmul.mubr.bf16.gmra.mxu0 %v2144
      %v8330 = vpop.f32.mrf.mxu0
      %v8331 = vadd.f32 %v8291, %v8330
      %v8332 = vpop.f32.mrf.mxu0
      %v8333 = vpop.f32.mrf.mxu0
      %v8334 = vpop.f32.mrf.mxu0
      %8335 = vdwg.mxu0
      %8336 = vmatprep.subr.bf16.mxu0 0
      %8337 = vmatpush1.bf16.msra.mxu0 %v6103
      %8338 = vmatprep.subr.bf16.mxu0 0
      %8339 = vmatpush1.bf16.msra.mxu0 %v6102
      %8340 = vmatprep.subr.bf16.mxu0 0
      %8341 = vmatpush1.bf16.msra.mxu0 %v6101
      %8342 = vmatprep.subr.bf16.mxu0 0
      %8343 = vmatpush1.bf16.msra.mxu0 %v6100
      %8344 = vmatprep.subr.bf16.mxu0 0
      %8345 = vmatpush1.bf16.msra.mxu0 %v6099
      %8346 = vmatprep.subr.bf16.mxu0 0
      %8347 = vmatpush1.bf16.msra.mxu0 %v6098
      %8348 = vmatprep.subr.bf16.mxu0 0
      %8349 = vmatpush1.bf16.msra.mxu0 %v6097
      %8350 = vmatprep.subr.bf16.mxu0 0
      %8351 = vmatpush1.bf16.msra.mxu0 %v6096
      %8352 = vmatprep.subr.bf16.mxu0 0
      %8353 = vmatpush2.bf16.msra.mxu0 %v6111
      %8354 = vmatprep.subr.bf16.mxu0 0
      %8355 = vmatpush2.bf16.msra.mxu0 %v6110
      %8356 = vmatprep.subr.bf16.mxu0 0
      %8357 = vmatpush2.bf16.msra.mxu0 %v6109
      %8358 = vmatprep.subr.bf16.mxu0 0
      %8359 = vmatpush2.bf16.msra.mxu0 %v6108
      %8360 = vmatprep.subr.bf16.mxu0 0
      %8361 = vmatpush2.bf16.msra.mxu0 %v6107
      %8362 = vmatprep.subr.bf16.mxu0 0
      %8363 = vmatpush2.bf16.msra.mxu0 %v6106
      %8364 = vmatprep.subr.bf16.mxu0 0
      %8365 = vmatpush2.bf16.msra.mxu0 %v6105
      %8366 = vmatprep.subr.bf16.mxu0 0
      %8367 = vmatpush2.bf16.msra.mxu0 %v6104
      %8368 = vmatprep.mubr.bf16.mxu0 %v2184
      %8369 = vmatmul.mubr.bf16.gmra.mxu0 %v2170
      %v8370 = vpop.f32.mrf.mxu0
      %v8371 = vadd.f32 %v8331, %v8370
      %v8372 = vpop.f32.mrf.mxu0
      %v8373 = vpop.f32.mrf.mxu0
      %v8374 = vpop.f32.mrf.mxu0
      %8375 = vdwg.mxu0
      %8376 = vmatprep.subr.bf16.mxu0 0
      %8377 = vmatpush1.bf16.msra.mxu0 %v6119
      %8378 = vmatprep.subr.bf16.mxu0 0
      %8379 = vmatpush1.bf16.msra.mxu0 %v6118
      %8380 = vmatprep.subr.bf16.mxu0 0
      %8381 = vmatpush1.bf16.msra.mxu0 %v6117
      %8382 = vmatprep.subr.bf16.mxu0 0
      %8383 = vmatpush1.bf16.msra.mxu0 %v6116
      %8384 = vmatprep.subr.bf16.mxu0 0
      %8385 = vmatpush1.bf16.msra.mxu0 %v6115
      %8386 = vmatprep.subr.bf16.mxu0 0
      %8387 = vmatpush1.bf16.msra.mxu0 %v6114
      %8388 = vmatprep.subr.bf16.mxu0 0
      %8389 = vmatpush1.bf16.msra.mxu0 %v6113
      %8390 = vmatprep.subr.bf16.mxu0 0
      %8391 = vmatpush1.bf16.msra.mxu0 %v6112
      %8392 = vmatprep.subr.bf16.mxu0 0
      %8393 = vmatpush2.bf16.msra.mxu0 %v6127
      %8394 = vmatprep.subr.bf16.mxu0 0
      %8395 = vmatpush2.bf16.msra.mxu0 %v6126
      %8396 = vmatprep.subr.bf16.mxu0 0
      %8397 = vmatpush2.bf16.msra.mxu0 %v6125
      %8398 = vmatprep.subr.bf16.mxu0 0
      %8399 = vmatpush2.bf16.msra.mxu0 %v6124
      %8400 = vmatprep.subr.bf16.mxu0 0
      %8401 = vmatpush2.bf16.msra.mxu0 %v6123
      %8402 = vmatprep.subr.bf16.mxu0 0
      %8403 = vmatpush2.bf16.msra.mxu0 %v6122
      %8404 = vmatprep.subr.bf16.mxu0 0
      %8405 = vmatpush2.bf16.msra.mxu0 %v6121
      %8406 = vmatprep.subr.bf16.mxu0 0
      %8407 = vmatpush2.bf16.msra.mxu0 %v6120
      %8408 = vmatprep.mubr.bf16.mxu0 %v2194
      %8409 = vmatmul.mubr.bf16.gmra.mxu0 %v2192
      %v8410 = vpop.f32.mrf.mxu0
      %v8411 = vadd.f32 %v8371, %v8410
      %v8412 = vpop.f32.mrf.mxu0
      %v8413 = vpop.f32.mrf.mxu0
      %v8414 = vpop.f32.mrf.mxu0
      %8415 = vdwg.mxu0
      %8416 = vmatprep.subr.bf16.mxu0 0
      %8417 = vmatpush1.bf16.msra.mxu0 %v6135
      %8418 = vmatprep.subr.bf16.mxu0 0
      %8419 = vmatpush1.bf16.msra.mxu0 %v6134
      %8420 = vmatprep.subr.bf16.mxu0 0
      %8421 = vmatpush1.bf16.msra.mxu0 %v6133
      %8422 = vmatprep.subr.bf16.mxu0 0
      %8423 = vmatpush1.bf16.msra.mxu0 %v6132
      %8424 = vmatprep.subr.bf16.mxu0 0
      %8425 = vmatpush1.bf16.msra.mxu0 %v6131
      %8426 = vmatprep.subr.bf16.mxu0 0
      %8427 = vmatpush1.bf16.msra.mxu0 %v6130
      %8428 = vmatprep.subr.bf16.mxu0 0
      %8429 = vmatpush1.bf16.msra.mxu0 %v6129
      %8430 = vmatprep.subr.bf16.mxu0 0
      %8431 = vmatpush1.bf16.msra.mxu0 %v6128
      %8432 = vmatprep.subr.bf16.mxu0 0
      %8433 = vmatpush2.bf16.msra.mxu0 %v6143
      %8434 = vmatprep.subr.bf16.mxu0 0
      %8435 = vmatpush2.bf16.msra.mxu0 %v6142
      %8436 = vmatprep.subr.bf16.mxu0 0
      %8437 = vmatpush2.bf16.msra.mxu0 %v6141
      %8438 = vmatprep.subr.bf16.mxu0 0
      %8439 = vmatpush2.bf16.msra.mxu0 %v6140
      %8440 = vmatprep.subr.bf16.mxu0 0
      %8441 = vmatpush2.bf16.msra.mxu0 %v6139
      %8442 = vmatprep.subr.bf16.mxu0 0
      %8443 = vmatpush2.bf16.msra.mxu0 %v6138
      %8444 = vmatprep.subr.bf16.mxu0 0
      %8445 = vmatpush2.bf16.msra.mxu0 %v6137
      %8446 = vmatprep.subr.bf16.mxu0 0
      %8447 = vmatpush2.bf16.msra.mxu0 %v6136
      %8448 = vmatprep.mubr.bf16.mxu0 %v2191
      %8449 = vmatmul.mubr.bf16.gmra.mxu0 %v2177
      %v8450 = vpop.f32.mrf.mxu0
      %v8451 = vadd.f32 %v8411, %v8450
      %v8452 = vpop.f32.mrf.mxu0
      %v8453 = vpop.f32.mrf.mxu0
      %v8454 = vpop.f32.mrf.mxu0
      %8455 = vdwg.mxu0
      %8456 = vmatprep.subr.bf16.mxu0 0
      %8457 = vmatpush1.bf16.msra.mxu0 %v6151
      %8458 = vmatprep.subr.bf16.mxu0 0
      %8459 = vmatpush1.bf16.msra.mxu0 %v6150
      %8460 = vmatprep.subr.bf16.mxu0 0
      %8461 = vmatpush1.bf16.msra.mxu0 %v6149
      %8462 = vmatprep.subr.bf16.mxu0 0
      %8463 = vmatpush1.bf16.msra.mxu0 %v6148
      %8464 = vmatprep.subr.bf16.mxu0 0
      %8465 = vmatpush1.bf16.msra.mxu0 %v6147
      %8466 = vmatprep.subr.bf16.mxu0 0
      %8467 = vmatpush1.bf16.msra.mxu0 %v6146
      %8468 = vmatprep.subr.bf16.mxu0 0
      %8469 = vmatpush1.bf16.msra.mxu0 %v6145
      %8470 = vmatprep.subr.bf16.mxu0 0
      %8471 = vmatpush1.bf16.msra.mxu0 %v6144
      %8472 = vmatprep.subr.bf16.mxu0 0
      %8473 = vmatpush2.bf16.msra.mxu0 %v6159
      %8474 = vmatprep.subr.bf16.mxu0 0
      %8475 = vmatpush2.bf16.msra.mxu0 %v6158
      %8476 = vmatprep.subr.bf16.mxu0 0
      %8477 = vmatpush2.bf16.msra.mxu0 %v6157
      %8478 = vmatprep.subr.bf16.mxu0 0
      %8479 = vmatpush2.bf16.msra.mxu0 %v6156
      %8480 = vmatprep.subr.bf16.mxu0 0
      %8481 = vmatpush2.bf16.msra.mxu0 %v6155
      %8482 = vmatprep.subr.bf16.mxu0 0
      %8483 = vmatpush2.bf16.msra.mxu0 %v6154
      %8484 = vmatprep.subr.bf16.mxu0 0
      %8485 = vmatpush2.bf16.msra.mxu0 %v6153
      %8486 = vmatprep.subr.bf16.mxu0 0
      %8487 = vmatpush2.bf16.msra.mxu0 %v6152
      %8488 = vmatprep.mubr.bf16.mxu0 %v2195
      %8489 = vmatmul.mubr.bf16.gmra.mxu0 %v2193
      %v8490 = vpop.f32.mrf.mxu0
      %v8491 = vadd.f32 %v8451, %v8490
      %v8492 = vpop.f32.mrf.mxu0
      %v8493 = vpop.f32.mrf.mxu0
      %v8494 = vpop.f32.mrf.mxu0
      %8495 = vdwg.mxu0
      %8496 = vmatprep.subr.bf16.mxu0 0
      %8497 = vmatpush1.bf16.msra.mxu0 %v6167
      %8498 = vmatprep.subr.bf16.mxu0 0
      %8499 = vmatpush1.bf16.msra.mxu0 %v6166
      %8500 = vmatprep.subr.bf16.mxu0 0
      %8501 = vmatpush1.bf16.msra.mxu0 %v6165
      %8502 = vmatprep.subr.bf16.mxu0 0
      %8503 = vmatpush1.bf16.msra.mxu0 %v6164
      %8504 = vmatprep.subr.bf16.mxu0 0
      %8505 = vmatpush1.bf16.msra.mxu0 %v6163
      %8506 = vmatprep.subr.bf16.mxu0 0
      %8507 = vmatpush1.bf16.msra.mxu0 %v6162
      %8508 = vmatprep.subr.bf16.mxu0 0
      %8509 = vmatpush1.bf16.msra.mxu0 %v6161
      %8510 = vmatprep.subr.bf16.mxu0 0
      %8511 = vmatpush1.bf16.msra.mxu0 %v6160
      %8512 = vmatprep.subr.bf16.mxu0 0
      %8513 = vmatpush2.bf16.msra.mxu0 %v6175
      %8514 = vmatprep.subr.bf16.mxu0 0
      %8515 = vmatpush2.bf16.msra.mxu0 %v6174
      %8516 = vmatprep.subr.bf16.mxu0 0
      %8517 = vmatpush2.bf16.msra.mxu0 %v6173
      %8518 = vmatprep.subr.bf16.mxu0 0
      %8519 = vmatpush2.bf16.msra.mxu0 %v6172
      %8520 = vmatprep.subr.bf16.mxu0 0
      %8521 = vmatpush2.bf16.msra.mxu0 %v6171
      %8522 = vmatprep.subr.bf16.mxu0 0
      %8523 = vmatpush2.bf16.msra.mxu0 %v6170
      %8524 = vmatprep.subr.bf16.mxu0 0
      %8525 = vmatpush2.bf16.msra.mxu0 %v6169
      %8526 = vmatprep.subr.bf16.mxu0 0
      %8527 = vmatpush2.bf16.msra.mxu0 %v6168
      %8528 = vmatprep.mubr.bf16.mxu0 %v2233
      %8529 = vmatmul.mubr.bf16.gmra.mxu0 %v2219
      %v8530 = vpop.f32.mrf.mxu0
      %v8531 = vadd.f32 %v8491, %v8530
      %v8532 = vpop.f32.mrf.mxu0
      %v8533 = vpop.f32.mrf.mxu0
      %v8534 = vpop.f32.mrf.mxu0
      %8535 = vdwg.mxu0
      %8536 = vmatprep.subr.bf16.mxu0 0
      %8537 = vmatpush1.bf16.msra.mxu0 %v6183
      %8538 = vmatprep.subr.bf16.mxu0 0
      %8539 = vmatpush1.bf16.msra.mxu0 %v6182
      %8540 = vmatprep.subr.bf16.mxu0 0
      %8541 = vmatpush1.bf16.msra.mxu0 %v6181
      %8542 = vmatprep.subr.bf16.mxu0 0
      %8543 = vmatpush1.bf16.msra.mxu0 %v6180
      %8544 = vmatprep.subr.bf16.mxu0 0
      %8545 = vmatpush1.bf16.msra.mxu0 %v6179
      %8546 = vmatprep.subr.bf16.mxu0 0
      %8547 = vmatpush1.bf16.msra.mxu0 %v6178
      %8548 = vmatprep.subr.bf16.mxu0 0
      %8549 = vmatpush1.bf16.msra.mxu0 %v6177
      %8550 = vmatprep.subr.bf16.mxu0 0
      %8551 = vmatpush1.bf16.msra.mxu0 %v6176
      %8552 = vmatprep.subr.bf16.mxu0 0
      %8553 = vmatpush2.bf16.msra.mxu0 %v6191
      %8554 = vmatprep.subr.bf16.mxu0 0
      %8555 = vmatpush2.bf16.msra.mxu0 %v6190
      %8556 = vmatprep.subr.bf16.mxu0 0
      %8557 = vmatpush2.bf16.msra.mxu0 %v6189
      %8558 = vmatprep.subr.bf16.mxu0 0
      %8559 = vmatpush2.bf16.msra.mxu0 %v6188
      %8560 = vmatprep.subr.bf16.mxu0 0
      %8561 = vmatpush2.bf16.msra.mxu0 %v6187
      %8562 = vmatprep.subr.bf16.mxu0 0
      %8563 = vmatpush2.bf16.msra.mxu0 %v6186
      %8564 = vmatprep.subr.bf16.mxu0 0
      %8565 = vmatpush2.bf16.msra.mxu0 %v6185
      %8566 = vmatprep.subr.bf16.mxu0 0
      %8567 = vmatpush2.bf16.msra.mxu0 %v6184
      %8568 = vmatprep.mubr.bf16.mxu0 %v2243
      %8569 = vmatmul.mubr.bf16.gmra.mxu0 %v2241
      %v8570 = vpop.f32.mrf.mxu0
      %v8571 = vadd.f32 %v8531, %v8570
      %v8572 = vpop.f32.mrf.mxu0
      %v8573 = vpop.f32.mrf.mxu0
      %v8574 = vpop.f32.mrf.mxu0
      %8575 = vdwg.mxu0
      %8576 = vmatprep.subr.bf16.mxu0 0
      %8577 = vmatpush1.bf16.msra.mxu0 %v6199
      %8578 = vmatprep.subr.bf16.mxu0 0
      %8579 = vmatpush1.bf16.msra.mxu0 %v6198
      %8580 = vmatprep.subr.bf16.mxu0 0
      %8581 = vmatpush1.bf16.msra.mxu0 %v6197
      %8582 = vmatprep.subr.bf16.mxu0 0
      %8583 = vmatpush1.bf16.msra.mxu0 %v6196
      %8584 = vmatprep.subr.bf16.mxu0 0
      %8585 = vmatpush1.bf16.msra.mxu0 %v6195
      %8586 = vmatprep.subr.bf16.mxu0 0
      %8587 = vmatpush1.bf16.msra.mxu0 %v6194
      %8588 = vmatprep.subr.bf16.mxu0 0
      %8589 = vmatpush1.bf16.msra.mxu0 %v6193
      %8590 = vmatprep.subr.bf16.mxu0 0
      %8591 = vmatpush1.bf16.msra.mxu0 %v6192
      %8592 = vmatprep.subr.bf16.mxu0 0
      %8593 = vmatpush2.bf16.msra.mxu0 %v6207
      %8594 = vmatprep.subr.bf16.mxu0 0
      %8595 = vmatpush2.bf16.msra.mxu0 %v6206
      %8596 = vmatprep.subr.bf16.mxu0 0
      %8597 = vmatpush2.bf16.msra.mxu0 %v6205
      %8598 = vmatprep.subr.bf16.mxu0 0
      %8599 = vmatpush2.bf16.msra.mxu0 %v6204
      %8600 = vmatprep.subr.bf16.mxu0 0
      %8601 = vmatpush2.bf16.msra.mxu0 %v6203
      %8602 = vmatprep.subr.bf16.mxu0 0
      %8603 = vmatpush2.bf16.msra.mxu0 %v6202
      %8604 = vmatprep.subr.bf16.mxu0 0
      %8605 = vmatpush2.bf16.msra.mxu0 %v6201
      %8606 = vmatprep.subr.bf16.mxu0 0
      %8607 = vmatpush2.bf16.msra.mxu0 %v6200
      %8608 = vmatprep.mubr.bf16.mxu0 %v2240
      %8609 = vmatmul.mubr.bf16.gmra.mxu0 %v2226
      %v8610 = vpop.f32.mrf.mxu0
      %v8611 = vadd.f32 %v8571, %v8610
      %v8612 = vpop.f32.mrf.mxu0
      %v8613 = vpop.f32.mrf.mxu0
      %v8614 = vpop.f32.mrf.mxu0
      %8615 = vdwg.mxu0
      %8616 = vmatprep.subr.bf16.mxu0 0
      %8617 = vmatpush1.bf16.msra.mxu0 %v6215
      %8618 = vmatprep.subr.bf16.mxu0 0
      %8619 = vmatpush1.bf16.msra.mxu0 %v6214
      %8620 = vmatprep.subr.bf16.mxu0 0
      %8621 = vmatpush1.bf16.msra.mxu0 %v6213
      %8622 = vmatprep.subr.bf16.mxu0 0
      %8623 = vmatpush1.bf16.msra.mxu0 %v6212
      %8624 = vmatprep.subr.bf16.mxu0 0
      %8625 = vmatpush1.bf16.msra.mxu0 %v6211
      %8626 = vmatprep.subr.bf16.mxu0 0
      %8627 = vmatpush1.bf16.msra.mxu0 %v6210
      %8628 = vmatprep.subr.bf16.mxu0 0
      %8629 = vmatpush1.bf16.msra.mxu0 %v6209
      %8630 = vmatprep.subr.bf16.mxu0 0
      %8631 = vmatpush1.bf16.msra.mxu0 %v6208
      %8632 = vmatprep.subr.bf16.mxu0 0
      %8633 = vmatpush2.bf16.msra.mxu0 %v6223
      %8634 = vmatprep.subr.bf16.mxu0 0
      %8635 = vmatpush2.bf16.msra.mxu0 %v6222
      %8636 = vmatprep.subr.bf16.mxu0 0
      %8637 = vmatpush2.bf16.msra.mxu0 %v6221
      %8638 = vmatprep.subr.bf16.mxu0 0
      %8639 = vmatpush2.bf16.msra.mxu0 %v6220
      %8640 = vmatprep.subr.bf16.mxu0 0
      %8641 = vmatpush2.bf16.msra.mxu0 %v6219
      %8642 = vmatprep.subr.bf16.mxu0 0
      %8643 = vmatpush2.bf16.msra.mxu0 %v6218
      %8644 = vmatprep.subr.bf16.mxu0 0
      %8645 = vmatpush2.bf16.msra.mxu0 %v6217
      %8646 = vmatprep.subr.bf16.mxu0 0
      %8647 = vmatpush2.bf16.msra.mxu0 %v6216
      %8648 = vmatprep.mubr.bf16.mxu0 %v2244
      %8649 = vmatmul.mubr.bf16.gmra.mxu0 %v2242
      %v8650 = vpop.f32.mrf.mxu0
      %v8651 = vadd.f32 %v8611, %v8650
      %v8652 = vpop.f32.mrf.mxu0
      %v8653 = vpop.f32.mrf.mxu0
      %v8654 = vpop.f32.mrf.mxu0
      %8655 = vdwg.mxu0
      %8656 = vmatprep.subr.bf16.mxu0 0
      %8657 = vmatpush1.bf16.msra.mxu0 %v6231
      %8658 = vmatprep.subr.bf16.mxu0 0
      %8659 = vmatpush1.bf16.msra.mxu0 %v6230
      %8660 = vmatprep.subr.bf16.mxu0 0
      %8661 = vmatpush1.bf16.msra.mxu0 %v6229
      %8662 = vmatprep.subr.bf16.mxu0 0
      %8663 = vmatpush1.bf16.msra.mxu0 %v6228
      %8664 = vmatprep.subr.bf16.mxu0 0
      %8665 = vmatpush1.bf16.msra.mxu0 %v6227
      %8666 = vmatprep.subr.bf16.mxu0 0
      %8667 = vmatpush1.bf16.msra.mxu0 %v6226
      %8668 = vmatprep.subr.bf16.mxu0 0
      %8669 = vmatpush1.bf16.msra.mxu0 %v6225
      %8670 = vmatprep.subr.bf16.mxu0 0
      %8671 = vmatpush1.bf16.msra.mxu0 %v6224
      %8672 = vmatprep.subr.bf16.mxu0 0
      %8673 = vmatpush2.bf16.msra.mxu0 %v6239
      %8674 = vmatprep.subr.bf16.mxu0 0
      %8675 = vmatpush2.bf16.msra.mxu0 %v6238
      %8676 = vmatprep.subr.bf16.mxu0 0
      %8677 = vmatpush2.bf16.msra.mxu0 %v6237
      %8678 = vmatprep.subr.bf16.mxu0 0
      %8679 = vmatpush2.bf16.msra.mxu0 %v6236
      %8680 = vmatprep.subr.bf16.mxu0 0
      %8681 = vmatpush2.bf16.msra.mxu0 %v6235
      %8682 = vmatprep.subr.bf16.mxu0 0
      %8683 = vmatpush2.bf16.msra.mxu0 %v6234
      %8684 = vmatprep.subr.bf16.mxu0 0
      %8685 = vmatpush2.bf16.msra.mxu0 %v6233
      %8686 = vmatprep.subr.bf16.mxu0 0
      %8687 = vmatpush2.bf16.msra.mxu0 %v6232
      %8688 = vmatprep.mubr.bf16.mxu0 %v2282
      %8689 = vmatmul.mubr.bf16.gmra.mxu0 %v2268
      %v8690 = vpop.f32.mrf.mxu0
      %v8691 = vadd.f32 %v8651, %v8690
      %v8692 = vpop.f32.mrf.mxu0
      %v8693 = vpop.f32.mrf.mxu0
      %v8694 = vpop.f32.mrf.mxu0
      %8695 = vdwg.mxu0
      %8696 = vmatprep.subr.bf16.mxu0 0
      %8697 = vmatpush1.bf16.msra.mxu0 %v6247
      %8698 = vmatprep.subr.bf16.mxu0 0
      %8699 = vmatpush1.bf16.msra.mxu0 %v6246
      %8700 = vmatprep.subr.bf16.mxu0 0
      %8701 = vmatpush1.bf16.msra.mxu0 %v6245
      %8702 = vmatprep.subr.bf16.mxu0 0
      %8703 = vmatpush1.bf16.msra.mxu0 %v6244
      %8704 = vmatprep.subr.bf16.mxu0 0
      %8705 = vmatpush1.bf16.msra.mxu0 %v6243
      %8706 = vmatprep.subr.bf16.mxu0 0
      %8707 = vmatpush1.bf16.msra.mxu0 %v6242
      %8708 = vmatprep.subr.bf16.mxu0 0
      %8709 = vmatpush1.bf16.msra.mxu0 %v6241
      %8710 = vmatprep.subr.bf16.mxu0 0
      %8711 = vmatpush1.bf16.msra.mxu0 %v6240
      %8712 = vmatprep.subr.bf16.mxu0 0
      %8713 = vmatpush2.bf16.msra.mxu0 %v6255
      %8714 = vmatprep.subr.bf16.mxu0 0
      %8715 = vmatpush2.bf16.msra.mxu0 %v6254
      %8716 = vmatprep.subr.bf16.mxu0 0
      %8717 = vmatpush2.bf16.msra.mxu0 %v6253
      %8718 = vmatprep.subr.bf16.mxu0 0
      %8719 = vmatpush2.bf16.msra.mxu0 %v6252
      %8720 = vmatprep.subr.bf16.mxu0 0
      %8721 = vmatpush2.bf16.msra.mxu0 %v6251
      %8722 = vmatprep.subr.bf16.mxu0 0
      %8723 = vmatpush2.bf16.msra.mxu0 %v6250
      %8724 = vmatprep.subr.bf16.mxu0 0
      %8725 = vmatpush2.bf16.msra.mxu0 %v6249
      %8726 = vmatprep.subr.bf16.mxu0 0
      %8727 = vmatpush2.bf16.msra.mxu0 %v6248
      %8728 = vmatprep.mubr.bf16.mxu0 %v2292
      %8729 = vmatmul.mubr.bf16.gmra.mxu0 %v2290
      %v8730 = vpop.f32.mrf.mxu0
      %v8731 = vadd.f32 %v8691, %v8730
      %v8732 = vpop.f32.mrf.mxu0
      %v8733 = vpop.f32.mrf.mxu0
      %v8734 = vpop.f32.mrf.mxu0
      %8735 = vdwg.mxu0
      %8736 = vmatprep.subr.bf16.mxu0 0
      %8737 = vmatpush1.bf16.msra.mxu0 %v6263
      %8738 = vmatprep.subr.bf16.mxu0 0
      %8739 = vmatpush1.bf16.msra.mxu0 %v6262
      %8740 = vmatprep.subr.bf16.mxu0 0
      %8741 = vmatpush1.bf16.msra.mxu0 %v6261
      %8742 = vmatprep.subr.bf16.mxu0 0
      %8743 = vmatpush1.bf16.msra.mxu0 %v6260
      %8744 = vmatprep.subr.bf16.mxu0 0
      %8745 = vmatpush1.bf16.msra.mxu0 %v6259
      %8746 = vmatprep.subr.bf16.mxu0 0
      %8747 = vmatpush1.bf16.msra.mxu0 %v6258
      %8748 = vmatprep.subr.bf16.mxu0 0
      %8749 = vmatpush1.bf16.msra.mxu0 %v6257
      %8750 = vmatprep.subr.bf16.mxu0 0
      %8751 = vmatpush1.bf16.msra.mxu0 %v6256
      %8752 = vmatprep.subr.bf16.mxu0 0
      %8753 = vmatpush2.bf16.msra.mxu0 %v6271
      %8754 = vmatprep.subr.bf16.mxu0 0
      %8755 = vmatpush2.bf16.msra.mxu0 %v6270
      %8756 = vmatprep.subr.bf16.mxu0 0
      %8757 = vmatpush2.bf16.msra.mxu0 %v6269
      %8758 = vmatprep.subr.bf16.mxu0 0
      %8759 = vmatpush2.bf16.msra.mxu0 %v6268
      %8760 = vmatprep.subr.bf16.mxu0 0
      %8761 = vmatpush2.bf16.msra.mxu0 %v6267
      %8762 = vmatprep.subr.bf16.mxu0 0
      %8763 = vmatpush2.bf16.msra.mxu0 %v6266
      %8764 = vmatprep.subr.bf16.mxu0 0
      %8765 = vmatpush2.bf16.msra.mxu0 %v6265
      %8766 = vmatprep.subr.bf16.mxu0 0
      %8767 = vmatpush2.bf16.msra.mxu0 %v6264
      %8768 = vmatprep.mubr.bf16.mxu0 %v2289
      %8769 = vmatmul.mubr.bf16.gmra.mxu0 %v2275
      %v8770 = vpop.f32.mrf.mxu0
      %v8771 = vadd.f32 %v8731, %v8770
      %v8772 = vpop.f32.mrf.mxu0
      %v8773 = vpop.f32.mrf.mxu0
      %v8774 = vpop.f32.mrf.mxu0
      %8775 = vdwg.mxu0
      %8776 = vmatprep.subr.bf16.mxu0 0
      %8777 = vmatpush1.bf16.msra.mxu0 %v6279
      %8778 = vmatprep.subr.bf16.mxu0 0
      %8779 = vmatpush1.bf16.msra.mxu0 %v6278
      %8780 = vmatprep.subr.bf16.mxu0 0
      %8781 = vmatpush1.bf16.msra.mxu0 %v6277
      %8782 = vmatprep.subr.bf16.mxu0 0
      %8783 = vmatpush1.bf16.msra.mxu0 %v6276
      %8784 = vmatprep.subr.bf16.mxu0 0
      %8785 = vmatpush1.bf16.msra.mxu0 %v6275
      %8786 = vmatprep.subr.bf16.mxu0 0
      %8787 = vmatpush1.bf16.msra.mxu0 %v6274
      %8788 = vmatprep.subr.bf16.mxu0 0
      %8789 = vmatpush1.bf16.msra.mxu0 %v6273
      %8790 = vmatprep.subr.bf16.mxu0 0
      %8791 = vmatpush1.bf16.msra.mxu0 %v6272
      %8792 = vmatprep.subr.bf16.mxu0 0
      %8793 = vmatpush2.bf16.msra.mxu0 %v6287
      %8794 = vmatprep.subr.bf16.mxu0 0
      %8795 = vmatpush2.bf16.msra.mxu0 %v6286
      %8796 = vmatprep.subr.bf16.mxu0 0
      %8797 = vmatpush2.bf16.msra.mxu0 %v6285
      %8798 = vmatprep.subr.bf16.mxu0 0
      %8799 = vmatpush2.bf16.msra.mxu0 %v6284
      %8800 = vmatprep.subr.bf16.mxu0 0
      %8801 = vmatpush2.bf16.msra.mxu0 %v6283
      %8802 = vmatprep.subr.bf16.mxu0 0
      %8803 = vmatpush2.bf16.msra.mxu0 %v6282
      %8804 = vmatprep.subr.bf16.mxu0 0
      %8805 = vmatpush2.bf16.msra.mxu0 %v6281
      %8806 = vmatprep.subr.bf16.mxu0 0
      %8807 = vmatpush2.bf16.msra.mxu0 %v6280
      %8808 = vmatprep.mubr.bf16.mxu0 %v2293
      %8809 = vmatmul.mubr.bf16.gmra.mxu0 %v2291
      %v8810 = vpop.f32.mrf.mxu0
      %v8811 = vadd.f32 %v8771, %v8810
      %v8812 = vpop.f32.mrf.mxu0
      %v8813 = vpop.f32.mrf.mxu0
      %v8814 = vpop.f32.mrf.mxu0
      %8815 = vdwg.mxu0
      %8816 = vmatprep.subr.bf16.mxu0 0
      %8817 = vmatpush1.bf16.msra.mxu0 %v6295
      %8818 = vmatprep.subr.bf16.mxu0 0
      %8819 = vmatpush1.bf16.msra.mxu0 %v6294
      %8820 = vmatprep.subr.bf16.mxu0 0
      %8821 = vmatpush1.bf16.msra.mxu0 %v6293
      %8822 = vmatprep.subr.bf16.mxu0 0
      %8823 = vmatpush1.bf16.msra.mxu0 %v6292
      %8824 = vmatprep.subr.bf16.mxu0 0
      %8825 = vmatpush1.bf16.msra.mxu0 %v6291
      %8826 = vmatprep.subr.bf16.mxu0 0
      %8827 = vmatpush1.bf16.msra.mxu0 %v6290
      %8828 = vmatprep.subr.bf16.mxu0 0
      %8829 = vmatpush1.bf16.msra.mxu0 %v6289
      %8830 = vmatprep.subr.bf16.mxu0 0
      %8831 = vmatpush1.bf16.msra.mxu0 %v6288
      %8832 = vmatprep.subr.bf16.mxu0 0
      %8833 = vmatpush2.bf16.msra.mxu0 %v6303
      %8834 = vmatprep.subr.bf16.mxu0 0
      %8835 = vmatpush2.bf16.msra.mxu0 %v6302
      %8836 = vmatprep.subr.bf16.mxu0 0
      %8837 = vmatpush2.bf16.msra.mxu0 %v6301
      %8838 = vmatprep.subr.bf16.mxu0 0
      %8839 = vmatpush2.bf16.msra.mxu0 %v6300
      %8840 = vmatprep.subr.bf16.mxu0 0
      %8841 = vmatpush2.bf16.msra.mxu0 %v6299
      %8842 = vmatprep.subr.bf16.mxu0 0
      %8843 = vmatpush2.bf16.msra.mxu0 %v6298
      %8844 = vmatprep.subr.bf16.mxu0 0
      %8845 = vmatpush2.bf16.msra.mxu0 %v6297
      %8846 = vmatprep.subr.bf16.mxu0 0
      %8847 = vmatpush2.bf16.msra.mxu0 %v6296
      %8848 = vmatprep.mubr.bf16.mxu0 %v2331
      %8849 = vmatmul.mubr.bf16.gmra.mxu0 %v2317
      %v8850 = vpop.f32.mrf.mxu0
      %v8851 = vadd.f32 %v8811, %v8850
      %v8852 = vpop.f32.mrf.mxu0
      %v8853 = vpop.f32.mrf.mxu0
      %v8854 = vpop.f32.mrf.mxu0
      %8855 = vdwg.mxu0
      %8856 = vmatprep.subr.bf16.mxu0 0
      %8857 = vmatpush1.bf16.msra.mxu0 %v6311
      %8858 = vmatprep.subr.bf16.mxu0 0
      %8859 = vmatpush1.bf16.msra.mxu0 %v6310
      %8860 = vmatprep.subr.bf16.mxu0 0
      %8861 = vmatpush1.bf16.msra.mxu0 %v6309
      %8862 = vmatprep.subr.bf16.mxu0 0
      %8863 = vmatpush1.bf16.msra.mxu0 %v6308
      %8864 = vmatprep.subr.bf16.mxu0 0
      %8865 = vmatpush1.bf16.msra.mxu0 %v6307
      %8866 = vmatprep.subr.bf16.mxu0 0
      %8867 = vmatpush1.bf16.msra.mxu0 %v6306
      %8868 = vmatprep.subr.bf16.mxu0 0
      %8869 = vmatpush1.bf16.msra.mxu0 %v6305
      %8870 = vmatprep.subr.bf16.mxu0 0
      %8871 = vmatpush1.bf16.msra.mxu0 %v6304
      %8872 = vmatprep.subr.bf16.mxu0 0
      %8873 = vmatpush2.bf16.msra.mxu0 %v6319
      %8874 = vmatprep.subr.bf16.mxu0 0
      %8875 = vmatpush2.bf16.msra.mxu0 %v6318
      %8876 = vmatprep.subr.bf16.mxu0 0
      %8877 = vmatpush2.bf16.msra.mxu0 %v6317
      %8878 = vmatprep.subr.bf16.mxu0 0
      %8879 = vmatpush2.bf16.msra.mxu0 %v6316
      %8880 = vmatprep.subr.bf16.mxu0 0
      %8881 = vmatpush2.bf16.msra.mxu0 %v6315
      %8882 = vmatprep.subr.bf16.mxu0 0
      %8883 = vmatpush2.bf16.msra.mxu0 %v6314
      %8884 = vmatprep.subr.bf16.mxu0 0
      %8885 = vmatpush2.bf16.msra.mxu0 %v6313
      %8886 = vmatprep.subr.bf16.mxu0 0
      %8887 = vmatpush2.bf16.msra.mxu0 %v6312
      %8888 = vmatprep.mubr.bf16.mxu0 %v2341
      %8889 = vmatmul.mubr.bf16.gmra.mxu0 %v2339
      %v8890 = vpop.f32.mrf.mxu0
      %v8891 = vadd.f32 %v8851, %v8890
      %v8892 = vpop.f32.mrf.mxu0
      %v8893 = vpop.f32.mrf.mxu0
      %v8894 = vpop.f32.mrf.mxu0
      %8895 = vdwg.mxu0
      %8896 = vmatprep.subr.bf16.mxu0 0
      %8897 = vmatpush1.bf16.msra.mxu0 %v6327
      %8898 = vmatprep.subr.bf16.mxu0 0
      %8899 = vmatpush1.bf16.msra.mxu0 %v6326
      %8900 = vmatprep.subr.bf16.mxu0 0
      %8901 = vmatpush1.bf16.msra.mxu0 %v6325
      %8902 = vmatprep.subr.bf16.mxu0 0
      %8903 = vmatpush1.bf16.msra.mxu0 %v6324
      %8904 = vmatprep.subr.bf16.mxu0 0
      %8905 = vmatpush1.bf16.msra.mxu0 %v6323
      %8906 = vmatprep.subr.bf16.mxu0 0
      %8907 = vmatpush1.bf16.msra.mxu0 %v6322
      %8908 = vmatprep.subr.bf16.mxu0 0
      %8909 = vmatpush1.bf16.msra.mxu0 %v6321
      %8910 = vmatprep.subr.bf16.mxu0 0
      %8911 = vmatpush1.bf16.msra.mxu0 %v6320
      %8912 = vmatprep.subr.bf16.mxu0 0
      %8913 = vmatpush2.bf16.msra.mxu0 %v6335
      %8914 = vmatprep.subr.bf16.mxu0 0
      %8915 = vmatpush2.bf16.msra.mxu0 %v6334
      %8916 = vmatprep.subr.bf16.mxu0 0
      %8917 = vmatpush2.bf16.msra.mxu0 %v6333
      %8918 = vmatprep.subr.bf16.mxu0 0
      %8919 = vmatpush2.bf16.msra.mxu0 %v6332
      %8920 = vmatprep.subr.bf16.mxu0 0
      %8921 = vmatpush2.bf16.msra.mxu0 %v6331
      %8922 = vmatprep.subr.bf16.mxu0 0
      %8923 = vmatpush2.bf16.msra.mxu0 %v6330
      %8924 = vmatprep.subr.bf16.mxu0 0
      %8925 = vmatpush2.bf16.msra.mxu0 %v6329
      %8926 = vmatprep.subr.bf16.mxu0 0
      %8927 = vmatpush2.bf16.msra.mxu0 %v6328
      %8928 = vmatprep.mubr.bf16.mxu0 %v2338
      %8929 = vmatmul.mubr.bf16.gmra.mxu0 %v2324
      %v8930 = vpop.f32.mrf.mxu0
      %v8931 = vadd.f32 %v8891, %v8930
      %v8932 = vpop.f32.mrf.mxu0
      %v8933 = vpop.f32.mrf.mxu0
      %v8934 = vpop.f32.mrf.mxu0
      %8935 = vdwg.mxu0
      %8936 = vmatprep.subr.bf16.mxu0 0
      %8937 = vmatpush1.bf16.msra.mxu0 %v6343
      %8938 = vmatprep.subr.bf16.mxu0 0
      %8939 = vmatpush1.bf16.msra.mxu0 %v6342
      %8940 = vmatprep.subr.bf16.mxu0 0
      %8941 = vmatpush1.bf16.msra.mxu0 %v6341
      %8942 = vmatprep.subr.bf16.mxu0 0
      %8943 = vmatpush1.bf16.msra.mxu0 %v6340
      %8944 = vmatprep.subr.bf16.mxu0 0
      %8945 = vmatpush1.bf16.msra.mxu0 %v6339
      %8946 = vmatprep.subr.bf16.mxu0 0
      %8947 = vmatpush1.bf16.msra.mxu0 %v6338
      %8948 = vmatprep.subr.bf16.mxu0 0
      %8949 = vmatpush1.bf16.msra.mxu0 %v6337
      %8950 = vmatprep.subr.bf16.mxu0 0
      %8951 = vmatpush1.bf16.msra.mxu0 %v6336
      %8952 = vmatprep.subr.bf16.mxu0 0
      %8953 = vmatpush2.bf16.msra.mxu0 %v6351
      %8954 = vmatprep.subr.bf16.mxu0 0
      %8955 = vmatpush2.bf16.msra.mxu0 %v6350
      %8956 = vmatprep.subr.bf16.mxu0 0
      %8957 = vmatpush2.bf16.msra.mxu0 %v6349
      %8958 = vmatprep.subr.bf16.mxu0 0
      %8959 = vmatpush2.bf16.msra.mxu0 %v6348
      %8960 = vmatprep.subr.bf16.mxu0 0
      %8961 = vmatpush2.bf16.msra.mxu0 %v6347
      %8962 = vmatprep.subr.bf16.mxu0 0
      %8963 = vmatpush2.bf16.msra.mxu0 %v6346
      %8964 = vmatprep.subr.bf16.mxu0 0
      %8965 = vmatpush2.bf16.msra.mxu0 %v6345
      %8966 = vmatprep.subr.bf16.mxu0 0
      %8967 = vmatpush2.bf16.msra.mxu0 %v6344
      %8968 = vmatprep.mubr.bf16.mxu0 %v2342
      %8969 = vmatmul.mubr.bf16.gmra.mxu0 %v2340
      %v8970 = vpop.f32.mrf.mxu0
      %v8971 = vadd.f32 %v8931, %v8970
      %v8972 = vpop.f32.mrf.mxu0
      %v8973 = vpop.f32.mrf.mxu0
      %v8974 = vpop.f32.mrf.mxu0
      %8975 = vdwg.mxu0
      %8976 = vmatprep.subr.bf16.mxu0 0
      %8977 = vmatpush1.bf16.msra.mxu0 %v6359
      %8978 = vmatprep.subr.bf16.mxu0 0
      %8979 = vmatpush1.bf16.msra.mxu0 %v6358
      %8980 = vmatprep.subr.bf16.mxu0 0
      %8981 = vmatpush1.bf16.msra.mxu0 %v6357
      %8982 = vmatprep.subr.bf16.mxu0 0
      %8983 = vmatpush1.bf16.msra.mxu0 %v6356
      %8984 = vmatprep.subr.bf16.mxu0 0
      %8985 = vmatpush1.bf16.msra.mxu0 %v6355
      %8986 = vmatprep.subr.bf16.mxu0 0
      %8987 = vmatpush1.bf16.msra.mxu0 %v6354
      %8988 = vmatprep.subr.bf16.mxu0 0
      %8989 = vmatpush1.bf16.msra.mxu0 %v6353
      %8990 = vmatprep.subr.bf16.mxu0 0
      %8991 = vmatpush1.bf16.msra.mxu0 %v6352
      %8992 = vmatprep.subr.bf16.mxu0 0
      %8993 = vmatpush2.bf16.msra.mxu0 %v6367
      %8994 = vmatprep.subr.bf16.mxu0 0
      %8995 = vmatpush2.bf16.msra.mxu0 %v6366
      %8996 = vmatprep.subr.bf16.mxu0 0
      %8997 = vmatpush2.bf16.msra.mxu0 %v6365
      %8998 = vmatprep.subr.bf16.mxu0 0
      %8999 = vmatpush2.bf16.msra.mxu0 %v6364
      %9000 = vmatprep.subr.bf16.mxu0 0
      %9001 = vmatpush2.bf16.msra.mxu0 %v6363
      %9002 = vmatprep.subr.bf16.mxu0 0
      %9003 = vmatpush2.bf16.msra.mxu0 %v6362
      %9004 = vmatprep.subr.bf16.mxu0 0
      %9005 = vmatpush2.bf16.msra.mxu0 %v6361
      %9006 = vmatprep.subr.bf16.mxu0 0
      %9007 = vmatpush2.bf16.msra.mxu0 %v6360
      %9008 = vmatprep.mubr.bf16.mxu0 %v2380
      %9009 = vmatmul.mubr.bf16.gmra.mxu0 %v2366
      %v9010 = vpop.f32.mrf.mxu0
      %v9011 = vadd.f32 %v8971, %v9010
      %v9012 = vpop.f32.mrf.mxu0
      %v9013 = vpop.f32.mrf.mxu0
      %v9014 = vpop.f32.mrf.mxu0
      %9015 = vdwg.mxu0
      %9016 = vmatprep.subr.bf16.mxu0 0
      %9017 = vmatpush1.bf16.msra.mxu0 %v6375
      %9018 = vmatprep.subr.bf16.mxu0 0
      %9019 = vmatpush1.bf16.msra.mxu0 %v6374
      %9020 = vmatprep.subr.bf16.mxu0 0
      %9021 = vmatpush1.bf16.msra.mxu0 %v6373
      %9022 = vmatprep.subr.bf16.mxu0 0
      %9023 = vmatpush1.bf16.msra.mxu0 %v6372
      %9024 = vmatprep.subr.bf16.mxu0 0
      %9025 = vmatpush1.bf16.msra.mxu0 %v6371
      %9026 = vmatprep.subr.bf16.mxu0 0
      %9027 = vmatpush1.bf16.msra.mxu0 %v6370
      %9028 = vmatprep.subr.bf16.mxu0 0
      %9029 = vmatpush1.bf16.msra.mxu0 %v6369
      %9030 = vmatprep.subr.bf16.mxu0 0
      %9031 = vmatpush1.bf16.msra.mxu0 %v6368
      %9032 = vmatprep.subr.bf16.mxu0 0
      %9033 = vmatpush2.bf16.msra.mxu0 %v6383
      %9034 = vmatprep.subr.bf16.mxu0 0
      %9035 = vmatpush2.bf16.msra.mxu0 %v6382
      %9036 = vmatprep.subr.bf16.mxu0 0
      %9037 = vmatpush2.bf16.msra.mxu0 %v6381
      %9038 = vmatprep.subr.bf16.mxu0 0
      %9039 = vmatpush2.bf16.msra.mxu0 %v6380
      %9040 = vmatprep.subr.bf16.mxu0 0
      %9041 = vmatpush2.bf16.msra.mxu0 %v6379
      %9042 = vmatprep.subr.bf16.mxu0 0
      %9043 = vmatpush2.bf16.msra.mxu0 %v6378
      %9044 = vmatprep.subr.bf16.mxu0 0
      %9045 = vmatpush2.bf16.msra.mxu0 %v6377
      %9046 = vmatprep.subr.bf16.mxu0 0
      %9047 = vmatpush2.bf16.msra.mxu0 %v6376
      %9048 = vmatprep.mubr.bf16.mxu0 %v2390
      %9049 = vmatmul.mubr.bf16.gmra.mxu0 %v2388
      %v9050 = vpop.f32.mrf.mxu0
      %v9051 = vadd.f32 %v9011, %v9050
      %v9052 = vpop.f32.mrf.mxu0
      %v9053 = vpop.f32.mrf.mxu0
      %v9054 = vpop.f32.mrf.mxu0
      %9055 = vdwg.mxu0
      %9056 = vmatprep.subr.bf16.mxu0 0
      %9057 = vmatpush1.bf16.msra.mxu0 %v6391
      %9058 = vmatprep.subr.bf16.mxu0 0
      %9059 = vmatpush1.bf16.msra.mxu0 %v6390
      %9060 = vmatprep.subr.bf16.mxu0 0
      %9061 = vmatpush1.bf16.msra.mxu0 %v6389
      %9062 = vmatprep.subr.bf16.mxu0 0
      %9063 = vmatpush1.bf16.msra.mxu0 %v6388
      %9064 = vmatprep.subr.bf16.mxu0 0
      %9065 = vmatpush1.bf16.msra.mxu0 %v6387
      %9066 = vmatprep.subr.bf16.mxu0 0
      %9067 = vmatpush1.bf16.msra.mxu0 %v6386
      %9068 = vmatprep.subr.bf16.mxu0 0
      %9069 = vmatpush1.bf16.msra.mxu0 %v6385
      %9070 = vmatprep.subr.bf16.mxu0 0
      %9071 = vmatpush1.bf16.msra.mxu0 %v6384
      %9072 = vmatprep.subr.bf16.mxu0 0
      %9073 = vmatpush2.bf16.msra.mxu0 %v6399
      %9074 = vmatprep.subr.bf16.mxu0 0
      %9075 = vmatpush2.bf16.msra.mxu0 %v6398
      %9076 = vmatprep.subr.bf16.mxu0 0
      %9077 = vmatpush2.bf16.msra.mxu0 %v6397
      %9078 = vmatprep.subr.bf16.mxu0 0
      %9079 = vmatpush2.bf16.msra.mxu0 %v6396
      %9080 = vmatprep.subr.bf16.mxu0 0
      %9081 = vmatpush2.bf16.msra.mxu0 %v6395
      %9082 = vmatprep.subr.bf16.mxu0 0
      %9083 = vmatpush2.bf16.msra.mxu0 %v6394
      %9084 = vmatprep.subr.bf16.mxu0 0
      %9085 = vmatpush2.bf16.msra.mxu0 %v6393
      %9086 = vmatprep.subr.bf16.mxu0 0
      %9087 = vmatpush2.bf16.msra.mxu0 %v6392
      %9088 = vmatprep.mubr.bf16.mxu0 %v2387
      %9089 = vmatmul.mubr.bf16.gmra.mxu0 %v2373
      %v9090 = vpop.f32.mrf.mxu0
      %v9091 = vadd.f32 %v9051, %v9090
      %v9092 = vpop.f32.mrf.mxu0
      %v9093 = vpop.f32.mrf.mxu0
      %v9094 = vpop.f32.mrf.mxu0
      %9095 = vdwg.mxu0
      %9096 = vmatprep.subr.bf16.mxu0 0
      %9097 = vmatpush1.bf16.msra.mxu0 %v6407
      %9098 = vmatprep.subr.bf16.mxu0 0
      %9099 = vmatpush1.bf16.msra.mxu0 %v6406
      %9100 = vmatprep.subr.bf16.mxu0 0
      %9101 = vmatpush1.bf16.msra.mxu0 %v6405
      %9102 = vmatprep.subr.bf16.mxu0 0
      %9103 = vmatpush1.bf16.msra.mxu0 %v6404
      %9104 = vmatprep.subr.bf16.mxu0 0
      %9105 = vmatpush1.bf16.msra.mxu0 %v6403
      %9106 = vmatprep.subr.bf16.mxu0 0
      %9107 = vmatpush1.bf16.msra.mxu0 %v6402
      %9108 = vmatprep.subr.bf16.mxu0 0
      %9109 = vmatpush1.bf16.msra.mxu0 %v6401
      %9110 = vmatprep.subr.bf16.mxu0 0
      %9111 = vmatpush1.bf16.msra.mxu0 %v6400
      %9112 = vmatprep.subr.bf16.mxu0 0
      %9113 = vmatpush2.bf16.msra.mxu0 %v6415
      %9114 = vmatprep.subr.bf16.mxu0 0
      %9115 = vmatpush2.bf16.msra.mxu0 %v6414
      %9116 = vmatprep.subr.bf16.mxu0 0
      %9117 = vmatpush2.bf16.msra.mxu0 %v6413
      %9118 = vmatprep.subr.bf16.mxu0 0
      %9119 = vmatpush2.bf16.msra.mxu0 %v6412
      %9120 = vmatprep.subr.bf16.mxu0 0
      %9121 = vmatpush2.bf16.msra.mxu0 %v6411
      %9122 = vmatprep.subr.bf16.mxu0 0
      %9123 = vmatpush2.bf16.msra.mxu0 %v6410
      %9124 = vmatprep.subr.bf16.mxu0 0
      %9125 = vmatpush2.bf16.msra.mxu0 %v6409
      %9126 = vmatprep.subr.bf16.mxu0 0
      %9127 = vmatpush2.bf16.msra.mxu0 %v6408
      %9128 = vmatprep.mubr.bf16.mxu0 %v2391
      %9129 = vmatmul.mubr.bf16.gmra.mxu0 %v2389
      %v9130 = vpop.f32.mrf.mxu0
      %v9131 = vadd.f32 %v9091, %v9130
      %v9132 = vpop.f32.mrf.mxu0
      %v9133 = vpop.f32.mrf.mxu0
      %v9134 = vpop.f32.mrf.mxu0
      %9135 = vdwg.mxu0
      %9136 = vmatprep.subr.bf16.mxu0 0
      %9137 = vmatpush1.bf16.msra.mxu0 %v6423
      %9138 = vmatprep.subr.bf16.mxu0 0
      %9139 = vmatpush1.bf16.msra.mxu0 %v6422
      %9140 = vmatprep.subr.bf16.mxu0 0
      %9141 = vmatpush1.bf16.msra.mxu0 %v6421
      %9142 = vmatprep.subr.bf16.mxu0 0
      %9143 = vmatpush1.bf16.msra.mxu0 %v6420
      %9144 = vmatprep.subr.bf16.mxu0 0
      %9145 = vmatpush1.bf16.msra.mxu0 %v6419
      %9146 = vmatprep.subr.bf16.mxu0 0
      %9147 = vmatpush1.bf16.msra.mxu0 %v6418
      %9148 = vmatprep.subr.bf16.mxu0 0
      %9149 = vmatpush1.bf16.msra.mxu0 %v6417
      %9150 = vmatprep.subr.bf16.mxu0 0
      %9151 = vmatpush1.bf16.msra.mxu0 %v6416
      %9152 = vmatprep.subr.bf16.mxu0 0
      %9153 = vmatpush2.bf16.msra.mxu0 %v6431
      %9154 = vmatprep.subr.bf16.mxu0 0
      %9155 = vmatpush2.bf16.msra.mxu0 %v6430
      %9156 = vmatprep.subr.bf16.mxu0 0
      %9157 = vmatpush2.bf16.msra.mxu0 %v6429
      %9158 = vmatprep.subr.bf16.mxu0 0
      %9159 = vmatpush2.bf16.msra.mxu0 %v6428
      %9160 = vmatprep.subr.bf16.mxu0 0
      %9161 = vmatpush2.bf16.msra.mxu0 %v6427
      %9162 = vmatprep.subr.bf16.mxu0 0
      %9163 = vmatpush2.bf16.msra.mxu0 %v6426
      %9164 = vmatprep.subr.bf16.mxu0 0
      %9165 = vmatpush2.bf16.msra.mxu0 %v6425
      %9166 = vmatprep.subr.bf16.mxu0 0
      %9167 = vmatpush2.bf16.msra.mxu0 %v6424
      %9168 = vmatprep.mubr.bf16.mxu0 %v2413
      %9169 = vmatmul.mubr.bf16.gmra.mxu0 %v2406
      %v9170 = vpop.f32.mrf.mxu0
      %v9171 = vadd.f32 %v9131, %v9170
      %v9172 = vpop.f32.mrf.mxu0
      %v9173 = vpop.f32.mrf.mxu0
      %v9174 = vpop.f32.mrf.mxu0
      %9175 = vdwg.mxu0
      %v9176 = vadd.f32 %v209, %v9171
      %9177 = vst [vmem:[#allocation2] sm:$0x3] %v9176
      %p9178 = scmp.eq.s32.totalorder %s18, 7
      // Predicated region
      $region33: #{simple_cnn_forward.4} parent=27 // pred_check
        %p9179 = pneg %p9178
      $region34: #{simple_cnn_forward.4} parent=27 // pred_check_branch
        %9181 = sbr.rel (%p9179) target = $region36
      $region35: #{simple_cnn_forward.4} parent=27 // pred_region
        %v9182 = vld [vmem:[#allocation2] sm:$0x3]
        %9183 = vst [vmem:[%s202] sm:$0x3] %v9182
      $region36: #{simple_cnn_forward.4} parent=27 // pred_fallthru
        _
      %p9184 = scmp.lt.s32.totalorder %s17, 1
      %s9185 = scalar_select %p9184, %s17, 1
      %s9186 = smul.addr %s9185, 2
      %s9187 = scalar_lea.vmem %s2, %s9186
      // Predicated region
      $region37: #{simple_cnn_forward.4} parent=27 // pred_check
        %p9188 = pneg %p103
      $region38: #{simple_cnn_forward.4} parent=27 // pred_check_branch
        %9190 = sbr.rel (%p9188) target = $region40
      $region39: #{simple_cnn_forward.4} parent=27 // pred_region
        _
      $region40: #{simple_cnn_forward.4} parent=27 // pred_fallthru
        _
    $region28: #{simple_cnn_forward.4} parent=5 // pred_fallthru
      _
    %p9191 = scmp.le.s32.totalorder 2, %s8
    // Predicated region
    $region41: #{simple_cnn_forward.4} parent=5 // pred_check
      %p9192 = pneg %p9191
    $region42: #{simple_cnn_forward.4} parent=5 // pred_check_branch
      %9194 = sbr.rel (%p9192) target = $region44
    $region43: #{simple_cnn_forward.4} parent=5 // pred_region
      %s9195 = ssub.s32 %s8, 2
      // Predicated region
      $region45: #{simple_cnn_forward.4} parent=43 // pred_check
        %p9196 = pneg %p109
      $region46: #{simple_cnn_forward.4} parent=43 // pred_check_branch
        %9198 = sbr.rel (%p9196) target = $region48
      $region47: #{simple_cnn_forward.4} parent=43 // pred_region
        %p9199 = scmp.lt.s32.totalorder %s19, 1
        %s9200 = scalar_select %p9199, %s19, 1
        %s9201 = smul.addr %s9200, 2
        %s9202 = scalar_lea.vmem %s2, %s9201
      $region48: #{simple_cnn_forward.4} parent=43 // pred_fallthru
        _
    $region44: #{simple_cnn_forward.4} parent=5 // pred_fallthru
      _
  $region6: #{simple_cnn_forward.4} parent=0 // loop_footer
    %s12 = sadd.s32 1, %s8
  $region7: #{simple_cnn_forward.4} parent=0 // loop_footer_branch
    %7 = sbr.rel target = $region3
  $region8: #{simple_cnn_forward.4} parent=0 // loop_exit
    _

</llo_original>
